<compile_context>
chip_gen: v7x
topology: tpu7x:2x2x1
jax: 0.10.0
libtpu: 0.0.40
codegen_flags: <defaults>
</compile_context>

<pallas_src>
import functools

import jax
import jax.numpy as jnp
from jax.experimental import pallas as pl
from jax.experimental.pallas import tpu as pltpu


# ----------------------------------------------------------------------------
# Fused BasicBlock kernel
# ----------------------------------------------------------------------------
def _conv3x3_strip(src_ref, w_ref, r0, rb, W, fused):
    """3x3 SAME-conv contribution for output rows [r0, r0+rb).

    src_ref: (H+2, W+2, Cs) padded activations in VMEM (compute dtype)
    w_ref:   (3, 3*Cs, Cd)  weights laid out (kh, kw-major / channel-minor, Cd)
    returns: (rb*W, Cd) float32 accumulator (register/VMEM-resident per strip)
    """
    Cs = src_ref.shape[-1]
    Cd = w_ref.shape[-1]
    acc = jnp.zeros((rb * W, Cd), jnp.float32)
    for kh in range(3):
        rows = src_ref[r0 + kh:r0 + kh + rb, :, :]               # (rb, W+2, Cs)
        if fused:
            # Lane-aligned only when Cs % 128 == 0: one matmul with K = 3*Cs.
            strip = jnp.concatenate(
                [rows[:, 0:W, :], rows[:, 1:W + 1, :], rows[:, 2:W + 2, :]],
                axis=-1).reshape(rb * W, 3 * Cs)
            acc = acc + jnp.dot(strip, w_ref[kh],
                                preferred_element_type=jnp.float32)
        else:
            # 9 matmuls with K = Cs: no lane-offset concatenation (better for
            # Cs = 64-style ResNet layers that are not 128-multiples).
            for kw in range(3):
                tap = rows[:, kw:kw + W, :].reshape(rb * W, Cs)
                acc = acc + jnp.dot(tap, w_ref[kh, kw * Cs:(kw + 1) * Cs, :],
                                    preferred_element_type=jnp.float32)
    return acc


def basic_block_kernel(x_ref, w1_ref, b1_ref, w2_ref, b2_ref, *rest,
                       has_downsample, row_block, fused1, fused2):
    """Fully fused BasicBlock for one batch element.

    x_ref:    (1, H, W, Cin)       input tile (compute dtype)
    w1_ref:   (3, 3*Cin, Cout)     conv1 weights, BN scale pre-folded
    w2_ref:   (3, 3*Cout, Cout)    conv2 weights, BN scale pre-folded
    b1/b2:    (1, Cout) f32        folded BN biases
    [wd_ref (Cin, Cout), bd_ref (1, Cout)]  optional 1x1 downsample branch
    out_ref:  (1, Cout, H*W)       lane-dense transposed (= NCHW-flat) output
    xpad_ref: (H+2, W+2, Cin)      SAME-padded input scratch (compute dtype)
    hpad_ref: (H+2, W+2, Cout)     SAME-padded intermediate scratch
    """
    if has_downsample:
        wd_ref, bd_ref, out_ref, xpad_ref, hpad_ref = rest
    else:
        out_ref, xpad_ref, hpad_ref = rest

    _, H, W, Cin = x_ref.shape
    Cout = w1_ref.shape[-1]

    # Zero the padded scratch only on the first grid step: halos stay zero
    # across steps and interiors are fully rewritten every step.
    @pl.when(pl.program_id(0) == 0)
    def _():
        xpad_ref[...] = jnp.zeros_like(xpad_ref)
        hpad_ref[...] = jnp.zeros_like(hpad_ref)

    # Stage this image into the padded interior (compute dtype, no f32 blowup).
    xpad_ref[1:H + 1, 1:W + 1, :] = x_ref[0].astype(xpad_ref.dtype)

    b1 = b1_ref[...]                                   # (1, Cout) f32
    b2 = b2_ref[...]

    # ---- conv1 (3x3, BN scale folded) + bias + ReLU -> hpad interior -------
    for r0 in range(0, H, row_block):
        rb = min(row_block, H - r0)
        acc = _conv3x3_strip(xpad_ref, w1_ref, r0, rb, W, fused1)
        h = jnp.maximum(acc + b1, 0.0)
        hpad_ref[r0 + 1:r0 + 1 + rb, 1:W + 1, :] = (
            h.reshape(rb, W, Cout).astype(hpad_ref.dtype))

    # ---- conv2 (3x3) + bias + residual (+ optional 1x1 downsample) + ReLU --
    for r0 in range(0, H, row_block):
        rb = min(row_block, H - r0)
        acc = _conv3x3_strip(hpad_ref, w2_ref, r0, rb, W, fused2)
        y = acc + b2
        x_strip = xpad_ref[r0 + 1:r0 + 1 + rb, 1:W + 1, :].reshape(rb * W, Cin)
        if has_downsample:
            ident = (jnp.dot(x_strip, wd_ref[...],
                             preferred_element_type=jnp.float32) + bd_ref[...])
        else:
            ident = x_strip.astype(jnp.float32)
        y = jnp.maximum(y + ident, 0.0)
        # Lane-dense transposed store: (Cout, rb*W) at lane offset r0*W.
        out_ref[0, :, r0 * W:(r0 + rb) * W] = y.T.astype(out_ref.dtype)


# ----------------------------------------------------------------------------
# Wrapper (NCHW in / NCHW out, like the PyTorch module)
# ----------------------------------------------------------------------------
def basic_block_forward(x_nchw, params, *, compute_dtype=jnp.float32,
                        row_block=None):
    N, Cin, H, W = x_nchw.shape
    Cout = params["w1"].shape[-1]
    has_downsample = "wd" in params
    out_dtype = x_nchw.dtype

    if row_block is None:
        # Fill the 256-wide MXUs of v6e/v7x: M = row_block*W >= 256.
        row_block = max(8, -(-256 // W))
    row_block = min(row_block, H)

    # NCHW -> NHWC once (input side only; output comes back NCHW-flat).
    x = jnp.transpose(x_nchw, (0, 2, 3, 1)).astype(compute_dtype)

    # Fold BN scale into the conv weights (in f32, then cast); kernel keeps
    # only a bias-add in the epilogue.  K laid out (kw-major, channel-minor).
    w1 = (params["w1"] * params["s1"]).reshape(3, 3 * Cin, Cout).astype(compute_dtype)
    w2 = (params["w2"] * params["s2"]).reshape(3, 3 * Cout, Cout).astype(compute_dtype)
    b1 = params["b1"].reshape(1, Cout).astype(jnp.float32)
    b2 = params["b2"].reshape(1, Cout).astype(jnp.float32)

    args = [x, w1, b1, w2, b2]
    in_specs = [
        pl.BlockSpec((1, H, W, Cin), lambda n: (n, 0, 0, 0)),
        pl.BlockSpec((3, 3 * Cin, Cout), lambda n: (0, 0, 0)),
        pl.BlockSpec((1, Cout), lambda n: (0, 0)),
        pl.BlockSpec((3, 3 * Cout, Cout), lambda n: (0, 0, 0)),
        pl.BlockSpec((1, Cout), lambda n: (0, 0)),
    ]
    if has_downsample:
        wd = (params["wd"] * params["sd"]).astype(compute_dtype)
        bd = params["bd"].reshape(1, Cout).astype(jnp.float32)
        args += [wd, bd]
        in_specs += [pl.BlockSpec((Cin, Cout), lambda n: (0, 0)),
                     pl.BlockSpec((1, Cout), lambda n: (0, 0))]

    kernel = functools.partial(
        basic_block_kernel, has_downsample=has_downsample, row_block=row_block,
        fused1=(Cin % 128 == 0), fused2=(Cout % 128 == 0))

    # VMEM budget: double-buffered blocks + padded scratch + margin, clamped
    # generation-aware (v7x: 64 MiB/TC; v5e/v6e: 128 MiB).
    bpe = jnp.dtype(compute_dtype).itemsize
    block_bytes = (H * W * Cin * bpe
                   + H * W * Cout * jnp.dtype(out_dtype).itemsize
                   + (9 * Cin * Cout + 9 * Cout * Cout + Cin * Cout) * bpe
                   + 4 * Cout * 4)
    scratch_bytes = (H + 2) * (W + 2) * (Cin + Cout) * bpe
    requested = 2 * block_bytes + scratch_bytes + (8 << 20)
    try:
        cap = int(getattr(pltpu.get_tpu_info(), "vmem_capacity_bytes", 0)) or None
    except Exception:  # query unavailable -> conservative ceiling
        cap = None
    ceiling = (cap - (16 << 20)) if cap else (48 << 20)
    vmem_limit = int(min(max(requested, 32 << 20), max(ceiling, 32 << 20)))

    out_flat = pl.pallas_call(
        kernel,
        out_shape=jax.ShapeDtypeStruct((N, Cout, H * W), out_dtype),
        grid=(N,),
        in_specs=in_specs,
        out_specs=pl.BlockSpec((1, Cout, H * W), lambda n: (n, 0, 0)),
        scratch_shapes=[
            pltpu.VMEM((H + 2, W + 2, Cin), compute_dtype),
            pltpu.VMEM((H + 2, W + 2, Cout), compute_dtype),
        ],
        compiler_params=pltpu.CompilerParams(
            # "arbitrary": the once-only scratch zero-init at program_id==0
            # requires sequential grid execution on a single core.
            dimension_semantics=("arbitrary",),
            vmem_limit_bytes=vmem_limit),
    )(*args)

    # (N, Cout, H*W) is already flattened NCHW: reshape only, no transpose.
    return out_flat.reshape(N, Cout, H, W)


# ----------------------------------------------------------------------------
# Deterministic parameters (BN folded into scale/bias)
# ----------------------------------------------------------------------------
def fold_bn(key, c):
    kg, kb, km, kv = jax.random.split(key, 4)
    gamma = 1.0 + 0.1 * jax.random.normal(kg, (c,), jnp.float32)
    beta = 0.1 * jax.random.normal(kb, (c,), jnp.float32)
    mean = 0.1 * jax.random.normal(km, (c,), jnp.float32)
    var = 1.0 + 0.1 * jax.random.uniform(kv, (c,), jnp.float32)
    scale = gamma * jax.lax.rsqrt(var + 1e-5)
    return scale, beta - mean * scale


def make_params(key, in_ch, out_ch):
    keys = jax.random.split(key, 6)
    params = {
        "w1": 0.1 * jax.random.normal(keys[0], (3, 3, in_ch, out_ch), jnp.float32),
        "w2": 0.1 * jax.random.normal(keys[1], (3, 3, out_ch, out_ch), jnp.float32),
    }
    params["s1"], params["b1"] = fold_bn(keys[2], out_ch)
    params["s2"], params["b2"] = fold_bn(keys[3], out_ch)
    if in_ch != out_ch:
        params["wd"] = 0.1 * jax.random.normal(keys[4], (in_ch, out_ch), jnp.float32)
        params["sd"], params["bd"] = fold_bn(keys[5], out_ch)
    return params


# ----------------------------------------------------------------------------
# Pure-JAX reference (BN applied un-folded: scale after the conv)
# ----------------------------------------------------------------------------
def ref_conv_bn(x, w, scale, bias, relu):
    y = jax.lax.conv_general_dilated(
        x, w, (1, 1), "SAME", dimension_numbers=("NHWC", "HWIO", "NHWC"))
    y = y * scale + bias
    return jnp.maximum(y, 0.0) if relu else y


def ref_basic_block(x_nchw, params):
    x = jnp.transpose(x_nchw, (0, 2, 3, 1))
    identity = x
    h = ref_conv_bn(x, params["w1"], params["s1"], params["b1"], True)
    if "wd" in params:
        identity = ref_conv_bn(
            identity, params["wd"].reshape(1, 1, *params["wd"].shape),
            params["sd"], params["bd"], False)
    y = ref_conv_bn(h, params["w2"], params["s2"], params["b2"], False)
    y = jnp.maximum(y + identity, 0.0)
    return jnp.transpose(y, (0, 3, 1, 2))


if __name__ == "__main__":
    key = jax.random.PRNGKey(0)
    k_x, k_p, k_x2, k_p2, k_x3, k_p3 = jax.random.split(key, 6)

    # ---- config 1: in_ch != out_ch (1x1 downsample branch active) ----------
    N, in_ch, out_ch, H, W = 2, 4, 8, 16, 16
    x = jax.random.normal(k_x, (N, in_ch, H, W), jnp.float32)          # NCHW
    params = make_params(k_p, in_ch, out_ch)

    out = jax.block_until_ready(basic_block_forward(x, params))
    ref = ref_basic_block(x, params)
    assert out.shape == (N, out_ch, H, W)
    assert jnp.allclose(out, ref, atol=1e-4, rtol=1e-4), (
        f"f32 max abs err {jnp.max(jnp.abs(out - ref))}")

    # bf16 MXU path (recommended on v5e/v6e/v7x): f32 accumulation + epilogue.
    out_bf = jax.block_until_ready(
        basic_block_forward(x, params, compute_dtype=jnp.bfloat16))
    assert jnp.max(jnp.abs(out_bf - ref)) < 5e-2, (
        f"bf16 max abs err {jnp.max(jnp.abs(out_bf - ref))}")

    # ---- config 2: in_ch == out_ch (identity residual, no downsample) ------
    x2 = jax.random.normal(k_x2, (N, out_ch, H, W), jnp.float32)
    params2 = make_params(k_p2, out_ch, out_ch)
    out2 = jax.block_until_ready(basic_block_forward(x2, params2))
    ref2 = ref_basic_block(x2, params2)
    assert jnp.allclose(out2, ref2, atol=1e-4, rtol=1e-4), (
        f"identity-path max abs err {jnp.max(jnp.abs(out2 - ref2))}")

    # ---- config 3: multiple row strips including a ragged tail -------------
    x3 = jax.random.normal(k_x3, (1, out_ch, 12, 16), jnp.float32)
    params3 = make_params(k_p3, out_ch, out_ch)
    out3 = jax.block_until_ready(
        basic_block_forward(x3, params3, row_block=8))
    ref3 = ref_basic_block(x3, params3)
    assert jnp.allclose(out3, ref3, atol=1e-4, rtol=1e-4), (
        f"multi-strip max abs err {jnp.max(jnp.abs(out3 - ref3))}")

    print("KERNEL_OK")
</pallas_src>

<mosaic_0001>
module attributes {stable_mosaic.version = 11 : i64} {
  func.func @basic_block_kernel(%arg0: i32, %arg1: memref<1x16x16x4xf32, #tpu.memory_space<vmem>>, %arg2: memref<3x12x8xf32, #tpu.memory_space<vmem>>, %arg3: memref<1x8xf32, #tpu.memory_space<vmem>>, %arg4: memref<3x24x8xf32, #tpu.memory_space<vmem>>, %arg5: memref<1x8xf32, #tpu.memory_space<vmem>>, %arg6: memref<4x8xf32, #tpu.memory_space<vmem>>, %arg7: memref<1x8xf32, #tpu.memory_space<vmem>>, %arg8: memref<1x8x256xf32, #tpu.memory_space<vmem>>, %arg9: memref<18x18x4xf32, #tpu.memory_space<vmem>>, %arg10: memref<18x18x8xf32, #tpu.memory_space<vmem>>) attributes {dimension_semantics = [#tpu.dimension_semantics<arbitrary>], iteration_bounds = array<i64: 2>, scalar_prefetch = 0 : i64, scratch_operands = 2 : i64, tpu.core_type = #tpu.core_type<tc>, window_params = [{transform_indices = @transform_0, window_bounds = array<i64: 1, 16, 16, 4>}, {pipeline_mode = #tpu.pipeline_mode<synchronous>, transform_indices = @transform_1, window_bounds = array<i64: 3, 12, 8>}, {pipeline_mode = #tpu.pipeline_mode<synchronous>, transform_indices = @transform_2, window_bounds = array<i64: 1, 8>}, {pipeline_mode = #tpu.pipeline_mode<synchronous>, transform_indices = @transform_3, window_bounds = array<i64: 3, 24, 8>}, {pipeline_mode = #tpu.pipeline_mode<synchronous>, transform_indices = @transform_4, window_bounds = array<i64: 1, 8>}, {pipeline_mode = #tpu.pipeline_mode<synchronous>, transform_indices = @transform_5, window_bounds = array<i64: 4, 8>}, {pipeline_mode = #tpu.pipeline_mode<synchronous>, transform_indices = @transform_6, window_bounds = array<i64: 1, 8>}, {transform_indices = @transform_7, window_bounds = array<i64: 1, 8, 256>}]} {
    %c0_i32 = arith.constant 0 : i32
    %0 = arith.cmpi eq, %arg0, %c0_i32 : i32
    %1 = arith.extui %0 : i1 to i32
    %c0_i32_0 = arith.constant 0 : i32
    %2 = arith.cmpi ne, %1, %c0_i32_0 : i32
    scf.if %2 {
      %cst_113 = arith.constant 0.000000e+00 : f32
      %146 = vector.broadcast %cst_113 : f32 to vector<18x18x4xf32>
      %c0_114 = arith.constant 0 : index
      %c0_115 = arith.constant 0 : index
      %c0_116 = arith.constant 0 : index
      %147 = vector.load %arg9[%c0_114, %c0_115, %c0_116] : memref<18x18x4xf32, #tpu.memory_space<vmem>>, vector<18x18x4xf32>
      tpu.vector_store %arg9[%c0_114, %c0_115, %c0_116], %146 {strides = array<i32>} : memref<18x18x4xf32, #tpu.memory_space<vmem>>, vector<18x18x4xf32>,
      %cst_117 = arith.constant 0.000000e+00 : f32
      %148 = vector.broadcast %cst_117 : f32 to vector<18x18x8xf32>
      %c0_118 = arith.constant 0 : index
      %c0_119 = arith.constant 0 : index
      %c0_120 = arith.constant 0 : index
      %149 = vector.load %arg10[%c0_118, %c0_119, %c0_120] : memref<18x18x8xf32, #tpu.memory_space<vmem>>, vector<18x18x8xf32>
      tpu.vector_store %arg10[%c0_118, %c0_119, %c0_120], %148 {strides = array<i32>} : memref<18x18x8xf32, #tpu.memory_space<vmem>>, vector<18x18x8xf32>,
    } else {
    }
    %c0 = arith.constant 0 : index
    %c0_1 = arith.constant 0 : index
    %c0_2 = arith.constant 0 : index
    %c0_3 = arith.constant 0 : index
    %3 = vector.load %arg1[%c0, %c0_1, %c0_2, %c0_3] : memref<1x16x16x4xf32, #tpu.memory_space<vmem>>, vector<1x16x16x4xf32>
    %4 = vector.shape_cast %3 : vector<1x16x16x4xf32> to vector<16x16x4xf32>
    %c1 = arith.constant 1 : index
    %c1_4 = arith.constant 1 : index
    %c0_5 = arith.constant 0 : index
    %5 = vector.load %arg9[%c1, %c1_4, %c0_5] : memref<18x18x4xf32, #tpu.memory_space<vmem>>, vector<16x16x4xf32>
    tpu.vector_store %arg9[%c1, %c1_4, %c0_5], %4 {strides = array<i32>} : memref<18x18x4xf32, #tpu.memory_space<vmem>>, vector<16x16x4xf32>,
    %c0_6 = arith.constant 0 : index
    %c0_7 = arith.constant 0 : index
    %6 = vector.load %arg3[%c0_6, %c0_7] : memref<1x8xf32, #tpu.memory_space<vmem>>, vector<1x8xf32>
    %c0_8 = arith.constant 0 : index
    %c0_9 = arith.constant 0 : index
    %7 = vector.load %arg5[%c0_8, %c0_9] : memref<1x8xf32, #tpu.memory_space<vmem>>, vector<1x8xf32>
    %cst = arith.constant 0.000000e+00 : f32
    %8 = vector.broadcast %cst : f32 to vector<256x8xf32>
    %c0_10 = arith.constant 0 : index
    %c0_11 = arith.constant 0 : index
    %c0_12 = arith.constant 0 : index
    %9 = vector.load %arg9[%c0_10, %c0_11, %c0_12] : memref<18x18x4xf32, #tpu.memory_space<vmem>>, vector<16x18x4xf32>
    %10 = vector.extract_strided_slice %9 {offsets = [0, 0, 0], sizes = [16, 16, 4], strides = [1, 1, 1]} : vector<16x18x4xf32> to vector<16x16x4xf32>
    %11 = vector.shape_cast %10 : vector<16x16x4xf32> to vector<256x4xf32>
    %c0_13 = arith.constant 0 : index
    %c0_14 = arith.constant 0 : index
    %c0_15 = arith.constant 0 : index
    %12 = vector.load %arg2[%c0_13, %c0_14, %c0_15] : memref<3x12x8xf32, #tpu.memory_space<vmem>>, vector<1x4x8xf32>
    %13 = vector.shape_cast %12 : vector<1x4x8xf32> to vector<4x8xf32>
    %cst_16 = arith.constant dense<0.000000e+00> : vector<256x8xf32>
    %14 = tpu.matmul %11, %13, %cst_16 {dimension_numbers = #tpu.dot_dimension_numbers<[1], [0], [0], [1], [0, 0, 1, 1], [], []>} : vector<256x4xf32>, vector<4x8xf32>, vector<256x8xf32> -> vector<256x8xf32>
    %15 = arith.addf %8, %14 : vector<256x8xf32>
    %16 = vector.extract_strided_slice %9 {offsets = [0, 1, 0], sizes = [16, 16, 4], strides = [1, 1, 1]} : vector<16x18x4xf32> to vector<16x16x4xf32>
    %17 = vector.shape_cast %16 : vector<16x16x4xf32> to vector<256x4xf32>
    %c0_17 = arith.constant 0 : index
    %c4 = arith.constant 4 : index
    %c0_18 = arith.constant 0 : index
    %18 = vector.load %arg2[%c0_17, %c4, %c0_18] : memref<3x12x8xf32, #tpu.memory_space<vmem>>, vector<1x4x8xf32>
    %19 = vector.shape_cast %18 : vector<1x4x8xf32> to vector<4x8xf32>
    %cst_19 = arith.constant dense<0.000000e+00> : vector<256x8xf32>
    %20 = tpu.matmul %17, %19, %cst_19 {dimension_numbers = #tpu.dot_dimension_numbers<[1], [0], [0], [1], [0, 0, 1, 1], [], []>} : vector<256x4xf32>, vector<4x8xf32>, vector<256x8xf32> -> vector<256x8xf32>
    %21 = arith.addf %15, %20 : vector<256x8xf32>
    %22 = vector.extract_strided_slice %9 {offsets = [0, 2, 0], sizes = [16, 16, 4], strides = [1, 1, 1]} : vector<16x18x4xf32> to vector<16x16x4xf32>
    %23 = vector.shape_cast %22 : vector<16x16x4xf32> to vector<256x4xf32>
    %c0_20 = arith.constant 0 : index
    %c8 = arith.constant 8 : index
    %c0_21 = arith.constant 0 : index
    %24 = vector.load %arg2[%c0_20, %c8, %c0_21] : memref<3x12x8xf32, #tpu.memory_space<vmem>>, vector<1x4x8xf32>
    %25 = vector.shape_cast %24 : vector<1x4x8xf32> to vector<4x8xf32>
    %cst_22 = arith.constant dense<0.000000e+00> : vector<256x8xf32>
    %26 = tpu.matmul %23, %25, %cst_22 {dimension_numbers = #tpu.dot_dimension_numbers<[1], [0], [0], [1], [0, 0, 1, 1], [], []>} : vector<256x4xf32>, vector<4x8xf32>, vector<256x8xf32> -> vector<256x8xf32>
    %27 = arith.addf %21, %26 : vector<256x8xf32>
    %c1_23 = arith.constant 1 : index
    %c0_24 = arith.constant 0 : index
    %c0_25 = arith.constant 0 : index
    %28 = vector.load %arg9[%c1_23, %c0_24, %c0_25] : memref<18x18x4xf32, #tpu.memory_space<vmem>>, vector<16x18x4xf32>
    %29 = vector.extract_strided_slice %28 {offsets = [0, 0, 0], sizes = [16, 16, 4], strides = [1, 1, 1]} : vector<16x18x4xf32> to vector<16x16x4xf32>
    %30 = vector.shape_cast %29 : vector<16x16x4xf32> to vector<256x4xf32>
    %c1_26 = arith.constant 1 : index
    %c0_27 = arith.constant 0 : index
    %c0_28 = arith.constant 0 : index
    %31 = vector.load %arg2[%c1_26, %c0_27, %c0_28] : memref<3x12x8xf32, #tpu.memory_space<vmem>>, vector<1x4x8xf32>
    %32 = vector.shape_cast %31 : vector<1x4x8xf32> to vector<4x8xf32>
    %cst_29 = arith.constant dense<0.000000e+00> : vector<256x8xf32>
    %33 = tpu.matmul %30, %32, %cst_29 {dimension_numbers = #tpu.dot_dimension_numbers<[1], [0], [0], [1], [0, 0, 1, 1], [], []>} : vector<256x4xf32>, vector<4x8xf32>, vector<256x8xf32> -> vector<256x8xf32>
    %34 = arith.addf %27, %33 : vector<256x8xf32>
    %35 = vector.extract_strided_slice %28 {offsets = [0, 1, 0], sizes = [16, 16, 4], strides = [1, 1, 1]} : vector<16x18x4xf32> to vector<16x16x4xf32>
    %36 = vector.shape_cast %35 : vector<16x16x4xf32> to vector<256x4xf32>
    %c1_30 = arith.constant 1 : index
    %c4_31 = arith.constant 4 : index
    %c0_32 = arith.constant 0 : index
    %37 = vector.load %arg2[%c1_30, %c4_31, %c0_32] : memref<3x12x8xf32, #tpu.memory_space<vmem>>, vector<1x4x8xf32>
    %38 = vector.shape_cast %37 : vector<1x4x8xf32> to vector<4x8xf32>
    %cst_33 = arith.constant dense<0.000000e+00> : vector<256x8xf32>
    %39 = tpu.matmul %36, %38, %cst_33 {dimension_numbers = #tpu.dot_dimension_numbers<[1], [0], [0], [1], [0, 0, 1, 1], [], []>} : vector<256x4xf32>, vector<4x8xf32>, vector<256x8xf32> -> vector<256x8xf32>
    %40 = arith.addf %34, %39 : vector<256x8xf32>
    %41 = vector.extract_strided_slice %28 {offsets = [0, 2, 0], sizes = [16, 16, 4], strides = [1, 1, 1]} : vector<16x18x4xf32> to vector<16x16x4xf32>
    %42 = vector.shape_cast %41 : vector<16x16x4xf32> to vector<256x4xf32>
    %c1_34 = arith.constant 1 : index
    %c8_35 = arith.constant 8 : index
    %c0_36 = arith.constant 0 : index
    %43 = vector.load %arg2[%c1_34, %c8_35, %c0_36] : memref<3x12x8xf32, #tpu.memory_space<vmem>>, vector<1x4x8xf32>
    %44 = vector.shape_cast %43 : vector<1x4x8xf32> to vector<4x8xf32>
    %cst_37 = arith.constant dense<0.000000e+00> : vector<256x8xf32>
    %45 = tpu.matmul %42, %44, %cst_37 {dimension_numbers = #tpu.dot_dimension_numbers<[1], [0], [0], [1], [0, 0, 1, 1], [], []>} : vector<256x4xf32>, vector<4x8xf32>, vector<256x8xf32> -> vector<256x8xf32>
    %46 = arith.addf %40, %45 : vector<256x8xf32>
    %c2 = arith.constant 2 : index
    %c0_38 = arith.constant 0 : index
    %c0_39 = arith.constant 0 : index
    %47 = vector.load %arg9[%c2, %c0_38, %c0_39] : memref<18x18x4xf32, #tpu.memory_space<vmem>>, vector<16x18x4xf32>
    %48 = vector.extract_strided_slice %47 {offsets = [0, 0, 0], sizes = [16, 16, 4], strides = [1, 1, 1]} : vector<16x18x4xf32> to vector<16x16x4xf32>
    %49 = vector.shape_cast %48 : vector<16x16x4xf32> to vector<256x4xf32>
    %c2_40 = arith.constant 2 : index
    %c0_41 = arith.constant 0 : index
    %c0_42 = arith.constant 0 : index
    %50 = vector.load %arg2[%c2_40, %c0_41, %c0_42] : memref<3x12x8xf32, #tpu.memory_space<vmem>>, vector<1x4x8xf32>
    %51 = vector.shape_cast %50 : vector<1x4x8xf32> to vector<4x8xf32>
    %cst_43 = arith.constant dense<0.000000e+00> : vector<256x8xf32>
    %52 = tpu.matmul %49, %51, %cst_43 {dimension_numbers = #tpu.dot_dimension_numbers<[1], [0], [0], [1], [0, 0, 1, 1], [], []>} : vector<256x4xf32>, vector<4x8xf32>, vector<256x8xf32> -> vector<256x8xf32>
    %53 = arith.addf %46, %52 : vector<256x8xf32>
    %54 = vector.extract_strided_slice %47 {offsets = [0, 1, 0], sizes = [16, 16, 4], strides = [1, 1, 1]} : vector<16x18x4xf32> to vector<16x16x4xf32>
    %55 = vector.shape_cast %54 : vector<16x16x4xf32> to vector<256x4xf32>
    %c2_44 = arith.constant 2 : index
    %c4_45 = arith.constant 4 : index
    %c0_46 = arith.constant 0 : index
    %56 = vector.load %arg2[%c2_44, %c4_45, %c0_46] : memref<3x12x8xf32, #tpu.memory_space<vmem>>, vector<1x4x8xf32>
    %57 = vector.shape_cast %56 : vector<1x4x8xf32> to vector<4x8xf32>
    %cst_47 = arith.constant dense<0.000000e+00> : vector<256x8xf32>
    %58 = tpu.matmul %55, %57, %cst_47 {dimension_numbers = #tpu.dot_dimension_numbers<[1], [0], [0], [1], [0, 0, 1, 1], [], []>} : vector<256x4xf32>, vector<4x8xf32>, vector<256x8xf32> -> vector<256x8xf32>
    %59 = arith.addf %53, %58 : vector<256x8xf32>
    %60 = vector.extract_strided_slice %47 {offsets = [0, 2, 0], sizes = [16, 16, 4], strides = [1, 1, 1]} : vector<16x18x4xf32> to vector<16x16x4xf32>
    %61 = vector.shape_cast %60 : vector<16x16x4xf32> to vector<256x4xf32>
    %c2_48 = arith.constant 2 : index
    %c8_49 = arith.constant 8 : index
    %c0_50 = arith.constant 0 : index
    %62 = vector.load %arg2[%c2_48, %c8_49, %c0_50] : memref<3x12x8xf32, #tpu.memory_space<vmem>>, vector<1x4x8xf32>
    %63 = vector.shape_cast %62 : vector<1x4x8xf32> to vector<4x8xf32>
    %cst_51 = arith.constant dense<0.000000e+00> : vector<256x8xf32>
    %64 = tpu.matmul %61, %63, %cst_51 {dimension_numbers = #tpu.dot_dimension_numbers<[1], [0], [0], [1], [0, 0, 1, 1], [], []>} : vector<256x4xf32>, vector<4x8xf32>, vector<256x8xf32> -> vector<256x8xf32>
    %65 = arith.addf %59, %64 : vector<256x8xf32>
    %66 = vector.broadcast %6 : vector<1x8xf32> to vector<256x8xf32>
    %67 = arith.addf %65, %66 : vector<256x8xf32>
    %cst_52 = arith.constant 0.000000e+00 : f32
    %68 = vector.broadcast %cst_52 : f32 to vector<256x8xf32>
    %69 = arith.maximumf %67, %68 : vector<256x8xf32>
    %70 = vector.shape_cast %69 : vector<256x8xf32> to vector<16x16x8xf32>
    %c1_53 = arith.constant 1 : index
    %c1_54 = arith.constant 1 : index
    %c0_55 = arith.constant 0 : index
    %71 = vector.load %arg10[%c1_53, %c1_54, %c0_55] : memref<18x18x8xf32, #tpu.memory_space<vmem>>, vector<16x16x8xf32>
    tpu.vector_store %arg10[%c1_53, %c1_54, %c0_55], %70 {strides = array<i32>} : memref<18x18x8xf32, #tpu.memory_space<vmem>>, vector<16x16x8xf32>,
    %cst_56 = arith.constant 0.000000e+00 : f32
    %72 = vector.broadcast %cst_56 : f32 to vector<256x8xf32>
    %c0_57 = arith.constant 0 : index
    %c0_58 = arith.constant 0 : index
    %c0_59 = arith.constant 0 : index
    %73 = vector.load %arg10[%c0_57, %c0_58, %c0_59] : memref<18x18x8xf32, #tpu.memory_space<vmem>>, vector<16x18x8xf32>
    %74 = vector.extract_strided_slice %73 {offsets = [0, 0, 0], sizes = [16, 16, 8], strides = [1, 1, 1]} : vector<16x18x8xf32> to vector<16x16x8xf32>
    %75 = vector.shape_cast %74 : vector<16x16x8xf32> to vector<256x8xf32>
    %c0_60 = arith.constant 0 : index
    %c0_61 = arith.constant 0 : index
    %c0_62 = arith.constant 0 : index
    %76 = vector.load %arg4[%c0_60, %c0_61, %c0_62] : memref<3x24x8xf32, #tpu.memory_space<vmem>>, vector<1x8x8xf32>
    %77 = vector.shape_cast %76 : vector<1x8x8xf32> to vector<8x8xf32>
    %cst_63 = arith.constant dense<0.000000e+00> : vector<256x8xf32>
    %78 = tpu.matmul %75, %77, %cst_63 {dimension_numbers = #tpu.dot_dimension_numbers<[1], [0], [0], [1], [0, 0, 1, 1], [], []>} : vector<256x8xf32>, vector<8x8xf32>, vector<256x8xf32> -> vector<256x8xf32>
    %79 = arith.addf %72, %78 : vector<256x8xf32>
    %80 = vector.extract_strided_slice %73 {offsets = [0, 1, 0], sizes = [16, 16, 8], strides = [1, 1, 1]} : vector<16x18x8xf32> to vector<16x16x8xf32>
    %81 = vector.shape_cast %80 : vector<16x16x8xf32> to vector<256x8xf32>
    %c0_64 = arith.constant 0 : index
    %c8_65 = arith.constant 8 : index
    %c0_66 = arith.constant 0 : index
    %82 = vector.load %arg4[%c0_64, %c8_65, %c0_66] : memref<3x24x8xf32, #tpu.memory_space<vmem>>, vector<1x8x8xf32>
    %83 = vector.shape_cast %82 : vector<1x8x8xf32> to vector<8x8xf32>
    %cst_67 = arith.constant dense<0.000000e+00> : vector<256x8xf32>
    %84 = tpu.matmul %81, %83, %cst_67 {dimension_numbers = #tpu.dot_dimension_numbers<[1], [0], [0], [1], [0, 0, 1, 1], [], []>} : vector<256x8xf32>, vector<8x8xf32>, vector<256x8xf32> -> vector<256x8xf32>
    %85 = arith.addf %79, %84 : vector<256x8xf32>
    %86 = vector.extract_strided_slice %73 {offsets = [0, 2, 0], sizes = [16, 16, 8], strides = [1, 1, 1]} : vector<16x18x8xf32> to vector<16x16x8xf32>
    %87 = vector.shape_cast %86 : vector<16x16x8xf32> to vector<256x8xf32>
    %c0_68 = arith.constant 0 : index
    %c16 = arith.constant 16 : index
    %c0_69 = arith.constant 0 : index
    %88 = vector.load %arg4[%c0_68, %c16, %c0_69] : memref<3x24x8xf32, #tpu.memory_space<vmem>>, vector<1x8x8xf32>
    %89 = vector.shape_cast %88 : vector<1x8x8xf32> to vector<8x8xf32>
    %cst_70 = arith.constant dense<0.000000e+00> : vector<256x8xf32>
    %90 = tpu.matmul %87, %89, %cst_70 {dimension_numbers = #tpu.dot_dimension_numbers<[1], [0], [0], [1], [0, 0, 1, 1], [], []>} : vector<256x8xf32>, vector<8x8xf32>, vector<256x8xf32> -> vector<256x8xf32>
    %91 = arith.addf %85, %90 : vector<256x8xf32>
    %c1_71 = arith.constant 1 : index
    %c0_72 = arith.constant 0 : index
    %c0_73 = arith.constant 0 : index
    %92 = vector.load %arg10[%c1_71, %c0_72, %c0_73] : memref<18x18x8xf32, #tpu.memory_space<vmem>>, vector<16x18x8xf32>
    %93 = vector.extract_strided_slice %92 {offsets = [0, 0, 0], sizes = [16, 16, 8], strides = [1, 1, 1]} : vector<16x18x8xf32> to vector<16x16x8xf32>
    %94 = vector.shape_cast %93 : vector<16x16x8xf32> to vector<256x8xf32>
    %c1_74 = arith.constant 1 : index
    %c0_75 = arith.constant 0 : index
    %c0_76 = arith.constant 0 : index
    %95 = vector.load %arg4[%c1_74, %c0_75, %c0_76] : memref<3x24x8xf32, #tpu.memory_space<vmem>>, vector<1x8x8xf32>
    %96 = vector.shape_cast %95 : vector<1x8x8xf32> to vector<8x8xf32>
    %cst_77 = arith.constant dense<0.000000e+00> : vector<256x8xf32>
    %97 = tpu.matmul %94, %96, %cst_77 {dimension_numbers = #tpu.dot_dimension_numbers<[1], [0], [0], [1], [0, 0, 1, 1], [], []>} : vector<256x8xf32>, vector<8x8xf32>, vector<256x8xf32> -> vector<256x8xf32>
    %98 = arith.addf %91, %97 : vector<256x8xf32>
    %99 = vector.extract_strided_slice %92 {offsets = [0, 1, 0], sizes = [16, 16, 8], strides = [1, 1, 1]} : vector<16x18x8xf32> to vector<16x16x8xf32>
    %100 = vector.shape_cast %99 : vector<16x16x8xf32> to vector<256x8xf32>
    %c1_78 = arith.constant 1 : index
    %c8_79 = arith.constant 8 : index
    %c0_80 = arith.constant 0 : index
    %101 = vector.load %arg4[%c1_78, %c8_79, %c0_80] : memref<3x24x8xf32, #tpu.memory_space<vmem>>, vector<1x8x8xf32>
    %102 = vector.shape_cast %101 : vector<1x8x8xf32> to vector<8x8xf32>
    %cst_81 = arith.constant dense<0.000000e+00> : vector<256x8xf32>
    %103 = tpu.matmul %100, %102, %cst_81 {dimension_numbers = #tpu.dot_dimension_numbers<[1], [0], [0], [1], [0, 0, 1, 1], [], []>} : vector<256x8xf32>, vector<8x8xf32>, vector<256x8xf32> -> vector<256x8xf32>
    %104 = arith.addf %98, %103 : vector<256x8xf32>
    %105 = vector.extract_strided_slice %92 {offsets = [0, 2, 0], sizes = [16, 16, 8], strides = [1, 1, 1]} : vector<16x18x8xf32> to vector<16x16x8xf32>
    %106 = vector.shape_cast %105 : vector<16x16x8xf32> to vector<256x8xf32>
    %c1_82 = arith.constant 1 : index
    %c16_83 = arith.constant 16 : index
    %c0_84 = arith.constant 0 : index
    %107 = vector.load %arg4[%c1_82, %c16_83, %c0_84] : memref<3x24x8xf32, #tpu.memory_space<vmem>>, vector<1x8x8xf32>
    %108 = vector.shape_cast %107 : vector<1x8x8xf32> to vector<8x8xf32>
    %cst_85 = arith.constant dense<0.000000e+00> : vector<256x8xf32>
    %109 = tpu.matmul %106, %108, %cst_85 {dimension_numbers = #tpu.dot_dimension_numbers<[1], [0], [0], [1], [0, 0, 1, 1], [], []>} : vector<256x8xf32>, vector<8x8xf32>, vector<256x8xf32> -> vector<256x8xf32>
    %110 = arith.addf %104, %109 : vector<256x8xf32>
    %c2_86 = arith.constant 2 : index
    %c0_87 = arith.constant 0 : index
    %c0_88 = arith.constant 0 : index
    %111 = vector.load %arg10[%c2_86, %c0_87, %c0_88] : memref<18x18x8xf32, #tpu.memory_space<vmem>>, vector<16x18x8xf32>
    %112 = vector.extract_strided_slice %111 {offsets = [0, 0, 0], sizes = [16, 16, 8], strides = [1, 1, 1]} : vector<16x18x8xf32> to vector<16x16x8xf32>
    %113 = vector.shape_cast %112 : vector<16x16x8xf32> to vector<256x8xf32>
    %c2_89 = arith.constant 2 : index
    %c0_90 = arith.constant 0 : index
    %c0_91 = arith.constant 0 : index
    %114 = vector.load %arg4[%c2_89, %c0_90, %c0_91] : memref<3x24x8xf32, #tpu.memory_space<vmem>>, vector<1x8x8xf32>
    %115 = vector.shape_cast %114 : vector<1x8x8xf32> to vector<8x8xf32>
    %cst_92 = arith.constant dense<0.000000e+00> : vector<256x8xf32>
    %116 = tpu.matmul %113, %115, %cst_92 {dimension_numbers = #tpu.dot_dimension_numbers<[1], [0], [0], [1], [0, 0, 1, 1], [], []>} : vector<256x8xf32>, vector<8x8xf32>, vector<256x8xf32> -> vector<256x8xf32>
    %117 = arith.addf %110, %116 : vector<256x8xf32>
    %118 = vector.extract_strided_slice %111 {offsets = [0, 1, 0], sizes = [16, 16, 8], strides = [1, 1, 1]} : vector<16x18x8xf32> to vector<16x16x8xf32>
    %119 = vector.shape_cast %118 : vector<16x16x8xf32> to vector<256x8xf32>
    %c2_93 = arith.constant 2 : index
    %c8_94 = arith.constant 8 : index
    %c0_95 = arith.constant 0 : index
    %120 = vector.load %arg4[%c2_93, %c8_94, %c0_95] : memref<3x24x8xf32, #tpu.memory_space<vmem>>, vector<1x8x8xf32>
    %121 = vector.shape_cast %120 : vector<1x8x8xf32> to vector<8x8xf32>
    %cst_96 = arith.constant dense<0.000000e+00> : vector<256x8xf32>
    %122 = tpu.matmul %119, %121, %cst_96 {dimension_numbers = #tpu.dot_dimension_numbers<[1], [0], [0], [1], [0, 0, 1, 1], [], []>} : vector<256x8xf32>, vector<8x8xf32>, vector<256x8xf32> -> vector<256x8xf32>
    %123 = arith.addf %117, %122 : vector<256x8xf32>
    %124 = vector.extract_strided_slice %111 {offsets = [0, 2, 0], sizes = [16, 16, 8], strides = [1, 1, 1]} : vector<16x18x8xf32> to vector<16x16x8xf32>
    %125 = vector.shape_cast %124 : vector<16x16x8xf32> to vector<256x8xf32>
    %c2_97 = arith.constant 2 : index
    %c16_98 = arith.constant 16 : index
    %c0_99 = arith.constant 0 : index
    %126 = vector.load %arg4[%c2_97, %c16_98, %c0_99] : memref<3x24x8xf32, #tpu.memory_space<vmem>>, vector<1x8x8xf32>
    %127 = vector.shape_cast %126 : vector<1x8x8xf32> to vector<8x8xf32>
    %cst_100 = arith.constant dense<0.000000e+00> : vector<256x8xf32>
    %128 = tpu.matmul %125, %127, %cst_100 {dimension_numbers = #tpu.dot_dimension_numbers<[1], [0], [0], [1], [0, 0, 1, 1], [], []>} : vector<256x8xf32>, vector<8x8xf32>, vector<256x8xf32> -> vector<256x8xf32>
    %129 = arith.addf %123, %128 : vector<256x8xf32>
    %130 = vector.broadcast %7 : vector<1x8xf32> to vector<256x8xf32>
    %131 = arith.addf %129, %130 : vector<256x8xf32>
    %c1_101 = arith.constant 1 : index
    %c1_102 = arith.constant 1 : index
    %c0_103 = arith.constant 0 : index
    %132 = vector.load %arg9[%c1_101, %c1_102, %c0_103] : memref<18x18x4xf32, #tpu.memory_space<vmem>>, vector<16x16x4xf32>
    %133 = vector.shape_cast %132 : vector<16x16x4xf32> to vector<256x4xf32>
    %c0_104 = arith.constant 0 : index
    %c0_105 = arith.constant 0 : index
    %134 = vector.load %arg6[%c0_104, %c0_105] : memref<4x8xf32, #tpu.memory_space<vmem>>, vector<4x8xf32>
    %cst_106 = arith.constant dense<0.000000e+00> : vector<256x8xf32>
    %135 = tpu.matmul %133, %134, %cst_106 {dimension_numbers = #tpu.dot_dimension_numbers<[1], [0], [0], [1], [0, 0, 1, 1], [], []>} : vector<256x4xf32>, vector<4x8xf32>, vector<256x8xf32> -> vector<256x8xf32>
    %c0_107 = arith.constant 0 : index
    %c0_108 = arith.constant 0 : index
    %136 = vector.load %arg7[%c0_107, %c0_108] : memref<1x8xf32, #tpu.memory_space<vmem>>, vector<1x8xf32>
    %137 = vector.broadcast %136 : vector<1x8xf32> to vector<256x8xf32>
    %138 = arith.addf %135, %137 : vector<256x8xf32>
    %139 = arith.addf %131, %138 : vector<256x8xf32>
    %cst_109 = arith.constant 0.000000e+00 : f32
    %140 = vector.broadcast %cst_109 : f32 to vector<256x8xf32>
    %141 = arith.maximumf %139, %140 : vector<256x8xf32>
    %142 = tpu.transpose %141, [1, 0] : vector<256x8xf32> -> vector<8x256xf32>
    %c0_110 = arith.constant 0 : index
    %c0_111 = arith.constant 0 : index
    %c0_112 = arith.constant 0 : index
    %143 = vector.load %arg8[%c0_110, %c0_111, %c0_112] : memref<1x8x256xf32, #tpu.memory_space<vmem>>, vector<1x8x256xf32>
    %144 = vector.shape_cast %143 : vector<1x8x256xf32> to vector<8x256xf32>
    %145 = vector.shape_cast %142 : vector<8x256xf32> to vector<1x8x256xf32>
    tpu.vector_store %arg8[%c0_110, %c0_111, %c0_112], %145 {strides = array<i32>} : memref<1x8x256xf32, #tpu.memory_space<vmem>>, vector<1x8x256xf32>,
    return
  }
  func.func @transform_0(%arg0: i32) -> (i32, i32, i32, i32) {
    %c0_i32 = arith.constant 0 : i32
    %c0_i32_0 = arith.constant 0 : i32
    %c0_i32_1 = arith.constant 0 : i32
    %c0_i32_2 = arith.constant 0 : i32
    return %arg0, %c0_i32, %c0_i32_0, %c0_i32_1 : i32, i32, i32, i32
  }
  func.func @transform_1(%arg0: i32) -> (i32, i32, i32) {
    %c0_i32 = arith.constant 0 : i32
    %c0_i32_0 = arith.constant 0 : i32
    %c0_i32_1 = arith.constant 0 : i32
    %c0_i32_2 = arith.constant 0 : i32
    return %c0_i32, %c0_i32_0, %c0_i32_1 : i32, i32, i32
  }
  func.func @transform_2(%arg0: i32) -> (i32, i32) {
    %c0_i32 = arith.constant 0 : i32
    %c0_i32_0 = arith.constant 0 : i32
    %c0_i32_1 = arith.constant 0 : i32
    return %c0_i32, %c0_i32_0 : i32, i32
  }
  func.func @transform_3(%arg0: i32) -> (i32, i32, i32) {
    %c0_i32 = arith.constant 0 : i32
    %c0_i32_0 = arith.constant 0 : i32
    %c0_i32_1 = arith.constant 0 : i32
    %c0_i32_2 = arith.constant 0 : i32
    return %c0_i32, %c0_i32_0, %c0_i32_1 : i32, i32, i32
  }
  func.func @transform_4(%arg0: i32) -> (i32, i32) {
    %c0_i32 = arith.constant 0 : i32
    %c0_i32_0 = arith.constant 0 : i32
    %c0_i32_1 = arith.constant 0 : i32
    return %c0_i32, %c0_i32_0 : i32, i32
  }
  func.func @transform_5(%arg0: i32) -> (i32, i32) {
    %c0_i32 = arith.constant 0 : i32
    %c0_i32_0 = arith.constant 0 : i32
    %c0_i32_1 = arith.constant 0 : i32
    return %c0_i32, %c0_i32_0 : i32, i32
  }
  func.func @transform_6(%arg0: i32) -> (i32, i32) {
    %c0_i32 = arith.constant 0 : i32
    %c0_i32_0 = arith.constant 0 : i32
    %c0_i32_1 = arith.constant 0 : i32
    return %c0_i32, %c0_i32_0 : i32, i32
  }
  func.func @transform_7(%arg0: i32) -> (i32, i32, i32) {
    %c0_i32 = arith.constant 0 : i32
    %c0_i32_0 = arith.constant 0 : i32
    %c0_i32_1 = arith.constant 0 : i32
    return %arg0, %c0_i32, %c0_i32_0 : i32, i32, i32
  }
}

</mosaic_0001>

<llo_original>
// kernel: tpu_custom_call.1
$region0: #{tpu_custom_call.1}
  #allocation0 [shape = 'u32[]', space=smem, size = 0x4, offset = 0x4, fixed_abs, tag = 'smem constant byte address 0x4 - core index']
  #allocation1 [shape = 'u32[144,128]{1,0:T(1,128)}', space=vmem, size = 0x12000, scoped, tag = 'internal scratch']
  #allocation2 [shape = 'f32[18,18,4]{2,1,0:T(8,128)}', space=vmem, size = 0x36000, scoped, tag = 'scratch operand']
  #allocation3 [shape = 'f32[18,18,8]{2,1,0:T(8,128)}', space=vmem, size = 0x36000, scoped, tag = 'scratch operand']
  %s0 = inlined_call_operand.vmem [shape: f32[2,16,16,4], index: 0, kind: input, shape index: {}]
  %s1 = inlined_call_operand.vmem [shape: f32[3,12,8], index: 1, kind: input, shape index: {}]
  %s2 = inlined_call_operand.vmem [shape: f32[1,8], index: 2, kind: input, shape index: {}]
  %s3 = inlined_call_operand.vmem [shape: f32[3,24,8], index: 3, kind: input, shape index: {}]
  %s4 = inlined_call_operand.vmem [shape: f32[1,8], index: 4, kind: input, shape index: {}]
  %s5 = inlined_call_operand.vmem [shape: f32[4,8], index: 5, kind: input, shape index: {}]
  %s6 = inlined_call_operand.vmem [shape: f32[1,8], index: 6, kind: input, shape index: {}]
  %s7 = inlined_call_operand.hbm [shape: f32[2,8,256], index: 7, kind: output, shape index: {}]
  %s8 = sld [smem:[#allocation0]]
  $region65: #{tpu_custom_call.1} parent=0
    _
  %s10 = ssub.s32 1, %s8
  %s11 = scalar_select 0, %s10, %s8
  $region1: #{tpu_custom_call.1} parent=0
    #allocation4 [shape = 'u8[16384]{0}', space=vmem, size = 0x4000, scoped, tag = 'output window, operand 0']
    #allocation5 [shape = 's32[2]{0}', space=sflag, size = 0x8, scoped, tag = 'scoped memory for tpu_custom_call.1']
    %12 = vsyncpa [#allocation5], 0
    %s13 = scalar_lea.sflag [#allocation5], 1
    %14 = vsyncpa %s13, 0
    loop: start=0, step=1, limit=4
    $region2: #{tpu_custom_call.1} parent=1 // loop_pre_header
      _
    $region3: #{tpu_custom_call.1} parent=1 // loop_header
      %s16 = sphi 0, %s20
      %p17 = scmp.ge.s32.totalorder %s16, 4
      %s26 = sphi 0, %s28
      %s29 = sphi 0, %s26
      %s30 = sphi 0, %s29
      %s46 = sphi 0, %s30
      %s50 = sphi 0, %s50
      %s52 = sphi 0, %s50
      %s53 = sphi 0, %s52
      %s67 = sphi 0, %s53
      %s71 = sphi 0, %s71
      %s73 = sphi 0, %s71
      %s74 = sphi 0, %s73
      %s88 = sphi 0, %s74
      %s92 = sphi 0, %s92
      %s94 = sphi 0, %s92
      %s95 = sphi 0, %s94
      %s109 = sphi 0, %s95
      %s113 = sphi 0, %s113
      %s115 = sphi 0, %s113
      %s116 = sphi 0, %s115
      %s130 = sphi 0, %s116
      %s134 = sphi 0, %s134
      %s136 = sphi 0, %s134
      %s137 = sphi 0, %s136
      %s151 = sphi 0, %s137
      %s155 = sphi 0, %s155
      %s157 = sphi 0, %s155
      %s158 = sphi 0, %s157
      %s172 = sphi 0, %s158
      %s178 = sphi 0, %s180
      %s181 = sphi 0, %s178
      %s182 = sphi 0, %s181
      %s198 = sphi 0, %s182
    $region4: #{tpu_custom_call.1} parent=1 // loop_header_branch
      %19 = sbr.rel (%p17) target = $region8
    $region5: #{tpu_custom_call.1} parent=1 // loop_body
      %s21 = ssub.s32 %s16, 1
      %s22 = ssub.s32 %s16, 2
      %s23 = sadd.s32 %s16, 1
      %s24 = ssub.s32 %s16, %s23
      %p25 = scmp.eq.s32.totalorder %s24, 0
      %s27 = sadd.s32 %s26, 1
      %s28 = scalar_select %p25, %s26, %s27
      %p31 = pneg %p25
      %p32 = scmp.eq.s32.totalorder %s16, 1
      %p33 = por %p31, %p32
      %p34 = scmp.ne.s32.totalorder %s26, %s29
      %p35 = scmp.eq.s32.totalorder %s16, 0
      %p36 = por %p34, %p35
      %p37 = scmp.ne.s32.totalorder %s26, %s29
      %p38 = scmp.eq.s32.totalorder %s21, 1
      %p39 = por %p37, %p38
      %p40 = scmp.ne.s32.totalorder %s29, %s30
      %p41 = scmp.eq.s32.totalorder %s21, 0
      %p42 = por %p40, %p41
      %p43 = scmp.ne.s32.totalorder %s29, %s30
      %p44 = scmp.eq.s32.totalorder %s22, 1
      %p45 = por %p43, %p44
      %p47 = scmp.ne.s32.totalorder %s30, %s46
      %p48 = scmp.eq.s32.totalorder %s22, 0
      %p49 = por %p47, %p48
      %s51 = sadd.s32 %s50, 1
      %p54 = scmp.eq.s32.totalorder %s16, 1
      %p55 = scmp.ne.s32.totalorder %s50, %s52
      %p56 = scmp.eq.s32.totalorder %s16, 0
      %p57 = por %p55, %p56
      %p58 = scmp.ne.s32.totalorder %s50, %s52
      %p59 = scmp.eq.s32.totalorder %s21, 1
      %p60 = por %p58, %p59
      %p61 = scmp.ne.s32.totalorder %s52, %s53
      %p62 = scmp.eq.s32.totalorder %s21, 0
      %p63 = por %p61, %p62
      %p64 = scmp.ne.s32.totalorder %s52, %s53
      %p65 = scmp.eq.s32.totalorder %s22, 1
      %p66 = por %p64, %p65
      %p68 = scmp.ne.s32.totalorder %s53, %s67
      %p69 = scmp.eq.s32.totalorder %s22, 0
      %p70 = por %p68, %p69
      %s72 = sadd.s32 %s71, 1
      %p75 = scmp.eq.s32.totalorder %s16, 1
      %p76 = scmp.ne.s32.totalorder %s71, %s73
      %p77 = scmp.eq.s32.totalorder %s16, 0
      %p78 = por %p76, %p77
      %p79 = scmp.ne.s32.totalorder %s71, %s73
      %p80 = scmp.eq.s32.totalorder %s21, 1
      %p81 = por %p79, %p80
      %p82 = scmp.ne.s32.totalorder %s73, %s74
      %p83 = scmp.eq.s32.totalorder %s21, 0
      %p84 = por %p82, %p83
      %p85 = scmp.ne.s32.totalorder %s73, %s74
      %p86 = scmp.eq.s32.totalorder %s22, 1
      %p87 = por %p85, %p86
      %p89 = scmp.ne.s32.totalorder %s74, %s88
      %p90 = scmp.eq.s32.totalorder %s22, 0
      %p91 = por %p89, %p90
      %s93 = sadd.s32 %s92, 1
      %p96 = scmp.eq.s32.totalorder %s16, 1
      %p97 = scmp.ne.s32.totalorder %s92, %s94
      %p98 = scmp.eq.s32.totalorder %s16, 0
      %p99 = por %p97, %p98
      %p100 = scmp.ne.s32.totalorder %s92, %s94
      %p101 = scmp.eq.s32.totalorder %s21, 1
      %p102 = por %p100, %p101
      %p103 = scmp.ne.s32.totalorder %s94, %s95
      %p104 = scmp.eq.s32.totalorder %s21, 0
      %p105 = por %p103, %p104
      %p106 = scmp.ne.s32.totalorder %s94, %s95
      %p107 = scmp.eq.s32.totalorder %s22, 1
      %p108 = por %p106, %p107
      %p110 = scmp.ne.s32.totalorder %s95, %s109
      %p111 = scmp.eq.s32.totalorder %s22, 0
      %p112 = por %p110, %p111
      %s114 = sadd.s32 %s113, 1
      %p117 = scmp.eq.s32.totalorder %s16, 1
      %p118 = scmp.ne.s32.totalorder %s113, %s115
      %p119 = scmp.eq.s32.totalorder %s16, 0
      %p120 = por %p118, %p119
      %p121 = scmp.ne.s32.totalorder %s113, %s115
      %p122 = scmp.eq.s32.totalorder %s21, 1
      %p123 = por %p121, %p122
      %p124 = scmp.ne.s32.totalorder %s115, %s116
      %p125 = scmp.eq.s32.totalorder %s21, 0
      %p126 = por %p124, %p125
      %p127 = scmp.ne.s32.totalorder %s115, %s116
      %p128 = scmp.eq.s32.totalorder %s22, 1
      %p129 = por %p127, %p128
      %p131 = scmp.ne.s32.totalorder %s116, %s130
      %p132 = scmp.eq.s32.totalorder %s22, 0
      %p133 = por %p131, %p132
      %s135 = sadd.s32 %s134, 1
      %p138 = scmp.eq.s32.totalorder %s16, 1
      %p139 = scmp.ne.s32.totalorder %s134, %s136
      %p140 = scmp.eq.s32.totalorder %s16, 0
      %p141 = por %p139, %p140
      %p142 = scmp.ne.s32.totalorder %s134, %s136
      %p143 = scmp.eq.s32.totalorder %s21, 1
      %p144 = por %p142, %p143
      %p145 = scmp.ne.s32.totalorder %s136, %s137
      %p146 = scmp.eq.s32.totalorder %s21, 0
      %p147 = por %p145, %p146
      %p148 = scmp.ne.s32.totalorder %s136, %s137
      %p149 = scmp.eq.s32.totalorder %s22, 1
      %p150 = por %p148, %p149
      %p152 = scmp.ne.s32.totalorder %s137, %s151
      %p153 = scmp.eq.s32.totalorder %s22, 0
      %p154 = por %p152, %p153
      %s156 = sadd.s32 %s155, 1
      %p159 = scmp.eq.s32.totalorder %s16, 1
      %p160 = scmp.ne.s32.totalorder %s155, %s157
      %p161 = scmp.eq.s32.totalorder %s16, 0
      %p162 = por %p160, %p161
      %p163 = scmp.ne.s32.totalorder %s155, %s157
      %p164 = scmp.eq.s32.totalorder %s21, 1
      %p165 = por %p163, %p164
      %p166 = scmp.ne.s32.totalorder %s157, %s158
      %p167 = scmp.eq.s32.totalorder %s21, 0
      %p168 = por %p166, %p167
      %p169 = scmp.ne.s32.totalorder %s157, %s158
      %p170 = scmp.eq.s32.totalorder %s22, 1
      %p171 = por %p169, %p170
      %p173 = scmp.ne.s32.totalorder %s158, %s172
      %p174 = scmp.eq.s32.totalorder %s22, 0
      %p175 = por %p173, %p174
      %s176 = ssub.s32 %s16, %s23
      %p177 = scmp.eq.s32.totalorder %s176, 0
      %s179 = sadd.s32 %s178, 1
      %s180 = scalar_select %p177, %s178, %s179
      %p183 = pneg %p177
      %p184 = scmp.eq.s32.totalorder %s16, 1
      %p185 = por %p183, %p184
      %p186 = scmp.ne.s32.totalorder %s178, %s181
      %p187 = scmp.eq.s32.totalorder %s16, 0
      %p188 = por %p186, %p187
      %p189 = scmp.ne.s32.totalorder %s178, %s181
      %p190 = scmp.eq.s32.totalorder %s21, 1
      %p191 = por %p189, %p190
      %p192 = scmp.ne.s32.totalorder %s181, %s182
      %p193 = scmp.eq.s32.totalorder %s21, 0
      %p194 = por %p192, %p193
      %p195 = scmp.ne.s32.totalorder %s181, %s182
      %p196 = scmp.eq.s32.totalorder %s22, 1
      %p197 = por %p195, %p196
      %p199 = scmp.ne.s32.totalorder %s182, %s198
      %p200 = scmp.eq.s32.totalorder %s22, 0
      %p201 = por %p199, %p200
      %p202 = scmp.le.s32.totalorder 1, %s16
      %p203 = scmp.lt.s32.totalorder %s16, 3
      %p204 = pnand %p202, %p203
      %p205 = pneg %p204
      // Predicated region
      $region9: #{tpu_custom_call.1} parent=5 // pred_check
        _
      $region10: #{tpu_custom_call.1} parent=5 // pred_check_branch
        %207 = sbr.rel (%p204) target = $region12
      $region11: #{tpu_custom_call.1} parent=5 // pred_region
        %s208 = ssub.s32 %s16, 1
        // Predicated region
        $region13: #{tpu_custom_call.1} parent=11 // pred_check
          %p209 = pneg %p63
        $region14: #{tpu_custom_call.1} parent=11 // pred_check_branch
          %211 = sbr.rel (%p209) target = $region16
        $region15: #{tpu_custom_call.1} parent=11 // pred_region
          _
        $region16: #{tpu_custom_call.1} parent=11 // pred_fallthru
          _
        // Predicated region
        $region17: #{tpu_custom_call.1} parent=11 // pred_check
          %p212 = pneg %p84
        $region18: #{tpu_custom_call.1} parent=11 // pred_check_branch
          %214 = sbr.rel (%p212) target = $region20
        $region19: #{tpu_custom_call.1} parent=11 // pred_region
          _
        $region20: #{tpu_custom_call.1} parent=11 // pred_fallthru
          _
        // Predicated region
        $region21: #{tpu_custom_call.1} parent=11 // pred_check
          %p215 = pneg %p105
        $region22: #{tpu_custom_call.1} parent=11 // pred_check_branch
          %217 = sbr.rel (%p215) target = $region24
        $region23: #{tpu_custom_call.1} parent=11 // pred_region
          _
        $region24: #{tpu_custom_call.1} parent=11 // pred_fallthru
          _
        // Predicated region
        $region25: #{tpu_custom_call.1} parent=11 // pred_check
          %p218 = pneg %p126
        $region26: #{tpu_custom_call.1} parent=11 // pred_check_branch
          %220 = sbr.rel (%p218) target = $region28
        $region27: #{tpu_custom_call.1} parent=11 // pred_region
          _
        $region28: #{tpu_custom_call.1} parent=11 // pred_fallthru
          _
        // Predicated region
        $region29: #{tpu_custom_call.1} parent=11 // pred_check
          %p221 = pneg %p147
        $region30: #{tpu_custom_call.1} parent=11 // pred_check_branch
          %223 = sbr.rel (%p221) target = $region32
        $region31: #{tpu_custom_call.1} parent=11 // pred_region
          _
        $region32: #{tpu_custom_call.1} parent=11 // pred_fallthru
          _
        // Predicated region
        $region33: #{tpu_custom_call.1} parent=11 // pred_check
          %p224 = pneg %p168
        $region34: #{tpu_custom_call.1} parent=11 // pred_check_branch
          %226 = sbr.rel (%p224) target = $region36
        $region35: #{tpu_custom_call.1} parent=11 // pred_region
          _
        $region36: #{tpu_custom_call.1} parent=11 // pred_fallthru
          _
      $region12: #{tpu_custom_call.1} parent=5 // pred_fallthru
        _
      %p227 = scmp.lt.s32.totalorder %s16, 2
      // Predicated region
      $region37: #{tpu_custom_call.1} parent=5 // pred_check
        %p228 = pneg %p227
      $region38: #{tpu_custom_call.1} parent=5 // pred_check_branch
        %230 = sbr.rel (%p228) target = $region40
      $region39: #{tpu_custom_call.1} parent=5 // pred_region
        // Predicated region
        $region41: #{tpu_custom_call.1} parent=39 // pred_check
          %p231 = pneg %p36
        $region42: #{tpu_custom_call.1} parent=39 // pred_check_branch
          %233 = sbr.rel (%p231) target = $region44
        $region43: #{tpu_custom_call.1} parent=39 // pred_region
          %p234 = scmp.lt.s32.totalorder %s16, 1
          %s235 = scalar_select %p234, %s16, 1
          %s236 = smul.addr %s235, 32
          %s237 = smul.addr %s236, 8
          %s238 = scalar_lea.vmem %s0, %s237
        $region44: #{tpu_custom_call.1} parent=39 // pred_fallthru
          _
      $region40: #{tpu_custom_call.1} parent=5 // pred_fallthru
        _
      %p239 = scmp.le.s32.totalorder 1, %s16
      %p240 = scmp.lt.s32.totalorder %s16, 3
      %p241 = pnand %p239, %p240
      %p242 = pneg %p241
      // Predicated region
      $region45: #{tpu_custom_call.1} parent=5 // pred_check
        _
      $region46: #{tpu_custom_call.1} parent=5 // pred_check_branch
        %244 = sbr.rel (%p241) target = $region48
      $region47: #{tpu_custom_call.1} parent=5 // pred_region
        %s245 = ssub.s32 %s16, 1
        %p246 = scmp.lt.s32.totalorder %s21, 1
        %s247 = scalar_select %p246, %s21, 1
        %s248 = smul.addr %s247, 32
        %s249 = smul.addr %s248, 8
        %s250 = scalar_lea.vmem %s0, %s249
        %p251 = pneg %p42
        %p252 = pneg %p39
        %p253 = pneg %p63
        %p254 = pneg %p60
        %p255 = pneg %p84
        %p256 = pneg %p81
        %p257 = pneg %p105
        %p258 = pneg %p102
        %p259 = pneg %p126
        %p260 = pneg %p123
        %p261 = pneg %p147
        %p262 = pneg %p144
        %p263 = pneg %p168
        %p264 = pneg %p165
        %p265 = pneg %p194
        %p266 = pneg %p191
        %s267 = sand.u32 %s181, 1
        %s268 = scalar_lea.sflag [#allocation5], %s267
        %s269 = sand.u32 %s181, 1
        %s270 = smul.addr %s269, 16
        %s271 = scalar_lea.vmem [#allocation4], %s270
        %p272 = scmp.lt.s32.totalorder %s21, 1
        %s273 = scalar_select %p272, %s21, 1
        %s274 = smul.addr %s273, 32
        %s275 = smul.addr %s274, 8
        %s276 = scalar_lea.vmem %s0, %s275
        %p277 = scmp.eq.s32.totalorder %s21, 0
        // Predicated region
        $region49: #{tpu_custom_call.1} parent=47 // pred_check
          %p278 = pneg %p277
        $region50: #{tpu_custom_call.1} parent=47 // pred_check_branch
          %280 = sbr.rel (%p278) target = $region52
        $region51: #{tpu_custom_call.1} parent=47 // pred_region
          %vm281 = vcmask 31744
          %282 = vst.msk [vmem:[#allocation2] sm:$0xff] %vm281, 0.0
          %283 = vst.msk [vmem:[#allocation2 + $0x8] sm:$0xff] %vm281, 0.0
          %vm284 = vcmask 25600
          %285 = vst.msk [vmem:[#allocation2 + $0x10] sm:$0x3] %vm284, 0.0
          %286 = vst.msk [vmem:[#allocation2 + $0x18] sm:$0xff] %vm281, 0.0
          %287 = vst.msk [vmem:[#allocation2 + $0x20] sm:$0xff] %vm281, 0.0
          %288 = vst.msk [vmem:[#allocation2 + $0x28] sm:$0x3] %vm284, 0.0
          %289 = vst.msk [vmem:[#allocation2 + $0x30] sm:$0xff] %vm281, 0.0
          %290 = vst.msk [vmem:[#allocation2 + $0x38] sm:$0xff] %vm281, 0.0
          %291 = vst.msk [vmem:[#allocation2 + $0x40] sm:$0x3] %vm284, 0.0
          %292 = vst.msk [vmem:[#allocation2 + $0x48] sm:$0xff] %vm281, 0.0
          %293 = vst.msk [vmem:[#allocation2 + $0x50] sm:$0xff] %vm281, 0.0
          %294 = vst.msk [vmem:[#allocation2 + $0x58] sm:$0x3] %vm284, 0.0
          %295 = vst.msk [vmem:[#allocation2 + $0x60] sm:$0xff] %vm281, 0.0
          %296 = vst.msk [vmem:[#allocation2 + $0x68] sm:$0xff] %vm281, 0.0
          %297 = vst.msk [vmem:[#allocation2 + $0x70] sm:$0x3] %vm284, 0.0
          %298 = vst.msk [vmem:[#allocation2 + $0x78] sm:$0xff] %vm281, 0.0
          %299 = vst.msk [vmem:[#allocation2 + $0x80] sm:$0xff] %vm281, 0.0
          %300 = vst.msk [vmem:[#allocation2 + $0x88] sm:$0x3] %vm284, 0.0
          %301 = vst.msk [vmem:[#allocation2 + $0x90] sm:$0xff] %vm281, 0.0
          %302 = vst.msk [vmem:[#allocation2 + $0x98] sm:$0xff] %vm281, 0.0
          %303 = vst.msk [vmem:[#allocation2 + $0xa0] sm:$0x3] %vm284, 0.0
          %304 = vst.msk [vmem:[#allocation2 + $0xa8] sm:$0xff] %vm281, 0.0
          %305 = vst.msk [vmem:[#allocation2 + $0xb0] sm:$0xff] %vm281, 0.0
          %306 = vst.msk [vmem:[#allocation2 + $0xb8] sm:$0x3] %vm284, 0.0
          %307 = vst.msk [vmem:[#allocation2 + $0xc0] sm:$0xff] %vm281, 0.0
          %308 = vst.msk [vmem:[#allocation2 + $0xc8] sm:$0xff] %vm281, 0.0
          %309 = vst.msk [vmem:[#allocation2 + $0xd0] sm:$0x3] %vm284, 0.0
          %310 = vst.msk [vmem:[#allocation2 + $0xd8] sm:$0xff] %vm281, 0.0
          %311 = vst.msk [vmem:[#allocation2 + $0xe0] sm:$0xff] %vm281, 0.0
          %312 = vst.msk [vmem:[#allocation2 + $0xe8] sm:$0x3] %vm284, 0.0
          %313 = vst.msk [vmem:[#allocation2 + $0xf0] sm:$0xff] %vm281, 0.0
          %314 = vst.msk [vmem:[#allocation2 + $0xf8] sm:$0xff] %vm281, 0.0
          %315 = vst.msk [vmem:[#allocation2 + $0x100] sm:$0x3] %vm284, 0.0
          %316 = vst.msk [vmem:[#allocation2 + $0x108] sm:$0xff] %vm281, 0.0
          %317 = vst.msk [vmem:[#allocation2 + $0x110] sm:$0xff] %vm281, 0.0
          %318 = vst.msk [vmem:[#allocation2 + $0x118] sm:$0x3] %vm284, 0.0
          %319 = vst.msk [vmem:[#allocation2 + $0x120] sm:$0xff] %vm281, 0.0
          %320 = vst.msk [vmem:[#allocation2 + $0x128] sm:$0xff] %vm281, 0.0
          %321 = vst.msk [vmem:[#allocation2 + $0x130] sm:$0x3] %vm284, 0.0
          %322 = vst.msk [vmem:[#allocation2 + $0x138] sm:$0xff] %vm281, 0.0
          %323 = vst.msk [vmem:[#allocation2 + $0x140] sm:$0xff] %vm281, 0.0
          %324 = vst.msk [vmem:[#allocation2 + $0x148] sm:$0x3] %vm284, 0.0
          %325 = vst.msk [vmem:[#allocation2 + $0x150] sm:$0xff] %vm281, 0.0
          %326 = vst.msk [vmem:[#allocation2 + $0x158] sm:$0xff] %vm281, 0.0
          %327 = vst.msk [vmem:[#allocation2 + $0x160] sm:$0x3] %vm284, 0.0
          %328 = vst.msk [vmem:[#allocation2 + $0x168] sm:$0xff] %vm281, 0.0
          %329 = vst.msk [vmem:[#allocation2 + $0x170] sm:$0xff] %vm281, 0.0
          %330 = vst.msk [vmem:[#allocation2 + $0x178] sm:$0x3] %vm284, 0.0
          %331 = vst.msk [vmem:[#allocation2 + $0x180] sm:$0xff] %vm281, 0.0
          %332 = vst.msk [vmem:[#allocation2 + $0x188] sm:$0xff] %vm281, 0.0
          %333 = vst.msk [vmem:[#allocation2 + $0x190] sm:$0x3] %vm284, 0.0
          %334 = vst.msk [vmem:[#allocation2 + $0x198] sm:$0xff] %vm281, 0.0
          %335 = vst.msk [vmem:[#allocation2 + $0x1a0] sm:$0xff] %vm281, 0.0
          %336 = vst.msk [vmem:[#allocation2 + $0x1a8] sm:$0x3] %vm284, 0.0
          %vm337 = vcmask 64512
          %338 = vst.msk [vmem:[#allocation3] sm:$0xff] %vm337, 0.0
          %339 = vst.msk [vmem:[#allocation3 + $0x8] sm:$0xff] %vm337, 0.0
          %vm340 = vcmask 58368
          %341 = vst.msk [vmem:[#allocation3 + $0x10] sm:$0x3] %vm340, 0.0
          %342 = vst.msk [vmem:[#allocation3 + $0x18] sm:$0xff] %vm337, 0.0
          %343 = vst.msk [vmem:[#allocation3 + $0x20] sm:$0xff] %vm337, 0.0
          %344 = vst.msk [vmem:[#allocation3 + $0x28] sm:$0x3] %vm340, 0.0
          %345 = vst.msk [vmem:[#allocation3 + $0x30] sm:$0xff] %vm337, 0.0
          %346 = vst.msk [vmem:[#allocation3 + $0x38] sm:$0xff] %vm337, 0.0
          %347 = vst.msk [vmem:[#allocation3 + $0x40] sm:$0x3] %vm340, 0.0
          %348 = vst.msk [vmem:[#allocation3 + $0x48] sm:$0xff] %vm337, 0.0
          %349 = vst.msk [vmem:[#allocation3 + $0x50] sm:$0xff] %vm337, 0.0
          %350 = vst.msk [vmem:[#allocation3 + $0x58] sm:$0x3] %vm340, 0.0
          %351 = vst.msk [vmem:[#allocation3 + $0x60] sm:$0xff] %vm337, 0.0
          %352 = vst.msk [vmem:[#allocation3 + $0x68] sm:$0xff] %vm337, 0.0
          %353 = vst.msk [vmem:[#allocation3 + $0x70] sm:$0x3] %vm340, 0.0
          %354 = vst.msk [vmem:[#allocation3 + $0x78] sm:$0xff] %vm337, 0.0
          %355 = vst.msk [vmem:[#allocation3 + $0x80] sm:$0xff] %vm337, 0.0
          %356 = vst.msk [vmem:[#allocation3 + $0x88] sm:$0x3] %vm340, 0.0
          %357 = vst.msk [vmem:[#allocation3 + $0x90] sm:$0xff] %vm337, 0.0
          %358 = vst.msk [vmem:[#allocation3 + $0x98] sm:$0xff] %vm337, 0.0
          %359 = vst.msk [vmem:[#allocation3 + $0xa0] sm:$0x3] %vm340, 0.0
          %360 = vst.msk [vmem:[#allocation3 + $0xa8] sm:$0xff] %vm337, 0.0
          %361 = vst.msk [vmem:[#allocation3 + $0xb0] sm:$0xff] %vm337, 0.0
          %362 = vst.msk [vmem:[#allocation3 + $0xb8] sm:$0x3] %vm340, 0.0
          %363 = vst.msk [vmem:[#allocation3 + $0xc0] sm:$0xff] %vm337, 0.0
          %364 = vst.msk [vmem:[#allocation3 + $0xc8] sm:$0xff] %vm337, 0.0
          %365 = vst.msk [vmem:[#allocation3 + $0xd0] sm:$0x3] %vm340, 0.0
          %366 = vst.msk [vmem:[#allocation3 + $0xd8] sm:$0xff] %vm337, 0.0
          %367 = vst.msk [vmem:[#allocation3 + $0xe0] sm:$0xff] %vm337, 0.0
          %368 = vst.msk [vmem:[#allocation3 + $0xe8] sm:$0x3] %vm340, 0.0
          %369 = vst.msk [vmem:[#allocation3 + $0xf0] sm:$0xff] %vm337, 0.0
          %370 = vst.msk [vmem:[#allocation3 + $0xf8] sm:$0xff] %vm337, 0.0
          %371 = vst.msk [vmem:[#allocation3 + $0x100] sm:$0x3] %vm340, 0.0
          %372 = vst.msk [vmem:[#allocation3 + $0x108] sm:$0xff] %vm337, 0.0
          %373 = vst.msk [vmem:[#allocation3 + $0x110] sm:$0xff] %vm337, 0.0
          %374 = vst.msk [vmem:[#allocation3 + $0x118] sm:$0x3] %vm340, 0.0
          %375 = vst.msk [vmem:[#allocation3 + $0x120] sm:$0xff] %vm337, 0.0
          %376 = vst.msk [vmem:[#allocation3 + $0x128] sm:$0xff] %vm337, 0.0
          %377 = vst.msk [vmem:[#allocation3 + $0x130] sm:$0x3] %vm340, 0.0
          %378 = vst.msk [vmem:[#allocation3 + $0x138] sm:$0xff] %vm337, 0.0
          %379 = vst.msk [vmem:[#allocation3 + $0x140] sm:$0xff] %vm337, 0.0
          %380 = vst.msk [vmem:[#allocation3 + $0x148] sm:$0x3] %vm340, 0.0
          %381 = vst.msk [vmem:[#allocation3 + $0x150] sm:$0xff] %vm337, 0.0
          %382 = vst.msk [vmem:[#allocation3 + $0x158] sm:$0xff] %vm337, 0.0
          %383 = vst.msk [vmem:[#allocation3 + $0x160] sm:$0x3] %vm340, 0.0
          %384 = vst.msk [vmem:[#allocation3 + $0x168] sm:$0xff] %vm337, 0.0
          %385 = vst.msk [vmem:[#allocation3 + $0x170] sm:$0xff] %vm337, 0.0
          %386 = vst.msk [vmem:[#allocation3 + $0x178] sm:$0x3] %vm340, 0.0
          %387 = vst.msk [vmem:[#allocation3 + $0x180] sm:$0xff] %vm337, 0.0
          %388 = vst.msk [vmem:[#allocation3 + $0x188] sm:$0xff] %vm337, 0.0
          %389 = vst.msk [vmem:[#allocation3 + $0x190] sm:$0x3] %vm340, 0.0
          %390 = vst.msk [vmem:[#allocation3 + $0x198] sm:$0xff] %vm337, 0.0
          %391 = vst.msk [vmem:[#allocation3 + $0x1a0] sm:$0xff] %vm337, 0.0
          %392 = vst.msk [vmem:[#allocation3 + $0x1a8] sm:$0x3] %vm340, 0.0
        $region52: #{tpu_custom_call.1} parent=47 // pred_fallthru
          _
        %v393 = vld [vmem:[%s276] sm:$0xff]
        %v394 = vld [vmem:[%s276 + $0x8] sm:$0xff]
        %v395 = vld [vmem:[%s276 + $0x10] sm:$0xff]
        %v396 = vld [vmem:[%s276 + $0x18] sm:$0xff]
        %v397 = vld [vmem:[%s276 + $0x20] sm:$0xff]
        %v398 = vld [vmem:[%s276 + $0x28] sm:$0xff]
        %v399 = vld [vmem:[%s276 + $0x30] sm:$0xff]
        %v400 = vld [vmem:[%s276 + $0x38] sm:$0xff]
        %v401 = vld [vmem:[%s276 + $0x40] sm:$0xff]
        %v402 = vld [vmem:[%s276 + $0x48] sm:$0xff]
        %v403 = vld [vmem:[%s276 + $0x50] sm:$0xff]
        %v404 = vld [vmem:[%s276 + $0x58] sm:$0xff]
        %v405 = vld [vmem:[%s276 + $0x60] sm:$0xff]
        %v406 = vld [vmem:[%s276 + $0x68] sm:$0xff]
        %v407 = vld [vmem:[%s276 + $0x70] sm:$0xff]
        %v408 = vld [vmem:[%s276 + $0x78] sm:$0xff]
        %v409 = vld [vmem:[%s276 + $0x80] sm:$0xff]
        %v410 = vld [vmem:[%s276 + $0x88] sm:$0xff]
        %v411 = vld [vmem:[%s276 + $0x90] sm:$0xff]
        %v412 = vld [vmem:[%s276 + $0x98] sm:$0xff]
        %v413 = vld [vmem:[%s276 + $0xa0] sm:$0xff]
        %v414 = vld [vmem:[%s276 + $0xa8] sm:$0xff]
        %v415 = vld [vmem:[%s276 + $0xb0] sm:$0xff]
        %v416 = vld [vmem:[%s276 + $0xb8] sm:$0xff]
        %v417 = vld [vmem:[%s276 + $0xc0] sm:$0xff]
        %v418 = vld [vmem:[%s276 + $0xc8] sm:$0xff]
        %v419 = vld [vmem:[%s276 + $0xd0] sm:$0xff]
        %v420 = vld [vmem:[%s276 + $0xd8] sm:$0xff]
        %v421 = vld [vmem:[%s276 + $0xe0] sm:$0xff]
        %v422 = vld [vmem:[%s276 + $0xe8] sm:$0xff]
        %v423 = vld [vmem:[%s276 + $0xf0] sm:$0xff]
        %v424 = vld [vmem:[%s276 + $0xf8] sm:$0xff]
        %s425 = scalar_lea.vmem [#allocation2], 24
        %vm426 = vcmask 31744
        %427 = vst.msk [vmem:[%s425 + $0x1] sm:$0xff] %vm426, %v393
        %428 = vst.msk [vmem:[%s425 + $0x9] sm:$0xff] %vm426, %v394
        %429 = vst.msk [vmem:[%s425 + $0x19] sm:$0xff] %vm426, %v395
        %430 = vst.msk [vmem:[%s425 + $0x21] sm:$0xff] %vm426, %v396
        %431 = vst.msk [vmem:[%s425 + $0x31] sm:$0xff] %vm426, %v397
        %432 = vst.msk [vmem:[%s425 + $0x39] sm:$0xff] %vm426, %v398
        %433 = vst.msk [vmem:[%s425 + $0x49] sm:$0xff] %vm426, %v399
        %434 = vst.msk [vmem:[%s425 + $0x51] sm:$0xff] %vm426, %v400
        %435 = vst.msk [vmem:[%s425 + $0x61] sm:$0xff] %vm426, %v401
        %436 = vst.msk [vmem:[%s425 + $0x69] sm:$0xff] %vm426, %v402
        %437 = vst.msk [vmem:[%s425 + $0x79] sm:$0xff] %vm426, %v403
        %438 = vst.msk [vmem:[%s425 + $0x81] sm:$0xff] %vm426, %v404
        %439 = vst.msk [vmem:[%s425 + $0x91] sm:$0xff] %vm426, %v405
        %440 = vst.msk [vmem:[%s425 + $0x99] sm:$0xff] %vm426, %v406
        %441 = vst.msk [vmem:[%s425 + $0xa9] sm:$0xff] %vm426, %v407
        %442 = vst.msk [vmem:[%s425 + $0xb1] sm:$0xff] %vm426, %v408
        %443 = vst.msk [vmem:[%s425 + $0xc1] sm:$0xff] %vm426, %v409
        %444 = vst.msk [vmem:[%s425 + $0xc9] sm:$0xff] %vm426, %v410
        %445 = vst.msk [vmem:[%s425 + $0xd9] sm:$0xff] %vm426, %v411
        %446 = vst.msk [vmem:[%s425 + $0xe1] sm:$0xff] %vm426, %v412
        %447 = vst.msk [vmem:[%s425 + $0xf1] sm:$0xff] %vm426, %v413
        %448 = vst.msk [vmem:[%s425 + $0xf9] sm:$0xff] %vm426, %v414
        %449 = vst.msk [vmem:[%s425 + $0x109] sm:$0xff] %vm426, %v415
        %450 = vst.msk [vmem:[%s425 + $0x111] sm:$0xff] %vm426, %v416
        %451 = vst.msk [vmem:[%s425 + $0x121] sm:$0xff] %vm426, %v417
        %452 = vst.msk [vmem:[%s425 + $0x129] sm:$0xff] %vm426, %v418
        %453 = vst.msk [vmem:[%s425 + $0x139] sm:$0xff] %vm426, %v419
        %454 = vst.msk [vmem:[%s425 + $0x141] sm:$0xff] %vm426, %v420
        %455 = vst.msk [vmem:[%s425 + $0x151] sm:$0xff] %vm426, %v421
        %456 = vst.msk [vmem:[%s425 + $0x159] sm:$0xff] %vm426, %v422
        %457 = vst.msk [vmem:[%s425 + $0x169] sm:$0xff] %vm426, %v423
        %458 = vst.msk [vmem:[%s425 + $0x171] sm:$0xff] %vm426, %v424
        %v459 = vld [vmem:[%s2] sm:$0x1]
        %v460 = vld [vmem:[%s4] sm:$0x1]
        %v461 = vld [vmem:[#allocation2] sm:$0xff]
        %v462 = vld [vmem:[#allocation2 + $0x8] sm:$0xff]
        %v463 = vld [vmem:[#allocation2 + $0x10] sm:$0x3]
        %v464 = vld [vmem:[#allocation2 + $0x18] sm:$0xff]
        %v465 = vld [vmem:[#allocation2 + $0x20] sm:$0xff]
        %v466 = vld [vmem:[#allocation2 + $0x28] sm:$0x3]
        %v467 = vld [vmem:[#allocation2 + $0x30] sm:$0xff]
        %v468 = vld [vmem:[#allocation2 + $0x38] sm:$0xff]
        %v469 = vld [vmem:[#allocation2 + $0x40] sm:$0x3]
        %v470 = vld [vmem:[#allocation2 + $0x48] sm:$0xff]
        %v471 = vld [vmem:[#allocation2 + $0x50] sm:$0xff]
        %v472 = vld [vmem:[#allocation2 + $0x58] sm:$0x3]
        %v473 = vld [vmem:[#allocation2 + $0x60] sm:$0xff]
        %v474 = vld [vmem:[#allocation2 + $0x68] sm:$0xff]
        %v475 = vld [vmem:[#allocation2 + $0x70] sm:$0x3]
        %v476 = vld [vmem:[#allocation2 + $0x78] sm:$0xff]
        %v477 = vld [vmem:[#allocation2 + $0x80] sm:$0xff]
        %v478 = vld [vmem:[#allocation2 + $0x88] sm:$0x3]
        %v479 = vld [vmem:[#allocation2 + $0x90] sm:$0xff]
        %v480 = vld [vmem:[#allocation2 + $0x98] sm:$0xff]
        %v481 = vld [vmem:[#allocation2 + $0xa0] sm:$0x3]
        %v482 = vld [vmem:[#allocation2 + $0xa8] sm:$0xff]
        %v483 = vld [vmem:[#allocation2 + $0xb0] sm:$0xff]
        %v484 = vld [vmem:[#allocation2 + $0xb8] sm:$0x3]
        %v485 = vld [vmem:[#allocation2 + $0xc0] sm:$0xff]
        %v486 = vld [vmem:[#allocation2 + $0xc8] sm:$0xff]
        %v487 = vld [vmem:[#allocation2 + $0xd0] sm:$0x3]
        %v488 = vld [vmem:[#allocation2 + $0xd8] sm:$0xff]
        %v489 = vld [vmem:[#allocation2 + $0xe0] sm:$0xff]
        %v490 = vld [vmem:[#allocation2 + $0xe8] sm:$0x3]
        %v491 = vld [vmem:[#allocation2 + $0xf0] sm:$0xff]
        %v492 = vld [vmem:[#allocation2 + $0xf8] sm:$0xff]
        %v493 = vld [vmem:[#allocation2 + $0x100] sm:$0x3]
        %v494 = vld [vmem:[#allocation2 + $0x108] sm:$0xff]
        %v495 = vld [vmem:[#allocation2 + $0x110] sm:$0xff]
        %v496 = vld [vmem:[#allocation2 + $0x118] sm:$0x3]
        %v497 = vld [vmem:[#allocation2 + $0x120] sm:$0xff]
        %v498 = vld [vmem:[#allocation2 + $0x128] sm:$0xff]
        %v499 = vld [vmem:[#allocation2 + $0x130] sm:$0x3]
        %v500 = vld [vmem:[#allocation2 + $0x138] sm:$0xff]
        %v501 = vld [vmem:[#allocation2 + $0x140] sm:$0xff]
        %v502 = vld [vmem:[#allocation2 + $0x148] sm:$0x3]
        %v503 = vld [vmem:[#allocation2 + $0x150] sm:$0xff]
        %v504 = vld [vmem:[#allocation2 + $0x158] sm:$0xff]
        %v505 = vld [vmem:[#allocation2 + $0x160] sm:$0x3]
        %v506 = vld [vmem:[#allocation2 + $0x168] sm:$0xff]
        %v507 = vld [vmem:[#allocation2 + $0x170] sm:$0xff]
        %v508 = vld [vmem:[#allocation2 + $0x178] sm:$0x3]
        %v509 = vld [vmem:[%s1] sm:$0xf]
        %vm558 = vcmask 1046528
        %v559 = vrot.slane %v461, 1
        %v560 = vrot.slane %v462, 1
        %v561 = vsel %vm558, %v559, %v560
        %v562 = vrot.slane %v463, 1
        %v563 = vsel %vm558, %v560, %v562
        %v564 = vrot.slane %v464, 1
        %v565 = vrot.slane %v465, 1
        %v566 = vsel %vm558, %v564, %v565
        %v567 = vrot.slane %v466, 1
        %v568 = vsel %vm558, %v565, %v567
        %v569 = vrot.slane %v467, 1
        %v570 = vrot.slane %v468, 1
        %v571 = vsel %vm558, %v569, %v570
        %v572 = vrot.slane %v469, 1
        %v573 = vsel %vm558, %v570, %v572
        %v574 = vrot.slane %v470, 1
        %v575 = vrot.slane %v471, 1
        %v576 = vsel %vm558, %v574, %v575
        %v577 = vrot.slane %v472, 1
        %v578 = vsel %vm558, %v575, %v577
        %v579 = vrot.slane %v473, 1
        %v580 = vrot.slane %v474, 1
        %v581 = vsel %vm558, %v579, %v580
        %v582 = vrot.slane %v475, 1
        %v583 = vsel %vm558, %v580, %v582
        %v584 = vrot.slane %v476, 1
        %v585 = vrot.slane %v477, 1
        %v586 = vsel %vm558, %v584, %v585
        %v587 = vrot.slane %v478, 1
        %v588 = vsel %vm558, %v585, %v587
        %v589 = vrot.slane %v479, 1
        %v590 = vrot.slane %v480, 1
        %v591 = vsel %vm558, %v589, %v590
        %v592 = vrot.slane %v481, 1
        %v593 = vsel %vm558, %v590, %v592
        %v594 = vrot.slane %v482, 1
        %v595 = vrot.slane %v483, 1
        %v596 = vsel %vm558, %v594, %v595
        %v597 = vrot.slane %v484, 1
        %v598 = vsel %vm558, %v595, %v597
        %v599 = vrot.slane %v485, 1
        %v600 = vrot.slane %v486, 1
        %v601 = vsel %vm558, %v599, %v600
        %v602 = vrot.slane %v487, 1
        %v603 = vsel %vm558, %v600, %v602
        %v604 = vrot.slane %v488, 1
        %v605 = vrot.slane %v489, 1
        %v606 = vsel %vm558, %v604, %v605
        %v607 = vrot.slane %v490, 1
        %v608 = vsel %vm558, %v605, %v607
        %v609 = vrot.slane %v491, 1
        %v610 = vrot.slane %v492, 1
        %v611 = vsel %vm558, %v609, %v610
        %v612 = vrot.slane %v493, 1
        %v613 = vsel %vm558, %v610, %v612
        %v614 = vrot.slane %v494, 1
        %v615 = vrot.slane %v495, 1
        %v616 = vsel %vm558, %v614, %v615
        %v617 = vrot.slane %v496, 1
        %v618 = vsel %vm558, %v615, %v617
        %v619 = vrot.slane %v497, 1
        %v620 = vrot.slane %v498, 1
        %v621 = vsel %vm558, %v619, %v620
        %v622 = vrot.slane %v499, 1
        %v623 = vsel %vm558, %v620, %v622
        %v624 = vrot.slane %v500, 1
        %v625 = vrot.slane %v501, 1
        %v626 = vsel %vm558, %v624, %v625
        %v627 = vrot.slane %v502, 1
        %v628 = vsel %vm558, %v625, %v627
        %v629 = vrot.slane %v503, 1
        %v630 = vrot.slane %v504, 1
        %v631 = vsel %vm558, %v629, %v630
        %v632 = vrot.slane %v505, 1
        %v633 = vsel %vm558, %v630, %v632
        %v634 = vrot.slane %v506, 1
        %v635 = vrot.slane %v507, 1
        %v636 = vsel %vm558, %v634, %v635
        %v637 = vrot.slane %v508, 1
        %v638 = vsel %vm558, %v635, %v637
        %v639 = vld [vmem:[%s1 + $0x4] sm:$0xf]
        %v640 = vsel %vm426, %v561, 0
        %v642 = vsel %vm426, %v563, 0
        %v644 = vsel %vm426, %v566, 0
        %v646 = vsel %vm426, %v568, 0
        %v648 = vsel %vm426, %v571, 0
        %v650 = vsel %vm426, %v573, 0
        %v652 = vsel %vm426, %v576, 0
        %v654 = vsel %vm426, %v578, 0
        %v656 = vsel %vm426, %v581, 0
        %v658 = vsel %vm426, %v583, 0
        %v660 = vsel %vm426, %v586, 0
        %v662 = vsel %vm426, %v588, 0
        %v664 = vsel %vm426, %v591, 0
        %v666 = vsel %vm426, %v593, 0
        %v668 = vsel %vm426, %v596, 0
        %v670 = vsel %vm426, %v598, 0
        %v672 = vsel %vm426, %v601, 0
        %v674 = vsel %vm426, %v603, 0
        %v676 = vsel %vm426, %v606, 0
        %v678 = vsel %vm426, %v608, 0
        %v680 = vsel %vm426, %v611, 0
        %v682 = vsel %vm426, %v613, 0
        %v684 = vsel %vm426, %v616, 0
        %v686 = vsel %vm426, %v618, 0
        %v688 = vsel %vm426, %v621, 0
        %v690 = vsel %vm426, %v623, 0
        %v692 = vsel %vm426, %v626, 0
        %v694 = vsel %vm426, %v628, 0
        %v696 = vsel %vm426, %v631, 0
        %v698 = vsel %vm426, %v633, 0
        %v700 = vsel %vm426, %v636, 0
        %v702 = vsel %vm426, %v638, 0
        %vm704 = vcmask 1043456
        %v706 = vsel %vm704, %v639, 0
        %708 = vmatprep.subr.mxu0 0.0
        %709 = vmatpush1.msra.mxu0 %v706
        %710 = vmatprep.subr.mxu0 0.0
        %711 = vmatpush1.msra.mxu0 0.0
        %712 = vmatprep.subr.mxu0 0.0
        %713 = vmatpush1.msra.mxu0 0.0
        %714 = vmatprep.subr.mxu0 0.0
        %715 = vmatpush1.msra.mxu0 0.0
        %716 = vmatprep.subr.mxu0 0.0
        %717 = vmatpush1.msra.mxu0 0.0
        %718 = vmatprep.subr.mxu0 0.0
        %719 = vmatpush1.msra.mxu0 0.0
        %720 = vmatprep.subr.mxu0 0.0
        %721 = vmatpush1.msra.mxu0 0.0
        %722 = vmatprep.subr.mxu0 0.0
        %723 = vmatpush1.msra.mxu0 0.0
        %724 = vmatprep.subr.mxu0 0.0
        %725 = vmatpush1.msra.mxu0 0.0
        %726 = vmatprep.subr.mxu0 0.0
        %727 = vmatpush1.msra.mxu0 0.0
        %728 = vmatprep.subr.mxu0 0.0
        %729 = vmatpush1.msra.mxu0 0.0
        %730 = vmatprep.subr.mxu0 0.0
        %731 = vmatpush1.msra.mxu0 0.0
        %732 = vmatprep.subr.mxu0 0.0
        %733 = vmatpush1.msra.mxu0 0.0
        %734 = vmatprep.subr.mxu0 0.0
        %735 = vmatpush1.msra.mxu0 0.0
        %736 = vmatprep.subr.mxu0 0.0
        %737 = vmatpush1.msra.mxu0 0.0
        %738 = vmatprep.subr.mxu0 0.0
        %739 = vmatpush1.msra.mxu0 0.0
        %740 = vmatprep.subr.mxu0 0.0
        %741 = vmatpush1.msra.mxu0 0.0
        %742 = vmatprep.subr.mxu0 0.0
        %743 = vmatpush1.msra.mxu0 0.0
        %744 = vmatprep.subr.mxu0 0.0
        %745 = vmatpush1.msra.mxu0 0.0
        %746 = vmatprep.subr.mxu0 0.0
        %747 = vmatpush1.msra.mxu0 0.0
        %748 = vmatprep.subr.mxu0 0.0
        %749 = vmatpush1.msra.mxu0 0.0
        %750 = vmatprep.subr.mxu0 0.0
        %751 = vmatpush1.msra.mxu0 0.0
        %752 = vmatprep.subr.mxu0 0.0
        %753 = vmatpush1.msra.mxu0 0.0
        %754 = vmatprep.subr.mxu0 0.0
        %755 = vmatpush1.msra.mxu0 0.0
        %756 = vmatprep.subr.mxu0 0.0
        %757 = vmatpush1.msra.mxu0 0.0
        %758 = vmatprep.subr.mxu0 0.0
        %759 = vmatpush1.msra.mxu0 0.0
        %760 = vmatprep.subr.mxu0 0.0
        %761 = vmatpush1.msra.mxu0 0.0
        %762 = vmatprep.subr.mxu0 0.0
        %763 = vmatpush1.msra.mxu0 0.0
        %764 = vmatprep.subr.mxu0 0.0
        %765 = vmatpush1.msra.mxu0 0.0
        %766 = vmatprep.subr.mxu0 0.0
        %767 = vmatpush1.msra.mxu0 0.0
        %768 = vmatprep.subr.mxu0 0.0
        %769 = vmatpush1.msra.mxu0 0.0
        %770 = vmatprep.subr.mxu0 0.0
        %771 = vmatpush1.msra.mxu0 0.0
        %772 = vmatprep.mubr.f32.mxu0 0.0
        %773 = vmatmul.mubr.f32.gmra.mrb[0].mxu0 %v640
        %v774 = vpop.f32.mrb[0].mxu0
        %v775 = vadd.f32 0.0, %v774
        %v776 = vpop.f32.mrb[0].mxu0
        %777 = vmatprep.mubr.f32.mxu0 0.0
        %778 = vmatmul.mubr.f32.gmra.mrb[0].mxu0 %v642
        %v779 = vpop.f32.mrb[0].mxu0
        %v780 = vadd.f32 0.0, %v779
        %v781 = vpop.f32.mrb[0].mxu0
        %782 = vmatprep.mubr.f32.mxu0 0.0
        %783 = vmatmul.mubr.f32.gmra.mrb[0].mxu0 %v644
        %v784 = vpop.f32.mrb[0].mxu0
        %v785 = vadd.f32 0.0, %v784
        %v786 = vpop.f32.mrb[0].mxu0
        %787 = vmatprep.mubr.f32.mxu0 0.0
        %788 = vmatmul.mubr.f32.gmra.mrb[0].mxu0 %v646
        %v789 = vpop.f32.mrb[0].mxu0
        %v790 = vadd.f32 0.0, %v789
        %v791 = vpop.f32.mrb[0].mxu0
        %792 = vmatprep.mubr.f32.mxu0 0.0
        %793 = vmatmul.mubr.f32.gmra.mrb[0].mxu0 %v648
        %v794 = vpop.f32.mrb[0].mxu0
        %v795 = vadd.f32 0.0, %v794
        %v796 = vpop.f32.mrb[0].mxu0
        %797 = vmatprep.mubr.f32.mxu0 0.0
        %798 = vmatmul.mubr.f32.gmra.mrb[0].mxu0 %v650
        %v799 = vpop.f32.mrb[0].mxu0
        %v800 = vadd.f32 0.0, %v799
        %v801 = vpop.f32.mrb[0].mxu0
        %802 = vmatprep.mubr.f32.mxu0 0.0
        %803 = vmatmul.mubr.f32.gmra.mrb[0].mxu0 %v652
        %v804 = vpop.f32.mrb[0].mxu0
        %v805 = vadd.f32 0.0, %v804
        %v806 = vpop.f32.mrb[0].mxu0
        %807 = vmatprep.mubr.f32.mxu0 0.0
        %808 = vmatmul.mubr.f32.gmra.mrb[0].mxu0 %v654
        %v809 = vpop.f32.mrb[0].mxu0
        %v810 = vadd.f32 0.0, %v809
        %v811 = vpop.f32.mrb[0].mxu0
        %812 = vmatprep.mubr.f32.mxu0 0.0
        %813 = vmatmul.mubr.f32.gmra.mrb[0].mxu0 %v656
        %v814 = vpop.f32.mrb[0].mxu0
        %v815 = vadd.f32 0.0, %v814
        %v816 = vpop.f32.mrb[0].mxu0
        %817 = vmatprep.mubr.f32.mxu0 0.0
        %818 = vmatmul.mubr.f32.gmra.mrb[0].mxu0 %v658
        %v819 = vpop.f32.mrb[0].mxu0
        %v820 = vadd.f32 0.0, %v819
        %v821 = vpop.f32.mrb[0].mxu0
        %822 = vmatprep.mubr.f32.mxu0 0.0
        %823 = vmatmul.mubr.f32.gmra.mrb[0].mxu0 %v660
        %v824 = vpop.f32.mrb[0].mxu0
        %v825 = vadd.f32 0.0, %v824
        %v826 = vpop.f32.mrb[0].mxu0
        %827 = vmatprep.mubr.f32.mxu0 0.0
        %828 = vmatmul.mubr.f32.gmra.mrb[0].mxu0 %v662
        %v829 = vpop.f32.mrb[0].mxu0
        %v830 = vadd.f32 0.0, %v829
        %v831 = vpop.f32.mrb[0].mxu0
        %832 = vmatprep.mubr.f32.mxu0 0.0
        %833 = vmatmul.mubr.f32.gmra.mrb[0].mxu0 %v664
        %v834 = vpop.f32.mrb[0].mxu0
        %v835 = vadd.f32 0.0, %v834
        %v836 = vpop.f32.mrb[0].mxu0
        %837 = vmatprep.mubr.f32.mxu0 0.0
        %838 = vmatmul.mubr.f32.gmra.mrb[0].mxu0 %v666
        %v839 = vpop.f32.mrb[0].mxu0
        %v840 = vadd.f32 0.0, %v839
        %v841 = vpop.f32.mrb[0].mxu0
        %842 = vmatprep.mubr.f32.mxu0 0.0
        %843 = vmatmul.mubr.f32.gmra.mrb[0].mxu0 %v668
        %v844 = vpop.f32.mrb[0].mxu0
        %v845 = vadd.f32 0.0, %v844
        %v846 = vpop.f32.mrb[0].mxu0
        %847 = vmatprep.mubr.f32.mxu0 0.0
        %848 = vmatmul.mubr.f32.gmra.mrb[0].mxu0 %v670
        %v849 = vpop.f32.mrb[0].mxu0
        %v850 = vadd.f32 0.0, %v849
        %v851 = vpop.f32.mrb[0].mxu0
        %852 = vmatprep.mubr.f32.mxu0 0.0
        %853 = vmatmul.mubr.f32.gmra.mrb[0].mxu0 %v672
        %v854 = vpop.f32.mrb[0].mxu0
        %v855 = vadd.f32 0.0, %v854
        %v856 = vpop.f32.mrb[0].mxu0
        %857 = vmatprep.mubr.f32.mxu0 0.0
        %858 = vmatmul.mubr.f32.gmra.mrb[0].mxu0 %v674
        %v859 = vpop.f32.mrb[0].mxu0
        %v860 = vadd.f32 0.0, %v859
        %v861 = vpop.f32.mrb[0].mxu0
        %862 = vmatprep.mubr.f32.mxu0 0.0
        %863 = vmatmul.mubr.f32.gmra.mrb[0].mxu0 %v676
        %v864 = vpop.f32.mrb[0].mxu0
        %v865 = vadd.f32 0.0, %v864
        %v866 = vpop.f32.mrb[0].mxu0
        %867 = vmatprep.mubr.f32.mxu0 0.0
        %868 = vmatmul.mubr.f32.gmra.mrb[0].mxu0 %v678
        %v869 = vpop.f32.mrb[0].mxu0
        %v870 = vadd.f32 0.0, %v869
        %v871 = vpop.f32.mrb[0].mxu0
        %872 = vmatprep.mubr.f32.mxu0 0.0
        %873 = vmatmul.mubr.f32.gmra.mrb[0].mxu0 %v680
        %v874 = vpop.f32.mrb[0].mxu0
        %v875 = vadd.f32 0.0, %v874
        %v876 = vpop.f32.mrb[0].mxu0
        %877 = vmatprep.mubr.f32.mxu0 0.0
        %878 = vmatmul.mubr.f32.gmra.mrb[0].mxu0 %v682
        %v879 = vpop.f32.mrb[0].mxu0
        %v880 = vadd.f32 0.0, %v879
        %v881 = vpop.f32.mrb[0].mxu0
        %882 = vmatprep.mubr.f32.mxu0 0.0
        %883 = vmatmul.mubr.f32.gmra.mrb[0].mxu0 %v684
        %v884 = vpop.f32.mrb[0].mxu0
        %v885 = vadd.f32 0.0, %v884
        %v886 = vpop.f32.mrb[0].mxu0
        %887 = vmatprep.mubr.f32.mxu0 0.0
        %888 = vmatmul.mubr.f32.gmra.mrb[0].mxu0 %v686
        %v889 = vpop.f32.mrb[0].mxu0
        %v890 = vadd.f32 0.0, %v889
        %v891 = vpop.f32.mrb[0].mxu0
        %892 = vmatprep.mubr.f32.mxu0 0.0
        %893 = vmatmul.mubr.f32.gmra.mrb[0].mxu0 %v688
        %v894 = vpop.f32.mrb[0].mxu0
        %v895 = vadd.f32 0.0, %v894
        %v896 = vpop.f32.mrb[0].mxu0
        %897 = vmatprep.mubr.f32.mxu0 0.0
        %898 = vmatmul.mubr.f32.gmra.mrb[0].mxu0 %v690
        %v899 = vpop.f32.mrb[0].mxu0
        %v900 = vadd.f32 0.0, %v899
        %v901 = vpop.f32.mrb[0].mxu0
        %902 = vmatprep.mubr.f32.mxu0 0.0
        %903 = vmatmul.mubr.f32.gmra.mrb[0].mxu0 %v692
        %v904 = vpop.f32.mrb[0].mxu0
        %v905 = vadd.f32 0.0, %v904
        %v906 = vpop.f32.mrb[0].mxu0
        %907 = vmatprep.mubr.f32.mxu0 0.0
        %908 = vmatmul.mubr.f32.gmra.mrb[0].mxu0 %v694
        %v909 = vpop.f32.mrb[0].mxu0
        %v910 = vadd.f32 0.0, %v909
        %v911 = vpop.f32.mrb[0].mxu0
        %912 = vmatprep.mubr.f32.mxu0 0.0
        %913 = vmatmul.mubr.f32.gmra.mrb[0].mxu0 %v696
        %v914 = vpop.f32.mrb[0].mxu0
        %v915 = vadd.f32 0.0, %v914
        %v916 = vpop.f32.mrb[0].mxu0
        %917 = vmatprep.mubr.f32.mxu0 0.0
        %918 = vmatmul.mubr.f32.gmra.mrb[0].mxu0 %v698
        %v919 = vpop.f32.mrb[0].mxu0
        %v920 = vadd.f32 0.0, %v919
        %v921 = vpop.f32.mrb[0].mxu0
        %922 = vmatprep.mubr.f32.mxu0 0.0
        %923 = vmatmul.mubr.f32.gmra.mrb[0].mxu0 %v700
        %v924 = vpop.f32.mrb[0].mxu0
        %v925 = vadd.f32 0.0, %v924
        %v926 = vpop.f32.mrb[0].mxu0
        %927 = vmatprep.mubr.f32.mxu0 0.0
        %928 = vmatmul.mubr.f32.gmra.mrb[0].mxu0 %v702
        %v929 = vpop.f32.mrb[0].mxu0
        %v930 = vadd.f32 0.0, %v929
        %v931 = vpop.f32.mrb[0].mxu0
        %932 = vdwg.mxu0
        %v933 = vsel %vm426, %v461, 0
        %v935 = vsel %vm426, %v462, 0
        %v937 = vsel %vm426, %v464, 0
        %v939 = vsel %vm426, %v465, 0
        %v941 = vsel %vm426, %v467, 0
        %v943 = vsel %vm426, %v468, 0
        %v945 = vsel %vm426, %v470, 0
        %v947 = vsel %vm426, %v471, 0
        %v949 = vsel %vm426, %v473, 0
        %v951 = vsel %vm426, %v474, 0
        %v953 = vsel %vm426, %v476, 0
        %v955 = vsel %vm426, %v477, 0
        %v957 = vsel %vm426, %v479, 0
        %v959 = vsel %vm426, %v480, 0
        %v961 = vsel %vm426, %v482, 0
        %v963 = vsel %vm426, %v483, 0
        %v965 = vsel %vm426, %v485, 0
        %v967 = vsel %vm426, %v486, 0
        %v969 = vsel %vm426, %v488, 0
        %v971 = vsel %vm426, %v489, 0
        %v973 = vsel %vm426, %v491, 0
        %v975 = vsel %vm426, %v492, 0
        %v977 = vsel %vm426, %v494, 0
        %v979 = vsel %vm426, %v495, 0
        %v981 = vsel %vm426, %v497, 0
        %v983 = vsel %vm426, %v498, 0
        %v985 = vsel %vm426, %v500, 0
        %v987 = vsel %vm426, %v501, 0
        %v989 = vsel %vm426, %v503, 0
        %v991 = vsel %vm426, %v504, 0
        %v993 = vsel %vm426, %v506, 0
        %v995 = vsel %vm426, %v507, 0
        %v998 = vsel %vm704, %v509, 0
        %1000 = vmatprep.subr.mxu0 0.0
        %1001 = vmatpush1.msra.mxu0 %v998
        %1002 = vmatprep.subr.mxu0 0.0
        %1003 = vmatpush1.msra.mxu0 0.0
        %1004 = vmatprep.subr.mxu0 0.0
        %1005 = vmatpush1.msra.mxu0 0.0
        %1006 = vmatprep.subr.mxu0 0.0
        %1007 = vmatpush1.msra.mxu0 0.0
        %1008 = vmatprep.subr.mxu0 0.0
        %1009 = vmatpush1.msra.mxu0 0.0
        %1010 = vmatprep.subr.mxu0 0.0
        %1011 = vmatpush1.msra.mxu0 0.0
        %1012 = vmatprep.subr.mxu0 0.0
        %1013 = vmatpush1.msra.mxu0 0.0
        %1014 = vmatprep.subr.mxu0 0.0
        %1015 = vmatpush1.msra.mxu0 0.0
        %1016 = vmatprep.subr.mxu0 0.0
        %1017 = vmatpush1.msra.mxu0 0.0
        %1018 = vmatprep.subr.mxu0 0.0
        %1019 = vmatpush1.msra.mxu0 0.0
        %1020 = vmatprep.subr.mxu0 0.0
        %1021 = vmatpush1.msra.mxu0 0.0
        %1022 = vmatprep.subr.mxu0 0.0
        %1023 = vmatpush1.msra.mxu0 0.0
        %1024 = vmatprep.subr.mxu0 0.0
        %1025 = vmatpush1.msra.mxu0 0.0
        %1026 = vmatprep.subr.mxu0 0.0
        %1027 = vmatpush1.msra.mxu0 0.0
        %1028 = vmatprep.subr.mxu0 0.0
        %1029 = vmatpush1.msra.mxu0 0.0
        %1030 = vmatprep.subr.mxu0 0.0
        %1031 = vmatpush1.msra.mxu0 0.0
        %1032 = vmatprep.subr.mxu0 0.0
        %1033 = vmatpush1.msra.mxu0 0.0
        %1034 = vmatprep.subr.mxu0 0.0
        %1035 = vmatpush1.msra.mxu0 0.0
        %1036 = vmatprep.subr.mxu0 0.0
        %1037 = vmatpush1.msra.mxu0 0.0
        %1038 = vmatprep.subr.mxu0 0.0
        %1039 = vmatpush1.msra.mxu0 0.0
        %1040 = vmatprep.subr.mxu0 0.0
        %1041 = vmatpush1.msra.mxu0 0.0
        %1042 = vmatprep.subr.mxu0 0.0
        %1043 = vmatpush1.msra.mxu0 0.0
        %1044 = vmatprep.subr.mxu0 0.0
        %1045 = vmatpush1.msra.mxu0 0.0
        %1046 = vmatprep.subr.mxu0 0.0
        %1047 = vmatpush1.msra.mxu0 0.0
        %1048 = vmatprep.subr.mxu0 0.0
        %1049 = vmatpush1.msra.mxu0 0.0
        %1050 = vmatprep.subr.mxu0 0.0
        %1051 = vmatpush1.msra.mxu0 0.0
        %1052 = vmatprep.subr.mxu0 0.0
        %1053 = vmatpush1.msra.mxu0 0.0
        %1054 = vmatprep.subr.mxu0 0.0
        %1055 = vmatpush1.msra.mxu0 0.0
        %1056 = vmatprep.subr.mxu0 0.0
        %1057 = vmatpush1.msra.mxu0 0.0
        %1058 = vmatprep.subr.mxu0 0.0
        %1059 = vmatpush1.msra.mxu0 0.0
        %1060 = vmatprep.subr.mxu0 0.0
        %1061 = vmatpush1.msra.mxu0 0.0
        %1062 = vmatprep.subr.mxu0 0.0
        %1063 = vmatpush1.msra.mxu0 0.0
        %1064 = vmatprep.mubr.f32.mxu0 0.0
        %1065 = vmatmul.mubr.f32.gmra.mrb[0].mxu0 %v933
        %v1066 = vpop.f32.mrb[0].mxu0
        %v1067 = vadd.f32 %v775, %v1066
        %v1068 = vpop.f32.mrb[0].mxu0
        %1069 = vmatprep.mubr.f32.mxu0 0.0
        %1070 = vmatmul.mubr.f32.gmra.mrb[0].mxu0 %v935
        %v1071 = vpop.f32.mrb[0].mxu0
        %v1072 = vadd.f32 %v780, %v1071
        %v1073 = vpop.f32.mrb[0].mxu0
        %1074 = vmatprep.mubr.f32.mxu0 0.0
        %1075 = vmatmul.mubr.f32.gmra.mrb[0].mxu0 %v937
        %v1076 = vpop.f32.mrb[0].mxu0
        %v1077 = vadd.f32 %v785, %v1076
        %v1078 = vpop.f32.mrb[0].mxu0
        %1079 = vmatprep.mubr.f32.mxu0 0.0
        %1080 = vmatmul.mubr.f32.gmra.mrb[0].mxu0 %v939
        %v1081 = vpop.f32.mrb[0].mxu0
        %v1082 = vadd.f32 %v790, %v1081
        %v1083 = vpop.f32.mrb[0].mxu0
        %1084 = vmatprep.mubr.f32.mxu0 0.0
        %1085 = vmatmul.mubr.f32.gmra.mrb[0].mxu0 %v941
        %v1086 = vpop.f32.mrb[0].mxu0
        %v1087 = vadd.f32 %v795, %v1086
        %v1088 = vpop.f32.mrb[0].mxu0
        %1089 = vmatprep.mubr.f32.mxu0 0.0
        %1090 = vmatmul.mubr.f32.gmra.mrb[0].mxu0 %v943
        %v1091 = vpop.f32.mrb[0].mxu0
        %v1092 = vadd.f32 %v800, %v1091
        %v1093 = vpop.f32.mrb[0].mxu0
        %1094 = vmatprep.mubr.f32.mxu0 0.0
        %1095 = vmatmul.mubr.f32.gmra.mrb[0].mxu0 %v945
        %v1096 = vpop.f32.mrb[0].mxu0
        %v1097 = vadd.f32 %v805, %v1096
        %v1098 = vpop.f32.mrb[0].mxu0
        %1099 = vmatprep.mubr.f32.mxu0 0.0
        %1100 = vmatmul.mubr.f32.gmra.mrb[0].mxu0 %v947
        %v1101 = vpop.f32.mrb[0].mxu0
        %v1102 = vadd.f32 %v810, %v1101
        %v1103 = vpop.f32.mrb[0].mxu0
        %1104 = vmatprep.mubr.f32.mxu0 0.0
        %1105 = vmatmul.mubr.f32.gmra.mrb[0].mxu0 %v949
        %v1106 = vpop.f32.mrb[0].mxu0
        %v1107 = vadd.f32 %v815, %v1106
        %v1108 = vpop.f32.mrb[0].mxu0
        %1109 = vmatprep.mubr.f32.mxu0 0.0
        %1110 = vmatmul.mubr.f32.gmra.mrb[0].mxu0 %v951
        %v1111 = vpop.f32.mrb[0].mxu0
        %v1112 = vadd.f32 %v820, %v1111
        %v1113 = vpop.f32.mrb[0].mxu0
        %1114 = vmatprep.mubr.f32.mxu0 0.0
        %1115 = vmatmul.mubr.f32.gmra.mrb[0].mxu0 %v953
        %v1116 = vpop.f32.mrb[0].mxu0
        %v1117 = vadd.f32 %v825, %v1116
        %v1118 = vpop.f32.mrb[0].mxu0
        %1119 = vmatprep.mubr.f32.mxu0 0.0
        %1120 = vmatmul.mubr.f32.gmra.mrb[0].mxu0 %v955
        %v1121 = vpop.f32.mrb[0].mxu0
        %v1122 = vadd.f32 %v830, %v1121
        %v1123 = vpop.f32.mrb[0].mxu0
        %1124 = vmatprep.mubr.f32.mxu0 0.0
        %1125 = vmatmul.mubr.f32.gmra.mrb[0].mxu0 %v957
        %v1126 = vpop.f32.mrb[0].mxu0
        %v1127 = vadd.f32 %v835, %v1126
        %v1128 = vpop.f32.mrb[0].mxu0
        %1129 = vmatprep.mubr.f32.mxu0 0.0
        %1130 = vmatmul.mubr.f32.gmra.mrb[0].mxu0 %v959
        %v1131 = vpop.f32.mrb[0].mxu0
        %v1132 = vadd.f32 %v840, %v1131
        %v1133 = vpop.f32.mrb[0].mxu0
        %1134 = vmatprep.mubr.f32.mxu0 0.0
        %1135 = vmatmul.mubr.f32.gmra.mrb[0].mxu0 %v961
        %v1136 = vpop.f32.mrb[0].mxu0
        %v1137 = vadd.f32 %v845, %v1136
        %v1138 = vpop.f32.mrb[0].mxu0
        %1139 = vmatprep.mubr.f32.mxu0 0.0
        %1140 = vmatmul.mubr.f32.gmra.mrb[0].mxu0 %v963
        %v1141 = vpop.f32.mrb[0].mxu0
        %v1142 = vadd.f32 %v850, %v1141
        %v1143 = vpop.f32.mrb[0].mxu0
        %1144 = vmatprep.mubr.f32.mxu0 0.0
        %1145 = vmatmul.mubr.f32.gmra.mrb[0].mxu0 %v965
        %v1146 = vpop.f32.mrb[0].mxu0
        %v1147 = vadd.f32 %v855, %v1146
        %v1148 = vpop.f32.mrb[0].mxu0
        %1149 = vmatprep.mubr.f32.mxu0 0.0
        %1150 = vmatmul.mubr.f32.gmra.mrb[0].mxu0 %v967
        %v1151 = vpop.f32.mrb[0].mxu0
        %v1152 = vadd.f32 %v860, %v1151
        %v1153 = vpop.f32.mrb[0].mxu0
        %1154 = vmatprep.mubr.f32.mxu0 0.0
        %1155 = vmatmul.mubr.f32.gmra.mrb[0].mxu0 %v969
        %v1156 = vpop.f32.mrb[0].mxu0
        %v1157 = vadd.f32 %v865, %v1156
        %v1158 = vpop.f32.mrb[0].mxu0
        %1159 = vmatprep.mubr.f32.mxu0 0.0
        %1160 = vmatmul.mubr.f32.gmra.mrb[0].mxu0 %v971
        %v1161 = vpop.f32.mrb[0].mxu0
        %v1162 = vadd.f32 %v870, %v1161
        %v1163 = vpop.f32.mrb[0].mxu0
        %1164 = vmatprep.mubr.f32.mxu0 0.0
        %1165 = vmatmul.mubr.f32.gmra.mrb[0].mxu0 %v973
        %v1166 = vpop.f32.mrb[0].mxu0
        %v1167 = vadd.f32 %v875, %v1166
        %v1168 = vpop.f32.mrb[0].mxu0
        %1169 = vmatprep.mubr.f32.mxu0 0.0
        %1170 = vmatmul.mubr.f32.gmra.mrb[0].mxu0 %v975
        %v1171 = vpop.f32.mrb[0].mxu0
        %v1172 = vadd.f32 %v880, %v1171
        %v1173 = vpop.f32.mrb[0].mxu0
        %1174 = vmatprep.mubr.f32.mxu0 0.0
        %1175 = vmatmul.mubr.f32.gmra.mrb[0].mxu0 %v977
        %v1176 = vpop.f32.mrb[0].mxu0
        %v1177 = vadd.f32 %v885, %v1176
        %v1178 = vpop.f32.mrb[0].mxu0
        %1179 = vmatprep.mubr.f32.mxu0 0.0
        %1180 = vmatmul.mubr.f32.gmra.mrb[0].mxu0 %v979
        %v1181 = vpop.f32.mrb[0].mxu0
        %v1182 = vadd.f32 %v890, %v1181
        %v1183 = vpop.f32.mrb[0].mxu0
        %1184 = vmatprep.mubr.f32.mxu0 0.0
        %1185 = vmatmul.mubr.f32.gmra.mrb[0].mxu0 %v981
        %v1186 = vpop.f32.mrb[0].mxu0
        %v1187 = vadd.f32 %v895, %v1186
        %v1188 = vpop.f32.mrb[0].mxu0
        %1189 = vmatprep.mubr.f32.mxu0 0.0
        %1190 = vmatmul.mubr.f32.gmra.mrb[0].mxu0 %v983
        %v1191 = vpop.f32.mrb[0].mxu0
        %v1192 = vadd.f32 %v900, %v1191
        %v1193 = vpop.f32.mrb[0].mxu0
        %1194 = vmatprep.mubr.f32.mxu0 0.0
        %1195 = vmatmul.mubr.f32.gmra.mrb[0].mxu0 %v985
        %v1196 = vpop.f32.mrb[0].mxu0
        %v1197 = vadd.f32 %v905, %v1196
        %v1198 = vpop.f32.mrb[0].mxu0
        %1199 = vmatprep.mubr.f32.mxu0 0.0
        %1200 = vmatmul.mubr.f32.gmra.mrb[0].mxu0 %v987
        %v1201 = vpop.f32.mrb[0].mxu0
        %v1202 = vadd.f32 %v910, %v1201
        %v1203 = vpop.f32.mrb[0].mxu0
        %1204 = vmatprep.mubr.f32.mxu0 0.0
        %1205 = vmatmul.mubr.f32.gmra.mrb[0].mxu0 %v989
        %v1206 = vpop.f32.mrb[0].mxu0
        %v1207 = vadd.f32 %v915, %v1206
        %v1208 = vpop.f32.mrb[0].mxu0
        %1209 = vmatprep.mubr.f32.mxu0 0.0
        %1210 = vmatmul.mubr.f32.gmra.mrb[0].mxu0 %v991
        %v1211 = vpop.f32.mrb[0].mxu0
        %v1212 = vadd.f32 %v920, %v1211
        %v1213 = vpop.f32.mrb[0].mxu0
        %1214 = vmatprep.mubr.f32.mxu0 0.0
        %1215 = vmatmul.mubr.f32.gmra.mrb[0].mxu0 %v993
        %v1216 = vpop.f32.mrb[0].mxu0
        %v1217 = vadd.f32 %v925, %v1216
        %v1218 = vpop.f32.mrb[0].mxu0
        %1219 = vmatprep.mubr.f32.mxu0 0.0
        %1220 = vmatmul.mubr.f32.gmra.mrb[0].mxu0 %v995
        %v1221 = vpop.f32.mrb[0].mxu0
        %v1222 = vadd.f32 %v930, %v1221
        %v1223 = vpop.f32.mrb[0].mxu0
        %1224 = vdwg.mxu0
        %vm1225 = vcmask 1045504
        %v1226 = vrot.slane %v461, 2
        %v1227 = vrot.slane %v462, 2
        %v1228 = vsel %vm1225, %v1226, %v1227
        %v1229 = vrot.slane %v463, 2
        %v1230 = vsel %vm1225, %v1227, %v1229
        %v1231 = vrot.slane %v464, 2
        %v1232 = vrot.slane %v465, 2
        %v1233 = vsel %vm1225, %v1231, %v1232
        %v1234 = vrot.slane %v466, 2
        %v1235 = vsel %vm1225, %v1232, %v1234
        %v1236 = vrot.slane %v467, 2
        %v1237 = vrot.slane %v468, 2
        %v1238 = vsel %vm1225, %v1236, %v1237
        %v1239 = vrot.slane %v469, 2
        %v1240 = vsel %vm1225, %v1237, %v1239
        %v1241 = vrot.slane %v470, 2
        %v1242 = vrot.slane %v471, 2
        %v1243 = vsel %vm1225, %v1241, %v1242
        %v1244 = vrot.slane %v472, 2
        %v1245 = vsel %vm1225, %v1242, %v1244
        %v1246 = vrot.slane %v473, 2
        %v1247 = vrot.slane %v474, 2
        %v1248 = vsel %vm1225, %v1246, %v1247
        %v1249 = vrot.slane %v475, 2
        %v1250 = vsel %vm1225, %v1247, %v1249
        %v1251 = vrot.slane %v476, 2
        %v1252 = vrot.slane %v477, 2
        %v1253 = vsel %vm1225, %v1251, %v1252
        %v1254 = vrot.slane %v478, 2
        %v1255 = vsel %vm1225, %v1252, %v1254
        %v1256 = vrot.slane %v479, 2
        %v1257 = vrot.slane %v480, 2
        %v1258 = vsel %vm1225, %v1256, %v1257
        %v1259 = vrot.slane %v481, 2
        %v1260 = vsel %vm1225, %v1257, %v1259
        %v1261 = vrot.slane %v482, 2
        %v1262 = vrot.slane %v483, 2
        %v1263 = vsel %vm1225, %v1261, %v1262
        %v1264 = vrot.slane %v484, 2
        %v1265 = vsel %vm1225, %v1262, %v1264
        %v1266 = vrot.slane %v485, 2
        %v1267 = vrot.slane %v486, 2
        %v1268 = vsel %vm1225, %v1266, %v1267
        %v1269 = vrot.slane %v487, 2
        %v1270 = vsel %vm1225, %v1267, %v1269
        %v1271 = vrot.slane %v488, 2
        %v1272 = vrot.slane %v489, 2
        %v1273 = vsel %vm1225, %v1271, %v1272
        %v1274 = vrot.slane %v490, 2
        %v1275 = vsel %vm1225, %v1272, %v1274
        %v1276 = vrot.slane %v491, 2
        %v1277 = vrot.slane %v492, 2
        %v1278 = vsel %vm1225, %v1276, %v1277
        %v1279 = vrot.slane %v493, 2
        %v1280 = vsel %vm1225, %v1277, %v1279
        %v1281 = vrot.slane %v494, 2
        %v1282 = vrot.slane %v495, 2
        %v1283 = vsel %vm1225, %v1281, %v1282
        %v1284 = vrot.slane %v496, 2
        %v1285 = vsel %vm1225, %v1282, %v1284
        %v1286 = vrot.slane %v497, 2
        %v1287 = vrot.slane %v498, 2
        %v1288 = vsel %vm1225, %v1286, %v1287
        %v1289 = vrot.slane %v499, 2
        %v1290 = vsel %vm1225, %v1287, %v1289
        %v1291 = vrot.slane %v500, 2
        %v1292 = vrot.slane %v501, 2
        %v1293 = vsel %vm1225, %v1291, %v1292
        %v1294 = vrot.slane %v502, 2
        %v1295 = vsel %vm1225, %v1292, %v1294
        %v1296 = vrot.slane %v503, 2
        %v1297 = vrot.slane %v504, 2
        %v1298 = vsel %vm1225, %v1296, %v1297
        %v1299 = vrot.slane %v505, 2
        %v1300 = vsel %vm1225, %v1297, %v1299
        %v1301 = vrot.slane %v506, 2
        %v1302 = vrot.slane %v507, 2
        %v1303 = vsel %vm1225, %v1301, %v1302
        %v1304 = vrot.slane %v508, 2
        %v1305 = vsel %vm1225, %v1302, %v1304
        %v1306 = vld [vmem:[%s1 + $0x8] sm:$0xf]
        %v1307 = vsel %vm426, %v1228, 0
        %v1309 = vsel %vm426, %v1230, 0
        %v1311 = vsel %vm426, %v1233, 0
        %v1313 = vsel %vm426, %v1235, 0
        %v1315 = vsel %vm426, %v1238, 0
        %v1317 = vsel %vm426, %v1240, 0
        %v1319 = vsel %vm426, %v1243, 0
        %v1321 = vsel %vm426, %v1245, 0
        %v1323 = vsel %vm426, %v1248, 0
        %v1325 = vsel %vm426, %v1250, 0
        %v1327 = vsel %vm426, %v1253, 0
        %v1329 = vsel %vm426, %v1255, 0
        %v1331 = vsel %vm426, %v1258, 0
        %v1333 = vsel %vm426, %v1260, 0
        %v1335 = vsel %vm426, %v1263, 0
        %v1337 = vsel %vm426, %v1265, 0
        %v1339 = vsel %vm426, %v1268, 0
        %v1341 = vsel %vm426, %v1270, 0
        %v1343 = vsel %vm426, %v1273, 0
        %v1345 = vsel %vm426, %v1275, 0
        %v1347 = vsel %vm426, %v1278, 0
        %v1349 = vsel %vm426, %v1280, 0
        %v1351 = vsel %vm426, %v1283, 0
        %v1353 = vsel %vm426, %v1285, 0
        %v1355 = vsel %vm426, %v1288, 0
        %v1357 = vsel %vm426, %v1290, 0
        %v1359 = vsel %vm426, %v1293, 0
        %v1361 = vsel %vm426, %v1295, 0
        %v1363 = vsel %vm426, %v1298, 0
        %v1365 = vsel %vm426, %v1300, 0
        %v1367 = vsel %vm426, %v1303, 0
        %v1369 = vsel %vm426, %v1305, 0
        %v1372 = vsel %vm704, %v1306, 0
        %1374 = vmatprep.subr.mxu0 0.0
        %1375 = vmatpush1.msra.mxu0 %v1372
        %1376 = vmatprep.subr.mxu0 0.0
        %1377 = vmatpush1.msra.mxu0 0.0
        %1378 = vmatprep.subr.mxu0 0.0
        %1379 = vmatpush1.msra.mxu0 0.0
        %1380 = vmatprep.subr.mxu0 0.0
        %1381 = vmatpush1.msra.mxu0 0.0
        %1382 = vmatprep.subr.mxu0 0.0
        %1383 = vmatpush1.msra.mxu0 0.0
        %1384 = vmatprep.subr.mxu0 0.0
        %1385 = vmatpush1.msra.mxu0 0.0
        %1386 = vmatprep.subr.mxu0 0.0
        %1387 = vmatpush1.msra.mxu0 0.0
        %1388 = vmatprep.subr.mxu0 0.0
        %1389 = vmatpush1.msra.mxu0 0.0
        %1390 = vmatprep.subr.mxu0 0.0
        %1391 = vmatpush1.msra.mxu0 0.0
        %1392 = vmatprep.subr.mxu0 0.0
        %1393 = vmatpush1.msra.mxu0 0.0
        %1394 = vmatprep.subr.mxu0 0.0
        %1395 = vmatpush1.msra.mxu0 0.0
        %1396 = vmatprep.subr.mxu0 0.0
        %1397 = vmatpush1.msra.mxu0 0.0
        %1398 = vmatprep.subr.mxu0 0.0
        %1399 = vmatpush1.msra.mxu0 0.0
        %1400 = vmatprep.subr.mxu0 0.0
        %1401 = vmatpush1.msra.mxu0 0.0
        %1402 = vmatprep.subr.mxu0 0.0
        %1403 = vmatpush1.msra.mxu0 0.0
        %1404 = vmatprep.subr.mxu0 0.0
        %1405 = vmatpush1.msra.mxu0 0.0
        %1406 = vmatprep.subr.mxu0 0.0
        %1407 = vmatpush1.msra.mxu0 0.0
        %1408 = vmatprep.subr.mxu0 0.0
        %1409 = vmatpush1.msra.mxu0 0.0
        %1410 = vmatprep.subr.mxu0 0.0
        %1411 = vmatpush1.msra.mxu0 0.0
        %1412 = vmatprep.subr.mxu0 0.0
        %1413 = vmatpush1.msra.mxu0 0.0
        %1414 = vmatprep.subr.mxu0 0.0
        %1415 = vmatpush1.msra.mxu0 0.0
        %1416 = vmatprep.subr.mxu0 0.0
        %1417 = vmatpush1.msra.mxu0 0.0
        %1418 = vmatprep.subr.mxu0 0.0
        %1419 = vmatpush1.msra.mxu0 0.0
        %1420 = vmatprep.subr.mxu0 0.0
        %1421 = vmatpush1.msra.mxu0 0.0
        %1422 = vmatprep.subr.mxu0 0.0
        %1423 = vmatpush1.msra.mxu0 0.0
        %1424 = vmatprep.subr.mxu0 0.0
        %1425 = vmatpush1.msra.mxu0 0.0
        %1426 = vmatprep.subr.mxu0 0.0
        %1427 = vmatpush1.msra.mxu0 0.0
        %1428 = vmatprep.subr.mxu0 0.0
        %1429 = vmatpush1.msra.mxu0 0.0
        %1430 = vmatprep.subr.mxu0 0.0
        %1431 = vmatpush1.msra.mxu0 0.0
        %1432 = vmatprep.subr.mxu0 0.0
        %1433 = vmatpush1.msra.mxu0 0.0
        %1434 = vmatprep.subr.mxu0 0.0
        %1435 = vmatpush1.msra.mxu0 0.0
        %1436 = vmatprep.subr.mxu0 0.0
        %1437 = vmatpush1.msra.mxu0 0.0
        %1438 = vmatprep.mubr.f32.mxu0 0.0
        %1439 = vmatmul.mubr.f32.gmra.mrb[0].mxu0 %v1307
        %v1440 = vpop.f32.mrb[0].mxu0
        %v1441 = vadd.f32 0.0, %v1440
        %v1442 = vpop.f32.mrb[0].mxu0
        %1443 = vmatprep.mubr.f32.mxu0 0.0
        %1444 = vmatmul.mubr.f32.gmra.mrb[0].mxu0 %v1309
        %v1445 = vpop.f32.mrb[0].mxu0
        %v1446 = vadd.f32 0.0, %v1445
        %v1447 = vpop.f32.mrb[0].mxu0
        %1448 = vmatprep.mubr.f32.mxu0 0.0
        %1449 = vmatmul.mubr.f32.gmra.mrb[0].mxu0 %v1311
        %v1450 = vpop.f32.mrb[0].mxu0
        %v1451 = vadd.f32 0.0, %v1450
        %v1452 = vpop.f32.mrb[0].mxu0
        %1453 = vmatprep.mubr.f32.mxu0 0.0
        %1454 = vmatmul.mubr.f32.gmra.mrb[0].mxu0 %v1313
        %v1455 = vpop.f32.mrb[0].mxu0
        %v1456 = vadd.f32 0.0, %v1455
        %v1457 = vpop.f32.mrb[0].mxu0
        %1458 = vmatprep.mubr.f32.mxu0 0.0
        %1459 = vmatmul.mubr.f32.gmra.mrb[0].mxu0 %v1315
        %v1460 = vpop.f32.mrb[0].mxu0
        %v1461 = vadd.f32 0.0, %v1460
        %v1462 = vpop.f32.mrb[0].mxu0
        %1463 = vmatprep.mubr.f32.mxu0 0.0
        %1464 = vmatmul.mubr.f32.gmra.mrb[0].mxu0 %v1317
        %v1465 = vpop.f32.mrb[0].mxu0
        %v1466 = vadd.f32 0.0, %v1465
        %v1467 = vpop.f32.mrb[0].mxu0
        %1468 = vmatprep.mubr.f32.mxu0 0.0
        %1469 = vmatmul.mubr.f32.gmra.mrb[0].mxu0 %v1319
        %v1470 = vpop.f32.mrb[0].mxu0
        %v1471 = vadd.f32 0.0, %v1470
        %v1472 = vpop.f32.mrb[0].mxu0
        %1473 = vmatprep.mubr.f32.mxu0 0.0
        %1474 = vmatmul.mubr.f32.gmra.mrb[0].mxu0 %v1321
        %v1475 = vpop.f32.mrb[0].mxu0
        %v1476 = vadd.f32 0.0, %v1475
        %v1477 = vpop.f32.mrb[0].mxu0
        %1478 = vmatprep.mubr.f32.mxu0 0.0
        %1479 = vmatmul.mubr.f32.gmra.mrb[0].mxu0 %v1323
        %v1480 = vpop.f32.mrb[0].mxu0
        %v1481 = vadd.f32 0.0, %v1480
        %v1482 = vpop.f32.mrb[0].mxu0
        %1483 = vmatprep.mubr.f32.mxu0 0.0
        %1484 = vmatmul.mubr.f32.gmra.mrb[0].mxu0 %v1325
        %v1485 = vpop.f32.mrb[0].mxu0
        %v1486 = vadd.f32 0.0, %v1485
        %v1487 = vpop.f32.mrb[0].mxu0
        %1488 = vmatprep.mubr.f32.mxu0 0.0
        %1489 = vmatmul.mubr.f32.gmra.mrb[0].mxu0 %v1327
        %v1490 = vpop.f32.mrb[0].mxu0
        %v1491 = vadd.f32 0.0, %v1490
        %v1492 = vpop.f32.mrb[0].mxu0
        %1493 = vmatprep.mubr.f32.mxu0 0.0
        %1494 = vmatmul.mubr.f32.gmra.mrb[0].mxu0 %v1329
        %v1495 = vpop.f32.mrb[0].mxu0
        %v1496 = vadd.f32 0.0, %v1495
        %v1497 = vpop.f32.mrb[0].mxu0
        %1498 = vmatprep.mubr.f32.mxu0 0.0
        %1499 = vmatmul.mubr.f32.gmra.mrb[0].mxu0 %v1331
        %v1500 = vpop.f32.mrb[0].mxu0
        %v1501 = vadd.f32 0.0, %v1500
        %v1502 = vpop.f32.mrb[0].mxu0
        %1503 = vmatprep.mubr.f32.mxu0 0.0
        %1504 = vmatmul.mubr.f32.gmra.mrb[0].mxu0 %v1333
        %v1505 = vpop.f32.mrb[0].mxu0
        %v1506 = vadd.f32 0.0, %v1505
        %v1507 = vpop.f32.mrb[0].mxu0
        %1508 = vmatprep.mubr.f32.mxu0 0.0
        %1509 = vmatmul.mubr.f32.gmra.mrb[0].mxu0 %v1335
        %v1510 = vpop.f32.mrb[0].mxu0
        %v1511 = vadd.f32 0.0, %v1510
        %v1512 = vpop.f32.mrb[0].mxu0
        %1513 = vmatprep.mubr.f32.mxu0 0.0
        %1514 = vmatmul.mubr.f32.gmra.mrb[0].mxu0 %v1337
        %v1515 = vpop.f32.mrb[0].mxu0
        %v1516 = vadd.f32 0.0, %v1515
        %v1517 = vpop.f32.mrb[0].mxu0
        %1518 = vmatprep.mubr.f32.mxu0 0.0
        %1519 = vmatmul.mubr.f32.gmra.mrb[0].mxu0 %v1339
        %v1520 = vpop.f32.mrb[0].mxu0
        %v1521 = vadd.f32 0.0, %v1520
        %v1522 = vpop.f32.mrb[0].mxu0
        %1523 = vmatprep.mubr.f32.mxu0 0.0
        %1524 = vmatmul.mubr.f32.gmra.mrb[0].mxu0 %v1341
        %v1525 = vpop.f32.mrb[0].mxu0
        %v1526 = vadd.f32 0.0, %v1525
        %v1527 = vpop.f32.mrb[0].mxu0
        %1528 = vmatprep.mubr.f32.mxu0 0.0
        %1529 = vmatmul.mubr.f32.gmra.mrb[0].mxu0 %v1343
        %v1530 = vpop.f32.mrb[0].mxu0
        %v1531 = vadd.f32 0.0, %v1530
        %v1532 = vpop.f32.mrb[0].mxu0
        %1533 = vmatprep.mubr.f32.mxu0 0.0
        %1534 = vmatmul.mubr.f32.gmra.mrb[0].mxu0 %v1345
        %v1535 = vpop.f32.mrb[0].mxu0
        %v1536 = vadd.f32 0.0, %v1535
        %v1537 = vpop.f32.mrb[0].mxu0
        %1538 = vmatprep.mubr.f32.mxu0 0.0
        %1539 = vmatmul.mubr.f32.gmra.mrb[0].mxu0 %v1347
        %v1540 = vpop.f32.mrb[0].mxu0
        %v1541 = vadd.f32 0.0, %v1540
        %v1542 = vpop.f32.mrb[0].mxu0
        %1543 = vmatprep.mubr.f32.mxu0 0.0
        %1544 = vmatmul.mubr.f32.gmra.mrb[0].mxu0 %v1349
        %v1545 = vpop.f32.mrb[0].mxu0
        %v1546 = vadd.f32 0.0, %v1545
        %v1547 = vpop.f32.mrb[0].mxu0
        %1548 = vmatprep.mubr.f32.mxu0 0.0
        %1549 = vmatmul.mubr.f32.gmra.mrb[0].mxu0 %v1351
        %v1550 = vpop.f32.mrb[0].mxu0
        %v1551 = vadd.f32 0.0, %v1550
        %v1552 = vpop.f32.mrb[0].mxu0
        %1553 = vmatprep.mubr.f32.mxu0 0.0
        %1554 = vmatmul.mubr.f32.gmra.mrb[0].mxu0 %v1353
        %v1555 = vpop.f32.mrb[0].mxu0
        %v1556 = vadd.f32 0.0, %v1555
        %v1557 = vpop.f32.mrb[0].mxu0
        %1558 = vmatprep.mubr.f32.mxu0 0.0
        %1559 = vmatmul.mubr.f32.gmra.mrb[0].mxu0 %v1355
        %v1560 = vpop.f32.mrb[0].mxu0
        %v1561 = vadd.f32 0.0, %v1560
        %v1562 = vpop.f32.mrb[0].mxu0
        %1563 = vmatprep.mubr.f32.mxu0 0.0
        %1564 = vmatmul.mubr.f32.gmra.mrb[0].mxu0 %v1357
        %v1565 = vpop.f32.mrb[0].mxu0
        %v1566 = vadd.f32 0.0, %v1565
        %v1567 = vpop.f32.mrb[0].mxu0
        %1568 = vmatprep.mubr.f32.mxu0 0.0
        %1569 = vmatmul.mubr.f32.gmra.mrb[0].mxu0 %v1359
        %v1570 = vpop.f32.mrb[0].mxu0
        %v1571 = vadd.f32 0.0, %v1570
        %v1572 = vpop.f32.mrb[0].mxu0
        %1573 = vmatprep.mubr.f32.mxu0 0.0
        %1574 = vmatmul.mubr.f32.gmra.mrb[0].mxu0 %v1361
        %v1575 = vpop.f32.mrb[0].mxu0
        %v1576 = vadd.f32 0.0, %v1575
        %v1577 = vpop.f32.mrb[0].mxu0
        %1578 = vmatprep.mubr.f32.mxu0 0.0
        %1579 = vmatmul.mubr.f32.gmra.mrb[0].mxu0 %v1363
        %v1580 = vpop.f32.mrb[0].mxu0
        %v1581 = vadd.f32 0.0, %v1580
        %v1582 = vpop.f32.mrb[0].mxu0
        %1583 = vmatprep.mubr.f32.mxu0 0.0
        %1584 = vmatmul.mubr.f32.gmra.mrb[0].mxu0 %v1365
        %v1585 = vpop.f32.mrb[0].mxu0
        %v1586 = vadd.f32 0.0, %v1585
        %v1587 = vpop.f32.mrb[0].mxu0
        %1588 = vmatprep.mubr.f32.mxu0 0.0
        %1589 = vmatmul.mubr.f32.gmra.mrb[0].mxu0 %v1367
        %v1590 = vpop.f32.mrb[0].mxu0
        %v1591 = vadd.f32 0.0, %v1590
        %v1592 = vpop.f32.mrb[0].mxu0
        %1593 = vmatprep.mubr.f32.mxu0 0.0
        %1594 = vmatmul.mubr.f32.gmra.mrb[0].mxu0 %v1369
        %v1595 = vpop.f32.mrb[0].mxu0
        %v1596 = vadd.f32 0.0, %v1595
        %v1597 = vpop.f32.mrb[0].mxu0
        %1598 = vdwg.mxu0
        %v1599 = vadd.f32 %v1067, %v1441
        %v1600 = vadd.f32 %v1072, %v1446
        %v1601 = vadd.f32 %v1077, %v1451
        %v1602 = vadd.f32 %v1082, %v1456
        %v1603 = vadd.f32 %v1087, %v1461
        %v1604 = vadd.f32 %v1092, %v1466
        %v1605 = vadd.f32 %v1097, %v1471
        %v1606 = vadd.f32 %v1102, %v1476
        %v1607 = vadd.f32 %v1107, %v1481
        %v1608 = vadd.f32 %v1112, %v1486
        %v1609 = vadd.f32 %v1117, %v1491
        %v1610 = vadd.f32 %v1122, %v1496
        %v1611 = vadd.f32 %v1127, %v1501
        %v1612 = vadd.f32 %v1132, %v1506
        %v1613 = vadd.f32 %v1137, %v1511
        %v1614 = vadd.f32 %v1142, %v1516
        %v1615 = vadd.f32 %v1147, %v1521
        %v1616 = vadd.f32 %v1152, %v1526
        %v1617 = vadd.f32 %v1157, %v1531
        %v1618 = vadd.f32 %v1162, %v1536
        %v1619 = vadd.f32 %v1167, %v1541
        %v1620 = vadd.f32 %v1172, %v1546
        %v1621 = vadd.f32 %v1177, %v1551
        %v1622 = vadd.f32 %v1182, %v1556
        %v1623 = vadd.f32 %v1187, %v1561
        %v1624 = vadd.f32 %v1192, %v1566
        %v1625 = vadd.f32 %v1197, %v1571
        %v1626 = vadd.f32 %v1202, %v1576
        %v1627 = vadd.f32 %v1207, %v1581
        %v1628 = vadd.f32 %v1212, %v1586
        %v1629 = vadd.f32 %v1217, %v1591
        %v1630 = vadd.f32 %v1222, %v1596
        %v1631 = vld [vmem:[%s425] sm:$0xff]
        %v1632 = vld [vmem:[%s425 + $0x8] sm:$0xff]
        %v1633 = vld [vmem:[%s425 + $0x10] sm:$0x3]
        %v1634 = vld [vmem:[%s425 + $0x18] sm:$0xff]
        %v1635 = vld [vmem:[%s425 + $0x20] sm:$0xff]
        %v1636 = vld [vmem:[%s425 + $0x28] sm:$0x3]
        %v1637 = vld [vmem:[%s425 + $0x30] sm:$0xff]
        %v1638 = vld [vmem:[%s425 + $0x38] sm:$0xff]
        %v1639 = vld [vmem:[%s425 + $0x40] sm:$0x3]
        %v1640 = vld [vmem:[%s425 + $0x48] sm:$0xff]
        %v1641 = vld [vmem:[%s425 + $0x50] sm:$0xff]
        %v1642 = vld [vmem:[%s425 + $0x58] sm:$0x3]
        %v1643 = vld [vmem:[%s425 + $0x60] sm:$0xff]
        %v1644 = vld [vmem:[%s425 + $0x68] sm:$0xff]
        %v1645 = vld [vmem:[%s425 + $0x70] sm:$0x3]
        %v1646 = vld [vmem:[%s425 + $0x78] sm:$0xff]
        %v1647 = vld [vmem:[%s425 + $0x80] sm:$0xff]
        %v1648 = vld [vmem:[%s425 + $0x88] sm:$0x3]
        %v1649 = vld [vmem:[%s425 + $0x90] sm:$0xff]
        %v1650 = vld [vmem:[%s425 + $0x98] sm:$0xff]
        %v1651 = vld [vmem:[%s425 + $0xa0] sm:$0x3]
        %v1652 = vld [vmem:[%s425 + $0xa8] sm:$0xff]
        %v1653 = vld [vmem:[%s425 + $0xb0] sm:$0xff]
        %v1654 = vld [vmem:[%s425 + $0xb8] sm:$0x3]
        %v1655 = vld [vmem:[%s425 + $0xc0] sm:$0xff]
        %v1656 = vld [vmem:[%s425 + $0xc8] sm:$0xff]
        %v1657 = vld [vmem:[%s425 + $0xd0] sm:$0x3]
        %v1658 = vld [vmem:[%s425 + $0xd8] sm:$0xff]
        %v1659 = vld [vmem:[%s425 + $0xe0] sm:$0xff]
        %v1660 = vld [vmem:[%s425 + $0xe8] sm:$0x3]
        %v1661 = vld [vmem:[%s425 + $0xf0] sm:$0xff]
        %v1662 = vld [vmem:[%s425 + $0xf8] sm:$0xff]
        %v1663 = vld [vmem:[%s425 + $0x100] sm:$0x3]
        %v1664 = vld [vmem:[%s425 + $0x108] sm:$0xff]
        %v1665 = vld [vmem:[%s425 + $0x110] sm:$0xff]
        %v1666 = vld [vmem:[%s425 + $0x118] sm:$0x3]
        %v1667 = vld [vmem:[%s425 + $0x120] sm:$0xff]
        %v1668 = vld [vmem:[%s425 + $0x128] sm:$0xff]
        %v1669 = vld [vmem:[%s425 + $0x130] sm:$0x3]
        %v1670 = vld [vmem:[%s425 + $0x138] sm:$0xff]
        %v1671 = vld [vmem:[%s425 + $0x140] sm:$0xff]
        %v1672 = vld [vmem:[%s425 + $0x148] sm:$0x3]
        %v1673 = vld [vmem:[%s425 + $0x150] sm:$0xff]
        %v1674 = vld [vmem:[%s425 + $0x158] sm:$0xff]
        %v1675 = vld [vmem:[%s425 + $0x160] sm:$0x3]
        %v1676 = vld [vmem:[%s425 + $0x168] sm:$0xff]
        %v1677 = vld [vmem:[%s425 + $0x170] sm:$0xff]
        %v1678 = vld [vmem:[%s425 + $0x178] sm:$0x3]
        %s1679 = scalar_lea.vmem %s1, 16
        %v1680 = vld [vmem:[%s1679] sm:$0xf]
        %v1682 = vsel %vm426, %v1631, 0
        %v1685 = vsel %vm426, %v1632, 0
        %v1688 = vsel %vm426, %v1634, 0
        %v1691 = vsel %vm426, %v1635, 0
        %v1694 = vsel %vm426, %v1637, 0
        %v1697 = vsel %vm426, %v1638, 0
        %v1700 = vsel %vm426, %v1640, 0
        %v1703 = vsel %vm426, %v1641, 0
        %v1706 = vsel %vm426, %v1643, 0
        %v1709 = vsel %vm426, %v1644, 0
        %v1712 = vsel %vm426, %v1646, 0
        %v1715 = vsel %vm426, %v1647, 0
        %v1718 = vsel %vm426, %v1649, 0
        %v1721 = vsel %vm426, %v1650, 0
        %v1724 = vsel %vm426, %v1652, 0
        %v1727 = vsel %vm426, %v1653, 0
        %v1730 = vsel %vm426, %v1655, 0
        %v1733 = vsel %vm426, %v1656, 0
        %v1736 = vsel %vm426, %v1658, 0
        %v1739 = vsel %vm426, %v1659, 0
        %v1742 = vsel %vm426, %v1661, 0
        %v1745 = vsel %vm426, %v1662, 0
        %v1748 = vsel %vm426, %v1664, 0
        %v1751 = vsel %vm426, %v1665, 0
        %v1754 = vsel %vm426, %v1667, 0
        %v1757 = vsel %vm426, %v1668, 0
        %v1760 = vsel %vm426, %v1670, 0
        %v1763 = vsel %vm426, %v1671, 0
        %v1766 = vsel %vm426, %v1673, 0
        %v1769 = vsel %vm426, %v1674, 0
        %v1772 = vsel %vm426, %v1676, 0
        %v1775 = vsel %vm426, %v1677, 0
        %v1778 = vsel %vm704, %v1680, 0
        %1780 = vmatprep.subr.mxu0 0.0
        %1781 = vmatpush1.msra.mxu0 %v1778
        %1782 = vmatprep.subr.mxu0 0.0
        %1783 = vmatpush1.msra.mxu0 0.0
        %1784 = vmatprep.subr.mxu0 0.0
        %1785 = vmatpush1.msra.mxu0 0.0
        %1786 = vmatprep.subr.mxu0 0.0
        %1787 = vmatpush1.msra.mxu0 0.0
        %1788 = vmatprep.subr.mxu0 0.0
        %1789 = vmatpush1.msra.mxu0 0.0
        %1790 = vmatprep.subr.mxu0 0.0
        %1791 = vmatpush1.msra.mxu0 0.0
        %1792 = vmatprep.subr.mxu0 0.0
        %1793 = vmatpush1.msra.mxu0 0.0
        %1794 = vmatprep.subr.mxu0 0.0
        %1795 = vmatpush1.msra.mxu0 0.0
        %1796 = vmatprep.subr.mxu0 0.0
        %1797 = vmatpush1.msra.mxu0 0.0
        %1798 = vmatprep.subr.mxu0 0.0
        %1799 = vmatpush1.msra.mxu0 0.0
        %1800 = vmatprep.subr.mxu0 0.0
        %1801 = vmatpush1.msra.mxu0 0.0
        %1802 = vmatprep.subr.mxu0 0.0
        %1803 = vmatpush1.msra.mxu0 0.0
        %1804 = vmatprep.subr.mxu0 0.0
        %1805 = vmatpush1.msra.mxu0 0.0
        %1806 = vmatprep.subr.mxu0 0.0
        %1807 = vmatpush1.msra.mxu0 0.0
        %1808 = vmatprep.subr.mxu0 0.0
        %1809 = vmatpush1.msra.mxu0 0.0
        %1810 = vmatprep.subr.mxu0 0.0
        %1811 = vmatpush1.msra.mxu0 0.0
        %1812 = vmatprep.subr.mxu0 0.0
        %1813 = vmatpush1.msra.mxu0 0.0
        %1814 = vmatprep.subr.mxu0 0.0
        %1815 = vmatpush1.msra.mxu0 0.0
        %1816 = vmatprep.subr.mxu0 0.0
        %1817 = vmatpush1.msra.mxu0 0.0
        %1818 = vmatprep.subr.mxu0 0.0
        %1819 = vmatpush1.msra.mxu0 0.0
        %1820 = vmatprep.subr.mxu0 0.0
        %1821 = vmatpush1.msra.mxu0 0.0
        %1822 = vmatprep.subr.mxu0 0.0
        %1823 = vmatpush1.msra.mxu0 0.0
        %1824 = vmatprep.subr.mxu0 0.0
        %1825 = vmatpush1.msra.mxu0 0.0
        %1826 = vmatprep.subr.mxu0 0.0
        %1827 = vmatpush1.msra.mxu0 0.0
        %1828 = vmatprep.subr.mxu0 0.0
        %1829 = vmatpush1.msra.mxu0 0.0
        %1830 = vmatprep.subr.mxu0 0.0
        %1831 = vmatpush1.msra.mxu0 0.0
        %1832 = vmatprep.subr.mxu0 0.0
        %1833 = vmatpush1.msra.mxu0 0.0
        %1834 = vmatprep.subr.mxu0 0.0
        %1835 = vmatpush1.msra.mxu0 0.0
        %1836 = vmatprep.subr.mxu0 0.0
        %1837 = vmatpush1.msra.mxu0 0.0
        %1838 = vmatprep.subr.mxu0 0.0
        %1839 = vmatpush1.msra.mxu0 0.0
        %1840 = vmatprep.subr.mxu0 0.0
        %1841 = vmatpush1.msra.mxu0 0.0
        %1842 = vmatprep.subr.mxu0 0.0
        %1843 = vmatpush1.msra.mxu0 0.0
        %1844 = vmatprep.mubr.f32.mxu0 0.0
        %1845 = vmatmul.mubr.f32.gmra.mrb[0].mxu0 %v1682
        %v1846 = vpop.f32.mrb[0].mxu0
        %v1847 = vadd.f32 0.0, %v1846
        %v1848 = vpop.f32.mrb[0].mxu0
        %1849 = vmatprep.mubr.f32.mxu0 0.0
        %1850 = vmatmul.mubr.f32.gmra.mrb[0].mxu0 %v1685
        %v1851 = vpop.f32.mrb[0].mxu0
        %v1852 = vadd.f32 0.0, %v1851
        %v1853 = vpop.f32.mrb[0].mxu0
        %1854 = vmatprep.mubr.f32.mxu0 0.0
        %1855 = vmatmul.mubr.f32.gmra.mrb[0].mxu0 %v1688
        %v1856 = vpop.f32.mrb[0].mxu0
        %v1857 = vadd.f32 0.0, %v1856
        %v1858 = vpop.f32.mrb[0].mxu0
        %1859 = vmatprep.mubr.f32.mxu0 0.0
        %1860 = vmatmul.mubr.f32.gmra.mrb[0].mxu0 %v1691
        %v1861 = vpop.f32.mrb[0].mxu0
        %v1862 = vadd.f32 0.0, %v1861
        %v1863 = vpop.f32.mrb[0].mxu0
        %1864 = vmatprep.mubr.f32.mxu0 0.0
        %1865 = vmatmul.mubr.f32.gmra.mrb[0].mxu0 %v1694
        %v1866 = vpop.f32.mrb[0].mxu0
        %v1867 = vadd.f32 0.0, %v1866
        %v1868 = vpop.f32.mrb[0].mxu0
        %1869 = vmatprep.mubr.f32.mxu0 0.0
        %1870 = vmatmul.mubr.f32.gmra.mrb[0].mxu0 %v1697
        %v1871 = vpop.f32.mrb[0].mxu0
        %v1872 = vadd.f32 0.0, %v1871
        %v1873 = vpop.f32.mrb[0].mxu0
        %1874 = vmatprep.mubr.f32.mxu0 0.0
        %1875 = vmatmul.mubr.f32.gmra.mrb[0].mxu0 %v1700
        %v1876 = vpop.f32.mrb[0].mxu0
        %v1877 = vadd.f32 0.0, %v1876
        %v1878 = vpop.f32.mrb[0].mxu0
        %1879 = vmatprep.mubr.f32.mxu0 0.0
        %1880 = vmatmul.mubr.f32.gmra.mrb[0].mxu0 %v1703
        %v1881 = vpop.f32.mrb[0].mxu0
        %v1882 = vadd.f32 0.0, %v1881
        %v1883 = vpop.f32.mrb[0].mxu0
        %1884 = vmatprep.mubr.f32.mxu0 0.0
        %1885 = vmatmul.mubr.f32.gmra.mrb[0].mxu0 %v1706
        %v1886 = vpop.f32.mrb[0].mxu0
        %v1887 = vadd.f32 0.0, %v1886
        %v1888 = vpop.f32.mrb[0].mxu0
        %1889 = vmatprep.mubr.f32.mxu0 0.0
        %1890 = vmatmul.mubr.f32.gmra.mrb[0].mxu0 %v1709
        %v1891 = vpop.f32.mrb[0].mxu0
        %v1892 = vadd.f32 0.0, %v1891
        %v1893 = vpop.f32.mrb[0].mxu0
        %1894 = vmatprep.mubr.f32.mxu0 0.0
        %1895 = vmatmul.mubr.f32.gmra.mrb[0].mxu0 %v1712
        %v1896 = vpop.f32.mrb[0].mxu0
        %v1897 = vadd.f32 0.0, %v1896
        %v1898 = vpop.f32.mrb[0].mxu0
        %1899 = vmatprep.mubr.f32.mxu0 0.0
        %1900 = vmatmul.mubr.f32.gmra.mrb[0].mxu0 %v1715
        %v1901 = vpop.f32.mrb[0].mxu0
        %v1902 = vadd.f32 0.0, %v1901
        %v1903 = vpop.f32.mrb[0].mxu0
        %1904 = vmatprep.mubr.f32.mxu0 0.0
        %1905 = vmatmul.mubr.f32.gmra.mrb[0].mxu0 %v1718
        %v1906 = vpop.f32.mrb[0].mxu0
        %v1907 = vadd.f32 0.0, %v1906
        %v1908 = vpop.f32.mrb[0].mxu0
        %1909 = vmatprep.mubr.f32.mxu0 0.0
        %1910 = vmatmul.mubr.f32.gmra.mrb[0].mxu0 %v1721
        %v1911 = vpop.f32.mrb[0].mxu0
        %v1912 = vadd.f32 0.0, %v1911
        %v1913 = vpop.f32.mrb[0].mxu0
        %1914 = vmatprep.mubr.f32.mxu0 0.0
        %1915 = vmatmul.mubr.f32.gmra.mrb[0].mxu0 %v1724
        %v1916 = vpop.f32.mrb[0].mxu0
        %v1917 = vadd.f32 0.0, %v1916
        %v1918 = vpop.f32.mrb[0].mxu0
        %1919 = vmatprep.mubr.f32.mxu0 0.0
        %1920 = vmatmul.mubr.f32.gmra.mrb[0].mxu0 %v1727
        %v1921 = vpop.f32.mrb[0].mxu0
        %v1922 = vadd.f32 0.0, %v1921
        %v1923 = vpop.f32.mrb[0].mxu0
        %1924 = vmatprep.mubr.f32.mxu0 0.0
        %1925 = vmatmul.mubr.f32.gmra.mrb[0].mxu0 %v1730
        %v1926 = vpop.f32.mrb[0].mxu0
        %v1927 = vadd.f32 0.0, %v1926
        %v1928 = vpop.f32.mrb[0].mxu0
        %1929 = vmatprep.mubr.f32.mxu0 0.0
        %1930 = vmatmul.mubr.f32.gmra.mrb[0].mxu0 %v1733
        %v1931 = vpop.f32.mrb[0].mxu0
        %v1932 = vadd.f32 0.0, %v1931
        %v1933 = vpop.f32.mrb[0].mxu0
        %1934 = vmatprep.mubr.f32.mxu0 0.0
        %1935 = vmatmul.mubr.f32.gmra.mrb[0].mxu0 %v1736
        %v1936 = vpop.f32.mrb[0].mxu0
        %v1937 = vadd.f32 0.0, %v1936
        %v1938 = vpop.f32.mrb[0].mxu0
        %1939 = vmatprep.mubr.f32.mxu0 0.0
        %1940 = vmatmul.mubr.f32.gmra.mrb[0].mxu0 %v1739
        %v1941 = vpop.f32.mrb[0].mxu0
        %v1942 = vadd.f32 0.0, %v1941
        %v1943 = vpop.f32.mrb[0].mxu0
        %1944 = vmatprep.mubr.f32.mxu0 0.0
        %1945 = vmatmul.mubr.f32.gmra.mrb[0].mxu0 %v1742
        %v1946 = vpop.f32.mrb[0].mxu0
        %v1947 = vadd.f32 0.0, %v1946
        %v1948 = vpop.f32.mrb[0].mxu0
        %1949 = vmatprep.mubr.f32.mxu0 0.0
        %1950 = vmatmul.mubr.f32.gmra.mrb[0].mxu0 %v1745
        %v1951 = vpop.f32.mrb[0].mxu0
        %v1952 = vadd.f32 0.0, %v1951
        %v1953 = vpop.f32.mrb[0].mxu0
        %1954 = vmatprep.mubr.f32.mxu0 0.0
        %1955 = vmatmul.mubr.f32.gmra.mrb[0].mxu0 %v1748
        %v1956 = vpop.f32.mrb[0].mxu0
        %v1957 = vadd.f32 0.0, %v1956
        %v1958 = vpop.f32.mrb[0].mxu0
        %1959 = vmatprep.mubr.f32.mxu0 0.0
        %1960 = vmatmul.mubr.f32.gmra.mrb[0].mxu0 %v1751
        %v1961 = vpop.f32.mrb[0].mxu0
        %v1962 = vadd.f32 0.0, %v1961
        %v1963 = vpop.f32.mrb[0].mxu0
        %1964 = vmatprep.mubr.f32.mxu0 0.0
        %1965 = vmatmul.mubr.f32.gmra.mrb[0].mxu0 %v1754
        %v1966 = vpop.f32.mrb[0].mxu0
        %v1967 = vadd.f32 0.0, %v1966
        %v1968 = vpop.f32.mrb[0].mxu0
        %1969 = vmatprep.mubr.f32.mxu0 0.0
        %1970 = vmatmul.mubr.f32.gmra.mrb[0].mxu0 %v1757
        %v1971 = vpop.f32.mrb[0].mxu0
        %v1972 = vadd.f32 0.0, %v1971
        %v1973 = vpop.f32.mrb[0].mxu0
        %1974 = vmatprep.mubr.f32.mxu0 0.0
        %1975 = vmatmul.mubr.f32.gmra.mrb[0].mxu0 %v1760
        %v1976 = vpop.f32.mrb[0].mxu0
        %v1977 = vadd.f32 0.0, %v1976
        %v1978 = vpop.f32.mrb[0].mxu0
        %1979 = vmatprep.mubr.f32.mxu0 0.0
        %1980 = vmatmul.mubr.f32.gmra.mrb[0].mxu0 %v1763
        %v1981 = vpop.f32.mrb[0].mxu0
        %v1982 = vadd.f32 0.0, %v1981
        %v1983 = vpop.f32.mrb[0].mxu0
        %1984 = vmatprep.mubr.f32.mxu0 0.0
        %1985 = vmatmul.mubr.f32.gmra.mrb[0].mxu0 %v1766
        %v1986 = vpop.f32.mrb[0].mxu0
        %v1987 = vadd.f32 0.0, %v1986
        %v1988 = vpop.f32.mrb[0].mxu0
        %1989 = vmatprep.mubr.f32.mxu0 0.0
        %1990 = vmatmul.mubr.f32.gmra.mrb[0].mxu0 %v1769
        %v1991 = vpop.f32.mrb[0].mxu0
        %v1992 = vadd.f32 0.0, %v1991
        %v1993 = vpop.f32.mrb[0].mxu0
        %1994 = vmatprep.mubr.f32.mxu0 0.0
        %1995 = vmatmul.mubr.f32.gmra.mrb[0].mxu0 %v1772
        %v1996 = vpop.f32.mrb[0].mxu0
        %v1997 = vadd.f32 0.0, %v1996
        %v1998 = vpop.f32.mrb[0].mxu0
        %1999 = vmatprep.mubr.f32.mxu0 0.0
        %2000 = vmatmul.mubr.f32.gmra.mrb[0].mxu0 %v1775
        %v2001 = vpop.f32.mrb[0].mxu0
        %v2002 = vadd.f32 0.0, %v2001
        %v2003 = vpop.f32.mrb[0].mxu0
        %2004 = vdwg.mxu0
        %v2005 = vadd.f32 %v1599, %v1847
        %v2006 = vadd.f32 %v1600, %v1852
        %v2007 = vadd.f32 %v1601, %v1857
        %v2008 = vadd.f32 %v1602, %v1862
        %v2009 = vadd.f32 %v1603, %v1867
        %v2010 = vadd.f32 %v1604, %v1872
        %v2011 = vadd.f32 %v1605, %v1877
        %v2012 = vadd.f32 %v1606, %v1882
        %v2013 = vadd.f32 %v1607, %v1887
        %v2014 = vadd.f32 %v1608, %v1892
        %v2015 = vadd.f32 %v1609, %v1897
        %v2016 = vadd.f32 %v1610, %v1902
        %v2017 = vadd.f32 %v1611, %v1907
        %v2018 = vadd.f32 %v1612, %v1912
        %v2019 = vadd.f32 %v1613, %v1917
        %v2020 = vadd.f32 %v1614, %v1922
        %v2021 = vadd.f32 %v1615, %v1927
        %v2022 = vadd.f32 %v1616, %v1932
        %v2023 = vadd.f32 %v1617, %v1937
        %v2024 = vadd.f32 %v1618, %v1942
        %v2025 = vadd.f32 %v1619, %v1947
        %v2026 = vadd.f32 %v1620, %v1952
        %v2027 = vadd.f32 %v1621, %v1957
        %v2028 = vadd.f32 %v1622, %v1962
        %v2029 = vadd.f32 %v1623, %v1967
        %v2030 = vadd.f32 %v1624, %v1972
        %v2031 = vadd.f32 %v1625, %v1977
        %v2032 = vadd.f32 %v1626, %v1982
        %v2033 = vadd.f32 %v1627, %v1987
        %v2034 = vadd.f32 %v1628, %v1992
        %v2035 = vadd.f32 %v1629, %v1997
        %v2036 = vadd.f32 %v1630, %v2002
        %v2053 = vrot.slane %v1631, 1
        %v2054 = vrot.slane %v1632, 1
        %v2055 = vsel %vm558, %v2053, %v2054
        %v2056 = vrot.slane %v1633, 1
        %v2057 = vsel %vm558, %v2054, %v2056
        %v2058 = vrot.slane %v1634, 1
        %v2059 = vrot.slane %v1635, 1
        %v2060 = vsel %vm558, %v2058, %v2059
        %v2061 = vrot.slane %v1636, 1
        %v2062 = vsel %vm558, %v2059, %v2061
        %v2063 = vrot.slane %v1637, 1
        %v2064 = vrot.slane %v1638, 1
        %v2065 = vsel %vm558, %v2063, %v2064
        %v2066 = vrot.slane %v1639, 1
        %v2067 = vsel %vm558, %v2064, %v2066
        %v2068 = vrot.slane %v1640, 1
        %v2069 = vrot.slane %v1641, 1
        %v2070 = vsel %vm558, %v2068, %v2069
        %v2071 = vrot.slane %v1642, 1
        %v2072 = vsel %vm558, %v2069, %v2071
        %v2073 = vrot.slane %v1643, 1
        %v2074 = vrot.slane %v1644, 1
        %v2075 = vsel %vm558, %v2073, %v2074
        %v2076 = vrot.slane %v1645, 1
        %v2077 = vsel %vm558, %v2074, %v2076
        %v2078 = vrot.slane %v1646, 1
        %v2079 = vrot.slane %v1647, 1
        %v2080 = vsel %vm558, %v2078, %v2079
        %v2081 = vrot.slane %v1648, 1
        %v2082 = vsel %vm558, %v2079, %v2081
        %v2083 = vrot.slane %v1649, 1
        %v2084 = vrot.slane %v1650, 1
        %v2085 = vsel %vm558, %v2083, %v2084
        %v2086 = vrot.slane %v1651, 1
        %v2087 = vsel %vm558, %v2084, %v2086
        %v2088 = vrot.slane %v1652, 1
        %v2089 = vrot.slane %v1653, 1
        %v2090 = vsel %vm558, %v2088, %v2089
        %v2091 = vrot.slane %v1654, 1
        %v2092 = vsel %vm558, %v2089, %v2091
        %v2093 = vrot.slane %v1655, 1
        %v2094 = vrot.slane %v1656, 1
        %v2095 = vsel %vm558, %v2093, %v2094
        %v2096 = vrot.slane %v1657, 1
        %v2097 = vsel %vm558, %v2094, %v2096
        %v2098 = vrot.slane %v1658, 1
        %v2099 = vrot.slane %v1659, 1
        %v2100 = vsel %vm558, %v2098, %v2099
        %v2101 = vrot.slane %v1660, 1
        %v2102 = vsel %vm558, %v2099, %v2101
        %v2103 = vrot.slane %v1661, 1
        %v2104 = vrot.slane %v1662, 1
        %v2105 = vsel %vm558, %v2103, %v2104
        %v2106 = vrot.slane %v1663, 1
        %v2107 = vsel %vm558, %v2104, %v2106
        %v2108 = vrot.slane %v1664, 1
        %v2109 = vrot.slane %v1665, 1
        %v2110 = vsel %vm558, %v2108, %v2109
        %v2111 = vrot.slane %v1666, 1
        %v2112 = vsel %vm558, %v2109, %v2111
        %v2113 = vrot.slane %v1667, 1
        %v2114 = vrot.slane %v1668, 1
        %v2115 = vsel %vm558, %v2113, %v2114
        %v2116 = vrot.slane %v1669, 1
        %v2117 = vsel %vm558, %v2114, %v2116
        %v2118 = vrot.slane %v1670, 1
        %v2119 = vrot.slane %v1671, 1
        %v2120 = vsel %vm558, %v2118, %v2119
        %v2121 = vrot.slane %v1672, 1
        %v2122 = vsel %vm558, %v2119, %v2121
        %v2123 = vrot.slane %v1673, 1
        %v2124 = vrot.slane %v1674, 1
        %v2125 = vsel %vm558, %v2123, %v2124
        %v2126 = vrot.slane %v1675, 1
        %v2127 = vsel %vm558, %v2124, %v2126
        %v2128 = vrot.slane %v1676, 1
        %v2129 = vrot.slane %v1677, 1
        %v2130 = vsel %vm558, %v2128, %v2129
        %v2131 = vrot.slane %v1678, 1
        %v2132 = vsel %vm558, %v2129, %v2131
        %v2133 = vld [vmem:[%s1679 + $0x4] sm:$0xf]
        %v2134 = vsel %vm426, %v2055, 0
        %v2136 = vsel %vm426, %v2057, 0
        %v2138 = vsel %vm426, %v2060, 0
        %v2140 = vsel %vm426, %v2062, 0
        %v2142 = vsel %vm426, %v2065, 0
        %v2144 = vsel %vm426, %v2067, 0
        %v2146 = vsel %vm426, %v2070, 0
        %v2148 = vsel %vm426, %v2072, 0
        %v2150 = vsel %vm426, %v2075, 0
        %v2152 = vsel %vm426, %v2077, 0
        %v2154 = vsel %vm426, %v2080, 0
        %v2156 = vsel %vm426, %v2082, 0
        %v2158 = vsel %vm426, %v2085, 0
        %v2160 = vsel %vm426, %v2087, 0
        %v2162 = vsel %vm426, %v2090, 0
        %v2164 = vsel %vm426, %v2092, 0
        %v2166 = vsel %vm426, %v2095, 0
        %v2168 = vsel %vm426, %v2097, 0
        %v2170 = vsel %vm426, %v2100, 0
        %v2172 = vsel %vm426, %v2102, 0
        %v2174 = vsel %vm426, %v2105, 0
        %v2176 = vsel %vm426, %v2107, 0
        %v2178 = vsel %vm426, %v2110, 0
        %v2180 = vsel %vm426, %v2112, 0
        %v2182 = vsel %vm426, %v2115, 0
        %v2184 = vsel %vm426, %v2117, 0
        %v2186 = vsel %vm426, %v2120, 0
        %v2188 = vsel %vm426, %v2122, 0
        %v2190 = vsel %vm426, %v2125, 0
        %v2192 = vsel %vm426, %v2127, 0
        %v2194 = vsel %vm426, %v2130, 0
        %v2196 = vsel %vm426, %v2132, 0
        %v2199 = vsel %vm704, %v2133, 0
        %2201 = vmatprep.subr.mxu0 0.0
        %2202 = vmatpush1.msra.mxu0 %v2199
        %2203 = vmatprep.subr.mxu0 0.0
        %2204 = vmatpush1.msra.mxu0 0.0
        %2205 = vmatprep.subr.mxu0 0.0
        %2206 = vmatpush1.msra.mxu0 0.0
        %2207 = vmatprep.subr.mxu0 0.0
        %2208 = vmatpush1.msra.mxu0 0.0
        %2209 = vmatprep.subr.mxu0 0.0
        %2210 = vmatpush1.msra.mxu0 0.0
        %2211 = vmatprep.subr.mxu0 0.0
        %2212 = vmatpush1.msra.mxu0 0.0
        %2213 = vmatprep.subr.mxu0 0.0
        %2214 = vmatpush1.msra.mxu0 0.0
        %2215 = vmatprep.subr.mxu0 0.0
        %2216 = vmatpush1.msra.mxu0 0.0
        %2217 = vmatprep.subr.mxu0 0.0
        %2218 = vmatpush1.msra.mxu0 0.0
        %2219 = vmatprep.subr.mxu0 0.0
        %2220 = vmatpush1.msra.mxu0 0.0
        %2221 = vmatprep.subr.mxu0 0.0
        %2222 = vmatpush1.msra.mxu0 0.0
        %2223 = vmatprep.subr.mxu0 0.0
        %2224 = vmatpush1.msra.mxu0 0.0
        %2225 = vmatprep.subr.mxu0 0.0
        %2226 = vmatpush1.msra.mxu0 0.0
        %2227 = vmatprep.subr.mxu0 0.0
        %2228 = vmatpush1.msra.mxu0 0.0
        %2229 = vmatprep.subr.mxu0 0.0
        %2230 = vmatpush1.msra.mxu0 0.0
        %2231 = vmatprep.subr.mxu0 0.0
        %2232 = vmatpush1.msra.mxu0 0.0
        %2233 = vmatprep.subr.mxu0 0.0
        %2234 = vmatpush1.msra.mxu0 0.0
        %2235 = vmatprep.subr.mxu0 0.0
        %2236 = vmatpush1.msra.mxu0 0.0
        %2237 = vmatprep.subr.mxu0 0.0
        %2238 = vmatpush1.msra.mxu0 0.0
        %2239 = vmatprep.subr.mxu0 0.0
        %2240 = vmatpush1.msra.mxu0 0.0
        %2241 = vmatprep.subr.mxu0 0.0
        %2242 = vmatpush1.msra.mxu0 0.0
        %2243 = vmatprep.subr.mxu0 0.0
        %2244 = vmatpush1.msra.mxu0 0.0
        %2245 = vmatprep.subr.mxu0 0.0
        %2246 = vmatpush1.msra.mxu0 0.0
        %2247 = vmatprep.subr.mxu0 0.0
        %2248 = vmatpush1.msra.mxu0 0.0
        %2249 = vmatprep.subr.mxu0 0.0
        %2250 = vmatpush1.msra.mxu0 0.0
        %2251 = vmatprep.subr.mxu0 0.0
        %2252 = vmatpush1.msra.mxu0 0.0
        %2253 = vmatprep.subr.mxu0 0.0
        %2254 = vmatpush1.msra.mxu0 0.0
        %2255 = vmatprep.subr.mxu0 0.0
        %2256 = vmatpush1.msra.mxu0 0.0
        %2257 = vmatprep.subr.mxu0 0.0
        %2258 = vmatpush1.msra.mxu0 0.0
        %2259 = vmatprep.subr.mxu0 0.0
        %2260 = vmatpush1.msra.mxu0 0.0
        %2261 = vmatprep.subr.mxu0 0.0
        %2262 = vmatpush1.msra.mxu0 0.0
        %2263 = vmatprep.subr.mxu0 0.0
        %2264 = vmatpush1.msra.mxu0 0.0
        %2265 = vmatprep.mubr.f32.mxu0 0.0
        %2266 = vmatmul.mubr.f32.gmra.mrb[0].mxu0 %v2134
        %v2267 = vpop.f32.mrb[0].mxu0
        %v2268 = vadd.f32 0.0, %v2267
        %v2269 = vpop.f32.mrb[0].mxu0
        %2270 = vmatprep.mubr.f32.mxu0 0.0
        %2271 = vmatmul.mubr.f32.gmra.mrb[0].mxu0 %v2136
        %v2272 = vpop.f32.mrb[0].mxu0
        %v2273 = vadd.f32 0.0, %v2272
        %v2274 = vpop.f32.mrb[0].mxu0
        %2275 = vmatprep.mubr.f32.mxu0 0.0
        %2276 = vmatmul.mubr.f32.gmra.mrb[0].mxu0 %v2138
        %v2277 = vpop.f32.mrb[0].mxu0
        %v2278 = vadd.f32 0.0, %v2277
        %v2279 = vpop.f32.mrb[0].mxu0
        %2280 = vmatprep.mubr.f32.mxu0 0.0
        %2281 = vmatmul.mubr.f32.gmra.mrb[0].mxu0 %v2140
        %v2282 = vpop.f32.mrb[0].mxu0
        %v2283 = vadd.f32 0.0, %v2282
        %v2284 = vpop.f32.mrb[0].mxu0
        %2285 = vmatprep.mubr.f32.mxu0 0.0
        %2286 = vmatmul.mubr.f32.gmra.mrb[0].mxu0 %v2142
        %v2287 = vpop.f32.mrb[0].mxu0
        %v2288 = vadd.f32 0.0, %v2287
        %v2289 = vpop.f32.mrb[0].mxu0
        %2290 = vmatprep.mubr.f32.mxu0 0.0
        %2291 = vmatmul.mubr.f32.gmra.mrb[0].mxu0 %v2144
        %v2292 = vpop.f32.mrb[0].mxu0
        %v2293 = vadd.f32 0.0, %v2292
        %v2294 = vpop.f32.mrb[0].mxu0
        %2295 = vmatprep.mubr.f32.mxu0 0.0
        %2296 = vmatmul.mubr.f32.gmra.mrb[0].mxu0 %v2146
        %v2297 = vpop.f32.mrb[0].mxu0
        %v2298 = vadd.f32 0.0, %v2297
        %v2299 = vpop.f32.mrb[0].mxu0
        %2300 = vmatprep.mubr.f32.mxu0 0.0
        %2301 = vmatmul.mubr.f32.gmra.mrb[0].mxu0 %v2148
        %v2302 = vpop.f32.mrb[0].mxu0
        %v2303 = vadd.f32 0.0, %v2302
        %v2304 = vpop.f32.mrb[0].mxu0
        %2305 = vmatprep.mubr.f32.mxu0 0.0
        %2306 = vmatmul.mubr.f32.gmra.mrb[0].mxu0 %v2150
        %v2307 = vpop.f32.mrb[0].mxu0
        %v2308 = vadd.f32 0.0, %v2307
        %v2309 = vpop.f32.mrb[0].mxu0
        %2310 = vmatprep.mubr.f32.mxu0 0.0
        %2311 = vmatmul.mubr.f32.gmra.mrb[0].mxu0 %v2152
        %v2312 = vpop.f32.mrb[0].mxu0
        %v2313 = vadd.f32 0.0, %v2312
        %v2314 = vpop.f32.mrb[0].mxu0
        %2315 = vmatprep.mubr.f32.mxu0 0.0
        %2316 = vmatmul.mubr.f32.gmra.mrb[0].mxu0 %v2154
        %v2317 = vpop.f32.mrb[0].mxu0
        %v2318 = vadd.f32 0.0, %v2317
        %v2319 = vpop.f32.mrb[0].mxu0
        %2320 = vmatprep.mubr.f32.mxu0 0.0
        %2321 = vmatmul.mubr.f32.gmra.mrb[0].mxu0 %v2156
        %v2322 = vpop.f32.mrb[0].mxu0
        %v2323 = vadd.f32 0.0, %v2322
        %v2324 = vpop.f32.mrb[0].mxu0
        %2325 = vmatprep.mubr.f32.mxu0 0.0
        %2326 = vmatmul.mubr.f32.gmra.mrb[0].mxu0 %v2158
        %v2327 = vpop.f32.mrb[0].mxu0
        %v2328 = vadd.f32 0.0, %v2327
        %v2329 = vpop.f32.mrb[0].mxu0
        %2330 = vmatprep.mubr.f32.mxu0 0.0
        %2331 = vmatmul.mubr.f32.gmra.mrb[0].mxu0 %v2160
        %v2332 = vpop.f32.mrb[0].mxu0
        %v2333 = vadd.f32 0.0, %v2332
        %v2334 = vpop.f32.mrb[0].mxu0
        %2335 = vmatprep.mubr.f32.mxu0 0.0
        %2336 = vmatmul.mubr.f32.gmra.mrb[0].mxu0 %v2162
        %v2337 = vpop.f32.mrb[0].mxu0
        %v2338 = vadd.f32 0.0, %v2337
        %v2339 = vpop.f32.mrb[0].mxu0
        %2340 = vmatprep.mubr.f32.mxu0 0.0
        %2341 = vmatmul.mubr.f32.gmra.mrb[0].mxu0 %v2164
        %v2342 = vpop.f32.mrb[0].mxu0
        %v2343 = vadd.f32 0.0, %v2342
        %v2344 = vpop.f32.mrb[0].mxu0
        %2345 = vmatprep.mubr.f32.mxu0 0.0
        %2346 = vmatmul.mubr.f32.gmra.mrb[0].mxu0 %v2166
        %v2347 = vpop.f32.mrb[0].mxu0
        %v2348 = vadd.f32 0.0, %v2347
        %v2349 = vpop.f32.mrb[0].mxu0
        %2350 = vmatprep.mubr.f32.mxu0 0.0
        %2351 = vmatmul.mubr.f32.gmra.mrb[0].mxu0 %v2168
        %v2352 = vpop.f32.mrb[0].mxu0
        %v2353 = vadd.f32 0.0, %v2352
        %v2354 = vpop.f32.mrb[0].mxu0
        %2355 = vmatprep.mubr.f32.mxu0 0.0
        %2356 = vmatmul.mubr.f32.gmra.mrb[0].mxu0 %v2170
        %v2357 = vpop.f32.mrb[0].mxu0
        %v2358 = vadd.f32 0.0, %v2357
        %v2359 = vpop.f32.mrb[0].mxu0
        %2360 = vmatprep.mubr.f32.mxu0 0.0
        %2361 = vmatmul.mubr.f32.gmra.mrb[0].mxu0 %v2172
        %v2362 = vpop.f32.mrb[0].mxu0
        %v2363 = vadd.f32 0.0, %v2362
        %v2364 = vpop.f32.mrb[0].mxu0
        %2365 = vmatprep.mubr.f32.mxu0 0.0
        %2366 = vmatmul.mubr.f32.gmra.mrb[0].mxu0 %v2174
        %v2367 = vpop.f32.mrb[0].mxu0
        %v2368 = vadd.f32 0.0, %v2367
        %v2369 = vpop.f32.mrb[0].mxu0
        %2370 = vmatprep.mubr.f32.mxu0 0.0
        %2371 = vmatmul.mubr.f32.gmra.mrb[0].mxu0 %v2176
        %v2372 = vpop.f32.mrb[0].mxu0
        %v2373 = vadd.f32 0.0, %v2372
        %v2374 = vpop.f32.mrb[0].mxu0
        %2375 = vmatprep.mubr.f32.mxu0 0.0
        %2376 = vmatmul.mubr.f32.gmra.mrb[0].mxu0 %v2178
        %v2377 = vpop.f32.mrb[0].mxu0
        %v2378 = vadd.f32 0.0, %v2377
        %v2379 = vpop.f32.mrb[0].mxu0
        %2380 = vmatprep.mubr.f32.mxu0 0.0
        %2381 = vmatmul.mubr.f32.gmra.mrb[0].mxu0 %v2180
        %v2382 = vpop.f32.mrb[0].mxu0
        %v2383 = vadd.f32 0.0, %v2382
        %v2384 = vpop.f32.mrb[0].mxu0
        %2385 = vmatprep.mubr.f32.mxu0 0.0
        %2386 = vmatmul.mubr.f32.gmra.mrb[0].mxu0 %v2182
        %v2387 = vpop.f32.mrb[0].mxu0
        %v2388 = vadd.f32 0.0, %v2387
        %v2389 = vpop.f32.mrb[0].mxu0
        %2390 = vmatprep.mubr.f32.mxu0 0.0
        %2391 = vmatmul.mubr.f32.gmra.mrb[0].mxu0 %v2184
        %v2392 = vpop.f32.mrb[0].mxu0
        %v2393 = vadd.f32 0.0, %v2392
        %v2394 = vpop.f32.mrb[0].mxu0
        %2395 = vmatprep.mubr.f32.mxu0 0.0
        %2396 = vmatmul.mubr.f32.gmra.mrb[0].mxu0 %v2186
        %v2397 = vpop.f32.mrb[0].mxu0
        %v2398 = vadd.f32 0.0, %v2397
        %v2399 = vpop.f32.mrb[0].mxu0
        %2400 = vmatprep.mubr.f32.mxu0 0.0
        %2401 = vmatmul.mubr.f32.gmra.mrb[0].mxu0 %v2188
        %v2402 = vpop.f32.mrb[0].mxu0
        %v2403 = vadd.f32 0.0, %v2402
        %v2404 = vpop.f32.mrb[0].mxu0
        %2405 = vmatprep.mubr.f32.mxu0 0.0
        %2406 = vmatmul.mubr.f32.gmra.mrb[0].mxu0 %v2190
        %v2407 = vpop.f32.mrb[0].mxu0
        %v2408 = vadd.f32 0.0, %v2407
        %v2409 = vpop.f32.mrb[0].mxu0
        %2410 = vmatprep.mubr.f32.mxu0 0.0
        %2411 = vmatmul.mubr.f32.gmra.mrb[0].mxu0 %v2192
        %v2412 = vpop.f32.mrb[0].mxu0
        %v2413 = vadd.f32 0.0, %v2412
        %v2414 = vpop.f32.mrb[0].mxu0
        %2415 = vmatprep.mubr.f32.mxu0 0.0
        %2416 = vmatmul.mubr.f32.gmra.mrb[0].mxu0 %v2194
        %v2417 = vpop.f32.mrb[0].mxu0
        %v2418 = vadd.f32 0.0, %v2417
        %v2419 = vpop.f32.mrb[0].mxu0
        %2420 = vmatprep.mubr.f32.mxu0 0.0
        %2421 = vmatmul.mubr.f32.gmra.mrb[0].mxu0 %v2196
        %v2422 = vpop.f32.mrb[0].mxu0
        %v2423 = vadd.f32 0.0, %v2422
        %v2424 = vpop.f32.mrb[0].mxu0
        %2425 = vdwg.mxu0
        %v2426 = vadd.f32 %v2005, %v2268
        %v2427 = vadd.f32 %v2006, %v2273
        %v2428 = vadd.f32 %v2007, %v2278
        %v2429 = vadd.f32 %v2008, %v2283
        %v2430 = vadd.f32 %v2009, %v2288
        %v2431 = vadd.f32 %v2010, %v2293
        %v2432 = vadd.f32 %v2011, %v2298
        %v2433 = vadd.f32 %v2012, %v2303
        %v2434 = vadd.f32 %v2013, %v2308
        %v2435 = vadd.f32 %v2014, %v2313
        %v2436 = vadd.f32 %v2015, %v2318
        %v2437 = vadd.f32 %v2016, %v2323
        %v2438 = vadd.f32 %v2017, %v2328
        %v2439 = vadd.f32 %v2018, %v2333
        %v2440 = vadd.f32 %v2019, %v2338
        %v2441 = vadd.f32 %v2020, %v2343
        %v2442 = vadd.f32 %v2021, %v2348
        %v2443 = vadd.f32 %v2022, %v2353
        %v2444 = vadd.f32 %v2023, %v2358
        %v2445 = vadd.f32 %v2024, %v2363
        %v2446 = vadd.f32 %v2025, %v2368
        %v2447 = vadd.f32 %v2026, %v2373
        %v2448 = vadd.f32 %v2027, %v2378
        %v2449 = vadd.f32 %v2028, %v2383
        %v2450 = vadd.f32 %v2029, %v2388
        %v2451 = vadd.f32 %v2030, %v2393
        %v2452 = vadd.f32 %v2031, %v2398
        %v2453 = vadd.f32 %v2032, %v2403
        %v2454 = vadd.f32 %v2033, %v2408
        %v2455 = vadd.f32 %v2034, %v2413
        %v2456 = vadd.f32 %v2035, %v2418
        %v2457 = vadd.f32 %v2036, %v2423
        %v2458 = vrot.slane %v1631, 2
        %v2459 = vrot.slane %v1632, 2
        %v2460 = vsel %vm1225, %v2458, %v2459
        %v2461 = vrot.slane %v1633, 2
        %v2462 = vsel %vm1225, %v2459, %v2461
        %v2463 = vrot.slane %v1634, 2
        %v2464 = vrot.slane %v1635, 2
        %v2465 = vsel %vm1225, %v2463, %v2464
        %v2466 = vrot.slane %v1636, 2
        %v2467 = vsel %vm1225, %v2464, %v2466
        %v2468 = vrot.slane %v1637, 2
        %v2469 = vrot.slane %v1638, 2
        %v2470 = vsel %vm1225, %v2468, %v2469
        %v2471 = vrot.slane %v1639, 2
        %v2472 = vsel %vm1225, %v2469, %v2471
        %v2473 = vrot.slane %v1640, 2
        %v2474 = vrot.slane %v1641, 2
        %v2475 = vsel %vm1225, %v2473, %v2474
        %v2476 = vrot.slane %v1642, 2
        %v2477 = vsel %vm1225, %v2474, %v2476
        %v2478 = vrot.slane %v1643, 2
        %v2479 = vrot.slane %v1644, 2
        %v2480 = vsel %vm1225, %v2478, %v2479
        %v2481 = vrot.slane %v1645, 2
        %v2482 = vsel %vm1225, %v2479, %v2481
        %v2483 = vrot.slane %v1646, 2
        %v2484 = vrot.slane %v1647, 2
        %v2485 = vsel %vm1225, %v2483, %v2484
        %v2486 = vrot.slane %v1648, 2
        %v2487 = vsel %vm1225, %v2484, %v2486
        %v2488 = vrot.slane %v1649, 2
        %v2489 = vrot.slane %v1650, 2
        %v2490 = vsel %vm1225, %v2488, %v2489
        %v2491 = vrot.slane %v1651, 2
        %v2492 = vsel %vm1225, %v2489, %v2491
        %v2493 = vrot.slane %v1652, 2
        %v2494 = vrot.slane %v1653, 2
        %v2495 = vsel %vm1225, %v2493, %v2494
        %v2496 = vrot.slane %v1654, 2
        %v2497 = vsel %vm1225, %v2494, %v2496
        %v2498 = vrot.slane %v1655, 2
        %v2499 = vrot.slane %v1656, 2
        %v2500 = vsel %vm1225, %v2498, %v2499
        %v2501 = vrot.slane %v1657, 2
        %v2502 = vsel %vm1225, %v2499, %v2501
        %v2503 = vrot.slane %v1658, 2
        %v2504 = vrot.slane %v1659, 2
        %v2505 = vsel %vm1225, %v2503, %v2504
        %v2506 = vrot.slane %v1660, 2
        %v2507 = vsel %vm1225, %v2504, %v2506
        %v2508 = vrot.slane %v1661, 2
        %v2509 = vrot.slane %v1662, 2
        %v2510 = vsel %vm1225, %v2508, %v2509
        %v2511 = vrot.slane %v1663, 2
        %v2512 = vsel %vm1225, %v2509, %v2511
        %v2513 = vrot.slane %v1664, 2
        %v2514 = vrot.slane %v1665, 2
        %v2515 = vsel %vm1225, %v2513, %v2514
        %v2516 = vrot.slane %v1666, 2
        %v2517 = vsel %vm1225, %v2514, %v2516
        %v2518 = vrot.slane %v1667, 2
        %v2519 = vrot.slane %v1668, 2
        %v2520 = vsel %vm1225, %v2518, %v2519
        %v2521 = vrot.slane %v1669, 2
        %v2522 = vsel %vm1225, %v2519, %v2521
        %v2523 = vrot.slane %v1670, 2
        %v2524 = vrot.slane %v1671, 2
        %v2525 = vsel %vm1225, %v2523, %v2524
        %v2526 = vrot.slane %v1672, 2
        %v2527 = vsel %vm1225, %v2524, %v2526
        %v2528 = vrot.slane %v1673, 2
        %v2529 = vrot.slane %v1674, 2
        %v2530 = vsel %vm1225, %v2528, %v2529
        %v2531 = vrot.slane %v1675, 2
        %v2532 = vsel %vm1225, %v2529, %v2531
        %v2533 = vrot.slane %v1676, 2
        %v2534 = vrot.slane %v1677, 2
        %v2535 = vsel %vm1225, %v2533, %v2534
        %v2536 = vrot.slane %v1678, 2
        %v2537 = vsel %vm1225, %v2534, %v2536
        %v2538 = vld [vmem:[%s1679 + $0x8] sm:$0xf]
        %v2539 = vsel %vm426, %v2460, 0
        %v2541 = vsel %vm426, %v2462, 0
        %v2543 = vsel %vm426, %v2465, 0
        %v2545 = vsel %vm426, %v2467, 0
        %v2547 = vsel %vm426, %v2470, 0
        %v2549 = vsel %vm426, %v2472, 0
        %v2551 = vsel %vm426, %v2475, 0
        %v2553 = vsel %vm426, %v2477, 0
        %v2555 = vsel %vm426, %v2480, 0
        %v2557 = vsel %vm426, %v2482, 0
        %v2559 = vsel %vm426, %v2485, 0
        %v2561 = vsel %vm426, %v2487, 0
        %v2563 = vsel %vm426, %v2490, 0
        %v2565 = vsel %vm426, %v2492, 0
        %v2567 = vsel %vm426, %v2495, 0
        %v2569 = vsel %vm426, %v2497, 0
        %v2571 = vsel %vm426, %v2500, 0
        %v2573 = vsel %vm426, %v2502, 0
        %v2575 = vsel %vm426, %v2505, 0
        %v2577 = vsel %vm426, %v2507, 0
        %v2579 = vsel %vm426, %v2510, 0
        %v2581 = vsel %vm426, %v2512, 0
        %v2583 = vsel %vm426, %v2515, 0
        %v2585 = vsel %vm426, %v2517, 0
        %v2587 = vsel %vm426, %v2520, 0
        %v2589 = vsel %vm426, %v2522, 0
        %v2591 = vsel %vm426, %v2525, 0
        %v2593 = vsel %vm426, %v2527, 0
        %v2595 = vsel %vm426, %v2530, 0
        %v2597 = vsel %vm426, %v2532, 0
        %v2599 = vsel %vm426, %v2535, 0
        %v2601 = vsel %vm426, %v2537, 0
        %v2604 = vsel %vm704, %v2538, 0
        %2606 = vmatprep.subr.mxu0 0.0
        %2607 = vmatpush1.msra.mxu0 %v2604
        %2608 = vmatprep.subr.mxu0 0.0
        %2609 = vmatpush1.msra.mxu0 0.0
        %2610 = vmatprep.subr.mxu0 0.0
        %2611 = vmatpush1.msra.mxu0 0.0
        %2612 = vmatprep.subr.mxu0 0.0
        %2613 = vmatpush1.msra.mxu0 0.0
        %2614 = vmatprep.subr.mxu0 0.0
        %2615 = vmatpush1.msra.mxu0 0.0
        %2616 = vmatprep.subr.mxu0 0.0
        %2617 = vmatpush1.msra.mxu0 0.0
        %2618 = vmatprep.subr.mxu0 0.0
        %2619 = vmatpush1.msra.mxu0 0.0
        %2620 = vmatprep.subr.mxu0 0.0
        %2621 = vmatpush1.msra.mxu0 0.0
        %2622 = vmatprep.subr.mxu0 0.0
        %2623 = vmatpush1.msra.mxu0 0.0
        %2624 = vmatprep.subr.mxu0 0.0
        %2625 = vmatpush1.msra.mxu0 0.0
        %2626 = vmatprep.subr.mxu0 0.0
        %2627 = vmatpush1.msra.mxu0 0.0
        %2628 = vmatprep.subr.mxu0 0.0
        %2629 = vmatpush1.msra.mxu0 0.0
        %2630 = vmatprep.subr.mxu0 0.0
        %2631 = vmatpush1.msra.mxu0 0.0
        %2632 = vmatprep.subr.mxu0 0.0
        %2633 = vmatpush1.msra.mxu0 0.0
        %2634 = vmatprep.subr.mxu0 0.0
        %2635 = vmatpush1.msra.mxu0 0.0
        %2636 = vmatprep.subr.mxu0 0.0
        %2637 = vmatpush1.msra.mxu0 0.0
        %2638 = vmatprep.subr.mxu0 0.0
        %2639 = vmatpush1.msra.mxu0 0.0
        %2640 = vmatprep.subr.mxu0 0.0
        %2641 = vmatpush1.msra.mxu0 0.0
        %2642 = vmatprep.subr.mxu0 0.0
        %2643 = vmatpush1.msra.mxu0 0.0
        %2644 = vmatprep.subr.mxu0 0.0
        %2645 = vmatpush1.msra.mxu0 0.0
        %2646 = vmatprep.subr.mxu0 0.0
        %2647 = vmatpush1.msra.mxu0 0.0
        %2648 = vmatprep.subr.mxu0 0.0
        %2649 = vmatpush1.msra.mxu0 0.0
        %2650 = vmatprep.subr.mxu0 0.0
        %2651 = vmatpush1.msra.mxu0 0.0
        %2652 = vmatprep.subr.mxu0 0.0
        %2653 = vmatpush1.msra.mxu0 0.0
        %2654 = vmatprep.subr.mxu0 0.0
        %2655 = vmatpush1.msra.mxu0 0.0
        %2656 = vmatprep.subr.mxu0 0.0
        %2657 = vmatpush1.msra.mxu0 0.0
        %2658 = vmatprep.subr.mxu0 0.0
        %2659 = vmatpush1.msra.mxu0 0.0
        %2660 = vmatprep.subr.mxu0 0.0
        %2661 = vmatpush1.msra.mxu0 0.0
        %2662 = vmatprep.subr.mxu0 0.0
        %2663 = vmatpush1.msra.mxu0 0.0
        %2664 = vmatprep.subr.mxu0 0.0
        %2665 = vmatpush1.msra.mxu0 0.0
        %2666 = vmatprep.subr.mxu0 0.0
        %2667 = vmatpush1.msra.mxu0 0.0
        %2668 = vmatprep.subr.mxu0 0.0
        %2669 = vmatpush1.msra.mxu0 0.0
        %2670 = vmatprep.mubr.f32.mxu0 0.0
        %2671 = vmatmul.mubr.f32.gmra.mrb[0].mxu0 %v2539
        %v2672 = vpop.f32.mrb[0].mxu0
        %v2673 = vadd.f32 0.0, %v2672
        %v2674 = vpop.f32.mrb[0].mxu0
        %2675 = vmatprep.mubr.f32.mxu0 0.0
        %2676 = vmatmul.mubr.f32.gmra.mrb[0].mxu0 %v2541
        %v2677 = vpop.f32.mrb[0].mxu0
        %v2678 = vadd.f32 0.0, %v2677
        %v2679 = vpop.f32.mrb[0].mxu0
        %2680 = vmatprep.mubr.f32.mxu0 0.0
        %2681 = vmatmul.mubr.f32.gmra.mrb[0].mxu0 %v2543
        %v2682 = vpop.f32.mrb[0].mxu0
        %v2683 = vadd.f32 0.0, %v2682
        %v2684 = vpop.f32.mrb[0].mxu0
        %2685 = vmatprep.mubr.f32.mxu0 0.0
        %2686 = vmatmul.mubr.f32.gmra.mrb[0].mxu0 %v2545
        %v2687 = vpop.f32.mrb[0].mxu0
        %v2688 = vadd.f32 0.0, %v2687
        %v2689 = vpop.f32.mrb[0].mxu0
        %2690 = vmatprep.mubr.f32.mxu0 0.0
        %2691 = vmatmul.mubr.f32.gmra.mrb[0].mxu0 %v2547
        %v2692 = vpop.f32.mrb[0].mxu0
        %v2693 = vadd.f32 0.0, %v2692
        %v2694 = vpop.f32.mrb[0].mxu0
        %2695 = vmatprep.mubr.f32.mxu0 0.0
        %2696 = vmatmul.mubr.f32.gmra.mrb[0].mxu0 %v2549
        %v2697 = vpop.f32.mrb[0].mxu0
        %v2698 = vadd.f32 0.0, %v2697
        %v2699 = vpop.f32.mrb[0].mxu0
        %2700 = vmatprep.mubr.f32.mxu0 0.0
        %2701 = vmatmul.mubr.f32.gmra.mrb[0].mxu0 %v2551
        %v2702 = vpop.f32.mrb[0].mxu0
        %v2703 = vadd.f32 0.0, %v2702
        %v2704 = vpop.f32.mrb[0].mxu0
        %2705 = vmatprep.mubr.f32.mxu0 0.0
        %2706 = vmatmul.mubr.f32.gmra.mrb[0].mxu0 %v2553
        %v2707 = vpop.f32.mrb[0].mxu0
        %v2708 = vadd.f32 0.0, %v2707
        %v2709 = vpop.f32.mrb[0].mxu0
        %2710 = vmatprep.mubr.f32.mxu0 0.0
        %2711 = vmatmul.mubr.f32.gmra.mrb[0].mxu0 %v2555
        %v2712 = vpop.f32.mrb[0].mxu0
        %v2713 = vadd.f32 0.0, %v2712
        %v2714 = vpop.f32.mrb[0].mxu0
        %2715 = vmatprep.mubr.f32.mxu0 0.0
        %2716 = vmatmul.mubr.f32.gmra.mrb[0].mxu0 %v2557
        %v2717 = vpop.f32.mrb[0].mxu0
        %v2718 = vadd.f32 0.0, %v2717
        %v2719 = vpop.f32.mrb[0].mxu0
        %2720 = vmatprep.mubr.f32.mxu0 0.0
        %2721 = vmatmul.mubr.f32.gmra.mrb[0].mxu0 %v2559
        %v2722 = vpop.f32.mrb[0].mxu0
        %v2723 = vadd.f32 0.0, %v2722
        %v2724 = vpop.f32.mrb[0].mxu0
        %2725 = vmatprep.mubr.f32.mxu0 0.0
        %2726 = vmatmul.mubr.f32.gmra.mrb[0].mxu0 %v2561
        %v2727 = vpop.f32.mrb[0].mxu0
        %v2728 = vadd.f32 0.0, %v2727
        %v2729 = vpop.f32.mrb[0].mxu0
        %2730 = vmatprep.mubr.f32.mxu0 0.0
        %2731 = vmatmul.mubr.f32.gmra.mrb[0].mxu0 %v2563
        %v2732 = vpop.f32.mrb[0].mxu0
        %v2733 = vadd.f32 0.0, %v2732
        %v2734 = vpop.f32.mrb[0].mxu0
        %2735 = vmatprep.mubr.f32.mxu0 0.0
        %2736 = vmatmul.mubr.f32.gmra.mrb[0].mxu0 %v2565
        %v2737 = vpop.f32.mrb[0].mxu0
        %v2738 = vadd.f32 0.0, %v2737
        %v2739 = vpop.f32.mrb[0].mxu0
        %2740 = vmatprep.mubr.f32.mxu0 0.0
        %2741 = vmatmul.mubr.f32.gmra.mrb[0].mxu0 %v2567
        %v2742 = vpop.f32.mrb[0].mxu0
        %v2743 = vadd.f32 0.0, %v2742
        %v2744 = vpop.f32.mrb[0].mxu0
        %2745 = vmatprep.mubr.f32.mxu0 0.0
        %2746 = vmatmul.mubr.f32.gmra.mrb[0].mxu0 %v2569
        %v2747 = vpop.f32.mrb[0].mxu0
        %v2748 = vadd.f32 0.0, %v2747
        %v2749 = vpop.f32.mrb[0].mxu0
        %2750 = vmatprep.mubr.f32.mxu0 0.0
        %2751 = vmatmul.mubr.f32.gmra.mrb[0].mxu0 %v2571
        %v2752 = vpop.f32.mrb[0].mxu0
        %v2753 = vadd.f32 0.0, %v2752
        %v2754 = vpop.f32.mrb[0].mxu0
        %2755 = vmatprep.mubr.f32.mxu0 0.0
        %2756 = vmatmul.mubr.f32.gmra.mrb[0].mxu0 %v2573
        %v2757 = vpop.f32.mrb[0].mxu0
        %v2758 = vadd.f32 0.0, %v2757
        %v2759 = vpop.f32.mrb[0].mxu0
        %2760 = vmatprep.mubr.f32.mxu0 0.0
        %2761 = vmatmul.mubr.f32.gmra.mrb[0].mxu0 %v2575
        %v2762 = vpop.f32.mrb[0].mxu0
        %v2763 = vadd.f32 0.0, %v2762
        %v2764 = vpop.f32.mrb[0].mxu0
        %2765 = vmatprep.mubr.f32.mxu0 0.0
        %2766 = vmatmul.mubr.f32.gmra.mrb[0].mxu0 %v2577
        %v2767 = vpop.f32.mrb[0].mxu0
        %v2768 = vadd.f32 0.0, %v2767
        %v2769 = vpop.f32.mrb[0].mxu0
        %2770 = vmatprep.mubr.f32.mxu0 0.0
        %2771 = vmatmul.mubr.f32.gmra.mrb[0].mxu0 %v2579
        %v2772 = vpop.f32.mrb[0].mxu0
        %v2773 = vadd.f32 0.0, %v2772
        %v2774 = vpop.f32.mrb[0].mxu0
        %2775 = vmatprep.mubr.f32.mxu0 0.0
        %2776 = vmatmul.mubr.f32.gmra.mrb[0].mxu0 %v2581
        %v2777 = vpop.f32.mrb[0].mxu0
        %v2778 = vadd.f32 0.0, %v2777
        %v2779 = vpop.f32.mrb[0].mxu0
        %2780 = vmatprep.mubr.f32.mxu0 0.0
        %2781 = vmatmul.mubr.f32.gmra.mrb[0].mxu0 %v2583
        %v2782 = vpop.f32.mrb[0].mxu0
        %v2783 = vadd.f32 0.0, %v2782
        %v2784 = vpop.f32.mrb[0].mxu0
        %2785 = vmatprep.mubr.f32.mxu0 0.0
        %2786 = vmatmul.mubr.f32.gmra.mrb[0].mxu0 %v2585
        %v2787 = vpop.f32.mrb[0].mxu0
        %v2788 = vadd.f32 0.0, %v2787
        %v2789 = vpop.f32.mrb[0].mxu0
        %2790 = vmatprep.mubr.f32.mxu0 0.0
        %2791 = vmatmul.mubr.f32.gmra.mrb[0].mxu0 %v2587
        %v2792 = vpop.f32.mrb[0].mxu0
        %v2793 = vadd.f32 0.0, %v2792
        %v2794 = vpop.f32.mrb[0].mxu0
        %2795 = vmatprep.mubr.f32.mxu0 0.0
        %2796 = vmatmul.mubr.f32.gmra.mrb[0].mxu0 %v2589
        %v2797 = vpop.f32.mrb[0].mxu0
        %v2798 = vadd.f32 0.0, %v2797
        %v2799 = vpop.f32.mrb[0].mxu0
        %2800 = vmatprep.mubr.f32.mxu0 0.0
        %2801 = vmatmul.mubr.f32.gmra.mrb[0].mxu0 %v2591
        %v2802 = vpop.f32.mrb[0].mxu0
        %v2803 = vadd.f32 0.0, %v2802
        %v2804 = vpop.f32.mrb[0].mxu0
        %2805 = vmatprep.mubr.f32.mxu0 0.0
        %2806 = vmatmul.mubr.f32.gmra.mrb[0].mxu0 %v2593
        %v2807 = vpop.f32.mrb[0].mxu0
        %v2808 = vadd.f32 0.0, %v2807
        %v2809 = vpop.f32.mrb[0].mxu0
        %2810 = vmatprep.mubr.f32.mxu0 0.0
        %2811 = vmatmul.mubr.f32.gmra.mrb[0].mxu0 %v2595
        %v2812 = vpop.f32.mrb[0].mxu0
        %v2813 = vadd.f32 0.0, %v2812
        %v2814 = vpop.f32.mrb[0].mxu0
        %2815 = vmatprep.mubr.f32.mxu0 0.0
        %2816 = vmatmul.mubr.f32.gmra.mrb[0].mxu0 %v2597
        %v2817 = vpop.f32.mrb[0].mxu0
        %v2818 = vadd.f32 0.0, %v2817
        %v2819 = vpop.f32.mrb[0].mxu0
        %2820 = vmatprep.mubr.f32.mxu0 0.0
        %2821 = vmatmul.mubr.f32.gmra.mrb[0].mxu0 %v2599
        %v2822 = vpop.f32.mrb[0].mxu0
        %v2823 = vadd.f32 0.0, %v2822
        %v2824 = vpop.f32.mrb[0].mxu0
        %2825 = vmatprep.mubr.f32.mxu0 0.0
        %2826 = vmatmul.mubr.f32.gmra.mrb[0].mxu0 %v2601
        %v2827 = vpop.f32.mrb[0].mxu0
        %v2828 = vadd.f32 0.0, %v2827
        %v2829 = vpop.f32.mrb[0].mxu0
        %2830 = vdwg.mxu0
        %v2831 = vadd.f32 %v2426, %v2673
        %v2832 = vadd.f32 %v2427, %v2678
        %v2833 = vadd.f32 %v2428, %v2683
        %v2834 = vadd.f32 %v2429, %v2688
        %v2835 = vadd.f32 %v2430, %v2693
        %v2836 = vadd.f32 %v2431, %v2698
        %v2837 = vadd.f32 %v2432, %v2703
        %v2838 = vadd.f32 %v2433, %v2708
        %v2839 = vadd.f32 %v2434, %v2713
        %v2840 = vadd.f32 %v2435, %v2718
        %v2841 = vadd.f32 %v2436, %v2723
        %v2842 = vadd.f32 %v2437, %v2728
        %v2843 = vadd.f32 %v2438, %v2733
        %v2844 = vadd.f32 %v2439, %v2738
        %v2845 = vadd.f32 %v2440, %v2743
        %v2846 = vadd.f32 %v2441, %v2748
        %v2847 = vadd.f32 %v2442, %v2753
        %v2848 = vadd.f32 %v2443, %v2758
        %v2849 = vadd.f32 %v2444, %v2763
        %v2850 = vadd.f32 %v2445, %v2768
        %v2851 = vadd.f32 %v2446, %v2773
        %v2852 = vadd.f32 %v2447, %v2778
        %v2853 = vadd.f32 %v2448, %v2783
        %v2854 = vadd.f32 %v2449, %v2788
        %v2855 = vadd.f32 %v2450, %v2793
        %v2856 = vadd.f32 %v2451, %v2798
        %v2857 = vadd.f32 %v2452, %v2803
        %v2858 = vadd.f32 %v2453, %v2808
        %v2859 = vadd.f32 %v2454, %v2813
        %v2860 = vadd.f32 %v2455, %v2818
        %v2861 = vadd.f32 %v2456, %v2823
        %v2862 = vadd.f32 %v2457, %v2828
        %s2863 = scalar_lea.vmem [#allocation2], 48
        %v2864 = vld [vmem:[%s2863] sm:$0xff]
        %v2865 = vld [vmem:[%s2863 + $0x8] sm:$0xff]
        %v2866 = vld [vmem:[%s2863 + $0x10] sm:$0x3]
        %v2867 = vld [vmem:[%s2863 + $0x18] sm:$0xff]
        %v2868 = vld [vmem:[%s2863 + $0x20] sm:$0xff]
        %v2869 = vld [vmem:[%s2863 + $0x28] sm:$0x3]
        %v2870 = vld [vmem:[%s2863 + $0x30] sm:$0xff]
        %v2871 = vld [vmem:[%s2863 + $0x38] sm:$0xff]
        %v2872 = vld [vmem:[%s2863 + $0x40] sm:$0x3]
        %v2873 = vld [vmem:[%s2863 + $0x48] sm:$0xff]
        %v2874 = vld [vmem:[%s2863 + $0x50] sm:$0xff]
        %v2875 = vld [vmem:[%s2863 + $0x58] sm:$0x3]
        %v2876 = vld [vmem:[%s2863 + $0x60] sm:$0xff]
        %v2877 = vld [vmem:[%s2863 + $0x68] sm:$0xff]
        %v2878 = vld [vmem:[%s2863 + $0x70] sm:$0x3]
        %v2879 = vld [vmem:[%s2863 + $0x78] sm:$0xff]
        %v2880 = vld [vmem:[%s2863 + $0x80] sm:$0xff]
        %v2881 = vld [vmem:[%s2863 + $0x88] sm:$0x3]
        %v2882 = vld [vmem:[%s2863 + $0x90] sm:$0xff]
        %v2883 = vld [vmem:[%s2863 + $0x98] sm:$0xff]
        %v2884 = vld [vmem:[%s2863 + $0xa0] sm:$0x3]
        %v2885 = vld [vmem:[%s2863 + $0xa8] sm:$0xff]
        %v2886 = vld [vmem:[%s2863 + $0xb0] sm:$0xff]
        %v2887 = vld [vmem:[%s2863 + $0xb8] sm:$0x3]
        %v2888 = vld [vmem:[%s2863 + $0xc0] sm:$0xff]
        %v2889 = vld [vmem:[%s2863 + $0xc8] sm:$0xff]
        %v2890 = vld [vmem:[%s2863 + $0xd0] sm:$0x3]
        %v2891 = vld [vmem:[%s2863 + $0xd8] sm:$0xff]
        %v2892 = vld [vmem:[%s2863 + $0xe0] sm:$0xff]
        %v2893 = vld [vmem:[%s2863 + $0xe8] sm:$0x3]
        %v2894 = vld [vmem:[%s2863 + $0xf0] sm:$0xff]
        %v2895 = vld [vmem:[%s2863 + $0xf8] sm:$0xff]
        %v2896 = vld [vmem:[%s2863 + $0x100] sm:$0x3]
        %v2897 = vld [vmem:[%s2863 + $0x108] sm:$0xff]
        %v2898 = vld [vmem:[%s2863 + $0x110] sm:$0xff]
        %v2899 = vld [vmem:[%s2863 + $0x118] sm:$0x3]
        %v2900 = vld [vmem:[%s2863 + $0x120] sm:$0xff]
        %v2901 = vld [vmem:[%s2863 + $0x128] sm:$0xff]
        %v2902 = vld [vmem:[%s2863 + $0x130] sm:$0x3]
        %v2903 = vld [vmem:[%s2863 + $0x138] sm:$0xff]
        %v2904 = vld [vmem:[%s2863 + $0x140] sm:$0xff]
        %v2905 = vld [vmem:[%s2863 + $0x148] sm:$0x3]
        %v2906 = vld [vmem:[%s2863 + $0x150] sm:$0xff]
        %v2907 = vld [vmem:[%s2863 + $0x158] sm:$0xff]
        %v2908 = vld [vmem:[%s2863 + $0x160] sm:$0x3]
        %v2909 = vld [vmem:[%s2863 + $0x168] sm:$0xff]
        %v2910 = vld [vmem:[%s2863 + $0x170] sm:$0xff]
        %v2911 = vld [vmem:[%s2863 + $0x178] sm:$0x3]
        %s2912 = scalar_lea.vmem %s1, 32
        %v2913 = vld [vmem:[%s2912] sm:$0xf]
        %v2915 = vsel %vm426, %v2864, 0
        %v2918 = vsel %vm426, %v2865, 0
        %v2921 = vsel %vm426, %v2867, 0
        %v2924 = vsel %vm426, %v2868, 0
        %v2927 = vsel %vm426, %v2870, 0
        %v2930 = vsel %vm426, %v2871, 0
        %v2933 = vsel %vm426, %v2873, 0
        %v2936 = vsel %vm426, %v2874, 0
        %v2939 = vsel %vm426, %v2876, 0
        %v2942 = vsel %vm426, %v2877, 0
        %v2945 = vsel %vm426, %v2879, 0
        %v2948 = vsel %vm426, %v2880, 0
        %v2951 = vsel %vm426, %v2882, 0
        %v2954 = vsel %vm426, %v2883, 0
        %v2957 = vsel %vm426, %v2885, 0
        %v2960 = vsel %vm426, %v2886, 0
        %v2963 = vsel %vm426, %v2888, 0
        %v2966 = vsel %vm426, %v2889, 0
        %v2969 = vsel %vm426, %v2891, 0
        %v2972 = vsel %vm426, %v2892, 0
        %v2975 = vsel %vm426, %v2894, 0
        %v2978 = vsel %vm426, %v2895, 0
        %v2981 = vsel %vm426, %v2897, 0
        %v2984 = vsel %vm426, %v2898, 0
        %v2987 = vsel %vm426, %v2900, 0
        %v2990 = vsel %vm426, %v2901, 0
        %v2993 = vsel %vm426, %v2903, 0
        %v2996 = vsel %vm426, %v2904, 0
        %v2999 = vsel %vm426, %v2906, 0
        %v3002 = vsel %vm426, %v2907, 0
        %v3005 = vsel %vm426, %v2909, 0
        %v3008 = vsel %vm426, %v2910, 0
        %v3011 = vsel %vm704, %v2913, 0
        %3013 = vmatprep.subr.mxu0 0.0
        %3014 = vmatpush1.msra.mxu0 %v3011
        %3015 = vmatprep.subr.mxu0 0.0
        %3016 = vmatpush1.msra.mxu0 0.0
        %3017 = vmatprep.subr.mxu0 0.0
        %3018 = vmatpush1.msra.mxu0 0.0
        %3019 = vmatprep.subr.mxu0 0.0
        %3020 = vmatpush1.msra.mxu0 0.0
        %3021 = vmatprep.subr.mxu0 0.0
        %3022 = vmatpush1.msra.mxu0 0.0
        %3023 = vmatprep.subr.mxu0 0.0
        %3024 = vmatpush1.msra.mxu0 0.0
        %3025 = vmatprep.subr.mxu0 0.0
        %3026 = vmatpush1.msra.mxu0 0.0
        %3027 = vmatprep.subr.mxu0 0.0
        %3028 = vmatpush1.msra.mxu0 0.0
        %3029 = vmatprep.subr.mxu0 0.0
        %3030 = vmatpush1.msra.mxu0 0.0
        %3031 = vmatprep.subr.mxu0 0.0
        %3032 = vmatpush1.msra.mxu0 0.0
        %3033 = vmatprep.subr.mxu0 0.0
        %3034 = vmatpush1.msra.mxu0 0.0
        %3035 = vmatprep.subr.mxu0 0.0
        %3036 = vmatpush1.msra.mxu0 0.0
        %3037 = vmatprep.subr.mxu0 0.0
        %3038 = vmatpush1.msra.mxu0 0.0
        %3039 = vmatprep.subr.mxu0 0.0
        %3040 = vmatpush1.msra.mxu0 0.0
        %3041 = vmatprep.subr.mxu0 0.0
        %3042 = vmatpush1.msra.mxu0 0.0
        %3043 = vmatprep.subr.mxu0 0.0
        %3044 = vmatpush1.msra.mxu0 0.0
        %3045 = vmatprep.subr.mxu0 0.0
        %3046 = vmatpush1.msra.mxu0 0.0
        %3047 = vmatprep.subr.mxu0 0.0
        %3048 = vmatpush1.msra.mxu0 0.0
        %3049 = vmatprep.subr.mxu0 0.0
        %3050 = vmatpush1.msra.mxu0 0.0
        %3051 = vmatprep.subr.mxu0 0.0
        %3052 = vmatpush1.msra.mxu0 0.0
        %3053 = vmatprep.subr.mxu0 0.0
        %3054 = vmatpush1.msra.mxu0 0.0
        %3055 = vmatprep.subr.mxu0 0.0
        %3056 = vmatpush1.msra.mxu0 0.0
        %3057 = vmatprep.subr.mxu0 0.0
        %3058 = vmatpush1.msra.mxu0 0.0
        %3059 = vmatprep.subr.mxu0 0.0
        %3060 = vmatpush1.msra.mxu0 0.0
        %3061 = vmatprep.subr.mxu0 0.0
        %3062 = vmatpush1.msra.mxu0 0.0
        %3063 = vmatprep.subr.mxu0 0.0
        %3064 = vmatpush1.msra.mxu0 0.0
        %3065 = vmatprep.subr.mxu0 0.0
        %3066 = vmatpush1.msra.mxu0 0.0
        %3067 = vmatprep.subr.mxu0 0.0
        %3068 = vmatpush1.msra.mxu0 0.0
        %3069 = vmatprep.subr.mxu0 0.0
        %3070 = vmatpush1.msra.mxu0 0.0
        %3071 = vmatprep.subr.mxu0 0.0
        %3072 = vmatpush1.msra.mxu0 0.0
        %3073 = vmatprep.subr.mxu0 0.0
        %3074 = vmatpush1.msra.mxu0 0.0
        %3075 = vmatprep.subr.mxu0 0.0
        %3076 = vmatpush1.msra.mxu0 0.0
        %3077 = vmatprep.mubr.f32.mxu0 0.0
        %3078 = vmatmul.mubr.f32.gmra.mrb[0].mxu0 %v2915
        %v3079 = vpop.f32.mrb[0].mxu0
        %v3080 = vadd.f32 0.0, %v3079
        %v3081 = vpop.f32.mrb[0].mxu0
        %3082 = vmatprep.mubr.f32.mxu0 0.0
        %3083 = vmatmul.mubr.f32.gmra.mrb[0].mxu0 %v2918
        %v3084 = vpop.f32.mrb[0].mxu0
        %v3085 = vadd.f32 0.0, %v3084
        %v3086 = vpop.f32.mrb[0].mxu0
        %3087 = vmatprep.mubr.f32.mxu0 0.0
        %3088 = vmatmul.mubr.f32.gmra.mrb[0].mxu0 %v2921
        %v3089 = vpop.f32.mrb[0].mxu0
        %v3090 = vadd.f32 0.0, %v3089
        %v3091 = vpop.f32.mrb[0].mxu0
        %3092 = vmatprep.mubr.f32.mxu0 0.0
        %3093 = vmatmul.mubr.f32.gmra.mrb[0].mxu0 %v2924
        %v3094 = vpop.f32.mrb[0].mxu0
        %v3095 = vadd.f32 0.0, %v3094
        %v3096 = vpop.f32.mrb[0].mxu0
        %3097 = vmatprep.mubr.f32.mxu0 0.0
        %3098 = vmatmul.mubr.f32.gmra.mrb[0].mxu0 %v2927
        %v3099 = vpop.f32.mrb[0].mxu0
        %v3100 = vadd.f32 0.0, %v3099
        %v3101 = vpop.f32.mrb[0].mxu0
        %3102 = vmatprep.mubr.f32.mxu0 0.0
        %3103 = vmatmul.mubr.f32.gmra.mrb[0].mxu0 %v2930
        %v3104 = vpop.f32.mrb[0].mxu0
        %v3105 = vadd.f32 0.0, %v3104
        %v3106 = vpop.f32.mrb[0].mxu0
        %3107 = vmatprep.mubr.f32.mxu0 0.0
        %3108 = vmatmul.mubr.f32.gmra.mrb[0].mxu0 %v2933
        %v3109 = vpop.f32.mrb[0].mxu0
        %v3110 = vadd.f32 0.0, %v3109
        %v3111 = vpop.f32.mrb[0].mxu0
        %3112 = vmatprep.mubr.f32.mxu0 0.0
        %3113 = vmatmul.mubr.f32.gmra.mrb[0].mxu0 %v2936
        %v3114 = vpop.f32.mrb[0].mxu0
        %v3115 = vadd.f32 0.0, %v3114
        %v3116 = vpop.f32.mrb[0].mxu0
        %3117 = vmatprep.mubr.f32.mxu0 0.0
        %3118 = vmatmul.mubr.f32.gmra.mrb[0].mxu0 %v2939
        %v3119 = vpop.f32.mrb[0].mxu0
        %v3120 = vadd.f32 0.0, %v3119
        %v3121 = vpop.f32.mrb[0].mxu0
        %3122 = vmatprep.mubr.f32.mxu0 0.0
        %3123 = vmatmul.mubr.f32.gmra.mrb[0].mxu0 %v2942
        %v3124 = vpop.f32.mrb[0].mxu0
        %v3125 = vadd.f32 0.0, %v3124
        %v3126 = vpop.f32.mrb[0].mxu0
        %3127 = vmatprep.mubr.f32.mxu0 0.0
        %3128 = vmatmul.mubr.f32.gmra.mrb[0].mxu0 %v2945
        %v3129 = vpop.f32.mrb[0].mxu0
        %v3130 = vadd.f32 0.0, %v3129
        %v3131 = vpop.f32.mrb[0].mxu0
        %3132 = vmatprep.mubr.f32.mxu0 0.0
        %3133 = vmatmul.mubr.f32.gmra.mrb[0].mxu0 %v2948
        %v3134 = vpop.f32.mrb[0].mxu0
        %v3135 = vadd.f32 0.0, %v3134
        %v3136 = vpop.f32.mrb[0].mxu0
        %3137 = vmatprep.mubr.f32.mxu0 0.0
        %3138 = vmatmul.mubr.f32.gmra.mrb[0].mxu0 %v2951
        %v3139 = vpop.f32.mrb[0].mxu0
        %v3140 = vadd.f32 0.0, %v3139
        %v3141 = vpop.f32.mrb[0].mxu0
        %3142 = vmatprep.mubr.f32.mxu0 0.0
        %3143 = vmatmul.mubr.f32.gmra.mrb[0].mxu0 %v2954
        %v3144 = vpop.f32.mrb[0].mxu0
        %v3145 = vadd.f32 0.0, %v3144
        %v3146 = vpop.f32.mrb[0].mxu0
        %3147 = vmatprep.mubr.f32.mxu0 0.0
        %3148 = vmatmul.mubr.f32.gmra.mrb[0].mxu0 %v2957
        %v3149 = vpop.f32.mrb[0].mxu0
        %v3150 = vadd.f32 0.0, %v3149
        %v3151 = vpop.f32.mrb[0].mxu0
        %3152 = vmatprep.mubr.f32.mxu0 0.0
        %3153 = vmatmul.mubr.f32.gmra.mrb[0].mxu0 %v2960
        %v3154 = vpop.f32.mrb[0].mxu0
        %v3155 = vadd.f32 0.0, %v3154
        %v3156 = vpop.f32.mrb[0].mxu0
        %3157 = vmatprep.mubr.f32.mxu0 0.0
        %3158 = vmatmul.mubr.f32.gmra.mrb[0].mxu0 %v2963
        %v3159 = vpop.f32.mrb[0].mxu0
        %v3160 = vadd.f32 0.0, %v3159
        %v3161 = vpop.f32.mrb[0].mxu0
        %3162 = vmatprep.mubr.f32.mxu0 0.0
        %3163 = vmatmul.mubr.f32.gmra.mrb[0].mxu0 %v2966
        %v3164 = vpop.f32.mrb[0].mxu0
        %v3165 = vadd.f32 0.0, %v3164
        %v3166 = vpop.f32.mrb[0].mxu0
        %3167 = vmatprep.mubr.f32.mxu0 0.0
        %3168 = vmatmul.mubr.f32.gmra.mrb[0].mxu0 %v2969
        %v3169 = vpop.f32.mrb[0].mxu0
        %v3170 = vadd.f32 0.0, %v3169
        %v3171 = vpop.f32.mrb[0].mxu0
        %3172 = vmatprep.mubr.f32.mxu0 0.0
        %3173 = vmatmul.mubr.f32.gmra.mrb[0].mxu0 %v2972
        %v3174 = vpop.f32.mrb[0].mxu0
        %v3175 = vadd.f32 0.0, %v3174
        %v3176 = vpop.f32.mrb[0].mxu0
        %3177 = vmatprep.mubr.f32.mxu0 0.0
        %3178 = vmatmul.mubr.f32.gmra.mrb[0].mxu0 %v2975
        %v3179 = vpop.f32.mrb[0].mxu0
        %v3180 = vadd.f32 0.0, %v3179
        %v3181 = vpop.f32.mrb[0].mxu0
        %3182 = vmatprep.mubr.f32.mxu0 0.0
        %3183 = vmatmul.mubr.f32.gmra.mrb[0].mxu0 %v2978
        %v3184 = vpop.f32.mrb[0].mxu0
        %v3185 = vadd.f32 0.0, %v3184
        %v3186 = vpop.f32.mrb[0].mxu0
        %3187 = vmatprep.mubr.f32.mxu0 0.0
        %3188 = vmatmul.mubr.f32.gmra.mrb[0].mxu0 %v2981
        %v3189 = vpop.f32.mrb[0].mxu0
        %v3190 = vadd.f32 0.0, %v3189
        %v3191 = vpop.f32.mrb[0].mxu0
        %3192 = vmatprep.mubr.f32.mxu0 0.0
        %3193 = vmatmul.mubr.f32.gmra.mrb[0].mxu0 %v2984
        %v3194 = vpop.f32.mrb[0].mxu0
        %v3195 = vadd.f32 0.0, %v3194
        %v3196 = vpop.f32.mrb[0].mxu0
        %3197 = vmatprep.mubr.f32.mxu0 0.0
        %3198 = vmatmul.mubr.f32.gmra.mrb[0].mxu0 %v2987
        %v3199 = vpop.f32.mrb[0].mxu0
        %v3200 = vadd.f32 0.0, %v3199
        %v3201 = vpop.f32.mrb[0].mxu0
        %3202 = vmatprep.mubr.f32.mxu0 0.0
        %3203 = vmatmul.mubr.f32.gmra.mrb[0].mxu0 %v2990
        %v3204 = vpop.f32.mrb[0].mxu0
        %v3205 = vadd.f32 0.0, %v3204
        %v3206 = vpop.f32.mrb[0].mxu0
        %3207 = vmatprep.mubr.f32.mxu0 0.0
        %3208 = vmatmul.mubr.f32.gmra.mrb[0].mxu0 %v2993
        %v3209 = vpop.f32.mrb[0].mxu0
        %v3210 = vadd.f32 0.0, %v3209
        %v3211 = vpop.f32.mrb[0].mxu0
        %3212 = vmatprep.mubr.f32.mxu0 0.0
        %3213 = vmatmul.mubr.f32.gmra.mrb[0].mxu0 %v2996
        %v3214 = vpop.f32.mrb[0].mxu0
        %v3215 = vadd.f32 0.0, %v3214
        %v3216 = vpop.f32.mrb[0].mxu0
        %3217 = vmatprep.mubr.f32.mxu0 0.0
        %3218 = vmatmul.mubr.f32.gmra.mrb[0].mxu0 %v2999
        %v3219 = vpop.f32.mrb[0].mxu0
        %v3220 = vadd.f32 0.0, %v3219
        %v3221 = vpop.f32.mrb[0].mxu0
        %3222 = vmatprep.mubr.f32.mxu0 0.0
        %3223 = vmatmul.mubr.f32.gmra.mrb[0].mxu0 %v3002
        %v3224 = vpop.f32.mrb[0].mxu0
        %v3225 = vadd.f32 0.0, %v3224
        %v3226 = vpop.f32.mrb[0].mxu0
        %3227 = vmatprep.mubr.f32.mxu0 0.0
        %3228 = vmatmul.mubr.f32.gmra.mrb[0].mxu0 %v3005
        %v3229 = vpop.f32.mrb[0].mxu0
        %v3230 = vadd.f32 0.0, %v3229
        %v3231 = vpop.f32.mrb[0].mxu0
        %3232 = vmatprep.mubr.f32.mxu0 0.0
        %3233 = vmatmul.mubr.f32.gmra.mrb[0].mxu0 %v3008
        %v3234 = vpop.f32.mrb[0].mxu0
        %v3235 = vadd.f32 0.0, %v3234
        %v3236 = vpop.f32.mrb[0].mxu0
        %3237 = vdwg.mxu0
        %v3238 = vadd.f32 %v2831, %v3080
        %v3239 = vadd.f32 %v2832, %v3085
        %v3240 = vadd.f32 %v2833, %v3090
        %v3241 = vadd.f32 %v2834, %v3095
        %v3242 = vadd.f32 %v2835, %v3100
        %v3243 = vadd.f32 %v2836, %v3105
        %v3244 = vadd.f32 %v2837, %v3110
        %v3245 = vadd.f32 %v2838, %v3115
        %v3246 = vadd.f32 %v2839, %v3120
        %v3247 = vadd.f32 %v2840, %v3125
        %v3248 = vadd.f32 %v2841, %v3130
        %v3249 = vadd.f32 %v2842, %v3135
        %v3250 = vadd.f32 %v2843, %v3140
        %v3251 = vadd.f32 %v2844, %v3145
        %v3252 = vadd.f32 %v2845, %v3150
        %v3253 = vadd.f32 %v2846, %v3155
        %v3254 = vadd.f32 %v2847, %v3160
        %v3255 = vadd.f32 %v2848, %v3165
        %v3256 = vadd.f32 %v2849, %v3170
        %v3257 = vadd.f32 %v2850, %v3175
        %v3258 = vadd.f32 %v2851, %v3180
        %v3259 = vadd.f32 %v2852, %v3185
        %v3260 = vadd.f32 %v2853, %v3190
        %v3261 = vadd.f32 %v2854, %v3195
        %v3262 = vadd.f32 %v2855, %v3200
        %v3263 = vadd.f32 %v2856, %v3205
        %v3264 = vadd.f32 %v2857, %v3210
        %v3265 = vadd.f32 %v2858, %v3215
        %v3266 = vadd.f32 %v2859, %v3220
        %v3267 = vadd.f32 %v2860, %v3225
        %v3268 = vadd.f32 %v2861, %v3230
        %v3269 = vadd.f32 %v2862, %v3235
        %v3286 = vrot.slane %v2864, 1
        %v3287 = vrot.slane %v2865, 1
        %v3288 = vsel %vm558, %v3286, %v3287
        %v3289 = vrot.slane %v2866, 1
        %v3290 = vsel %vm558, %v3287, %v3289
        %v3291 = vrot.slane %v2867, 1
        %v3292 = vrot.slane %v2868, 1
        %v3293 = vsel %vm558, %v3291, %v3292
        %v3294 = vrot.slane %v2869, 1
        %v3295 = vsel %vm558, %v3292, %v3294
        %v3296 = vrot.slane %v2870, 1
        %v3297 = vrot.slane %v2871, 1
        %v3298 = vsel %vm558, %v3296, %v3297
        %v3299 = vrot.slane %v2872, 1
        %v3300 = vsel %vm558, %v3297, %v3299
        %v3301 = vrot.slane %v2873, 1
        %v3302 = vrot.slane %v2874, 1
        %v3303 = vsel %vm558, %v3301, %v3302
        %v3304 = vrot.slane %v2875, 1
        %v3305 = vsel %vm558, %v3302, %v3304
        %v3306 = vrot.slane %v2876, 1
        %v3307 = vrot.slane %v2877, 1
        %v3308 = vsel %vm558, %v3306, %v3307
        %v3309 = vrot.slane %v2878, 1
        %v3310 = vsel %vm558, %v3307, %v3309
        %v3311 = vrot.slane %v2879, 1
        %v3312 = vrot.slane %v2880, 1
        %v3313 = vsel %vm558, %v3311, %v3312
        %v3314 = vrot.slane %v2881, 1
        %v3315 = vsel %vm558, %v3312, %v3314
        %v3316 = vrot.slane %v2882, 1
        %v3317 = vrot.slane %v2883, 1
        %v3318 = vsel %vm558, %v3316, %v3317
        %v3319 = vrot.slane %v2884, 1
        %v3320 = vsel %vm558, %v3317, %v3319
        %v3321 = vrot.slane %v2885, 1
        %v3322 = vrot.slane %v2886, 1
        %v3323 = vsel %vm558, %v3321, %v3322
        %v3324 = vrot.slane %v2887, 1
        %v3325 = vsel %vm558, %v3322, %v3324
        %v3326 = vrot.slane %v2888, 1
        %v3327 = vrot.slane %v2889, 1
        %v3328 = vsel %vm558, %v3326, %v3327
        %v3329 = vrot.slane %v2890, 1
        %v3330 = vsel %vm558, %v3327, %v3329
        %v3331 = vrot.slane %v2891, 1
        %v3332 = vrot.slane %v2892, 1
        %v3333 = vsel %vm558, %v3331, %v3332
        %v3334 = vrot.slane %v2893, 1
        %v3335 = vsel %vm558, %v3332, %v3334
        %v3336 = vrot.slane %v2894, 1
        %v3337 = vrot.slane %v2895, 1
        %v3338 = vsel %vm558, %v3336, %v3337
        %v3339 = vrot.slane %v2896, 1
        %v3340 = vsel %vm558, %v3337, %v3339
        %v3341 = vrot.slane %v2897, 1
        %v3342 = vrot.slane %v2898, 1
        %v3343 = vsel %vm558, %v3341, %v3342
        %v3344 = vrot.slane %v2899, 1
        %v3345 = vsel %vm558, %v3342, %v3344
        %v3346 = vrot.slane %v2900, 1
        %v3347 = vrot.slane %v2901, 1
        %v3348 = vsel %vm558, %v3346, %v3347
        %v3349 = vrot.slane %v2902, 1
        %v3350 = vsel %vm558, %v3347, %v3349
        %v3351 = vrot.slane %v2903, 1
        %v3352 = vrot.slane %v2904, 1
        %v3353 = vsel %vm558, %v3351, %v3352
        %v3354 = vrot.slane %v2905, 1
        %v3355 = vsel %vm558, %v3352, %v3354
        %v3356 = vrot.slane %v2906, 1
        %v3357 = vrot.slane %v2907, 1
        %v3358 = vsel %vm558, %v3356, %v3357
        %v3359 = vrot.slane %v2908, 1
        %v3360 = vsel %vm558, %v3357, %v3359
        %v3361 = vrot.slane %v2909, 1
        %v3362 = vrot.slane %v2910, 1
        %v3363 = vsel %vm558, %v3361, %v3362
        %v3364 = vrot.slane %v2911, 1
        %v3365 = vsel %vm558, %v3362, %v3364
        %v3366 = vld [vmem:[%s2912 + $0x4] sm:$0xf]
        %v3367 = vsel %vm426, %v3288, 0
        %v3369 = vsel %vm426, %v3290, 0
        %v3371 = vsel %vm426, %v3293, 0
        %v3373 = vsel %vm426, %v3295, 0
        %v3375 = vsel %vm426, %v3298, 0
        %v3377 = vsel %vm426, %v3300, 0
        %v3379 = vsel %vm426, %v3303, 0
        %v3381 = vsel %vm426, %v3305, 0
        %v3383 = vsel %vm426, %v3308, 0
        %v3385 = vsel %vm426, %v3310, 0
        %v3387 = vsel %vm426, %v3313, 0
        %v3389 = vsel %vm426, %v3315, 0
        %v3391 = vsel %vm426, %v3318, 0
        %v3393 = vsel %vm426, %v3320, 0
        %v3395 = vsel %vm426, %v3323, 0
        %v3397 = vsel %vm426, %v3325, 0
        %v3399 = vsel %vm426, %v3328, 0
        %v3401 = vsel %vm426, %v3330, 0
        %v3403 = vsel %vm426, %v3333, 0
        %v3405 = vsel %vm426, %v3335, 0
        %v3407 = vsel %vm426, %v3338, 0
        %v3409 = vsel %vm426, %v3340, 0
        %v3411 = vsel %vm426, %v3343, 0
        %v3413 = vsel %vm426, %v3345, 0
        %v3415 = vsel %vm426, %v3348, 0
        %v3417 = vsel %vm426, %v3350, 0
        %v3419 = vsel %vm426, %v3353, 0
        %v3421 = vsel %vm426, %v3355, 0
        %v3423 = vsel %vm426, %v3358, 0
        %v3425 = vsel %vm426, %v3360, 0
        %v3427 = vsel %vm426, %v3363, 0
        %v3429 = vsel %vm426, %v3365, 0
        %v3432 = vsel %vm704, %v3366, 0
        %3434 = vmatprep.subr.mxu0 0.0
        %3435 = vmatpush1.msra.mxu0 %v3432
        %3436 = vmatprep.subr.mxu0 0.0
        %3437 = vmatpush1.msra.mxu0 0.0
        %3438 = vmatprep.subr.mxu0 0.0
        %3439 = vmatpush1.msra.mxu0 0.0
        %3440 = vmatprep.subr.mxu0 0.0
        %3441 = vmatpush1.msra.mxu0 0.0
        %3442 = vmatprep.subr.mxu0 0.0
        %3443 = vmatpush1.msra.mxu0 0.0
        %3444 = vmatprep.subr.mxu0 0.0
        %3445 = vmatpush1.msra.mxu0 0.0
        %3446 = vmatprep.subr.mxu0 0.0
        %3447 = vmatpush1.msra.mxu0 0.0
        %3448 = vmatprep.subr.mxu0 0.0
        %3449 = vmatpush1.msra.mxu0 0.0
        %3450 = vmatprep.subr.mxu0 0.0
        %3451 = vmatpush1.msra.mxu0 0.0
        %3452 = vmatprep.subr.mxu0 0.0
        %3453 = vmatpush1.msra.mxu0 0.0
        %3454 = vmatprep.subr.mxu0 0.0
        %3455 = vmatpush1.msra.mxu0 0.0
        %3456 = vmatprep.subr.mxu0 0.0
        %3457 = vmatpush1.msra.mxu0 0.0
        %3458 = vmatprep.subr.mxu0 0.0
        %3459 = vmatpush1.msra.mxu0 0.0
        %3460 = vmatprep.subr.mxu0 0.0
        %3461 = vmatpush1.msra.mxu0 0.0
        %3462 = vmatprep.subr.mxu0 0.0
        %3463 = vmatpush1.msra.mxu0 0.0
        %3464 = vmatprep.subr.mxu0 0.0
        %3465 = vmatpush1.msra.mxu0 0.0
        %3466 = vmatprep.subr.mxu0 0.0
        %3467 = vmatpush1.msra.mxu0 0.0
        %3468 = vmatprep.subr.mxu0 0.0
        %3469 = vmatpush1.msra.mxu0 0.0
        %3470 = vmatprep.subr.mxu0 0.0
        %3471 = vmatpush1.msra.mxu0 0.0
        %3472 = vmatprep.subr.mxu0 0.0
        %3473 = vmatpush1.msra.mxu0 0.0
        %3474 = vmatprep.subr.mxu0 0.0
        %3475 = vmatpush1.msra.mxu0 0.0
        %3476 = vmatprep.subr.mxu0 0.0
        %3477 = vmatpush1.msra.mxu0 0.0
        %3478 = vmatprep.subr.mxu0 0.0
        %3479 = vmatpush1.msra.mxu0 0.0
        %3480 = vmatprep.subr.mxu0 0.0
        %3481 = vmatpush1.msra.mxu0 0.0
        %3482 = vmatprep.subr.mxu0 0.0
        %3483 = vmatpush1.msra.mxu0 0.0
        %3484 = vmatprep.subr.mxu0 0.0
        %3485 = vmatpush1.msra.mxu0 0.0
        %3486 = vmatprep.subr.mxu0 0.0
        %3487 = vmatpush1.msra.mxu0 0.0
        %3488 = vmatprep.subr.mxu0 0.0
        %3489 = vmatpush1.msra.mxu0 0.0
        %3490 = vmatprep.subr.mxu0 0.0
        %3491 = vmatpush1.msra.mxu0 0.0
        %3492 = vmatprep.subr.mxu0 0.0
        %3493 = vmatpush1.msra.mxu0 0.0
        %3494 = vmatprep.subr.mxu0 0.0
        %3495 = vmatpush1.msra.mxu0 0.0
        %3496 = vmatprep.subr.mxu0 0.0
        %3497 = vmatpush1.msra.mxu0 0.0
        %3498 = vmatprep.mubr.f32.mxu0 0.0
        %3499 = vmatmul.mubr.f32.gmra.mrb[0].mxu0 %v3367
        %v3500 = vpop.f32.mrb[0].mxu0
        %v3501 = vadd.f32 0.0, %v3500
        %v3502 = vpop.f32.mrb[0].mxu0
        %3503 = vmatprep.mubr.f32.mxu0 0.0
        %3504 = vmatmul.mubr.f32.gmra.mrb[0].mxu0 %v3369
        %v3505 = vpop.f32.mrb[0].mxu0
        %v3506 = vadd.f32 0.0, %v3505
        %v3507 = vpop.f32.mrb[0].mxu0
        %3508 = vmatprep.mubr.f32.mxu0 0.0
        %3509 = vmatmul.mubr.f32.gmra.mrb[0].mxu0 %v3371
        %v3510 = vpop.f32.mrb[0].mxu0
        %v3511 = vadd.f32 0.0, %v3510
        %v3512 = vpop.f32.mrb[0].mxu0
        %3513 = vmatprep.mubr.f32.mxu0 0.0
        %3514 = vmatmul.mubr.f32.gmra.mrb[0].mxu0 %v3373
        %v3515 = vpop.f32.mrb[0].mxu0
        %v3516 = vadd.f32 0.0, %v3515
        %v3517 = vpop.f32.mrb[0].mxu0
        %3518 = vmatprep.mubr.f32.mxu0 0.0
        %3519 = vmatmul.mubr.f32.gmra.mrb[0].mxu0 %v3375
        %v3520 = vpop.f32.mrb[0].mxu0
        %v3521 = vadd.f32 0.0, %v3520
        %v3522 = vpop.f32.mrb[0].mxu0
        %3523 = vmatprep.mubr.f32.mxu0 0.0
        %3524 = vmatmul.mubr.f32.gmra.mrb[0].mxu0 %v3377
        %v3525 = vpop.f32.mrb[0].mxu0
        %v3526 = vadd.f32 0.0, %v3525
        %v3527 = vpop.f32.mrb[0].mxu0
        %3528 = vmatprep.mubr.f32.mxu0 0.0
        %3529 = vmatmul.mubr.f32.gmra.mrb[0].mxu0 %v3379
        %v3530 = vpop.f32.mrb[0].mxu0
        %v3531 = vadd.f32 0.0, %v3530
        %v3532 = vpop.f32.mrb[0].mxu0
        %3533 = vmatprep.mubr.f32.mxu0 0.0
        %3534 = vmatmul.mubr.f32.gmra.mrb[0].mxu0 %v3381
        %v3535 = vpop.f32.mrb[0].mxu0
        %v3536 = vadd.f32 0.0, %v3535
        %v3537 = vpop.f32.mrb[0].mxu0
        %3538 = vmatprep.mubr.f32.mxu0 0.0
        %3539 = vmatmul.mubr.f32.gmra.mrb[0].mxu0 %v3383
        %v3540 = vpop.f32.mrb[0].mxu0
        %v3541 = vadd.f32 0.0, %v3540
        %v3542 = vpop.f32.mrb[0].mxu0
        %3543 = vmatprep.mubr.f32.mxu0 0.0
        %3544 = vmatmul.mubr.f32.gmra.mrb[0].mxu0 %v3385
        %v3545 = vpop.f32.mrb[0].mxu0
        %v3546 = vadd.f32 0.0, %v3545
        %v3547 = vpop.f32.mrb[0].mxu0
        %3548 = vmatprep.mubr.f32.mxu0 0.0
        %3549 = vmatmul.mubr.f32.gmra.mrb[0].mxu0 %v3387
        %v3550 = vpop.f32.mrb[0].mxu0
        %v3551 = vadd.f32 0.0, %v3550
        %v3552 = vpop.f32.mrb[0].mxu0
        %3553 = vmatprep.mubr.f32.mxu0 0.0
        %3554 = vmatmul.mubr.f32.gmra.mrb[0].mxu0 %v3389
        %v3555 = vpop.f32.mrb[0].mxu0
        %v3556 = vadd.f32 0.0, %v3555
        %v3557 = vpop.f32.mrb[0].mxu0
        %3558 = vmatprep.mubr.f32.mxu0 0.0
        %3559 = vmatmul.mubr.f32.gmra.mrb[0].mxu0 %v3391
        %v3560 = vpop.f32.mrb[0].mxu0
        %v3561 = vadd.f32 0.0, %v3560
        %v3562 = vpop.f32.mrb[0].mxu0
        %3563 = vmatprep.mubr.f32.mxu0 0.0
        %3564 = vmatmul.mubr.f32.gmra.mrb[0].mxu0 %v3393
        %v3565 = vpop.f32.mrb[0].mxu0
        %v3566 = vadd.f32 0.0, %v3565
        %v3567 = vpop.f32.mrb[0].mxu0
        %3568 = vmatprep.mubr.f32.mxu0 0.0
        %3569 = vmatmul.mubr.f32.gmra.mrb[0].mxu0 %v3395
        %v3570 = vpop.f32.mrb[0].mxu0
        %v3571 = vadd.f32 0.0, %v3570
        %v3572 = vpop.f32.mrb[0].mxu0
        %3573 = vmatprep.mubr.f32.mxu0 0.0
        %3574 = vmatmul.mubr.f32.gmra.mrb[0].mxu0 %v3397
        %v3575 = vpop.f32.mrb[0].mxu0
        %v3576 = vadd.f32 0.0, %v3575
        %v3577 = vpop.f32.mrb[0].mxu0
        %3578 = vmatprep.mubr.f32.mxu0 0.0
        %3579 = vmatmul.mubr.f32.gmra.mrb[0].mxu0 %v3399
        %v3580 = vpop.f32.mrb[0].mxu0
        %v3581 = vadd.f32 0.0, %v3580
        %v3582 = vpop.f32.mrb[0].mxu0
        %3583 = vmatprep.mubr.f32.mxu0 0.0
        %3584 = vmatmul.mubr.f32.gmra.mrb[0].mxu0 %v3401
        %v3585 = vpop.f32.mrb[0].mxu0
        %v3586 = vadd.f32 0.0, %v3585
        %v3587 = vpop.f32.mrb[0].mxu0
        %3588 = vmatprep.mubr.f32.mxu0 0.0
        %3589 = vmatmul.mubr.f32.gmra.mrb[0].mxu0 %v3403
        %v3590 = vpop.f32.mrb[0].mxu0
        %v3591 = vadd.f32 0.0, %v3590
        %v3592 = vpop.f32.mrb[0].mxu0
        %3593 = vmatprep.mubr.f32.mxu0 0.0
        %3594 = vmatmul.mubr.f32.gmra.mrb[0].mxu0 %v3405
        %v3595 = vpop.f32.mrb[0].mxu0
        %v3596 = vadd.f32 0.0, %v3595
        %v3597 = vpop.f32.mrb[0].mxu0
        %3598 = vmatprep.mubr.f32.mxu0 0.0
        %3599 = vmatmul.mubr.f32.gmra.mrb[0].mxu0 %v3407
        %v3600 = vpop.f32.mrb[0].mxu0
        %v3601 = vadd.f32 0.0, %v3600
        %v3602 = vpop.f32.mrb[0].mxu0
        %3603 = vmatprep.mubr.f32.mxu0 0.0
        %3604 = vmatmul.mubr.f32.gmra.mrb[0].mxu0 %v3409
        %v3605 = vpop.f32.mrb[0].mxu0
        %v3606 = vadd.f32 0.0, %v3605
        %v3607 = vpop.f32.mrb[0].mxu0
        %3608 = vmatprep.mubr.f32.mxu0 0.0
        %3609 = vmatmul.mubr.f32.gmra.mrb[0].mxu0 %v3411
        %v3610 = vpop.f32.mrb[0].mxu0
        %v3611 = vadd.f32 0.0, %v3610
        %v3612 = vpop.f32.mrb[0].mxu0
        %3613 = vmatprep.mubr.f32.mxu0 0.0
        %3614 = vmatmul.mubr.f32.gmra.mrb[0].mxu0 %v3413
        %v3615 = vpop.f32.mrb[0].mxu0
        %v3616 = vadd.f32 0.0, %v3615
        %v3617 = vpop.f32.mrb[0].mxu0
        %3618 = vmatprep.mubr.f32.mxu0 0.0
        %3619 = vmatmul.mubr.f32.gmra.mrb[0].mxu0 %v3415
        %v3620 = vpop.f32.mrb[0].mxu0
        %v3621 = vadd.f32 0.0, %v3620
        %v3622 = vpop.f32.mrb[0].mxu0
        %3623 = vmatprep.mubr.f32.mxu0 0.0
        %3624 = vmatmul.mubr.f32.gmra.mrb[0].mxu0 %v3417
        %v3625 = vpop.f32.mrb[0].mxu0
        %v3626 = vadd.f32 0.0, %v3625
        %v3627 = vpop.f32.mrb[0].mxu0
        %3628 = vmatprep.mubr.f32.mxu0 0.0
        %3629 = vmatmul.mubr.f32.gmra.mrb[0].mxu0 %v3419
        %v3630 = vpop.f32.mrb[0].mxu0
        %v3631 = vadd.f32 0.0, %v3630
        %v3632 = vpop.f32.mrb[0].mxu0
        %3633 = vmatprep.mubr.f32.mxu0 0.0
        %3634 = vmatmul.mubr.f32.gmra.mrb[0].mxu0 %v3421
        %v3635 = vpop.f32.mrb[0].mxu0
        %v3636 = vadd.f32 0.0, %v3635
        %v3637 = vpop.f32.mrb[0].mxu0
        %3638 = vmatprep.mubr.f32.mxu0 0.0
        %3639 = vmatmul.mubr.f32.gmra.mrb[0].mxu0 %v3423
        %v3640 = vpop.f32.mrb[0].mxu0
        %v3641 = vadd.f32 0.0, %v3640
        %v3642 = vpop.f32.mrb[0].mxu0
        %3643 = vmatprep.mubr.f32.mxu0 0.0
        %3644 = vmatmul.mubr.f32.gmra.mrb[0].mxu0 %v3425
        %v3645 = vpop.f32.mrb[0].mxu0
        %v3646 = vadd.f32 0.0, %v3645
        %v3647 = vpop.f32.mrb[0].mxu0
        %3648 = vmatprep.mubr.f32.mxu0 0.0
        %3649 = vmatmul.mubr.f32.gmra.mrb[0].mxu0 %v3427
        %v3650 = vpop.f32.mrb[0].mxu0
        %v3651 = vadd.f32 0.0, %v3650
        %v3652 = vpop.f32.mrb[0].mxu0
        %3653 = vmatprep.mubr.f32.mxu0 0.0
        %3654 = vmatmul.mubr.f32.gmra.mrb[0].mxu0 %v3429
        %v3655 = vpop.f32.mrb[0].mxu0
        %v3656 = vadd.f32 0.0, %v3655
        %v3657 = vpop.f32.mrb[0].mxu0
        %3658 = vdwg.mxu0
        %v3659 = vadd.f32 %v3238, %v3501
        %v3660 = vadd.f32 %v3239, %v3506
        %v3661 = vadd.f32 %v3240, %v3511
        %v3662 = vadd.f32 %v3241, %v3516
        %v3663 = vadd.f32 %v3242, %v3521
        %v3664 = vadd.f32 %v3243, %v3526
        %v3665 = vadd.f32 %v3244, %v3531
        %v3666 = vadd.f32 %v3245, %v3536
        %v3667 = vadd.f32 %v3246, %v3541
        %v3668 = vadd.f32 %v3247, %v3546
        %v3669 = vadd.f32 %v3248, %v3551
        %v3670 = vadd.f32 %v3249, %v3556
        %v3671 = vadd.f32 %v3250, %v3561
        %v3672 = vadd.f32 %v3251, %v3566
        %v3673 = vadd.f32 %v3252, %v3571
        %v3674 = vadd.f32 %v3253, %v3576
        %v3675 = vadd.f32 %v3254, %v3581
        %v3676 = vadd.f32 %v3255, %v3586
        %v3677 = vadd.f32 %v3256, %v3591
        %v3678 = vadd.f32 %v3257, %v3596
        %v3679 = vadd.f32 %v3258, %v3601
        %v3680 = vadd.f32 %v3259, %v3606
        %v3681 = vadd.f32 %v3260, %v3611
        %v3682 = vadd.f32 %v3261, %v3616
        %v3683 = vadd.f32 %v3262, %v3621
        %v3684 = vadd.f32 %v3263, %v3626
        %v3685 = vadd.f32 %v3264, %v3631
        %v3686 = vadd.f32 %v3265, %v3636
        %v3687 = vadd.f32 %v3266, %v3641
        %v3688 = vadd.f32 %v3267, %v3646
        %v3689 = vadd.f32 %v3268, %v3651
        %v3690 = vadd.f32 %v3269, %v3656
        %v3691 = vrot.slane %v2864, 2
        %v3692 = vrot.slane %v2865, 2
        %v3693 = vsel %vm1225, %v3691, %v3692
        %v3694 = vrot.slane %v2866, 2
        %v3695 = vsel %vm1225, %v3692, %v3694
        %v3696 = vrot.slane %v2867, 2
        %v3697 = vrot.slane %v2868, 2
        %v3698 = vsel %vm1225, %v3696, %v3697
        %v3699 = vrot.slane %v2869, 2
        %v3700 = vsel %vm1225, %v3697, %v3699
        %v3701 = vrot.slane %v2870, 2
        %v3702 = vrot.slane %v2871, 2
        %v3703 = vsel %vm1225, %v3701, %v3702
        %v3704 = vrot.slane %v2872, 2
        %v3705 = vsel %vm1225, %v3702, %v3704
        %v3706 = vrot.slane %v2873, 2
        %v3707 = vrot.slane %v2874, 2
        %v3708 = vsel %vm1225, %v3706, %v3707
        %v3709 = vrot.slane %v2875, 2
        %v3710 = vsel %vm1225, %v3707, %v3709
        %v3711 = vrot.slane %v2876, 2
        %v3712 = vrot.slane %v2877, 2
        %v3713 = vsel %vm1225, %v3711, %v3712
        %v3714 = vrot.slane %v2878, 2
        %v3715 = vsel %vm1225, %v3712, %v3714
        %v3716 = vrot.slane %v2879, 2
        %v3717 = vrot.slane %v2880, 2
        %v3718 = vsel %vm1225, %v3716, %v3717
        %v3719 = vrot.slane %v2881, 2
        %v3720 = vsel %vm1225, %v3717, %v3719
        %v3721 = vrot.slane %v2882, 2
        %v3722 = vrot.slane %v2883, 2
        %v3723 = vsel %vm1225, %v3721, %v3722
        %v3724 = vrot.slane %v2884, 2
        %v3725 = vsel %vm1225, %v3722, %v3724
        %v3726 = vrot.slane %v2885, 2
        %v3727 = vrot.slane %v2886, 2
        %v3728 = vsel %vm1225, %v3726, %v3727
        %v3729 = vrot.slane %v2887, 2
        %v3730 = vsel %vm1225, %v3727, %v3729
        %v3731 = vrot.slane %v2888, 2
        %v3732 = vrot.slane %v2889, 2
        %v3733 = vsel %vm1225, %v3731, %v3732
        %v3734 = vrot.slane %v2890, 2
        %v3735 = vsel %vm1225, %v3732, %v3734
        %v3736 = vrot.slane %v2891, 2
        %v3737 = vrot.slane %v2892, 2
        %v3738 = vsel %vm1225, %v3736, %v3737
        %v3739 = vrot.slane %v2893, 2
        %v3740 = vsel %vm1225, %v3737, %v3739
        %v3741 = vrot.slane %v2894, 2
        %v3742 = vrot.slane %v2895, 2
        %v3743 = vsel %vm1225, %v3741, %v3742
        %v3744 = vrot.slane %v2896, 2
        %v3745 = vsel %vm1225, %v3742, %v3744
        %v3746 = vrot.slane %v2897, 2
        %v3747 = vrot.slane %v2898, 2
        %v3748 = vsel %vm1225, %v3746, %v3747
        %v3749 = vrot.slane %v2899, 2
        %v3750 = vsel %vm1225, %v3747, %v3749
        %v3751 = vrot.slane %v2900, 2
        %v3752 = vrot.slane %v2901, 2
        %v3753 = vsel %vm1225, %v3751, %v3752
        %v3754 = vrot.slane %v2902, 2
        %v3755 = vsel %vm1225, %v3752, %v3754
        %v3756 = vrot.slane %v2903, 2
        %v3757 = vrot.slane %v2904, 2
        %v3758 = vsel %vm1225, %v3756, %v3757
        %v3759 = vrot.slane %v2905, 2
        %v3760 = vsel %vm1225, %v3757, %v3759
        %v3761 = vrot.slane %v2906, 2
        %v3762 = vrot.slane %v2907, 2
        %v3763 = vsel %vm1225, %v3761, %v3762
        %v3764 = vrot.slane %v2908, 2
        %v3765 = vsel %vm1225, %v3762, %v3764
        %v3766 = vrot.slane %v2909, 2
        %v3767 = vrot.slane %v2910, 2
        %v3768 = vsel %vm1225, %v3766, %v3767
        %v3769 = vrot.slane %v2911, 2
        %v3770 = vsel %vm1225, %v3767, %v3769
        %v3771 = vld [vmem:[%s2912 + $0x8] sm:$0xf]
        %v3772 = vsel %vm426, %v3693, 0
        %v3774 = vsel %vm426, %v3695, 0
        %v3776 = vsel %vm426, %v3698, 0
        %v3778 = vsel %vm426, %v3700, 0
        %v3780 = vsel %vm426, %v3703, 0
        %v3782 = vsel %vm426, %v3705, 0
        %v3784 = vsel %vm426, %v3708, 0
        %v3786 = vsel %vm426, %v3710, 0
        %v3788 = vsel %vm426, %v3713, 0
        %v3790 = vsel %vm426, %v3715, 0
        %v3792 = vsel %vm426, %v3718, 0
        %v3794 = vsel %vm426, %v3720, 0
        %v3796 = vsel %vm426, %v3723, 0
        %v3798 = vsel %vm426, %v3725, 0
        %v3800 = vsel %vm426, %v3728, 0
        %v3802 = vsel %vm426, %v3730, 0
        %v3804 = vsel %vm426, %v3733, 0
        %v3806 = vsel %vm426, %v3735, 0
        %v3808 = vsel %vm426, %v3738, 0
        %v3810 = vsel %vm426, %v3740, 0
        %v3812 = vsel %vm426, %v3743, 0
        %v3814 = vsel %vm426, %v3745, 0
        %v3816 = vsel %vm426, %v3748, 0
        %v3818 = vsel %vm426, %v3750, 0
        %v3820 = vsel %vm426, %v3753, 0
        %v3822 = vsel %vm426, %v3755, 0
        %v3824 = vsel %vm426, %v3758, 0
        %v3826 = vsel %vm426, %v3760, 0
        %v3828 = vsel %vm426, %v3763, 0
        %v3830 = vsel %vm426, %v3765, 0
        %v3832 = vsel %vm426, %v3768, 0
        %v3834 = vsel %vm426, %v3770, 0
        %v3837 = vsel %vm704, %v3771, 0
        %3839 = vmatprep.subr.mxu0 0.0
        %3840 = vmatpush1.msra.mxu0 %v3837
        %3841 = vmatprep.subr.mxu0 0.0
        %3842 = vmatpush1.msra.mxu0 0.0
        %3843 = vmatprep.subr.mxu0 0.0
        %3844 = vmatpush1.msra.mxu0 0.0
        %3845 = vmatprep.subr.mxu0 0.0
        %3846 = vmatpush1.msra.mxu0 0.0
        %3847 = vmatprep.subr.mxu0 0.0
        %3848 = vmatpush1.msra.mxu0 0.0
        %3849 = vmatprep.subr.mxu0 0.0
        %3850 = vmatpush1.msra.mxu0 0.0
        %3851 = vmatprep.subr.mxu0 0.0
        %3852 = vmatpush1.msra.mxu0 0.0
        %3853 = vmatprep.subr.mxu0 0.0
        %3854 = vmatpush1.msra.mxu0 0.0
        %3855 = vmatprep.subr.mxu0 0.0
        %3856 = vmatpush1.msra.mxu0 0.0
        %3857 = vmatprep.subr.mxu0 0.0
        %3858 = vmatpush1.msra.mxu0 0.0
        %3859 = vmatprep.subr.mxu0 0.0
        %3860 = vmatpush1.msra.mxu0 0.0
        %3861 = vmatprep.subr.mxu0 0.0
        %3862 = vmatpush1.msra.mxu0 0.0
        %3863 = vmatprep.subr.mxu0 0.0
        %3864 = vmatpush1.msra.mxu0 0.0
        %3865 = vmatprep.subr.mxu0 0.0
        %3866 = vmatpush1.msra.mxu0 0.0
        %3867 = vmatprep.subr.mxu0 0.0
        %3868 = vmatpush1.msra.mxu0 0.0
        %3869 = vmatprep.subr.mxu0 0.0
        %3870 = vmatpush1.msra.mxu0 0.0
        %3871 = vmatprep.subr.mxu0 0.0
        %3872 = vmatpush1.msra.mxu0 0.0
        %3873 = vmatprep.subr.mxu0 0.0
        %3874 = vmatpush1.msra.mxu0 0.0
        %3875 = vmatprep.subr.mxu0 0.0
        %3876 = vmatpush1.msra.mxu0 0.0
        %3877 = vmatprep.subr.mxu0 0.0
        %3878 = vmatpush1.msra.mxu0 0.0
        %3879 = vmatprep.subr.mxu0 0.0
        %3880 = vmatpush1.msra.mxu0 0.0
        %3881 = vmatprep.subr.mxu0 0.0
        %3882 = vmatpush1.msra.mxu0 0.0
        %3883 = vmatprep.subr.mxu0 0.0
        %3884 = vmatpush1.msra.mxu0 0.0
        %3885 = vmatprep.subr.mxu0 0.0
        %3886 = vmatpush1.msra.mxu0 0.0
        %3887 = vmatprep.subr.mxu0 0.0
        %3888 = vmatpush1.msra.mxu0 0.0
        %3889 = vmatprep.subr.mxu0 0.0
        %3890 = vmatpush1.msra.mxu0 0.0
        %3891 = vmatprep.subr.mxu0 0.0
        %3892 = vmatpush1.msra.mxu0 0.0
        %3893 = vmatprep.subr.mxu0 0.0
        %3894 = vmatpush1.msra.mxu0 0.0
        %3895 = vmatprep.subr.mxu0 0.0
        %3896 = vmatpush1.msra.mxu0 0.0
        %3897 = vmatprep.subr.mxu0 0.0
        %3898 = vmatpush1.msra.mxu0 0.0
        %3899 = vmatprep.subr.mxu0 0.0
        %3900 = vmatpush1.msra.mxu0 0.0
        %3901 = vmatprep.subr.mxu0 0.0
        %3902 = vmatpush1.msra.mxu0 0.0
        %3903 = vmatprep.mubr.f32.mxu0 0.0
        %3904 = vmatmul.mubr.f32.gmra.mrb[0].mxu0 %v3772
        %v3905 = vpop.f32.mrb[0].mxu0
        %v3906 = vadd.f32 0.0, %v3905
        %v3907 = vpop.f32.mrb[0].mxu0
        %3908 = vmatprep.mubr.f32.mxu0 0.0
        %3909 = vmatmul.mubr.f32.gmra.mrb[0].mxu0 %v3774
        %v3910 = vpop.f32.mrb[0].mxu0
        %v3911 = vadd.f32 0.0, %v3910
        %v3912 = vpop.f32.mrb[0].mxu0
        %3913 = vmatprep.mubr.f32.mxu0 0.0
        %3914 = vmatmul.mubr.f32.gmra.mrb[0].mxu0 %v3776
        %v3915 = vpop.f32.mrb[0].mxu0
        %v3916 = vadd.f32 0.0, %v3915
        %v3917 = vpop.f32.mrb[0].mxu0
        %3918 = vmatprep.mubr.f32.mxu0 0.0
        %3919 = vmatmul.mubr.f32.gmra.mrb[0].mxu0 %v3778
        %v3920 = vpop.f32.mrb[0].mxu0
        %v3921 = vadd.f32 0.0, %v3920
        %v3922 = vpop.f32.mrb[0].mxu0
        %3923 = vmatprep.mubr.f32.mxu0 0.0
        %3924 = vmatmul.mubr.f32.gmra.mrb[0].mxu0 %v3780
        %v3925 = vpop.f32.mrb[0].mxu0
        %v3926 = vadd.f32 0.0, %v3925
        %v3927 = vpop.f32.mrb[0].mxu0
        %3928 = vmatprep.mubr.f32.mxu0 0.0
        %3929 = vmatmul.mubr.f32.gmra.mrb[0].mxu0 %v3782
        %v3930 = vpop.f32.mrb[0].mxu0
        %v3931 = vadd.f32 0.0, %v3930
        %v3932 = vpop.f32.mrb[0].mxu0
        %3933 = vmatprep.mubr.f32.mxu0 0.0
        %3934 = vmatmul.mubr.f32.gmra.mrb[0].mxu0 %v3784
        %v3935 = vpop.f32.mrb[0].mxu0
        %v3936 = vadd.f32 0.0, %v3935
        %v3937 = vpop.f32.mrb[0].mxu0
        %3938 = vmatprep.mubr.f32.mxu0 0.0
        %3939 = vmatmul.mubr.f32.gmra.mrb[0].mxu0 %v3786
        %v3940 = vpop.f32.mrb[0].mxu0
        %v3941 = vadd.f32 0.0, %v3940
        %v3942 = vpop.f32.mrb[0].mxu0
        %3943 = vmatprep.mubr.f32.mxu0 0.0
        %3944 = vmatmul.mubr.f32.gmra.mrb[0].mxu0 %v3788
        %v3945 = vpop.f32.mrb[0].mxu0
        %v3946 = vadd.f32 0.0, %v3945
        %v3947 = vpop.f32.mrb[0].mxu0
        %3948 = vmatprep.mubr.f32.mxu0 0.0
        %3949 = vmatmul.mubr.f32.gmra.mrb[0].mxu0 %v3790
        %v3950 = vpop.f32.mrb[0].mxu0
        %v3951 = vadd.f32 0.0, %v3950
        %v3952 = vpop.f32.mrb[0].mxu0
        %3953 = vmatprep.mubr.f32.mxu0 0.0
        %3954 = vmatmul.mubr.f32.gmra.mrb[0].mxu0 %v3792
        %v3955 = vpop.f32.mrb[0].mxu0
        %v3956 = vadd.f32 0.0, %v3955
        %v3957 = vpop.f32.mrb[0].mxu0
        %3958 = vmatprep.mubr.f32.mxu0 0.0
        %3959 = vmatmul.mubr.f32.gmra.mrb[0].mxu0 %v3794
        %v3960 = vpop.f32.mrb[0].mxu0
        %v3961 = vadd.f32 0.0, %v3960
        %v3962 = vpop.f32.mrb[0].mxu0
        %3963 = vmatprep.mubr.f32.mxu0 0.0
        %3964 = vmatmul.mubr.f32.gmra.mrb[0].mxu0 %v3796
        %v3965 = vpop.f32.mrb[0].mxu0
        %v3966 = vadd.f32 0.0, %v3965
        %v3967 = vpop.f32.mrb[0].mxu0
        %3968 = vmatprep.mubr.f32.mxu0 0.0
        %3969 = vmatmul.mubr.f32.gmra.mrb[0].mxu0 %v3798
        %v3970 = vpop.f32.mrb[0].mxu0
        %v3971 = vadd.f32 0.0, %v3970
        %v3972 = vpop.f32.mrb[0].mxu0
        %3973 = vmatprep.mubr.f32.mxu0 0.0
        %3974 = vmatmul.mubr.f32.gmra.mrb[0].mxu0 %v3800
        %v3975 = vpop.f32.mrb[0].mxu0
        %v3976 = vadd.f32 0.0, %v3975
        %v3977 = vpop.f32.mrb[0].mxu0
        %3978 = vmatprep.mubr.f32.mxu0 0.0
        %3979 = vmatmul.mubr.f32.gmra.mrb[0].mxu0 %v3802
        %v3980 = vpop.f32.mrb[0].mxu0
        %v3981 = vadd.f32 0.0, %v3980
        %v3982 = vpop.f32.mrb[0].mxu0
        %3983 = vmatprep.mubr.f32.mxu0 0.0
        %3984 = vmatmul.mubr.f32.gmra.mrb[0].mxu0 %v3804
        %v3985 = vpop.f32.mrb[0].mxu0
        %v3986 = vadd.f32 0.0, %v3985
        %v3987 = vpop.f32.mrb[0].mxu0
        %3988 = vmatprep.mubr.f32.mxu0 0.0
        %3989 = vmatmul.mubr.f32.gmra.mrb[0].mxu0 %v3806
        %v3990 = vpop.f32.mrb[0].mxu0
        %v3991 = vadd.f32 0.0, %v3990
        %v3992 = vpop.f32.mrb[0].mxu0
        %3993 = vmatprep.mubr.f32.mxu0 0.0
        %3994 = vmatmul.mubr.f32.gmra.mrb[0].mxu0 %v3808
        %v3995 = vpop.f32.mrb[0].mxu0
        %v3996 = vadd.f32 0.0, %v3995
        %v3997 = vpop.f32.mrb[0].mxu0
        %3998 = vmatprep.mubr.f32.mxu0 0.0
        %3999 = vmatmul.mubr.f32.gmra.mrb[0].mxu0 %v3810
        %v4000 = vpop.f32.mrb[0].mxu0
        %v4001 = vadd.f32 0.0, %v4000
        %v4002 = vpop.f32.mrb[0].mxu0
        %4003 = vmatprep.mubr.f32.mxu0 0.0
        %4004 = vmatmul.mubr.f32.gmra.mrb[0].mxu0 %v3812
        %v4005 = vpop.f32.mrb[0].mxu0
        %v4006 = vadd.f32 0.0, %v4005
        %v4007 = vpop.f32.mrb[0].mxu0
        %4008 = vmatprep.mubr.f32.mxu0 0.0
        %4009 = vmatmul.mubr.f32.gmra.mrb[0].mxu0 %v3814
        %v4010 = vpop.f32.mrb[0].mxu0
        %v4011 = vadd.f32 0.0, %v4010
        %v4012 = vpop.f32.mrb[0].mxu0
        %4013 = vmatprep.mubr.f32.mxu0 0.0
        %4014 = vmatmul.mubr.f32.gmra.mrb[0].mxu0 %v3816
        %v4015 = vpop.f32.mrb[0].mxu0
        %v4016 = vadd.f32 0.0, %v4015
        %v4017 = vpop.f32.mrb[0].mxu0
        %4018 = vmatprep.mubr.f32.mxu0 0.0
        %4019 = vmatmul.mubr.f32.gmra.mrb[0].mxu0 %v3818
        %v4020 = vpop.f32.mrb[0].mxu0
        %v4021 = vadd.f32 0.0, %v4020
        %v4022 = vpop.f32.mrb[0].mxu0
        %4023 = vmatprep.mubr.f32.mxu0 0.0
        %4024 = vmatmul.mubr.f32.gmra.mrb[0].mxu0 %v3820
        %v4025 = vpop.f32.mrb[0].mxu0
        %v4026 = vadd.f32 0.0, %v4025
        %v4027 = vpop.f32.mrb[0].mxu0
        %4028 = vmatprep.mubr.f32.mxu0 0.0
        %4029 = vmatmul.mubr.f32.gmra.mrb[0].mxu0 %v3822
        %v4030 = vpop.f32.mrb[0].mxu0
        %v4031 = vadd.f32 0.0, %v4030
        %v4032 = vpop.f32.mrb[0].mxu0
        %4033 = vmatprep.mubr.f32.mxu0 0.0
        %4034 = vmatmul.mubr.f32.gmra.mrb[0].mxu0 %v3824
        %v4035 = vpop.f32.mrb[0].mxu0
        %v4036 = vadd.f32 0.0, %v4035
        %v4037 = vpop.f32.mrb[0].mxu0
        %4038 = vmatprep.mubr.f32.mxu0 0.0
        %4039 = vmatmul.mubr.f32.gmra.mrb[0].mxu0 %v3826
        %v4040 = vpop.f32.mrb[0].mxu0
        %v4041 = vadd.f32 0.0, %v4040
        %v4042 = vpop.f32.mrb[0].mxu0
        %4043 = vmatprep.mubr.f32.mxu0 0.0
        %4044 = vmatmul.mubr.f32.gmra.mrb[0].mxu0 %v3828
        %v4045 = vpop.f32.mrb[0].mxu0
        %v4046 = vadd.f32 0.0, %v4045
        %v4047 = vpop.f32.mrb[0].mxu0
        %4048 = vmatprep.mubr.f32.mxu0 0.0
        %4049 = vmatmul.mubr.f32.gmra.mrb[0].mxu0 %v3830
        %v4050 = vpop.f32.mrb[0].mxu0
        %v4051 = vadd.f32 0.0, %v4050
        %v4052 = vpop.f32.mrb[0].mxu0
        %4053 = vmatprep.mubr.f32.mxu0 0.0
        %4054 = vmatmul.mubr.f32.gmra.mrb[0].mxu0 %v3832
        %v4055 = vpop.f32.mrb[0].mxu0
        %v4056 = vadd.f32 0.0, %v4055
        %v4057 = vpop.f32.mrb[0].mxu0
        %4058 = vmatprep.mubr.f32.mxu0 0.0
        %4059 = vmatmul.mubr.f32.gmra.mrb[0].mxu0 %v3834
        %v4060 = vpop.f32.mrb[0].mxu0
        %v4061 = vadd.f32 0.0, %v4060
        %v4062 = vpop.f32.mrb[0].mxu0
        %4063 = vdwg.mxu0
        %v4064 = vadd.f32 %v3659, %v3906
        %v4065 = vadd.f32 %v3660, %v3911
        %v4066 = vadd.f32 %v3661, %v3916
        %v4067 = vadd.f32 %v3662, %v3921
        %v4068 = vadd.f32 %v3663, %v3926
        %v4069 = vadd.f32 %v3664, %v3931
        %v4070 = vadd.f32 %v3665, %v3936
        %v4071 = vadd.f32 %v3666, %v3941
        %v4072 = vadd.f32 %v3667, %v3946
        %v4073 = vadd.f32 %v3668, %v3951
        %v4074 = vadd.f32 %v3669, %v3956
        %v4075 = vadd.f32 %v3670, %v3961
        %v4076 = vadd.f32 %v3671, %v3966
        %v4077 = vadd.f32 %v3672, %v3971
        %v4078 = vadd.f32 %v3673, %v3976
        %v4079 = vadd.f32 %v3674, %v3981
        %v4080 = vadd.f32 %v3675, %v3986
        %v4081 = vadd.f32 %v3676, %v3991
        %v4082 = vadd.f32 %v3677, %v3996
        %v4083 = vadd.f32 %v3678, %v4001
        %v4084 = vadd.f32 %v3679, %v4006
        %v4085 = vadd.f32 %v3680, %v4011
        %v4086 = vadd.f32 %v3681, %v4016
        %v4087 = vadd.f32 %v3682, %v4021
        %v4088 = vadd.f32 %v3683, %v4026
        %v4089 = vadd.f32 %v3684, %v4031
        %v4090 = vadd.f32 %v3685, %v4036
        %v4091 = vadd.f32 %v3686, %v4041
        %v4092 = vadd.f32 %v3687, %v4046
        %v4093 = vadd.f32 %v3688, %v4051
        %v4094 = vadd.f32 %v3689, %v4056
        %v4095 = vadd.f32 %v3690, %v4061
        %v4097 = vlaneseq
        %v4098 = vshrl.u32 %v4097, 7
        %v4099 = vsub.s32 0, %v4098
        %v4100 = vrot.slane %v459, %v4099
        %v4102 = vadd.f32 %v4064, %v4100
        %v4103 = vadd.f32 %v4065, %v4100
        %v4104 = vadd.f32 %v4066, %v4100
        %v4105 = vadd.f32 %v4067, %v4100
        %v4106 = vadd.f32 %v4068, %v4100
        %v4107 = vadd.f32 %v4069, %v4100
        %v4108 = vadd.f32 %v4070, %v4100
        %v4109 = vadd.f32 %v4071, %v4100
        %v4110 = vadd.f32 %v4072, %v4100
        %v4111 = vadd.f32 %v4073, %v4100
        %v4112 = vadd.f32 %v4074, %v4100
        %v4113 = vadd.f32 %v4075, %v4100
        %v4114 = vadd.f32 %v4076, %v4100
        %v4115 = vadd.f32 %v4077, %v4100
        %v4116 = vadd.f32 %v4078, %v4100
        %v4117 = vadd.f32 %v4079, %v4100
        %v4118 = vadd.f32 %v4080, %v4100
        %v4119 = vadd.f32 %v4081, %v4100
        %v4120 = vadd.f32 %v4082, %v4100
        %v4121 = vadd.f32 %v4083, %v4100
        %v4122 = vadd.f32 %v4084, %v4100
        %v4123 = vadd.f32 %v4085, %v4100
        %v4124 = vadd.f32 %v4086, %v4100
        %v4125 = vadd.f32 %v4087, %v4100
        %v4126 = vadd.f32 %v4088, %v4100
        %v4127 = vadd.f32 %v4089, %v4100
        %v4128 = vadd.f32 %v4090, %v4100
        %v4129 = vadd.f32 %v4091, %v4100
        %v4130 = vadd.f32 %v4092, %v4100
        %v4131 = vadd.f32 %v4093, %v4100
        %v4132 = vadd.f32 %v4094, %v4100
        %v4133 = vadd.f32 %v4095, %v4100
        %v4134 = vmax.f32 %v4102, 0.0
        %v4135 = vmax.f32 %v4103, 0.0
        %v4136 = vmax.f32 %v4104, 0.0
        %v4137 = vmax.f32 %v4105, 0.0
        %v4138 = vmax.f32 %v4106, 0.0
        %v4139 = vmax.f32 %v4107, 0.0
        %v4140 = vmax.f32 %v4108, 0.0
        %v4141 = vmax.f32 %v4109, 0.0
        %v4142 = vmax.f32 %v4110, 0.0
        %v4143 = vmax.f32 %v4111, 0.0
        %v4144 = vmax.f32 %v4112, 0.0
        %v4145 = vmax.f32 %v4113, 0.0
        %v4146 = vmax.f32 %v4114, 0.0
        %v4147 = vmax.f32 %v4115, 0.0
        %v4148 = vmax.f32 %v4116, 0.0
        %v4149 = vmax.f32 %v4117, 0.0
        %v4150 = vmax.f32 %v4118, 0.0
        %v4151 = vmax.f32 %v4119, 0.0
        %v4152 = vmax.f32 %v4120, 0.0
        %v4153 = vmax.f32 %v4121, 0.0
        %v4154 = vmax.f32 %v4122, 0.0
        %v4155 = vmax.f32 %v4123, 0.0
        %v4156 = vmax.f32 %v4124, 0.0
        %v4157 = vmax.f32 %v4125, 0.0
        %v4158 = vmax.f32 %v4126, 0.0
        %v4159 = vmax.f32 %v4127, 0.0
        %v4160 = vmax.f32 %v4128, 0.0
        %v4161 = vmax.f32 %v4129, 0.0
        %v4162 = vmax.f32 %v4130, 0.0
        %v4163 = vmax.f32 %v4131, 0.0
        %v4164 = vmax.f32 %v4132, 0.0
        %v4165 = vmax.f32 %v4133, 0.0
        %s4166 = scalar_lea.vmem [#allocation3], 24
        %vm4167 = vcmask 64512
        %4168 = vst.msk [vmem:[%s4166 + $0x1] sm:$0xff] %vm4167, %v4134
        %4169 = vst.msk [vmem:[%s4166 + $0x9] sm:$0xff] %vm4167, %v4135
        %4170 = vst.msk [vmem:[%s4166 + $0x19] sm:$0xff] %vm4167, %v4136
        %4171 = vst.msk [vmem:[%s4166 + $0x21] sm:$0xff] %vm4167, %v4137
        %4172 = vst.msk [vmem:[%s4166 + $0x31] sm:$0xff] %vm4167, %v4138
        %4173 = vst.msk [vmem:[%s4166 + $0x39] sm:$0xff] %vm4167, %v4139
        %4174 = vst.msk [vmem:[%s4166 + $0x49] sm:$0xff] %vm4167, %v4140
        %4175 = vst.msk [vmem:[%s4166 + $0x51] sm:$0xff] %vm4167, %v4141
        %4176 = vst.msk [vmem:[%s4166 + $0x61] sm:$0xff] %vm4167, %v4142
        %4177 = vst.msk [vmem:[%s4166 + $0x69] sm:$0xff] %vm4167, %v4143
        %4178 = vst.msk [vmem:[%s4166 + $0x79] sm:$0xff] %vm4167, %v4144
        %4179 = vst.msk [vmem:[%s4166 + $0x81] sm:$0xff] %vm4167, %v4145
        %4180 = vst.msk [vmem:[%s4166 + $0x91] sm:$0xff] %vm4167, %v4146
        %4181 = vst.msk [vmem:[%s4166 + $0x99] sm:$0xff] %vm4167, %v4147
        %4182 = vst.msk [vmem:[%s4166 + $0xa9] sm:$0xff] %vm4167, %v4148
        %4183 = vst.msk [vmem:[%s4166 + $0xb1] sm:$0xff] %vm4167, %v4149
        %4184 = vst.msk [vmem:[%s4166 + $0xc1] sm:$0xff] %vm4167, %v4150
        %4185 = vst.msk [vmem:[%s4166 + $0xc9] sm:$0xff] %vm4167, %v4151
        %4186 = vst.msk [vmem:[%s4166 + $0xd9] sm:$0xff] %vm4167, %v4152
        %4187 = vst.msk [vmem:[%s4166 + $0xe1] sm:$0xff] %vm4167, %v4153
        %4188 = vst.msk [vmem:[%s4166 + $0xf1] sm:$0xff] %vm4167, %v4154
        %4189 = vst.msk [vmem:[%s4166 + $0xf9] sm:$0xff] %vm4167, %v4155
        %4190 = vst.msk [vmem:[%s4166 + $0x109] sm:$0xff] %vm4167, %v4156
        %4191 = vst.msk [vmem:[%s4166 + $0x111] sm:$0xff] %vm4167, %v4157
        %4192 = vst.msk [vmem:[%s4166 + $0x121] sm:$0xff] %vm4167, %v4158
        %4193 = vst.msk [vmem:[%s4166 + $0x129] sm:$0xff] %vm4167, %v4159
        %4194 = vst.msk [vmem:[%s4166 + $0x139] sm:$0xff] %vm4167, %v4160
        %4195 = vst.msk [vmem:[%s4166 + $0x141] sm:$0xff] %vm4167, %v4161
        %4196 = vst.msk [vmem:[%s4166 + $0x151] sm:$0xff] %vm4167, %v4162
        %4197 = vst.msk [vmem:[%s4166 + $0x159] sm:$0xff] %vm4167, %v4163
        %4198 = vst.msk [vmem:[%s4166 + $0x169] sm:$0xff] %vm4167, %v4164
        %4199 = vst.msk [vmem:[%s4166 + $0x171] sm:$0xff] %vm4167, %v4165
        %v4200 = vld [vmem:[#allocation3] sm:$0xff]
        %v4201 = vld [vmem:[#allocation3 + $0x8] sm:$0xff]
        %v4202 = vld [vmem:[#allocation3 + $0x10] sm:$0x3]
        %v4203 = vld [vmem:[#allocation3 + $0x18] sm:$0xff]
        %v4204 = vld [vmem:[#allocation3 + $0x20] sm:$0xff]
        %v4205 = vld [vmem:[#allocation3 + $0x28] sm:$0x3]
        %v4206 = vld [vmem:[#allocation3 + $0x30] sm:$0xff]
        %v4207 = vld [vmem:[#allocation3 + $0x38] sm:$0xff]
        %v4208 = vld [vmem:[#allocation3 + $0x40] sm:$0x3]
        %v4209 = vld [vmem:[#allocation3 + $0x48] sm:$0xff]
        %v4210 = vld [vmem:[#allocation3 + $0x50] sm:$0xff]
        %v4211 = vld [vmem:[#allocation3 + $0x58] sm:$0x3]
        %v4212 = vld [vmem:[#allocation3 + $0x60] sm:$0xff]
        %v4213 = vld [vmem:[#allocation3 + $0x68] sm:$0xff]
        %v4214 = vld [vmem:[#allocation3 + $0x70] sm:$0x3]
        %v4215 = vld [vmem:[#allocation3 + $0x78] sm:$0xff]
        %v4216 = vld [vmem:[#allocation3 + $0x80] sm:$0xff]
        %v4217 = vld [vmem:[#allocation3 + $0x88] sm:$0x3]
        %v4218 = vld [vmem:[#allocation3 + $0x90] sm:$0xff]
        %v4219 = vld [vmem:[#allocation3 + $0x98] sm:$0xff]
        %v4220 = vld [vmem:[#allocation3 + $0xa0] sm:$0x3]
        %v4221 = vld [vmem:[#allocation3 + $0xa8] sm:$0xff]
        %v4222 = vld [vmem:[#allocation3 + $0xb0] sm:$0xff]
        %v4223 = vld [vmem:[#allocation3 + $0xb8] sm:$0x3]
        %v4224 = vld [vmem:[#allocation3 + $0xc0] sm:$0xff]
        %v4225 = vld [vmem:[#allocation3 + $0xc8] sm:$0xff]
        %v4226 = vld [vmem:[#allocation3 + $0xd0] sm:$0x3]
        %v4227 = vld [vmem:[#allocation3 + $0xd8] sm:$0xff]
        %v4228 = vld [vmem:[#allocation3 + $0xe0] sm:$0xff]
        %v4229 = vld [vmem:[#allocation3 + $0xe8] sm:$0x3]
        %v4230 = vld [vmem:[#allocation3 + $0xf0] sm:$0xff]
        %v4231 = vld [vmem:[#allocation3 + $0xf8] sm:$0xff]
        %v4232 = vld [vmem:[#allocation3 + $0x100] sm:$0x3]
        %v4233 = vld [vmem:[#allocation3 + $0x108] sm:$0xff]
        %v4234 = vld [vmem:[#allocation3 + $0x110] sm:$0xff]
        %v4235 = vld [vmem:[#allocation3 + $0x118] sm:$0x3]
        %v4236 = vld [vmem:[#allocation3 + $0x120] sm:$0xff]
        %v4237 = vld [vmem:[#allocation3 + $0x128] sm:$0xff]
        %v4238 = vld [vmem:[#allocation3 + $0x130] sm:$0x3]
        %v4239 = vld [vmem:[#allocation3 + $0x138] sm:$0xff]
        %v4240 = vld [vmem:[#allocation3 + $0x140] sm:$0xff]
        %v4241 = vld [vmem:[#allocation3 + $0x148] sm:$0x3]
        %v4242 = vld [vmem:[#allocation3 + $0x150] sm:$0xff]
        %v4243 = vld [vmem:[#allocation3 + $0x158] sm:$0xff]
        %v4244 = vld [vmem:[#allocation3 + $0x160] sm:$0x3]
        %v4245 = vld [vmem:[#allocation3 + $0x168] sm:$0xff]
        %v4246 = vld [vmem:[#allocation3 + $0x170] sm:$0xff]
        %v4247 = vld [vmem:[#allocation3 + $0x178] sm:$0x3]
        %v4248 = vld [vmem:[%s3] sm:$0xff]
        %v4297 = vrot.slane %v4200, 1
        %v4298 = vrot.slane %v4201, 1
        %v4299 = vsel %vm558, %v4297, %v4298
        %v4300 = vrot.slane %v4202, 1
        %v4301 = vsel %vm558, %v4298, %v4300
        %v4302 = vrot.slane %v4203, 1
        %v4303 = vrot.slane %v4204, 1
        %v4304 = vsel %vm558, %v4302, %v4303
        %v4305 = vrot.slane %v4205, 1
        %v4306 = vsel %vm558, %v4303, %v4305
        %v4307 = vrot.slane %v4206, 1
        %v4308 = vrot.slane %v4207, 1
        %v4309 = vsel %vm558, %v4307, %v4308
        %v4310 = vrot.slane %v4208, 1
        %v4311 = vsel %vm558, %v4308, %v4310
        %v4312 = vrot.slane %v4209, 1
        %v4313 = vrot.slane %v4210, 1
        %v4314 = vsel %vm558, %v4312, %v4313
        %v4315 = vrot.slane %v4211, 1
        %v4316 = vsel %vm558, %v4313, %v4315
        %v4317 = vrot.slane %v4212, 1
        %v4318 = vrot.slane %v4213, 1
        %v4319 = vsel %vm558, %v4317, %v4318
        %v4320 = vrot.slane %v4214, 1
        %v4321 = vsel %vm558, %v4318, %v4320
        %v4322 = vrot.slane %v4215, 1
        %v4323 = vrot.slane %v4216, 1
        %v4324 = vsel %vm558, %v4322, %v4323
        %v4325 = vrot.slane %v4217, 1
        %v4326 = vsel %vm558, %v4323, %v4325
        %v4327 = vrot.slane %v4218, 1
        %v4328 = vrot.slane %v4219, 1
        %v4329 = vsel %vm558, %v4327, %v4328
        %v4330 = vrot.slane %v4220, 1
        %v4331 = vsel %vm558, %v4328, %v4330
        %v4332 = vrot.slane %v4221, 1
        %v4333 = vrot.slane %v4222, 1
        %v4334 = vsel %vm558, %v4332, %v4333
        %v4335 = vrot.slane %v4223, 1
        %v4336 = vsel %vm558, %v4333, %v4335
        %v4337 = vrot.slane %v4224, 1
        %v4338 = vrot.slane %v4225, 1
        %v4339 = vsel %vm558, %v4337, %v4338
        %v4340 = vrot.slane %v4226, 1
        %v4341 = vsel %vm558, %v4338, %v4340
        %v4342 = vrot.slane %v4227, 1
        %v4343 = vrot.slane %v4228, 1
        %v4344 = vsel %vm558, %v4342, %v4343
        %v4345 = vrot.slane %v4229, 1
        %v4346 = vsel %vm558, %v4343, %v4345
        %v4347 = vrot.slane %v4230, 1
        %v4348 = vrot.slane %v4231, 1
        %v4349 = vsel %vm558, %v4347, %v4348
        %v4350 = vrot.slane %v4232, 1
        %v4351 = vsel %vm558, %v4348, %v4350
        %v4352 = vrot.slane %v4233, 1
        %v4353 = vrot.slane %v4234, 1
        %v4354 = vsel %vm558, %v4352, %v4353
        %v4355 = vrot.slane %v4235, 1
        %v4356 = vsel %vm558, %v4353, %v4355
        %v4357 = vrot.slane %v4236, 1
        %v4358 = vrot.slane %v4237, 1
        %v4359 = vsel %vm558, %v4357, %v4358
        %v4360 = vrot.slane %v4238, 1
        %v4361 = vsel %vm558, %v4358, %v4360
        %v4362 = vrot.slane %v4239, 1
        %v4363 = vrot.slane %v4240, 1
        %v4364 = vsel %vm558, %v4362, %v4363
        %v4365 = vrot.slane %v4241, 1
        %v4366 = vsel %vm558, %v4363, %v4365
        %v4367 = vrot.slane %v4242, 1
        %v4368 = vrot.slane %v4243, 1
        %v4369 = vsel %vm558, %v4367, %v4368
        %v4370 = vrot.slane %v4244, 1
        %v4371 = vsel %vm558, %v4368, %v4370
        %v4372 = vrot.slane %v4245, 1
        %v4373 = vrot.slane %v4246, 1
        %v4374 = vsel %vm558, %v4372, %v4373
        %v4375 = vrot.slane %v4247, 1
        %v4376 = vsel %vm558, %v4373, %v4375
        %v4377 = vld [vmem:[%s3 + $0x8] sm:$0xff]
        %v4378 = vsel %vm4167, %v4299, 0
        %v4380 = vsel %vm4167, %v4301, 0
        %v4382 = vsel %vm4167, %v4304, 0
        %v4384 = vsel %vm4167, %v4306, 0
        %v4386 = vsel %vm4167, %v4309, 0
        %v4388 = vsel %vm4167, %v4311, 0
        %v4390 = vsel %vm4167, %v4314, 0
        %v4392 = vsel %vm4167, %v4316, 0
        %v4394 = vsel %vm4167, %v4319, 0
        %v4396 = vsel %vm4167, %v4321, 0
        %v4398 = vsel %vm4167, %v4324, 0
        %v4400 = vsel %vm4167, %v4326, 0
        %v4402 = vsel %vm4167, %v4329, 0
        %v4404 = vsel %vm4167, %v4331, 0
        %v4406 = vsel %vm4167, %v4334, 0
        %v4408 = vsel %vm4167, %v4336, 0
        %v4410 = vsel %vm4167, %v4339, 0
        %v4412 = vsel %vm4167, %v4341, 0
        %v4414 = vsel %vm4167, %v4344, 0
        %v4416 = vsel %vm4167, %v4346, 0
        %v4418 = vsel %vm4167, %v4349, 0
        %v4420 = vsel %vm4167, %v4351, 0
        %v4422 = vsel %vm4167, %v4354, 0
        %v4424 = vsel %vm4167, %v4356, 0
        %v4426 = vsel %vm4167, %v4359, 0
        %v4428 = vsel %vm4167, %v4361, 0
        %v4430 = vsel %vm4167, %v4364, 0
        %v4432 = vsel %vm4167, %v4366, 0
        %v4434 = vsel %vm4167, %v4369, 0
        %v4436 = vsel %vm4167, %v4371, 0
        %v4438 = vsel %vm4167, %v4374, 0
        %v4440 = vsel %vm4167, %v4376, 0
        %4442 = vmatprep.subr.mxu0 0.0
        %4443 = vmatpush1.msra.mxu0 %v4377
        %4444 = vmatprep.subr.mxu0 0.0
        %4445 = vmatpush1.msra.mxu0 0.0
        %4446 = vmatprep.subr.mxu0 0.0
        %4447 = vmatpush1.msra.mxu0 0.0
        %4448 = vmatprep.subr.mxu0 0.0
        %4449 = vmatpush1.msra.mxu0 0.0
        %4450 = vmatprep.subr.mxu0 0.0
        %4451 = vmatpush1.msra.mxu0 0.0
        %4452 = vmatprep.subr.mxu0 0.0
        %4453 = vmatpush1.msra.mxu0 0.0
        %4454 = vmatprep.subr.mxu0 0.0
        %4455 = vmatpush1.msra.mxu0 0.0
        %4456 = vmatprep.subr.mxu0 0.0
        %4457 = vmatpush1.msra.mxu0 0.0
        %4458 = vmatprep.subr.mxu0 0.0
        %4459 = vmatpush1.msra.mxu0 0.0
        %4460 = vmatprep.subr.mxu0 0.0
        %4461 = vmatpush1.msra.mxu0 0.0
        %4462 = vmatprep.subr.mxu0 0.0
        %4463 = vmatpush1.msra.mxu0 0.0
        %4464 = vmatprep.subr.mxu0 0.0
        %4465 = vmatpush1.msra.mxu0 0.0
        %4466 = vmatprep.subr.mxu0 0.0
        %4467 = vmatpush1.msra.mxu0 0.0
        %4468 = vmatprep.subr.mxu0 0.0
        %4469 = vmatpush1.msra.mxu0 0.0
        %4470 = vmatprep.subr.mxu0 0.0
        %4471 = vmatpush1.msra.mxu0 0.0
        %4472 = vmatprep.subr.mxu0 0.0
        %4473 = vmatpush1.msra.mxu0 0.0
        %4474 = vmatprep.subr.mxu0 0.0
        %4475 = vmatpush1.msra.mxu0 0.0
        %4476 = vmatprep.subr.mxu0 0.0
        %4477 = vmatpush1.msra.mxu0 0.0
        %4478 = vmatprep.subr.mxu0 0.0
        %4479 = vmatpush1.msra.mxu0 0.0
        %4480 = vmatprep.subr.mxu0 0.0
        %4481 = vmatpush1.msra.mxu0 0.0
        %4482 = vmatprep.subr.mxu0 0.0
        %4483 = vmatpush1.msra.mxu0 0.0
        %4484 = vmatprep.subr.mxu0 0.0
        %4485 = vmatpush1.msra.mxu0 0.0
        %4486 = vmatprep.subr.mxu0 0.0
        %4487 = vmatpush1.msra.mxu0 0.0
        %4488 = vmatprep.subr.mxu0 0.0
        %4489 = vmatpush1.msra.mxu0 0.0
        %4490 = vmatprep.subr.mxu0 0.0
        %4491 = vmatpush1.msra.mxu0 0.0
        %4492 = vmatprep.subr.mxu0 0.0
        %4493 = vmatpush1.msra.mxu0 0.0
        %4494 = vmatprep.subr.mxu0 0.0
        %4495 = vmatpush1.msra.mxu0 0.0
        %4496 = vmatprep.subr.mxu0 0.0
        %4497 = vmatpush1.msra.mxu0 0.0
        %4498 = vmatprep.subr.mxu0 0.0
        %4499 = vmatpush1.msra.mxu0 0.0
        %4500 = vmatprep.subr.mxu0 0.0
        %4501 = vmatpush1.msra.mxu0 0.0
        %4502 = vmatprep.subr.mxu0 0.0
        %4503 = vmatpush1.msra.mxu0 0.0
        %4504 = vmatprep.subr.mxu0 0.0
        %4505 = vmatpush1.msra.mxu0 0.0
        %4506 = vmatprep.mubr.f32.mxu0 0.0
        %4507 = vmatmul.mubr.f32.gmra.mrb[0].mxu0 %v4378
        %v4508 = vpop.f32.mrb[0].mxu0
        %v4509 = vadd.f32 0.0, %v4508
        %v4510 = vpop.f32.mrb[0].mxu0
        %4511 = vmatprep.mubr.f32.mxu0 0.0
        %4512 = vmatmul.mubr.f32.gmra.mrb[0].mxu0 %v4380
        %v4513 = vpop.f32.mrb[0].mxu0
        %v4514 = vadd.f32 0.0, %v4513
        %v4515 = vpop.f32.mrb[0].mxu0
        %4516 = vmatprep.mubr.f32.mxu0 0.0
        %4517 = vmatmul.mubr.f32.gmra.mrb[0].mxu0 %v4382
        %v4518 = vpop.f32.mrb[0].mxu0
        %v4519 = vadd.f32 0.0, %v4518
        %v4520 = vpop.f32.mrb[0].mxu0
        %4521 = vmatprep.mubr.f32.mxu0 0.0
        %4522 = vmatmul.mubr.f32.gmra.mrb[0].mxu0 %v4384
        %v4523 = vpop.f32.mrb[0].mxu0
        %v4524 = vadd.f32 0.0, %v4523
        %v4525 = vpop.f32.mrb[0].mxu0
        %4526 = vmatprep.mubr.f32.mxu0 0.0
        %4527 = vmatmul.mubr.f32.gmra.mrb[0].mxu0 %v4386
        %v4528 = vpop.f32.mrb[0].mxu0
        %v4529 = vadd.f32 0.0, %v4528
        %v4530 = vpop.f32.mrb[0].mxu0
        %4531 = vmatprep.mubr.f32.mxu0 0.0
        %4532 = vmatmul.mubr.f32.gmra.mrb[0].mxu0 %v4388
        %v4533 = vpop.f32.mrb[0].mxu0
        %v4534 = vadd.f32 0.0, %v4533
        %v4535 = vpop.f32.mrb[0].mxu0
        %4536 = vmatprep.mubr.f32.mxu0 0.0
        %4537 = vmatmul.mubr.f32.gmra.mrb[0].mxu0 %v4390
        %v4538 = vpop.f32.mrb[0].mxu0
        %v4539 = vadd.f32 0.0, %v4538
        %v4540 = vpop.f32.mrb[0].mxu0
        %4541 = vmatprep.mubr.f32.mxu0 0.0
        %4542 = vmatmul.mubr.f32.gmra.mrb[0].mxu0 %v4392
        %v4543 = vpop.f32.mrb[0].mxu0
        %v4544 = vadd.f32 0.0, %v4543
        %v4545 = vpop.f32.mrb[0].mxu0
        %4546 = vmatprep.mubr.f32.mxu0 0.0
        %4547 = vmatmul.mubr.f32.gmra.mrb[0].mxu0 %v4394
        %v4548 = vpop.f32.mrb[0].mxu0
        %v4549 = vadd.f32 0.0, %v4548
        %v4550 = vpop.f32.mrb[0].mxu0
        %4551 = vmatprep.mubr.f32.mxu0 0.0
        %4552 = vmatmul.mubr.f32.gmra.mrb[0].mxu0 %v4396
        %v4553 = vpop.f32.mrb[0].mxu0
        %v4554 = vadd.f32 0.0, %v4553
        %v4555 = vpop.f32.mrb[0].mxu0
        %4556 = vmatprep.mubr.f32.mxu0 0.0
        %4557 = vmatmul.mubr.f32.gmra.mrb[0].mxu0 %v4398
        %v4558 = vpop.f32.mrb[0].mxu0
        %v4559 = vadd.f32 0.0, %v4558
        %v4560 = vpop.f32.mrb[0].mxu0
        %4561 = vmatprep.mubr.f32.mxu0 0.0
        %4562 = vmatmul.mubr.f32.gmra.mrb[0].mxu0 %v4400
        %v4563 = vpop.f32.mrb[0].mxu0
        %v4564 = vadd.f32 0.0, %v4563
        %v4565 = vpop.f32.mrb[0].mxu0
        %4566 = vmatprep.mubr.f32.mxu0 0.0
        %4567 = vmatmul.mubr.f32.gmra.mrb[0].mxu0 %v4402
        %v4568 = vpop.f32.mrb[0].mxu0
        %v4569 = vadd.f32 0.0, %v4568
        %v4570 = vpop.f32.mrb[0].mxu0
        %4571 = vmatprep.mubr.f32.mxu0 0.0
        %4572 = vmatmul.mubr.f32.gmra.mrb[0].mxu0 %v4404
        %v4573 = vpop.f32.mrb[0].mxu0
        %v4574 = vadd.f32 0.0, %v4573
        %v4575 = vpop.f32.mrb[0].mxu0
        %4576 = vmatprep.mubr.f32.mxu0 0.0
        %4577 = vmatmul.mubr.f32.gmra.mrb[0].mxu0 %v4406
        %v4578 = vpop.f32.mrb[0].mxu0
        %v4579 = vadd.f32 0.0, %v4578
        %v4580 = vpop.f32.mrb[0].mxu0
        %4581 = vmatprep.mubr.f32.mxu0 0.0
        %4582 = vmatmul.mubr.f32.gmra.mrb[0].mxu0 %v4408
        %v4583 = vpop.f32.mrb[0].mxu0
        %v4584 = vadd.f32 0.0, %v4583
        %v4585 = vpop.f32.mrb[0].mxu0
        %4586 = vmatprep.mubr.f32.mxu0 0.0
        %4587 = vmatmul.mubr.f32.gmra.mrb[0].mxu0 %v4410
        %v4588 = vpop.f32.mrb[0].mxu0
        %v4589 = vadd.f32 0.0, %v4588
        %v4590 = vpop.f32.mrb[0].mxu0
        %4591 = vmatprep.mubr.f32.mxu0 0.0
        %4592 = vmatmul.mubr.f32.gmra.mrb[0].mxu0 %v4412
        %v4593 = vpop.f32.mrb[0].mxu0
        %v4594 = vadd.f32 0.0, %v4593
        %v4595 = vpop.f32.mrb[0].mxu0
        %4596 = vmatprep.mubr.f32.mxu0 0.0
        %4597 = vmatmul.mubr.f32.gmra.mrb[0].mxu0 %v4414
        %v4598 = vpop.f32.mrb[0].mxu0
        %v4599 = vadd.f32 0.0, %v4598
        %v4600 = vpop.f32.mrb[0].mxu0
        %4601 = vmatprep.mubr.f32.mxu0 0.0
        %4602 = vmatmul.mubr.f32.gmra.mrb[0].mxu0 %v4416
        %v4603 = vpop.f32.mrb[0].mxu0
        %v4604 = vadd.f32 0.0, %v4603
        %v4605 = vpop.f32.mrb[0].mxu0
        %4606 = vmatprep.mubr.f32.mxu0 0.0
        %4607 = vmatmul.mubr.f32.gmra.mrb[0].mxu0 %v4418
        %v4608 = vpop.f32.mrb[0].mxu0
        %v4609 = vadd.f32 0.0, %v4608
        %v4610 = vpop.f32.mrb[0].mxu0
        %4611 = vmatprep.mubr.f32.mxu0 0.0
        %4612 = vmatmul.mubr.f32.gmra.mrb[0].mxu0 %v4420
        %v4613 = vpop.f32.mrb[0].mxu0
        %v4614 = vadd.f32 0.0, %v4613
        %v4615 = vpop.f32.mrb[0].mxu0
        %4616 = vmatprep.mubr.f32.mxu0 0.0
        %4617 = vmatmul.mubr.f32.gmra.mrb[0].mxu0 %v4422
        %v4618 = vpop.f32.mrb[0].mxu0
        %v4619 = vadd.f32 0.0, %v4618
        %v4620 = vpop.f32.mrb[0].mxu0
        %4621 = vmatprep.mubr.f32.mxu0 0.0
        %4622 = vmatmul.mubr.f32.gmra.mrb[0].mxu0 %v4424
        %v4623 = vpop.f32.mrb[0].mxu0
        %v4624 = vadd.f32 0.0, %v4623
        %v4625 = vpop.f32.mrb[0].mxu0
        %4626 = vmatprep.mubr.f32.mxu0 0.0
        %4627 = vmatmul.mubr.f32.gmra.mrb[0].mxu0 %v4426
        %v4628 = vpop.f32.mrb[0].mxu0
        %v4629 = vadd.f32 0.0, %v4628
        %v4630 = vpop.f32.mrb[0].mxu0
        %4631 = vmatprep.mubr.f32.mxu0 0.0
        %4632 = vmatmul.mubr.f32.gmra.mrb[0].mxu0 %v4428
        %v4633 = vpop.f32.mrb[0].mxu0
        %v4634 = vadd.f32 0.0, %v4633
        %v4635 = vpop.f32.mrb[0].mxu0
        %4636 = vmatprep.mubr.f32.mxu0 0.0
        %4637 = vmatmul.mubr.f32.gmra.mrb[0].mxu0 %v4430
        %v4638 = vpop.f32.mrb[0].mxu0
        %v4639 = vadd.f32 0.0, %v4638
        %v4640 = vpop.f32.mrb[0].mxu0
        %4641 = vmatprep.mubr.f32.mxu0 0.0
        %4642 = vmatmul.mubr.f32.gmra.mrb[0].mxu0 %v4432
        %v4643 = vpop.f32.mrb[0].mxu0
        %v4644 = vadd.f32 0.0, %v4643
        %v4645 = vpop.f32.mrb[0].mxu0
        %4646 = vmatprep.mubr.f32.mxu0 0.0
        %4647 = vmatmul.mubr.f32.gmra.mrb[0].mxu0 %v4434
        %v4648 = vpop.f32.mrb[0].mxu0
        %v4649 = vadd.f32 0.0, %v4648
        %v4650 = vpop.f32.mrb[0].mxu0
        %4651 = vmatprep.mubr.f32.mxu0 0.0
        %4652 = vmatmul.mubr.f32.gmra.mrb[0].mxu0 %v4436
        %v4653 = vpop.f32.mrb[0].mxu0
        %v4654 = vadd.f32 0.0, %v4653
        %v4655 = vpop.f32.mrb[0].mxu0
        %4656 = vmatprep.mubr.f32.mxu0 0.0
        %4657 = vmatmul.mubr.f32.gmra.mrb[0].mxu0 %v4438
        %v4658 = vpop.f32.mrb[0].mxu0
        %v4659 = vadd.f32 0.0, %v4658
        %v4660 = vpop.f32.mrb[0].mxu0
        %4661 = vmatprep.mubr.f32.mxu0 0.0
        %4662 = vmatmul.mubr.f32.gmra.mrb[0].mxu0 %v4440
        %v4663 = vpop.f32.mrb[0].mxu0
        %v4664 = vadd.f32 0.0, %v4663
        %v4665 = vpop.f32.mrb[0].mxu0
        %4666 = vdwg.mxu0
        %v4667 = vsel %vm4167, %v4200, 0
        %v4669 = vsel %vm4167, %v4201, 0
        %v4671 = vsel %vm4167, %v4203, 0
        %v4673 = vsel %vm4167, %v4204, 0
        %v4675 = vsel %vm4167, %v4206, 0
        %v4677 = vsel %vm4167, %v4207, 0
        %v4679 = vsel %vm4167, %v4209, 0
        %v4681 = vsel %vm4167, %v4210, 0
        %v4683 = vsel %vm4167, %v4212, 0
        %v4685 = vsel %vm4167, %v4213, 0
        %v4687 = vsel %vm4167, %v4215, 0
        %v4689 = vsel %vm4167, %v4216, 0
        %v4691 = vsel %vm4167, %v4218, 0
        %v4693 = vsel %vm4167, %v4219, 0
        %v4695 = vsel %vm4167, %v4221, 0
        %v4697 = vsel %vm4167, %v4222, 0
        %v4699 = vsel %vm4167, %v4224, 0
        %v4701 = vsel %vm4167, %v4225, 0
        %v4703 = vsel %vm4167, %v4227, 0
        %v4705 = vsel %vm4167, %v4228, 0
        %v4707 = vsel %vm4167, %v4230, 0
        %v4709 = vsel %vm4167, %v4231, 0
        %v4711 = vsel %vm4167, %v4233, 0
        %v4713 = vsel %vm4167, %v4234, 0
        %v4715 = vsel %vm4167, %v4236, 0
        %v4717 = vsel %vm4167, %v4237, 0
        %v4719 = vsel %vm4167, %v4239, 0
        %v4721 = vsel %vm4167, %v4240, 0
        %v4723 = vsel %vm4167, %v4242, 0
        %v4725 = vsel %vm4167, %v4243, 0
        %v4727 = vsel %vm4167, %v4245, 0
        %v4729 = vsel %vm4167, %v4246, 0
        %4731 = vmatprep.subr.mxu0 0.0
        %4732 = vmatpush1.msra.mxu0 %v4248
        %4733 = vmatprep.subr.mxu0 0.0
        %4734 = vmatpush1.msra.mxu0 0.0
        %4735 = vmatprep.subr.mxu0 0.0
        %4736 = vmatpush1.msra.mxu0 0.0
        %4737 = vmatprep.subr.mxu0 0.0
        %4738 = vmatpush1.msra.mxu0 0.0
        %4739 = vmatprep.subr.mxu0 0.0
        %4740 = vmatpush1.msra.mxu0 0.0
        %4741 = vmatprep.subr.mxu0 0.0
        %4742 = vmatpush1.msra.mxu0 0.0
        %4743 = vmatprep.subr.mxu0 0.0
        %4744 = vmatpush1.msra.mxu0 0.0
        %4745 = vmatprep.subr.mxu0 0.0
        %4746 = vmatpush1.msra.mxu0 0.0
        %4747 = vmatprep.subr.mxu0 0.0
        %4748 = vmatpush1.msra.mxu0 0.0
        %4749 = vmatprep.subr.mxu0 0.0
        %4750 = vmatpush1.msra.mxu0 0.0
        %4751 = vmatprep.subr.mxu0 0.0
        %4752 = vmatpush1.msra.mxu0 0.0
        %4753 = vmatprep.subr.mxu0 0.0
        %4754 = vmatpush1.msra.mxu0 0.0
        %4755 = vmatprep.subr.mxu0 0.0
        %4756 = vmatpush1.msra.mxu0 0.0
        %4757 = vmatprep.subr.mxu0 0.0
        %4758 = vmatpush1.msra.mxu0 0.0
        %4759 = vmatprep.subr.mxu0 0.0
        %4760 = vmatpush1.msra.mxu0 0.0
        %4761 = vmatprep.subr.mxu0 0.0
        %4762 = vmatpush1.msra.mxu0 0.0
        %4763 = vmatprep.subr.mxu0 0.0
        %4764 = vmatpush1.msra.mxu0 0.0
        %4765 = vmatprep.subr.mxu0 0.0
        %4766 = vmatpush1.msra.mxu0 0.0
        %4767 = vmatprep.subr.mxu0 0.0
        %4768 = vmatpush1.msra.mxu0 0.0
        %4769 = vmatprep.subr.mxu0 0.0
        %4770 = vmatpush1.msra.mxu0 0.0
        %4771 = vmatprep.subr.mxu0 0.0
        %4772 = vmatpush1.msra.mxu0 0.0
        %4773 = vmatprep.subr.mxu0 0.0
        %4774 = vmatpush1.msra.mxu0 0.0
        %4775 = vmatprep.subr.mxu0 0.0
        %4776 = vmatpush1.msra.mxu0 0.0
        %4777 = vmatprep.subr.mxu0 0.0
        %4778 = vmatpush1.msra.mxu0 0.0
        %4779 = vmatprep.subr.mxu0 0.0
        %4780 = vmatpush1.msra.mxu0 0.0
        %4781 = vmatprep.subr.mxu0 0.0
        %4782 = vmatpush1.msra.mxu0 0.0
        %4783 = vmatprep.subr.mxu0 0.0
        %4784 = vmatpush1.msra.mxu0 0.0
        %4785 = vmatprep.subr.mxu0 0.0
        %4786 = vmatpush1.msra.mxu0 0.0
        %4787 = vmatprep.subr.mxu0 0.0
        %4788 = vmatpush1.msra.mxu0 0.0
        %4789 = vmatprep.subr.mxu0 0.0
        %4790 = vmatpush1.msra.mxu0 0.0
        %4791 = vmatprep.subr.mxu0 0.0
        %4792 = vmatpush1.msra.mxu0 0.0
        %4793 = vmatprep.subr.mxu0 0.0
        %4794 = vmatpush1.msra.mxu0 0.0
        %4795 = vmatprep.mubr.f32.mxu0 0.0
        %4796 = vmatmul.mubr.f32.gmra.mrb[0].mxu0 %v4667
        %v4797 = vpop.f32.mrb[0].mxu0
        %v4798 = vadd.f32 %v4509, %v4797
        %v4799 = vpop.f32.mrb[0].mxu0
        %4800 = vmatprep.mubr.f32.mxu0 0.0
        %4801 = vmatmul.mubr.f32.gmra.mrb[0].mxu0 %v4669
        %v4802 = vpop.f32.mrb[0].mxu0
        %v4803 = vadd.f32 %v4514, %v4802
        %v4804 = vpop.f32.mrb[0].mxu0
        %4805 = vmatprep.mubr.f32.mxu0 0.0
        %4806 = vmatmul.mubr.f32.gmra.mrb[0].mxu0 %v4671
        %v4807 = vpop.f32.mrb[0].mxu0
        %v4808 = vadd.f32 %v4519, %v4807
        %v4809 = vpop.f32.mrb[0].mxu0
        %4810 = vmatprep.mubr.f32.mxu0 0.0
        %4811 = vmatmul.mubr.f32.gmra.mrb[0].mxu0 %v4673
        %v4812 = vpop.f32.mrb[0].mxu0
        %v4813 = vadd.f32 %v4524, %v4812
        %v4814 = vpop.f32.mrb[0].mxu0
        %4815 = vmatprep.mubr.f32.mxu0 0.0
        %4816 = vmatmul.mubr.f32.gmra.mrb[0].mxu0 %v4675
        %v4817 = vpop.f32.mrb[0].mxu0
        %v4818 = vadd.f32 %v4529, %v4817
        %v4819 = vpop.f32.mrb[0].mxu0
        %4820 = vmatprep.mubr.f32.mxu0 0.0
        %4821 = vmatmul.mubr.f32.gmra.mrb[0].mxu0 %v4677
        %v4822 = vpop.f32.mrb[0].mxu0
        %v4823 = vadd.f32 %v4534, %v4822
        %v4824 = vpop.f32.mrb[0].mxu0
        %4825 = vmatprep.mubr.f32.mxu0 0.0
        %4826 = vmatmul.mubr.f32.gmra.mrb[0].mxu0 %v4679
        %v4827 = vpop.f32.mrb[0].mxu0
        %v4828 = vadd.f32 %v4539, %v4827
        %v4829 = vpop.f32.mrb[0].mxu0
        %4830 = vmatprep.mubr.f32.mxu0 0.0
        %4831 = vmatmul.mubr.f32.gmra.mrb[0].mxu0 %v4681
        %v4832 = vpop.f32.mrb[0].mxu0
        %v4833 = vadd.f32 %v4544, %v4832
        %v4834 = vpop.f32.mrb[0].mxu0
        %4835 = vmatprep.mubr.f32.mxu0 0.0
        %4836 = vmatmul.mubr.f32.gmra.mrb[0].mxu0 %v4683
        %v4837 = vpop.f32.mrb[0].mxu0
        %v4838 = vadd.f32 %v4549, %v4837
        %v4839 = vpop.f32.mrb[0].mxu0
        %4840 = vmatprep.mubr.f32.mxu0 0.0
        %4841 = vmatmul.mubr.f32.gmra.mrb[0].mxu0 %v4685
        %v4842 = vpop.f32.mrb[0].mxu0
        %v4843 = vadd.f32 %v4554, %v4842
        %v4844 = vpop.f32.mrb[0].mxu0
        %4845 = vmatprep.mubr.f32.mxu0 0.0
        %4846 = vmatmul.mubr.f32.gmra.mrb[0].mxu0 %v4687
        %v4847 = vpop.f32.mrb[0].mxu0
        %v4848 = vadd.f32 %v4559, %v4847
        %v4849 = vpop.f32.mrb[0].mxu0
        %4850 = vmatprep.mubr.f32.mxu0 0.0
        %4851 = vmatmul.mubr.f32.gmra.mrb[0].mxu0 %v4689
        %v4852 = vpop.f32.mrb[0].mxu0
        %v4853 = vadd.f32 %v4564, %v4852
        %v4854 = vpop.f32.mrb[0].mxu0
        %4855 = vmatprep.mubr.f32.mxu0 0.0
        %4856 = vmatmul.mubr.f32.gmra.mrb[0].mxu0 %v4691
        %v4857 = vpop.f32.mrb[0].mxu0
        %v4858 = vadd.f32 %v4569, %v4857
        %v4859 = vpop.f32.mrb[0].mxu0
        %4860 = vmatprep.mubr.f32.mxu0 0.0
        %4861 = vmatmul.mubr.f32.gmra.mrb[0].mxu0 %v4693
        %v4862 = vpop.f32.mrb[0].mxu0
        %v4863 = vadd.f32 %v4574, %v4862
        %v4864 = vpop.f32.mrb[0].mxu0
        %4865 = vmatprep.mubr.f32.mxu0 0.0
        %4866 = vmatmul.mubr.f32.gmra.mrb[0].mxu0 %v4695
        %v4867 = vpop.f32.mrb[0].mxu0
        %v4868 = vadd.f32 %v4579, %v4867
        %v4869 = vpop.f32.mrb[0].mxu0
        %4870 = vmatprep.mubr.f32.mxu0 0.0
        %4871 = vmatmul.mubr.f32.gmra.mrb[0].mxu0 %v4697
        %v4872 = vpop.f32.mrb[0].mxu0
        %v4873 = vadd.f32 %v4584, %v4872
        %v4874 = vpop.f32.mrb[0].mxu0
        %4875 = vmatprep.mubr.f32.mxu0 0.0
        %4876 = vmatmul.mubr.f32.gmra.mrb[0].mxu0 %v4699
        %v4877 = vpop.f32.mrb[0].mxu0
        %v4878 = vadd.f32 %v4589, %v4877
        %v4879 = vpop.f32.mrb[0].mxu0
        %4880 = vmatprep.mubr.f32.mxu0 0.0
        %4881 = vmatmul.mubr.f32.gmra.mrb[0].mxu0 %v4701
        %v4882 = vpop.f32.mrb[0].mxu0
        %v4883 = vadd.f32 %v4594, %v4882
        %v4884 = vpop.f32.mrb[0].mxu0
        %4885 = vmatprep.mubr.f32.mxu0 0.0
        %4886 = vmatmul.mubr.f32.gmra.mrb[0].mxu0 %v4703
        %v4887 = vpop.f32.mrb[0].mxu0
        %v4888 = vadd.f32 %v4599, %v4887
        %v4889 = vpop.f32.mrb[0].mxu0
        %4890 = vmatprep.mubr.f32.mxu0 0.0
        %4891 = vmatmul.mubr.f32.gmra.mrb[0].mxu0 %v4705
        %v4892 = vpop.f32.mrb[0].mxu0
        %v4893 = vadd.f32 %v4604, %v4892
        %v4894 = vpop.f32.mrb[0].mxu0
        %4895 = vmatprep.mubr.f32.mxu0 0.0
        %4896 = vmatmul.mubr.f32.gmra.mrb[0].mxu0 %v4707
        %v4897 = vpop.f32.mrb[0].mxu0
        %v4898 = vadd.f32 %v4609, %v4897
        %v4899 = vpop.f32.mrb[0].mxu0
        %4900 = vmatprep.mubr.f32.mxu0 0.0
        %4901 = vmatmul.mubr.f32.gmra.mrb[0].mxu0 %v4709
        %v4902 = vpop.f32.mrb[0].mxu0
        %v4903 = vadd.f32 %v4614, %v4902
        %v4904 = vpop.f32.mrb[0].mxu0
        %4905 = vmatprep.mubr.f32.mxu0 0.0
        %4906 = vmatmul.mubr.f32.gmra.mrb[0].mxu0 %v4711
        %v4907 = vpop.f32.mrb[0].mxu0
        %v4908 = vadd.f32 %v4619, %v4907
        %v4909 = vpop.f32.mrb[0].mxu0
        %4910 = vmatprep.mubr.f32.mxu0 0.0
        %4911 = vmatmul.mubr.f32.gmra.mrb[0].mxu0 %v4713
        %v4912 = vpop.f32.mrb[0].mxu0
        %v4913 = vadd.f32 %v4624, %v4912
        %v4914 = vpop.f32.mrb[0].mxu0
        %4915 = vmatprep.mubr.f32.mxu0 0.0
        %4916 = vmatmul.mubr.f32.gmra.mrb[0].mxu0 %v4715
        %v4917 = vpop.f32.mrb[0].mxu0
        %v4918 = vadd.f32 %v4629, %v4917
        %v4919 = vpop.f32.mrb[0].mxu0
        %4920 = vmatprep.mubr.f32.mxu0 0.0
        %4921 = vmatmul.mubr.f32.gmra.mrb[0].mxu0 %v4717
        %v4922 = vpop.f32.mrb[0].mxu0
        %v4923 = vadd.f32 %v4634, %v4922
        %v4924 = vpop.f32.mrb[0].mxu0
        %4925 = vmatprep.mubr.f32.mxu0 0.0
        %4926 = vmatmul.mubr.f32.gmra.mrb[0].mxu0 %v4719
        %v4927 = vpop.f32.mrb[0].mxu0
        %v4928 = vadd.f32 %v4639, %v4927
        %v4929 = vpop.f32.mrb[0].mxu0
        %4930 = vmatprep.mubr.f32.mxu0 0.0
        %4931 = vmatmul.mubr.f32.gmra.mrb[0].mxu0 %v4721
        %v4932 = vpop.f32.mrb[0].mxu0
        %v4933 = vadd.f32 %v4644, %v4932
        %v4934 = vpop.f32.mrb[0].mxu0
        %4935 = vmatprep.mubr.f32.mxu0 0.0
        %4936 = vmatmul.mubr.f32.gmra.mrb[0].mxu0 %v4723
        %v4937 = vpop.f32.mrb[0].mxu0
        %v4938 = vadd.f32 %v4649, %v4937
        %v4939 = vpop.f32.mrb[0].mxu0
        %4940 = vmatprep.mubr.f32.mxu0 0.0
        %4941 = vmatmul.mubr.f32.gmra.mrb[0].mxu0 %v4725
        %v4942 = vpop.f32.mrb[0].mxu0
        %v4943 = vadd.f32 %v4654, %v4942
        %v4944 = vpop.f32.mrb[0].mxu0
        %4945 = vmatprep.mubr.f32.mxu0 0.0
        %4946 = vmatmul.mubr.f32.gmra.mrb[0].mxu0 %v4727
        %v4947 = vpop.f32.mrb[0].mxu0
        %v4948 = vadd.f32 %v4659, %v4947
        %v4949 = vpop.f32.mrb[0].mxu0
        %4950 = vmatprep.mubr.f32.mxu0 0.0
        %4951 = vmatmul.mubr.f32.gmra.mrb[0].mxu0 %v4729
        %v4952 = vpop.f32.mrb[0].mxu0
        %v4953 = vadd.f32 %v4664, %v4952
        %v4954 = vpop.f32.mrb[0].mxu0
        %4955 = vdwg.mxu0
        %v4956 = vrot.slane %v4200, 2
        %v4957 = vrot.slane %v4201, 2
        %v4958 = vsel %vm1225, %v4956, %v4957
        %v4959 = vrot.slane %v4202, 2
        %v4960 = vsel %vm1225, %v4957, %v4959
        %v4961 = vrot.slane %v4203, 2
        %v4962 = vrot.slane %v4204, 2
        %v4963 = vsel %vm1225, %v4961, %v4962
        %v4964 = vrot.slane %v4205, 2
        %v4965 = vsel %vm1225, %v4962, %v4964
        %v4966 = vrot.slane %v4206, 2
        %v4967 = vrot.slane %v4207, 2
        %v4968 = vsel %vm1225, %v4966, %v4967
        %v4969 = vrot.slane %v4208, 2
        %v4970 = vsel %vm1225, %v4967, %v4969
        %v4971 = vrot.slane %v4209, 2
        %v4972 = vrot.slane %v4210, 2
        %v4973 = vsel %vm1225, %v4971, %v4972
        %v4974 = vrot.slane %v4211, 2
        %v4975 = vsel %vm1225, %v4972, %v4974
        %v4976 = vrot.slane %v4212, 2
        %v4977 = vrot.slane %v4213, 2
        %v4978 = vsel %vm1225, %v4976, %v4977
        %v4979 = vrot.slane %v4214, 2
        %v4980 = vsel %vm1225, %v4977, %v4979
        %v4981 = vrot.slane %v4215, 2
        %v4982 = vrot.slane %v4216, 2
        %v4983 = vsel %vm1225, %v4981, %v4982
        %v4984 = vrot.slane %v4217, 2
        %v4985 = vsel %vm1225, %v4982, %v4984
        %v4986 = vrot.slane %v4218, 2
        %v4987 = vrot.slane %v4219, 2
        %v4988 = vsel %vm1225, %v4986, %v4987
        %v4989 = vrot.slane %v4220, 2
        %v4990 = vsel %vm1225, %v4987, %v4989
        %v4991 = vrot.slane %v4221, 2
        %v4992 = vrot.slane %v4222, 2
        %v4993 = vsel %vm1225, %v4991, %v4992
        %v4994 = vrot.slane %v4223, 2
        %v4995 = vsel %vm1225, %v4992, %v4994
        %v4996 = vrot.slane %v4224, 2
        %v4997 = vrot.slane %v4225, 2
        %v4998 = vsel %vm1225, %v4996, %v4997
        %v4999 = vrot.slane %v4226, 2
        %v5000 = vsel %vm1225, %v4997, %v4999
        %v5001 = vrot.slane %v4227, 2
        %v5002 = vrot.slane %v4228, 2
        %v5003 = vsel %vm1225, %v5001, %v5002
        %v5004 = vrot.slane %v4229, 2
        %v5005 = vsel %vm1225, %v5002, %v5004
        %v5006 = vrot.slane %v4230, 2
        %v5007 = vrot.slane %v4231, 2
        %v5008 = vsel %vm1225, %v5006, %v5007
        %v5009 = vrot.slane %v4232, 2
        %v5010 = vsel %vm1225, %v5007, %v5009
        %v5011 = vrot.slane %v4233, 2
        %v5012 = vrot.slane %v4234, 2
        %v5013 = vsel %vm1225, %v5011, %v5012
        %v5014 = vrot.slane %v4235, 2
        %v5015 = vsel %vm1225, %v5012, %v5014
        %v5016 = vrot.slane %v4236, 2
        %v5017 = vrot.slane %v4237, 2
        %v5018 = vsel %vm1225, %v5016, %v5017
        %v5019 = vrot.slane %v4238, 2
        %v5020 = vsel %vm1225, %v5017, %v5019
        %v5021 = vrot.slane %v4239, 2
        %v5022 = vrot.slane %v4240, 2
        %v5023 = vsel %vm1225, %v5021, %v5022
        %v5024 = vrot.slane %v4241, 2
        %v5025 = vsel %vm1225, %v5022, %v5024
        %v5026 = vrot.slane %v4242, 2
        %v5027 = vrot.slane %v4243, 2
        %v5028 = vsel %vm1225, %v5026, %v5027
        %v5029 = vrot.slane %v4244, 2
        %v5030 = vsel %vm1225, %v5027, %v5029
        %v5031 = vrot.slane %v4245, 2
        %v5032 = vrot.slane %v4246, 2
        %v5033 = vsel %vm1225, %v5031, %v5032
        %v5034 = vrot.slane %v4247, 2
        %v5035 = vsel %vm1225, %v5032, %v5034
        %v5036 = vld [vmem:[%s3 + $0x10] sm:$0xff]
        %v5037 = vsel %vm4167, %v4958, 0
        %v5039 = vsel %vm4167, %v4960, 0
        %v5041 = vsel %vm4167, %v4963, 0
        %v5043 = vsel %vm4167, %v4965, 0
        %v5045 = vsel %vm4167, %v4968, 0
        %v5047 = vsel %vm4167, %v4970, 0
        %v5049 = vsel %vm4167, %v4973, 0
        %v5051 = vsel %vm4167, %v4975, 0
        %v5053 = vsel %vm4167, %v4978, 0
        %v5055 = vsel %vm4167, %v4980, 0
        %v5057 = vsel %vm4167, %v4983, 0
        %v5059 = vsel %vm4167, %v4985, 0
        %v5061 = vsel %vm4167, %v4988, 0
        %v5063 = vsel %vm4167, %v4990, 0
        %v5065 = vsel %vm4167, %v4993, 0
        %v5067 = vsel %vm4167, %v4995, 0
        %v5069 = vsel %vm4167, %v4998, 0
        %v5071 = vsel %vm4167, %v5000, 0
        %v5073 = vsel %vm4167, %v5003, 0
        %v5075 = vsel %vm4167, %v5005, 0
        %v5077 = vsel %vm4167, %v5008, 0
        %v5079 = vsel %vm4167, %v5010, 0
        %v5081 = vsel %vm4167, %v5013, 0
        %v5083 = vsel %vm4167, %v5015, 0
        %v5085 = vsel %vm4167, %v5018, 0
        %v5087 = vsel %vm4167, %v5020, 0
        %v5089 = vsel %vm4167, %v5023, 0
        %v5091 = vsel %vm4167, %v5025, 0
        %v5093 = vsel %vm4167, %v5028, 0
        %v5095 = vsel %vm4167, %v5030, 0
        %v5097 = vsel %vm4167, %v5033, 0
        %v5099 = vsel %vm4167, %v5035, 0
        %5101 = vmatprep.subr.mxu0 0.0
        %5102 = vmatpush1.msra.mxu0 %v5036
        %5103 = vmatprep.subr.mxu0 0.0
        %5104 = vmatpush1.msra.mxu0 0.0
        %5105 = vmatprep.subr.mxu0 0.0
        %5106 = vmatpush1.msra.mxu0 0.0
        %5107 = vmatprep.subr.mxu0 0.0
        %5108 = vmatpush1.msra.mxu0 0.0
        %5109 = vmatprep.subr.mxu0 0.0
        %5110 = vmatpush1.msra.mxu0 0.0
        %5111 = vmatprep.subr.mxu0 0.0
        %5112 = vmatpush1.msra.mxu0 0.0
        %5113 = vmatprep.subr.mxu0 0.0
        %5114 = vmatpush1.msra.mxu0 0.0
        %5115 = vmatprep.subr.mxu0 0.0
        %5116 = vmatpush1.msra.mxu0 0.0
        %5117 = vmatprep.subr.mxu0 0.0
        %5118 = vmatpush1.msra.mxu0 0.0
        %5119 = vmatprep.subr.mxu0 0.0
        %5120 = vmatpush1.msra.mxu0 0.0
        %5121 = vmatprep.subr.mxu0 0.0
        %5122 = vmatpush1.msra.mxu0 0.0
        %5123 = vmatprep.subr.mxu0 0.0
        %5124 = vmatpush1.msra.mxu0 0.0
        %5125 = vmatprep.subr.mxu0 0.0
        %5126 = vmatpush1.msra.mxu0 0.0
        %5127 = vmatprep.subr.mxu0 0.0
        %5128 = vmatpush1.msra.mxu0 0.0
        %5129 = vmatprep.subr.mxu0 0.0
        %5130 = vmatpush1.msra.mxu0 0.0
        %5131 = vmatprep.subr.mxu0 0.0
        %5132 = vmatpush1.msra.mxu0 0.0
        %5133 = vmatprep.subr.mxu0 0.0
        %5134 = vmatpush1.msra.mxu0 0.0
        %5135 = vmatprep.subr.mxu0 0.0
        %5136 = vmatpush1.msra.mxu0 0.0
        %5137 = vmatprep.subr.mxu0 0.0
        %5138 = vmatpush1.msra.mxu0 0.0
        %5139 = vmatprep.subr.mxu0 0.0
        %5140 = vmatpush1.msra.mxu0 0.0
        %5141 = vmatprep.subr.mxu0 0.0
        %5142 = vmatpush1.msra.mxu0 0.0
        %5143 = vmatprep.subr.mxu0 0.0
        %5144 = vmatpush1.msra.mxu0 0.0
        %5145 = vmatprep.subr.mxu0 0.0
        %5146 = vmatpush1.msra.mxu0 0.0
        %5147 = vmatprep.subr.mxu0 0.0
        %5148 = vmatpush1.msra.mxu0 0.0
        %5149 = vmatprep.subr.mxu0 0.0
        %5150 = vmatpush1.msra.mxu0 0.0
        %5151 = vmatprep.subr.mxu0 0.0
        %5152 = vmatpush1.msra.mxu0 0.0
        %5153 = vmatprep.subr.mxu0 0.0
        %5154 = vmatpush1.msra.mxu0 0.0
        %5155 = vmatprep.subr.mxu0 0.0
        %5156 = vmatpush1.msra.mxu0 0.0
        %5157 = vmatprep.subr.mxu0 0.0
        %5158 = vmatpush1.msra.mxu0 0.0
        %5159 = vmatprep.subr.mxu0 0.0
        %5160 = vmatpush1.msra.mxu0 0.0
        %5161 = vmatprep.subr.mxu0 0.0
        %5162 = vmatpush1.msra.mxu0 0.0
        %5163 = vmatprep.subr.mxu0 0.0
        %5164 = vmatpush1.msra.mxu0 0.0
        %5165 = vmatprep.mubr.f32.mxu0 0.0
        %5166 = vmatmul.mubr.f32.gmra.mrb[0].mxu0 %v5037
        %v5167 = vpop.f32.mrb[0].mxu0
        %v5168 = vadd.f32 0.0, %v5167
        %v5169 = vpop.f32.mrb[0].mxu0
        %5170 = vmatprep.mubr.f32.mxu0 0.0
        %5171 = vmatmul.mubr.f32.gmra.mrb[0].mxu0 %v5039
        %v5172 = vpop.f32.mrb[0].mxu0
        %v5173 = vadd.f32 0.0, %v5172
        %v5174 = vpop.f32.mrb[0].mxu0
        %5175 = vmatprep.mubr.f32.mxu0 0.0
        %5176 = vmatmul.mubr.f32.gmra.mrb[0].mxu0 %v5041
        %v5177 = vpop.f32.mrb[0].mxu0
        %v5178 = vadd.f32 0.0, %v5177
        %v5179 = vpop.f32.mrb[0].mxu0
        %5180 = vmatprep.mubr.f32.mxu0 0.0
        %5181 = vmatmul.mubr.f32.gmra.mrb[0].mxu0 %v5043
        %v5182 = vpop.f32.mrb[0].mxu0
        %v5183 = vadd.f32 0.0, %v5182
        %v5184 = vpop.f32.mrb[0].mxu0
        %5185 = vmatprep.mubr.f32.mxu0 0.0
        %5186 = vmatmul.mubr.f32.gmra.mrb[0].mxu0 %v5045
        %v5187 = vpop.f32.mrb[0].mxu0
        %v5188 = vadd.f32 0.0, %v5187
        %v5189 = vpop.f32.mrb[0].mxu0
        %5190 = vmatprep.mubr.f32.mxu0 0.0
        %5191 = vmatmul.mubr.f32.gmra.mrb[0].mxu0 %v5047
        %v5192 = vpop.f32.mrb[0].mxu0
        %v5193 = vadd.f32 0.0, %v5192
        %v5194 = vpop.f32.mrb[0].mxu0
        %5195 = vmatprep.mubr.f32.mxu0 0.0
        %5196 = vmatmul.mubr.f32.gmra.mrb[0].mxu0 %v5049
        %v5197 = vpop.f32.mrb[0].mxu0
        %v5198 = vadd.f32 0.0, %v5197
        %v5199 = vpop.f32.mrb[0].mxu0
        %5200 = vmatprep.mubr.f32.mxu0 0.0
        %5201 = vmatmul.mubr.f32.gmra.mrb[0].mxu0 %v5051
        %v5202 = vpop.f32.mrb[0].mxu0
        %v5203 = vadd.f32 0.0, %v5202
        %v5204 = vpop.f32.mrb[0].mxu0
        %5205 = vmatprep.mubr.f32.mxu0 0.0
        %5206 = vmatmul.mubr.f32.gmra.mrb[0].mxu0 %v5053
        %v5207 = vpop.f32.mrb[0].mxu0
        %v5208 = vadd.f32 0.0, %v5207
        %v5209 = vpop.f32.mrb[0].mxu0
        %5210 = vmatprep.mubr.f32.mxu0 0.0
        %5211 = vmatmul.mubr.f32.gmra.mrb[0].mxu0 %v5055
        %v5212 = vpop.f32.mrb[0].mxu0
        %v5213 = vadd.f32 0.0, %v5212
        %v5214 = vpop.f32.mrb[0].mxu0
        %5215 = vmatprep.mubr.f32.mxu0 0.0
        %5216 = vmatmul.mubr.f32.gmra.mrb[0].mxu0 %v5057
        %v5217 = vpop.f32.mrb[0].mxu0
        %v5218 = vadd.f32 0.0, %v5217
        %v5219 = vpop.f32.mrb[0].mxu0
        %5220 = vmatprep.mubr.f32.mxu0 0.0
        %5221 = vmatmul.mubr.f32.gmra.mrb[0].mxu0 %v5059
        %v5222 = vpop.f32.mrb[0].mxu0
        %v5223 = vadd.f32 0.0, %v5222
        %v5224 = vpop.f32.mrb[0].mxu0
        %5225 = vmatprep.mubr.f32.mxu0 0.0
        %5226 = vmatmul.mubr.f32.gmra.mrb[0].mxu0 %v5061
        %v5227 = vpop.f32.mrb[0].mxu0
        %v5228 = vadd.f32 0.0, %v5227
        %v5229 = vpop.f32.mrb[0].mxu0
        %5230 = vmatprep.mubr.f32.mxu0 0.0
        %5231 = vmatmul.mubr.f32.gmra.mrb[0].mxu0 %v5063
        %v5232 = vpop.f32.mrb[0].mxu0
        %v5233 = vadd.f32 0.0, %v5232
        %v5234 = vpop.f32.mrb[0].mxu0
        %5235 = vmatprep.mubr.f32.mxu0 0.0
        %5236 = vmatmul.mubr.f32.gmra.mrb[0].mxu0 %v5065
        %v5237 = vpop.f32.mrb[0].mxu0
        %v5238 = vadd.f32 0.0, %v5237
        %v5239 = vpop.f32.mrb[0].mxu0
        %5240 = vmatprep.mubr.f32.mxu0 0.0
        %5241 = vmatmul.mubr.f32.gmra.mrb[0].mxu0 %v5067
        %v5242 = vpop.f32.mrb[0].mxu0
        %v5243 = vadd.f32 0.0, %v5242
        %v5244 = vpop.f32.mrb[0].mxu0
        %5245 = vmatprep.mubr.f32.mxu0 0.0
        %5246 = vmatmul.mubr.f32.gmra.mrb[0].mxu0 %v5069
        %v5247 = vpop.f32.mrb[0].mxu0
        %v5248 = vadd.f32 0.0, %v5247
        %v5249 = vpop.f32.mrb[0].mxu0
        %5250 = vmatprep.mubr.f32.mxu0 0.0
        %5251 = vmatmul.mubr.f32.gmra.mrb[0].mxu0 %v5071
        %v5252 = vpop.f32.mrb[0].mxu0
        %v5253 = vadd.f32 0.0, %v5252
        %v5254 = vpop.f32.mrb[0].mxu0
        %5255 = vmatprep.mubr.f32.mxu0 0.0
        %5256 = vmatmul.mubr.f32.gmra.mrb[0].mxu0 %v5073
        %v5257 = vpop.f32.mrb[0].mxu0
        %v5258 = vadd.f32 0.0, %v5257
        %v5259 = vpop.f32.mrb[0].mxu0
        %5260 = vmatprep.mubr.f32.mxu0 0.0
        %5261 = vmatmul.mubr.f32.gmra.mrb[0].mxu0 %v5075
        %v5262 = vpop.f32.mrb[0].mxu0
        %v5263 = vadd.f32 0.0, %v5262
        %v5264 = vpop.f32.mrb[0].mxu0
        %5265 = vmatprep.mubr.f32.mxu0 0.0
        %5266 = vmatmul.mubr.f32.gmra.mrb[0].mxu0 %v5077
        %v5267 = vpop.f32.mrb[0].mxu0
        %v5268 = vadd.f32 0.0, %v5267
        %v5269 = vpop.f32.mrb[0].mxu0
        %5270 = vmatprep.mubr.f32.mxu0 0.0
        %5271 = vmatmul.mubr.f32.gmra.mrb[0].mxu0 %v5079
        %v5272 = vpop.f32.mrb[0].mxu0
        %v5273 = vadd.f32 0.0, %v5272
        %v5274 = vpop.f32.mrb[0].mxu0
        %5275 = vmatprep.mubr.f32.mxu0 0.0
        %5276 = vmatmul.mubr.f32.gmra.mrb[0].mxu0 %v5081
        %v5277 = vpop.f32.mrb[0].mxu0
        %v5278 = vadd.f32 0.0, %v5277
        %v5279 = vpop.f32.mrb[0].mxu0
        %5280 = vmatprep.mubr.f32.mxu0 0.0
        %5281 = vmatmul.mubr.f32.gmra.mrb[0].mxu0 %v5083
        %v5282 = vpop.f32.mrb[0].mxu0
        %v5283 = vadd.f32 0.0, %v5282
        %v5284 = vpop.f32.mrb[0].mxu0
        %5285 = vmatprep.mubr.f32.mxu0 0.0
        %5286 = vmatmul.mubr.f32.gmra.mrb[0].mxu0 %v5085
        %v5287 = vpop.f32.mrb[0].mxu0
        %v5288 = vadd.f32 0.0, %v5287
        %v5289 = vpop.f32.mrb[0].mxu0
        %5290 = vmatprep.mubr.f32.mxu0 0.0
        %5291 = vmatmul.mubr.f32.gmra.mrb[0].mxu0 %v5087
        %v5292 = vpop.f32.mrb[0].mxu0
        %v5293 = vadd.f32 0.0, %v5292
        %v5294 = vpop.f32.mrb[0].mxu0
        %5295 = vmatprep.mubr.f32.mxu0 0.0
        %5296 = vmatmul.mubr.f32.gmra.mrb[0].mxu0 %v5089
        %v5297 = vpop.f32.mrb[0].mxu0
        %v5298 = vadd.f32 0.0, %v5297
        %v5299 = vpop.f32.mrb[0].mxu0
        %5300 = vmatprep.mubr.f32.mxu0 0.0
        %5301 = vmatmul.mubr.f32.gmra.mrb[0].mxu0 %v5091
        %v5302 = vpop.f32.mrb[0].mxu0
        %v5303 = vadd.f32 0.0, %v5302
        %v5304 = vpop.f32.mrb[0].mxu0
        %5305 = vmatprep.mubr.f32.mxu0 0.0
        %5306 = vmatmul.mubr.f32.gmra.mrb[0].mxu0 %v5093
        %v5307 = vpop.f32.mrb[0].mxu0
        %v5308 = vadd.f32 0.0, %v5307
        %v5309 = vpop.f32.mrb[0].mxu0
        %5310 = vmatprep.mubr.f32.mxu0 0.0
        %5311 = vmatmul.mubr.f32.gmra.mrb[0].mxu0 %v5095
        %v5312 = vpop.f32.mrb[0].mxu0
        %v5313 = vadd.f32 0.0, %v5312
        %v5314 = vpop.f32.mrb[0].mxu0
        %5315 = vmatprep.mubr.f32.mxu0 0.0
        %5316 = vmatmul.mubr.f32.gmra.mrb[0].mxu0 %v5097
        %v5317 = vpop.f32.mrb[0].mxu0
        %v5318 = vadd.f32 0.0, %v5317
        %v5319 = vpop.f32.mrb[0].mxu0
        %5320 = vmatprep.mubr.f32.mxu0 0.0
        %5321 = vmatmul.mubr.f32.gmra.mrb[0].mxu0 %v5099
        %v5322 = vpop.f32.mrb[0].mxu0
        %v5323 = vadd.f32 0.0, %v5322
        %v5324 = vpop.f32.mrb[0].mxu0
        %5325 = vdwg.mxu0
        %v5326 = vadd.f32 %v4798, %v5168
        %v5327 = vadd.f32 %v4803, %v5173
        %v5328 = vadd.f32 %v4808, %v5178
        %v5329 = vadd.f32 %v4813, %v5183
        %v5330 = vadd.f32 %v4818, %v5188
        %v5331 = vadd.f32 %v4823, %v5193
        %v5332 = vadd.f32 %v4828, %v5198
        %v5333 = vadd.f32 %v4833, %v5203
        %v5334 = vadd.f32 %v4838, %v5208
        %v5335 = vadd.f32 %v4843, %v5213
        %v5336 = vadd.f32 %v4848, %v5218
        %v5337 = vadd.f32 %v4853, %v5223
        %v5338 = vadd.f32 %v4858, %v5228
        %v5339 = vadd.f32 %v4863, %v5233
        %v5340 = vadd.f32 %v4868, %v5238
        %v5341 = vadd.f32 %v4873, %v5243
        %v5342 = vadd.f32 %v4878, %v5248
        %v5343 = vadd.f32 %v4883, %v5253
        %v5344 = vadd.f32 %v4888, %v5258
        %v5345 = vadd.f32 %v4893, %v5263
        %v5346 = vadd.f32 %v4898, %v5268
        %v5347 = vadd.f32 %v4903, %v5273
        %v5348 = vadd.f32 %v4908, %v5278
        %v5349 = vadd.f32 %v4913, %v5283
        %v5350 = vadd.f32 %v4918, %v5288
        %v5351 = vadd.f32 %v4923, %v5293
        %v5352 = vadd.f32 %v4928, %v5298
        %v5353 = vadd.f32 %v4933, %v5303
        %v5354 = vadd.f32 %v4938, %v5308
        %v5355 = vadd.f32 %v4943, %v5313
        %v5356 = vadd.f32 %v4948, %v5318
        %v5357 = vadd.f32 %v4953, %v5323
        %v5358 = vld [vmem:[%s4166] sm:$0xff]
        %v5359 = vld [vmem:[%s4166 + $0x8] sm:$0xff]
        %v5360 = vld [vmem:[%s4166 + $0x10] sm:$0x3]
        %v5361 = vld [vmem:[%s4166 + $0x18] sm:$0xff]
        %v5362 = vld [vmem:[%s4166 + $0x20] sm:$0xff]
        %v5363 = vld [vmem:[%s4166 + $0x28] sm:$0x3]
        %v5364 = vld [vmem:[%s4166 + $0x30] sm:$0xff]
        %v5365 = vld [vmem:[%s4166 + $0x38] sm:$0xff]
        %v5366 = vld [vmem:[%s4166 + $0x40] sm:$0x3]
        %v5367 = vld [vmem:[%s4166 + $0x48] sm:$0xff]
        %v5368 = vld [vmem:[%s4166 + $0x50] sm:$0xff]
        %v5369 = vld [vmem:[%s4166 + $0x58] sm:$0x3]
        %v5370 = vld [vmem:[%s4166 + $0x60] sm:$0xff]
        %v5371 = vld [vmem:[%s4166 + $0x68] sm:$0xff]
        %v5372 = vld [vmem:[%s4166 + $0x70] sm:$0x3]
        %v5373 = vld [vmem:[%s4166 + $0x78] sm:$0xff]
        %v5374 = vld [vmem:[%s4166 + $0x80] sm:$0xff]
        %v5375 = vld [vmem:[%s4166 + $0x88] sm:$0x3]
        %v5376 = vld [vmem:[%s4166 + $0x90] sm:$0xff]
        %v5377 = vld [vmem:[%s4166 + $0x98] sm:$0xff]
        %v5378 = vld [vmem:[%s4166 + $0xa0] sm:$0x3]
        %v5379 = vld [vmem:[%s4166 + $0xa8] sm:$0xff]
        %v5380 = vld [vmem:[%s4166 + $0xb0] sm:$0xff]
        %v5381 = vld [vmem:[%s4166 + $0xb8] sm:$0x3]
        %v5382 = vld [vmem:[%s4166 + $0xc0] sm:$0xff]
        %v5383 = vld [vmem:[%s4166 + $0xc8] sm:$0xff]
        %v5384 = vld [vmem:[%s4166 + $0xd0] sm:$0x3]
        %v5385 = vld [vmem:[%s4166 + $0xd8] sm:$0xff]
        %v5386 = vld [vmem:[%s4166 + $0xe0] sm:$0xff]
        %v5387 = vld [vmem:[%s4166 + $0xe8] sm:$0x3]
        %v5388 = vld [vmem:[%s4166 + $0xf0] sm:$0xff]
        %v5389 = vld [vmem:[%s4166 + $0xf8] sm:$0xff]
        %v5390 = vld [vmem:[%s4166 + $0x100] sm:$0x3]
        %v5391 = vld [vmem:[%s4166 + $0x108] sm:$0xff]
        %v5392 = vld [vmem:[%s4166 + $0x110] sm:$0xff]
        %v5393 = vld [vmem:[%s4166 + $0x118] sm:$0x3]
        %v5394 = vld [vmem:[%s4166 + $0x120] sm:$0xff]
        %v5395 = vld [vmem:[%s4166 + $0x128] sm:$0xff]
        %v5396 = vld [vmem:[%s4166 + $0x130] sm:$0x3]
        %v5397 = vld [vmem:[%s4166 + $0x138] sm:$0xff]
        %v5398 = vld [vmem:[%s4166 + $0x140] sm:$0xff]
        %v5399 = vld [vmem:[%s4166 + $0x148] sm:$0x3]
        %v5400 = vld [vmem:[%s4166 + $0x150] sm:$0xff]
        %v5401 = vld [vmem:[%s4166 + $0x158] sm:$0xff]
        %v5402 = vld [vmem:[%s4166 + $0x160] sm:$0x3]
        %v5403 = vld [vmem:[%s4166 + $0x168] sm:$0xff]
        %v5404 = vld [vmem:[%s4166 + $0x170] sm:$0xff]
        %v5405 = vld [vmem:[%s4166 + $0x178] sm:$0x3]
        %s5406 = scalar_lea.vmem %s3, 24
        %v5407 = vld [vmem:[%s5406] sm:$0xff]
        %v5409 = vsel %vm4167, %v5358, 0
        %v5412 = vsel %vm4167, %v5359, 0
        %v5415 = vsel %vm4167, %v5361, 0
        %v5418 = vsel %vm4167, %v5362, 0
        %v5421 = vsel %vm4167, %v5364, 0
        %v5424 = vsel %vm4167, %v5365, 0
        %v5427 = vsel %vm4167, %v5367, 0
        %v5430 = vsel %vm4167, %v5368, 0
        %v5433 = vsel %vm4167, %v5370, 0
        %v5436 = vsel %vm4167, %v5371, 0
        %v5439 = vsel %vm4167, %v5373, 0
        %v5442 = vsel %vm4167, %v5374, 0
        %v5445 = vsel %vm4167, %v5376, 0
        %v5448 = vsel %vm4167, %v5377, 0
        %v5451 = vsel %vm4167, %v5379, 0
        %v5454 = vsel %vm4167, %v5380, 0
        %v5457 = vsel %vm4167, %v5382, 0
        %v5460 = vsel %vm4167, %v5383, 0
        %v5463 = vsel %vm4167, %v5385, 0
        %v5466 = vsel %vm4167, %v5386, 0
        %v5469 = vsel %vm4167, %v5388, 0
        %v5472 = vsel %vm4167, %v5389, 0
        %v5475 = vsel %vm4167, %v5391, 0
        %v5478 = vsel %vm4167, %v5392, 0
        %v5481 = vsel %vm4167, %v5394, 0
        %v5484 = vsel %vm4167, %v5395, 0
        %v5487 = vsel %vm4167, %v5397, 0
        %v5490 = vsel %vm4167, %v5398, 0
        %v5493 = vsel %vm4167, %v5400, 0
        %v5496 = vsel %vm4167, %v5401, 0
        %v5499 = vsel %vm4167, %v5403, 0
        %v5502 = vsel %vm4167, %v5404, 0
        %5504 = vmatprep.subr.mxu0 0.0
        %5505 = vmatpush1.msra.mxu0 %v5407
        %5506 = vmatprep.subr.mxu0 0.0
        %5507 = vmatpush1.msra.mxu0 0.0
        %5508 = vmatprep.subr.mxu0 0.0
        %5509 = vmatpush1.msra.mxu0 0.0
        %5510 = vmatprep.subr.mxu0 0.0
        %5511 = vmatpush1.msra.mxu0 0.0
        %5512 = vmatprep.subr.mxu0 0.0
        %5513 = vmatpush1.msra.mxu0 0.0
        %5514 = vmatprep.subr.mxu0 0.0
        %5515 = vmatpush1.msra.mxu0 0.0
        %5516 = vmatprep.subr.mxu0 0.0
        %5517 = vmatpush1.msra.mxu0 0.0
        %5518 = vmatprep.subr.mxu0 0.0
        %5519 = vmatpush1.msra.mxu0 0.0
        %5520 = vmatprep.subr.mxu0 0.0
        %5521 = vmatpush1.msra.mxu0 0.0
        %5522 = vmatprep.subr.mxu0 0.0
        %5523 = vmatpush1.msra.mxu0 0.0
        %5524 = vmatprep.subr.mxu0 0.0
        %5525 = vmatpush1.msra.mxu0 0.0
        %5526 = vmatprep.subr.mxu0 0.0
        %5527 = vmatpush1.msra.mxu0 0.0
        %5528 = vmatprep.subr.mxu0 0.0
        %5529 = vmatpush1.msra.mxu0 0.0
        %5530 = vmatprep.subr.mxu0 0.0
        %5531 = vmatpush1.msra.mxu0 0.0
        %5532 = vmatprep.subr.mxu0 0.0
        %5533 = vmatpush1.msra.mxu0 0.0
        %5534 = vmatprep.subr.mxu0 0.0
        %5535 = vmatpush1.msra.mxu0 0.0
        %5536 = vmatprep.subr.mxu0 0.0
        %5537 = vmatpush1.msra.mxu0 0.0
        %5538 = vmatprep.subr.mxu0 0.0
        %5539 = vmatpush1.msra.mxu0 0.0
        %5540 = vmatprep.subr.mxu0 0.0
        %5541 = vmatpush1.msra.mxu0 0.0
        %5542 = vmatprep.subr.mxu0 0.0
        %5543 = vmatpush1.msra.mxu0 0.0
        %5544 = vmatprep.subr.mxu0 0.0
        %5545 = vmatpush1.msra.mxu0 0.0
        %5546 = vmatprep.subr.mxu0 0.0
        %5547 = vmatpush1.msra.mxu0 0.0
        %5548 = vmatprep.subr.mxu0 0.0
        %5549 = vmatpush1.msra.mxu0 0.0
        %5550 = vmatprep.subr.mxu0 0.0
        %5551 = vmatpush1.msra.mxu0 0.0
        %5552 = vmatprep.subr.mxu0 0.0
        %5553 = vmatpush1.msra.mxu0 0.0
        %5554 = vmatprep.subr.mxu0 0.0
        %5555 = vmatpush1.msra.mxu0 0.0
        %5556 = vmatprep.subr.mxu0 0.0
        %5557 = vmatpush1.msra.mxu0 0.0
        %5558 = vmatprep.subr.mxu0 0.0
        %5559 = vmatpush1.msra.mxu0 0.0
        %5560 = vmatprep.subr.mxu0 0.0
        %5561 = vmatpush1.msra.mxu0 0.0
        %5562 = vmatprep.subr.mxu0 0.0
        %5563 = vmatpush1.msra.mxu0 0.0
        %5564 = vmatprep.subr.mxu0 0.0
        %5565 = vmatpush1.msra.mxu0 0.0
        %5566 = vmatprep.subr.mxu0 0.0
        %5567 = vmatpush1.msra.mxu0 0.0
        %5568 = vmatprep.mubr.f32.mxu0 0.0
        %5569 = vmatmul.mubr.f32.gmra.mrb[0].mxu0 %v5409
        %v5570 = vpop.f32.mrb[0].mxu0
        %v5571 = vadd.f32 0.0, %v5570
        %v5572 = vpop.f32.mrb[0].mxu0
        %5573 = vmatprep.mubr.f32.mxu0 0.0
        %5574 = vmatmul.mubr.f32.gmra.mrb[0].mxu0 %v5412
        %v5575 = vpop.f32.mrb[0].mxu0
        %v5576 = vadd.f32 0.0, %v5575
        %v5577 = vpop.f32.mrb[0].mxu0
        %5578 = vmatprep.mubr.f32.mxu0 0.0
        %5579 = vmatmul.mubr.f32.gmra.mrb[0].mxu0 %v5415
        %v5580 = vpop.f32.mrb[0].mxu0
        %v5581 = vadd.f32 0.0, %v5580
        %v5582 = vpop.f32.mrb[0].mxu0
        %5583 = vmatprep.mubr.f32.mxu0 0.0
        %5584 = vmatmul.mubr.f32.gmra.mrb[0].mxu0 %v5418
        %v5585 = vpop.f32.mrb[0].mxu0
        %v5586 = vadd.f32 0.0, %v5585
        %v5587 = vpop.f32.mrb[0].mxu0
        %5588 = vmatprep.mubr.f32.mxu0 0.0
        %5589 = vmatmul.mubr.f32.gmra.mrb[0].mxu0 %v5421
        %v5590 = vpop.f32.mrb[0].mxu0
        %v5591 = vadd.f32 0.0, %v5590
        %v5592 = vpop.f32.mrb[0].mxu0
        %5593 = vmatprep.mubr.f32.mxu0 0.0
        %5594 = vmatmul.mubr.f32.gmra.mrb[0].mxu0 %v5424
        %v5595 = vpop.f32.mrb[0].mxu0
        %v5596 = vadd.f32 0.0, %v5595
        %v5597 = vpop.f32.mrb[0].mxu0
        %5598 = vmatprep.mubr.f32.mxu0 0.0
        %5599 = vmatmul.mubr.f32.gmra.mrb[0].mxu0 %v5427
        %v5600 = vpop.f32.mrb[0].mxu0
        %v5601 = vadd.f32 0.0, %v5600
        %v5602 = vpop.f32.mrb[0].mxu0
        %5603 = vmatprep.mubr.f32.mxu0 0.0
        %5604 = vmatmul.mubr.f32.gmra.mrb[0].mxu0 %v5430
        %v5605 = vpop.f32.mrb[0].mxu0
        %v5606 = vadd.f32 0.0, %v5605
        %v5607 = vpop.f32.mrb[0].mxu0
        %5608 = vmatprep.mubr.f32.mxu0 0.0
        %5609 = vmatmul.mubr.f32.gmra.mrb[0].mxu0 %v5433
        %v5610 = vpop.f32.mrb[0].mxu0
        %v5611 = vadd.f32 0.0, %v5610
        %v5612 = vpop.f32.mrb[0].mxu0
        %5613 = vmatprep.mubr.f32.mxu0 0.0
        %5614 = vmatmul.mubr.f32.gmra.mrb[0].mxu0 %v5436
        %v5615 = vpop.f32.mrb[0].mxu0
        %v5616 = vadd.f32 0.0, %v5615
        %v5617 = vpop.f32.mrb[0].mxu0
        %5618 = vmatprep.mubr.f32.mxu0 0.0
        %5619 = vmatmul.mubr.f32.gmra.mrb[0].mxu0 %v5439
        %v5620 = vpop.f32.mrb[0].mxu0
        %v5621 = vadd.f32 0.0, %v5620
        %v5622 = vpop.f32.mrb[0].mxu0
        %5623 = vmatprep.mubr.f32.mxu0 0.0
        %5624 = vmatmul.mubr.f32.gmra.mrb[0].mxu0 %v5442
        %v5625 = vpop.f32.mrb[0].mxu0
        %v5626 = vadd.f32 0.0, %v5625
        %v5627 = vpop.f32.mrb[0].mxu0
        %5628 = vmatprep.mubr.f32.mxu0 0.0
        %5629 = vmatmul.mubr.f32.gmra.mrb[0].mxu0 %v5445
        %v5630 = vpop.f32.mrb[0].mxu0
        %v5631 = vadd.f32 0.0, %v5630
        %v5632 = vpop.f32.mrb[0].mxu0
        %5633 = vmatprep.mubr.f32.mxu0 0.0
        %5634 = vmatmul.mubr.f32.gmra.mrb[0].mxu0 %v5448
        %v5635 = vpop.f32.mrb[0].mxu0
        %v5636 = vadd.f32 0.0, %v5635
        %v5637 = vpop.f32.mrb[0].mxu0
        %5638 = vmatprep.mubr.f32.mxu0 0.0
        %5639 = vmatmul.mubr.f32.gmra.mrb[0].mxu0 %v5451
        %v5640 = vpop.f32.mrb[0].mxu0
        %v5641 = vadd.f32 0.0, %v5640
        %v5642 = vpop.f32.mrb[0].mxu0
        %5643 = vmatprep.mubr.f32.mxu0 0.0
        %5644 = vmatmul.mubr.f32.gmra.mrb[0].mxu0 %v5454
        %v5645 = vpop.f32.mrb[0].mxu0
        %v5646 = vadd.f32 0.0, %v5645
        %v5647 = vpop.f32.mrb[0].mxu0
        %5648 = vmatprep.mubr.f32.mxu0 0.0
        %5649 = vmatmul.mubr.f32.gmra.mrb[0].mxu0 %v5457
        %v5650 = vpop.f32.mrb[0].mxu0
        %v5651 = vadd.f32 0.0, %v5650
        %v5652 = vpop.f32.mrb[0].mxu0
        %5653 = vmatprep.mubr.f32.mxu0 0.0
        %5654 = vmatmul.mubr.f32.gmra.mrb[0].mxu0 %v5460
        %v5655 = vpop.f32.mrb[0].mxu0
        %v5656 = vadd.f32 0.0, %v5655
        %v5657 = vpop.f32.mrb[0].mxu0
        %5658 = vmatprep.mubr.f32.mxu0 0.0
        %5659 = vmatmul.mubr.f32.gmra.mrb[0].mxu0 %v5463
        %v5660 = vpop.f32.mrb[0].mxu0
        %v5661 = vadd.f32 0.0, %v5660
        %v5662 = vpop.f32.mrb[0].mxu0
        %5663 = vmatprep.mubr.f32.mxu0 0.0
        %5664 = vmatmul.mubr.f32.gmra.mrb[0].mxu0 %v5466
        %v5665 = vpop.f32.mrb[0].mxu0
        %v5666 = vadd.f32 0.0, %v5665
        %v5667 = vpop.f32.mrb[0].mxu0
        %5668 = vmatprep.mubr.f32.mxu0 0.0
        %5669 = vmatmul.mubr.f32.gmra.mrb[0].mxu0 %v5469
        %v5670 = vpop.f32.mrb[0].mxu0
        %v5671 = vadd.f32 0.0, %v5670
        %v5672 = vpop.f32.mrb[0].mxu0
        %5673 = vmatprep.mubr.f32.mxu0 0.0
        %5674 = vmatmul.mubr.f32.gmra.mrb[0].mxu0 %v5472
        %v5675 = vpop.f32.mrb[0].mxu0
        %v5676 = vadd.f32 0.0, %v5675
        %v5677 = vpop.f32.mrb[0].mxu0
        %5678 = vmatprep.mubr.f32.mxu0 0.0
        %5679 = vmatmul.mubr.f32.gmra.mrb[0].mxu0 %v5475
        %v5680 = vpop.f32.mrb[0].mxu0
        %v5681 = vadd.f32 0.0, %v5680
        %v5682 = vpop.f32.mrb[0].mxu0
        %5683 = vmatprep.mubr.f32.mxu0 0.0
        %5684 = vmatmul.mubr.f32.gmra.mrb[0].mxu0 %v5478
        %v5685 = vpop.f32.mrb[0].mxu0
        %v5686 = vadd.f32 0.0, %v5685
        %v5687 = vpop.f32.mrb[0].mxu0
        %5688 = vmatprep.mubr.f32.mxu0 0.0
        %5689 = vmatmul.mubr.f32.gmra.mrb[0].mxu0 %v5481
        %v5690 = vpop.f32.mrb[0].mxu0
        %v5691 = vadd.f32 0.0, %v5690
        %v5692 = vpop.f32.mrb[0].mxu0
        %5693 = vmatprep.mubr.f32.mxu0 0.0
        %5694 = vmatmul.mubr.f32.gmra.mrb[0].mxu0 %v5484
        %v5695 = vpop.f32.mrb[0].mxu0
        %v5696 = vadd.f32 0.0, %v5695
        %v5697 = vpop.f32.mrb[0].mxu0
        %5698 = vmatprep.mubr.f32.mxu0 0.0
        %5699 = vmatmul.mubr.f32.gmra.mrb[0].mxu0 %v5487
        %v5700 = vpop.f32.mrb[0].mxu0
        %v5701 = vadd.f32 0.0, %v5700
        %v5702 = vpop.f32.mrb[0].mxu0
        %5703 = vmatprep.mubr.f32.mxu0 0.0
        %5704 = vmatmul.mubr.f32.gmra.mrb[0].mxu0 %v5490
        %v5705 = vpop.f32.mrb[0].mxu0
        %v5706 = vadd.f32 0.0, %v5705
        %v5707 = vpop.f32.mrb[0].mxu0
        %5708 = vmatprep.mubr.f32.mxu0 0.0
        %5709 = vmatmul.mubr.f32.gmra.mrb[0].mxu0 %v5493
        %v5710 = vpop.f32.mrb[0].mxu0
        %v5711 = vadd.f32 0.0, %v5710
        %v5712 = vpop.f32.mrb[0].mxu0
        %5713 = vmatprep.mubr.f32.mxu0 0.0
        %5714 = vmatmul.mubr.f32.gmra.mrb[0].mxu0 %v5496
        %v5715 = vpop.f32.mrb[0].mxu0
        %v5716 = vadd.f32 0.0, %v5715
        %v5717 = vpop.f32.mrb[0].mxu0
        %5718 = vmatprep.mubr.f32.mxu0 0.0
        %5719 = vmatmul.mubr.f32.gmra.mrb[0].mxu0 %v5499
        %v5720 = vpop.f32.mrb[0].mxu0
        %v5721 = vadd.f32 0.0, %v5720
        %v5722 = vpop.f32.mrb[0].mxu0
        %5723 = vmatprep.mubr.f32.mxu0 0.0
        %5724 = vmatmul.mubr.f32.gmra.mrb[0].mxu0 %v5502
        %v5725 = vpop.f32.mrb[0].mxu0
        %v5726 = vadd.f32 0.0, %v5725
        %v5727 = vpop.f32.mrb[0].mxu0
        %5728 = vdwg.mxu0
        %v5729 = vadd.f32 %v5326, %v5571
        %v5730 = vadd.f32 %v5327, %v5576
        %v5731 = vadd.f32 %v5328, %v5581
        %v5732 = vadd.f32 %v5329, %v5586
        %v5733 = vadd.f32 %v5330, %v5591
        %v5734 = vadd.f32 %v5331, %v5596
        %v5735 = vadd.f32 %v5332, %v5601
        %v5736 = vadd.f32 %v5333, %v5606
        %v5737 = vadd.f32 %v5334, %v5611
        %v5738 = vadd.f32 %v5335, %v5616
        %v5739 = vadd.f32 %v5336, %v5621
        %v5740 = vadd.f32 %v5337, %v5626
        %v5741 = vadd.f32 %v5338, %v5631
        %v5742 = vadd.f32 %v5339, %v5636
        %v5743 = vadd.f32 %v5340, %v5641
        %v5744 = vadd.f32 %v5341, %v5646
        %v5745 = vadd.f32 %v5342, %v5651
        %v5746 = vadd.f32 %v5343, %v5656
        %v5747 = vadd.f32 %v5344, %v5661
        %v5748 = vadd.f32 %v5345, %v5666
        %v5749 = vadd.f32 %v5346, %v5671
        %v5750 = vadd.f32 %v5347, %v5676
        %v5751 = vadd.f32 %v5348, %v5681
        %v5752 = vadd.f32 %v5349, %v5686
        %v5753 = vadd.f32 %v5350, %v5691
        %v5754 = vadd.f32 %v5351, %v5696
        %v5755 = vadd.f32 %v5352, %v5701
        %v5756 = vadd.f32 %v5353, %v5706
        %v5757 = vadd.f32 %v5354, %v5711
        %v5758 = vadd.f32 %v5355, %v5716
        %v5759 = vadd.f32 %v5356, %v5721
        %v5760 = vadd.f32 %v5357, %v5726
        %v5777 = vrot.slane %v5358, 1
        %v5778 = vrot.slane %v5359, 1
        %v5779 = vsel %vm558, %v5777, %v5778
        %v5780 = vrot.slane %v5360, 1
        %v5781 = vsel %vm558, %v5778, %v5780
        %v5782 = vrot.slane %v5361, 1
        %v5783 = vrot.slane %v5362, 1
        %v5784 = vsel %vm558, %v5782, %v5783
        %v5785 = vrot.slane %v5363, 1
        %v5786 = vsel %vm558, %v5783, %v5785
        %v5787 = vrot.slane %v5364, 1
        %v5788 = vrot.slane %v5365, 1
        %v5789 = vsel %vm558, %v5787, %v5788
        %v5790 = vrot.slane %v5366, 1
        %v5791 = vsel %vm558, %v5788, %v5790
        %v5792 = vrot.slane %v5367, 1
        %v5793 = vrot.slane %v5368, 1
        %v5794 = vsel %vm558, %v5792, %v5793
        %v5795 = vrot.slane %v5369, 1
        %v5796 = vsel %vm558, %v5793, %v5795
        %v5797 = vrot.slane %v5370, 1
        %v5798 = vrot.slane %v5371, 1
        %v5799 = vsel %vm558, %v5797, %v5798
        %v5800 = vrot.slane %v5372, 1
        %v5801 = vsel %vm558, %v5798, %v5800
        %v5802 = vrot.slane %v5373, 1
        %v5803 = vrot.slane %v5374, 1
        %v5804 = vsel %vm558, %v5802, %v5803
        %v5805 = vrot.slane %v5375, 1
        %v5806 = vsel %vm558, %v5803, %v5805
        %v5807 = vrot.slane %v5376, 1
        %v5808 = vrot.slane %v5377, 1
        %v5809 = vsel %vm558, %v5807, %v5808
        %v5810 = vrot.slane %v5378, 1
        %v5811 = vsel %vm558, %v5808, %v5810
        %v5812 = vrot.slane %v5379, 1
        %v5813 = vrot.slane %v5380, 1
        %v5814 = vsel %vm558, %v5812, %v5813
        %v5815 = vrot.slane %v5381, 1
        %v5816 = vsel %vm558, %v5813, %v5815
        %v5817 = vrot.slane %v5382, 1
        %v5818 = vrot.slane %v5383, 1
        %v5819 = vsel %vm558, %v5817, %v5818
        %v5820 = vrot.slane %v5384, 1
        %v5821 = vsel %vm558, %v5818, %v5820
        %v5822 = vrot.slane %v5385, 1
        %v5823 = vrot.slane %v5386, 1
        %v5824 = vsel %vm558, %v5822, %v5823
        %v5825 = vrot.slane %v5387, 1
        %v5826 = vsel %vm558, %v5823, %v5825
        %v5827 = vrot.slane %v5388, 1
        %v5828 = vrot.slane %v5389, 1
        %v5829 = vsel %vm558, %v5827, %v5828
        %v5830 = vrot.slane %v5390, 1
        %v5831 = vsel %vm558, %v5828, %v5830
        %v5832 = vrot.slane %v5391, 1
        %v5833 = vrot.slane %v5392, 1
        %v5834 = vsel %vm558, %v5832, %v5833
        %v5835 = vrot.slane %v5393, 1
        %v5836 = vsel %vm558, %v5833, %v5835
        %v5837 = vrot.slane %v5394, 1
        %v5838 = vrot.slane %v5395, 1
        %v5839 = vsel %vm558, %v5837, %v5838
        %v5840 = vrot.slane %v5396, 1
        %v5841 = vsel %vm558, %v5838, %v5840
        %v5842 = vrot.slane %v5397, 1
        %v5843 = vrot.slane %v5398, 1
        %v5844 = vsel %vm558, %v5842, %v5843
        %v5845 = vrot.slane %v5399, 1
        %v5846 = vsel %vm558, %v5843, %v5845
        %v5847 = vrot.slane %v5400, 1
        %v5848 = vrot.slane %v5401, 1
        %v5849 = vsel %vm558, %v5847, %v5848
        %v5850 = vrot.slane %v5402, 1
        %v5851 = vsel %vm558, %v5848, %v5850
        %v5852 = vrot.slane %v5403, 1
        %v5853 = vrot.slane %v5404, 1
        %v5854 = vsel %vm558, %v5852, %v5853
        %v5855 = vrot.slane %v5405, 1
        %v5856 = vsel %vm558, %v5853, %v5855
        %v5857 = vld [vmem:[%s5406 + $0x8] sm:$0xff]
        %v5858 = vsel %vm4167, %v5779, 0
        %v5860 = vsel %vm4167, %v5781, 0
        %v5862 = vsel %vm4167, %v5784, 0
        %v5864 = vsel %vm4167, %v5786, 0
        %v5866 = vsel %vm4167, %v5789, 0
        %v5868 = vsel %vm4167, %v5791, 0
        %v5870 = vsel %vm4167, %v5794, 0
        %v5872 = vsel %vm4167, %v5796, 0
        %v5874 = vsel %vm4167, %v5799, 0
        %v5876 = vsel %vm4167, %v5801, 0
        %v5878 = vsel %vm4167, %v5804, 0
        %v5880 = vsel %vm4167, %v5806, 0
        %v5882 = vsel %vm4167, %v5809, 0
        %v5884 = vsel %vm4167, %v5811, 0
        %v5886 = vsel %vm4167, %v5814, 0
        %v5888 = vsel %vm4167, %v5816, 0
        %v5890 = vsel %vm4167, %v5819, 0
        %v5892 = vsel %vm4167, %v5821, 0
        %v5894 = vsel %vm4167, %v5824, 0
        %v5896 = vsel %vm4167, %v5826, 0
        %v5898 = vsel %vm4167, %v5829, 0
        %v5900 = vsel %vm4167, %v5831, 0
        %v5902 = vsel %vm4167, %v5834, 0
        %v5904 = vsel %vm4167, %v5836, 0
        %v5906 = vsel %vm4167, %v5839, 0
        %v5908 = vsel %vm4167, %v5841, 0
        %v5910 = vsel %vm4167, %v5844, 0
        %v5912 = vsel %vm4167, %v5846, 0
        %v5914 = vsel %vm4167, %v5849, 0
        %v5916 = vsel %vm4167, %v5851, 0
        %v5918 = vsel %vm4167, %v5854, 0
        %v5920 = vsel %vm4167, %v5856, 0
        %5922 = vmatprep.subr.mxu0 0.0
        %5923 = vmatpush1.msra.mxu0 %v5857
        %5924 = vmatprep.subr.mxu0 0.0
        %5925 = vmatpush1.msra.mxu0 0.0
        %5926 = vmatprep.subr.mxu0 0.0
        %5927 = vmatpush1.msra.mxu0 0.0
        %5928 = vmatprep.subr.mxu0 0.0
        %5929 = vmatpush1.msra.mxu0 0.0
        %5930 = vmatprep.subr.mxu0 0.0
        %5931 = vmatpush1.msra.mxu0 0.0
        %5932 = vmatprep.subr.mxu0 0.0
        %5933 = vmatpush1.msra.mxu0 0.0
        %5934 = vmatprep.subr.mxu0 0.0
        %5935 = vmatpush1.msra.mxu0 0.0
        %5936 = vmatprep.subr.mxu0 0.0
        %5937 = vmatpush1.msra.mxu0 0.0
        %5938 = vmatprep.subr.mxu0 0.0
        %5939 = vmatpush1.msra.mxu0 0.0
        %5940 = vmatprep.subr.mxu0 0.0
        %5941 = vmatpush1.msra.mxu0 0.0
        %5942 = vmatprep.subr.mxu0 0.0
        %5943 = vmatpush1.msra.mxu0 0.0
        %5944 = vmatprep.subr.mxu0 0.0
        %5945 = vmatpush1.msra.mxu0 0.0
        %5946 = vmatprep.subr.mxu0 0.0
        %5947 = vmatpush1.msra.mxu0 0.0
        %5948 = vmatprep.subr.mxu0 0.0
        %5949 = vmatpush1.msra.mxu0 0.0
        %5950 = vmatprep.subr.mxu0 0.0
        %5951 = vmatpush1.msra.mxu0 0.0
        %5952 = vmatprep.subr.mxu0 0.0
        %5953 = vmatpush1.msra.mxu0 0.0
        %5954 = vmatprep.subr.mxu0 0.0
        %5955 = vmatpush1.msra.mxu0 0.0
        %5956 = vmatprep.subr.mxu0 0.0
        %5957 = vmatpush1.msra.mxu0 0.0
        %5958 = vmatprep.subr.mxu0 0.0
        %5959 = vmatpush1.msra.mxu0 0.0
        %5960 = vmatprep.subr.mxu0 0.0
        %5961 = vmatpush1.msra.mxu0 0.0
        %5962 = vmatprep.subr.mxu0 0.0
        %5963 = vmatpush1.msra.mxu0 0.0
        %5964 = vmatprep.subr.mxu0 0.0
        %5965 = vmatpush1.msra.mxu0 0.0
        %5966 = vmatprep.subr.mxu0 0.0
        %5967 = vmatpush1.msra.mxu0 0.0
        %5968 = vmatprep.subr.mxu0 0.0
        %5969 = vmatpush1.msra.mxu0 0.0
        %5970 = vmatprep.subr.mxu0 0.0
        %5971 = vmatpush1.msra.mxu0 0.0
        %5972 = vmatprep.subr.mxu0 0.0
        %5973 = vmatpush1.msra.mxu0 0.0
        %5974 = vmatprep.subr.mxu0 0.0
        %5975 = vmatpush1.msra.mxu0 0.0
        %5976 = vmatprep.subr.mxu0 0.0
        %5977 = vmatpush1.msra.mxu0 0.0
        %5978 = vmatprep.subr.mxu0 0.0
        %5979 = vmatpush1.msra.mxu0 0.0
        %5980 = vmatprep.subr.mxu0 0.0
        %5981 = vmatpush1.msra.mxu0 0.0
        %5982 = vmatprep.subr.mxu0 0.0
        %5983 = vmatpush1.msra.mxu0 0.0
        %5984 = vmatprep.subr.mxu0 0.0
        %5985 = vmatpush1.msra.mxu0 0.0
        %5986 = vmatprep.mubr.f32.mxu0 0.0
        %5987 = vmatmul.mubr.f32.gmra.mrb[0].mxu0 %v5858
        %v5988 = vpop.f32.mrb[0].mxu0
        %v5989 = vadd.f32 0.0, %v5988
        %v5990 = vpop.f32.mrb[0].mxu0
        %5991 = vmatprep.mubr.f32.mxu0 0.0
        %5992 = vmatmul.mubr.f32.gmra.mrb[0].mxu0 %v5860
        %v5993 = vpop.f32.mrb[0].mxu0
        %v5994 = vadd.f32 0.0, %v5993
        %v5995 = vpop.f32.mrb[0].mxu0
        %5996 = vmatprep.mubr.f32.mxu0 0.0
        %5997 = vmatmul.mubr.f32.gmra.mrb[0].mxu0 %v5862
        %v5998 = vpop.f32.mrb[0].mxu0
        %v5999 = vadd.f32 0.0, %v5998
        %v6000 = vpop.f32.mrb[0].mxu0
        %6001 = vmatprep.mubr.f32.mxu0 0.0
        %6002 = vmatmul.mubr.f32.gmra.mrb[0].mxu0 %v5864
        %v6003 = vpop.f32.mrb[0].mxu0
        %v6004 = vadd.f32 0.0, %v6003
        %v6005 = vpop.f32.mrb[0].mxu0
        %6006 = vmatprep.mubr.f32.mxu0 0.0
        %6007 = vmatmul.mubr.f32.gmra.mrb[0].mxu0 %v5866
        %v6008 = vpop.f32.mrb[0].mxu0
        %v6009 = vadd.f32 0.0, %v6008
        %v6010 = vpop.f32.mrb[0].mxu0
        %6011 = vmatprep.mubr.f32.mxu0 0.0
        %6012 = vmatmul.mubr.f32.gmra.mrb[0].mxu0 %v5868
        %v6013 = vpop.f32.mrb[0].mxu0
        %v6014 = vadd.f32 0.0, %v6013
        %v6015 = vpop.f32.mrb[0].mxu0
        %6016 = vmatprep.mubr.f32.mxu0 0.0
        %6017 = vmatmul.mubr.f32.gmra.mrb[0].mxu0 %v5870
        %v6018 = vpop.f32.mrb[0].mxu0
        %v6019 = vadd.f32 0.0, %v6018
        %v6020 = vpop.f32.mrb[0].mxu0
        %6021 = vmatprep.mubr.f32.mxu0 0.0
        %6022 = vmatmul.mubr.f32.gmra.mrb[0].mxu0 %v5872
        %v6023 = vpop.f32.mrb[0].mxu0
        %v6024 = vadd.f32 0.0, %v6023
        %v6025 = vpop.f32.mrb[0].mxu0
        %6026 = vmatprep.mubr.f32.mxu0 0.0
        %6027 = vmatmul.mubr.f32.gmra.mrb[0].mxu0 %v5874
        %v6028 = vpop.f32.mrb[0].mxu0
        %v6029 = vadd.f32 0.0, %v6028
        %v6030 = vpop.f32.mrb[0].mxu0
        %6031 = vmatprep.mubr.f32.mxu0 0.0
        %6032 = vmatmul.mubr.f32.gmra.mrb[0].mxu0 %v5876
        %v6033 = vpop.f32.mrb[0].mxu0
        %v6034 = vadd.f32 0.0, %v6033
        %v6035 = vpop.f32.mrb[0].mxu0
        %6036 = vmatprep.mubr.f32.mxu0 0.0
        %6037 = vmatmul.mubr.f32.gmra.mrb[0].mxu0 %v5878
        %v6038 = vpop.f32.mrb[0].mxu0
        %v6039 = vadd.f32 0.0, %v6038
        %v6040 = vpop.f32.mrb[0].mxu0
        %6041 = vmatprep.mubr.f32.mxu0 0.0
        %6042 = vmatmul.mubr.f32.gmra.mrb[0].mxu0 %v5880
        %v6043 = vpop.f32.mrb[0].mxu0
        %v6044 = vadd.f32 0.0, %v6043
        %v6045 = vpop.f32.mrb[0].mxu0
        %6046 = vmatprep.mubr.f32.mxu0 0.0
        %6047 = vmatmul.mubr.f32.gmra.mrb[0].mxu0 %v5882
        %v6048 = vpop.f32.mrb[0].mxu0
        %v6049 = vadd.f32 0.0, %v6048
        %v6050 = vpop.f32.mrb[0].mxu0
        %6051 = vmatprep.mubr.f32.mxu0 0.0
        %6052 = vmatmul.mubr.f32.gmra.mrb[0].mxu0 %v5884
        %v6053 = vpop.f32.mrb[0].mxu0
        %v6054 = vadd.f32 0.0, %v6053
        %v6055 = vpop.f32.mrb[0].mxu0
        %6056 = vmatprep.mubr.f32.mxu0 0.0
        %6057 = vmatmul.mubr.f32.gmra.mrb[0].mxu0 %v5886
        %v6058 = vpop.f32.mrb[0].mxu0
        %v6059 = vadd.f32 0.0, %v6058
        %v6060 = vpop.f32.mrb[0].mxu0
        %6061 = vmatprep.mubr.f32.mxu0 0.0
        %6062 = vmatmul.mubr.f32.gmra.mrb[0].mxu0 %v5888
        %v6063 = vpop.f32.mrb[0].mxu0
        %v6064 = vadd.f32 0.0, %v6063
        %v6065 = vpop.f32.mrb[0].mxu0
        %6066 = vmatprep.mubr.f32.mxu0 0.0
        %6067 = vmatmul.mubr.f32.gmra.mrb[0].mxu0 %v5890
        %v6068 = vpop.f32.mrb[0].mxu0
        %v6069 = vadd.f32 0.0, %v6068
        %v6070 = vpop.f32.mrb[0].mxu0
        %6071 = vmatprep.mubr.f32.mxu0 0.0
        %6072 = vmatmul.mubr.f32.gmra.mrb[0].mxu0 %v5892
        %v6073 = vpop.f32.mrb[0].mxu0
        %v6074 = vadd.f32 0.0, %v6073
        %v6075 = vpop.f32.mrb[0].mxu0
        %6076 = vmatprep.mubr.f32.mxu0 0.0
        %6077 = vmatmul.mubr.f32.gmra.mrb[0].mxu0 %v5894
        %v6078 = vpop.f32.mrb[0].mxu0
        %v6079 = vadd.f32 0.0, %v6078
        %v6080 = vpop.f32.mrb[0].mxu0
        %6081 = vmatprep.mubr.f32.mxu0 0.0
        %6082 = vmatmul.mubr.f32.gmra.mrb[0].mxu0 %v5896
        %v6083 = vpop.f32.mrb[0].mxu0
        %v6084 = vadd.f32 0.0, %v6083
        %v6085 = vpop.f32.mrb[0].mxu0
        %6086 = vmatprep.mubr.f32.mxu0 0.0
        %6087 = vmatmul.mubr.f32.gmra.mrb[0].mxu0 %v5898
        %v6088 = vpop.f32.mrb[0].mxu0
        %v6089 = vadd.f32 0.0, %v6088
        %v6090 = vpop.f32.mrb[0].mxu0
        %6091 = vmatprep.mubr.f32.mxu0 0.0
        %6092 = vmatmul.mubr.f32.gmra.mrb[0].mxu0 %v5900
        %v6093 = vpop.f32.mrb[0].mxu0
        %v6094 = vadd.f32 0.0, %v6093
        %v6095 = vpop.f32.mrb[0].mxu0
        %6096 = vmatprep.mubr.f32.mxu0 0.0
        %6097 = vmatmul.mubr.f32.gmra.mrb[0].mxu0 %v5902
        %v6098 = vpop.f32.mrb[0].mxu0
        %v6099 = vadd.f32 0.0, %v6098
        %v6100 = vpop.f32.mrb[0].mxu0
        %6101 = vmatprep.mubr.f32.mxu0 0.0
        %6102 = vmatmul.mubr.f32.gmra.mrb[0].mxu0 %v5904
        %v6103 = vpop.f32.mrb[0].mxu0
        %v6104 = vadd.f32 0.0, %v6103
        %v6105 = vpop.f32.mrb[0].mxu0
        %6106 = vmatprep.mubr.f32.mxu0 0.0
        %6107 = vmatmul.mubr.f32.gmra.mrb[0].mxu0 %v5906
        %v6108 = vpop.f32.mrb[0].mxu0
        %v6109 = vadd.f32 0.0, %v6108
        %v6110 = vpop.f32.mrb[0].mxu0
        %6111 = vmatprep.mubr.f32.mxu0 0.0
        %6112 = vmatmul.mubr.f32.gmra.mrb[0].mxu0 %v5908
        %v6113 = vpop.f32.mrb[0].mxu0
        %v6114 = vadd.f32 0.0, %v6113
        %v6115 = vpop.f32.mrb[0].mxu0
        %6116 = vmatprep.mubr.f32.mxu0 0.0
        %6117 = vmatmul.mubr.f32.gmra.mrb[0].mxu0 %v5910
        %v6118 = vpop.f32.mrb[0].mxu0
        %v6119 = vadd.f32 0.0, %v6118
        %v6120 = vpop.f32.mrb[0].mxu0
        %6121 = vmatprep.mubr.f32.mxu0 0.0
        %6122 = vmatmul.mubr.f32.gmra.mrb[0].mxu0 %v5912
        %v6123 = vpop.f32.mrb[0].mxu0
        %v6124 = vadd.f32 0.0, %v6123
        %v6125 = vpop.f32.mrb[0].mxu0
        %6126 = vmatprep.mubr.f32.mxu0 0.0
        %6127 = vmatmul.mubr.f32.gmra.mrb[0].mxu0 %v5914
        %v6128 = vpop.f32.mrb[0].mxu0
        %v6129 = vadd.f32 0.0, %v6128
        %v6130 = vpop.f32.mrb[0].mxu0
        %6131 = vmatprep.mubr.f32.mxu0 0.0
        %6132 = vmatmul.mubr.f32.gmra.mrb[0].mxu0 %v5916
        %v6133 = vpop.f32.mrb[0].mxu0
        %v6134 = vadd.f32 0.0, %v6133
        %v6135 = vpop.f32.mrb[0].mxu0
        %6136 = vmatprep.mubr.f32.mxu0 0.0
        %6137 = vmatmul.mubr.f32.gmra.mrb[0].mxu0 %v5918
        %v6138 = vpop.f32.mrb[0].mxu0
        %v6139 = vadd.f32 0.0, %v6138
        %v6140 = vpop.f32.mrb[0].mxu0
        %6141 = vmatprep.mubr.f32.mxu0 0.0
        %6142 = vmatmul.mubr.f32.gmra.mrb[0].mxu0 %v5920
        %v6143 = vpop.f32.mrb[0].mxu0
        %v6144 = vadd.f32 0.0, %v6143
        %v6145 = vpop.f32.mrb[0].mxu0
        %6146 = vdwg.mxu0
        %v6147 = vadd.f32 %v5729, %v5989
        %v6148 = vadd.f32 %v5730, %v5994
        %v6149 = vadd.f32 %v5731, %v5999
        %v6150 = vadd.f32 %v5732, %v6004
        %v6151 = vadd.f32 %v5733, %v6009
        %v6152 = vadd.f32 %v5734, %v6014
        %v6153 = vadd.f32 %v5735, %v6019
        %v6154 = vadd.f32 %v5736, %v6024
        %v6155 = vadd.f32 %v5737, %v6029
        %v6156 = vadd.f32 %v5738, %v6034
        %v6157 = vadd.f32 %v5739, %v6039
        %v6158 = vadd.f32 %v5740, %v6044
        %v6159 = vadd.f32 %v5741, %v6049
        %v6160 = vadd.f32 %v5742, %v6054
        %v6161 = vadd.f32 %v5743, %v6059
        %v6162 = vadd.f32 %v5744, %v6064
        %v6163 = vadd.f32 %v5745, %v6069
        %v6164 = vadd.f32 %v5746, %v6074
        %v6165 = vadd.f32 %v5747, %v6079
        %v6166 = vadd.f32 %v5748, %v6084
        %v6167 = vadd.f32 %v5749, %v6089
        %v6168 = vadd.f32 %v5750, %v6094
        %v6169 = vadd.f32 %v5751, %v6099
        %v6170 = vadd.f32 %v5752, %v6104
        %v6171 = vadd.f32 %v5753, %v6109
        %v6172 = vadd.f32 %v5754, %v6114
        %v6173 = vadd.f32 %v5755, %v6119
        %v6174 = vadd.f32 %v5756, %v6124
        %v6175 = vadd.f32 %v5757, %v6129
        %v6176 = vadd.f32 %v5758, %v6134
        %v6177 = vadd.f32 %v5759, %v6139
        %v6178 = vadd.f32 %v5760, %v6144
        %v6179 = vrot.slane %v5358, 2
        %v6180 = vrot.slane %v5359, 2
        %v6181 = vsel %vm1225, %v6179, %v6180
        %v6182 = vrot.slane %v5360, 2
        %v6183 = vsel %vm1225, %v6180, %v6182
        %v6184 = vrot.slane %v5361, 2
        %v6185 = vrot.slane %v5362, 2
        %v6186 = vsel %vm1225, %v6184, %v6185
        %v6187 = vrot.slane %v5363, 2
        %v6188 = vsel %vm1225, %v6185, %v6187
        %v6189 = vrot.slane %v5364, 2
        %v6190 = vrot.slane %v5365, 2
        %v6191 = vsel %vm1225, %v6189, %v6190
        %v6192 = vrot.slane %v5366, 2
        %v6193 = vsel %vm1225, %v6190, %v6192
        %v6194 = vrot.slane %v5367, 2
        %v6195 = vrot.slane %v5368, 2
        %v6196 = vsel %vm1225, %v6194, %v6195
        %v6197 = vrot.slane %v5369, 2
        %v6198 = vsel %vm1225, %v6195, %v6197
        %v6199 = vrot.slane %v5370, 2
        %v6200 = vrot.slane %v5371, 2
        %v6201 = vsel %vm1225, %v6199, %v6200
        %v6202 = vrot.slane %v5372, 2
        %v6203 = vsel %vm1225, %v6200, %v6202
        %v6204 = vrot.slane %v5373, 2
        %v6205 = vrot.slane %v5374, 2
        %v6206 = vsel %vm1225, %v6204, %v6205
        %v6207 = vrot.slane %v5375, 2
        %v6208 = vsel %vm1225, %v6205, %v6207
        %v6209 = vrot.slane %v5376, 2
        %v6210 = vrot.slane %v5377, 2
        %v6211 = vsel %vm1225, %v6209, %v6210
        %v6212 = vrot.slane %v5378, 2
        %v6213 = vsel %vm1225, %v6210, %v6212
        %v6214 = vrot.slane %v5379, 2
        %v6215 = vrot.slane %v5380, 2
        %v6216 = vsel %vm1225, %v6214, %v6215
        %v6217 = vrot.slane %v5381, 2
        %v6218 = vsel %vm1225, %v6215, %v6217
        %v6219 = vrot.slane %v5382, 2
        %v6220 = vrot.slane %v5383, 2
        %v6221 = vsel %vm1225, %v6219, %v6220
        %v6222 = vrot.slane %v5384, 2
        %v6223 = vsel %vm1225, %v6220, %v6222
        %v6224 = vrot.slane %v5385, 2
        %v6225 = vrot.slane %v5386, 2
        %v6226 = vsel %vm1225, %v6224, %v6225
        %v6227 = vrot.slane %v5387, 2
        %v6228 = vsel %vm1225, %v6225, %v6227
        %v6229 = vrot.slane %v5388, 2
        %v6230 = vrot.slane %v5389, 2
        %v6231 = vsel %vm1225, %v6229, %v6230
        %v6232 = vrot.slane %v5390, 2
        %v6233 = vsel %vm1225, %v6230, %v6232
        %v6234 = vrot.slane %v5391, 2
        %v6235 = vrot.slane %v5392, 2
        %v6236 = vsel %vm1225, %v6234, %v6235
        %v6237 = vrot.slane %v5393, 2
        %v6238 = vsel %vm1225, %v6235, %v6237
        %v6239 = vrot.slane %v5394, 2
        %v6240 = vrot.slane %v5395, 2
        %v6241 = vsel %vm1225, %v6239, %v6240
        %v6242 = vrot.slane %v5396, 2
        %v6243 = vsel %vm1225, %v6240, %v6242
        %v6244 = vrot.slane %v5397, 2
        %v6245 = vrot.slane %v5398, 2
        %v6246 = vsel %vm1225, %v6244, %v6245
        %v6247 = vrot.slane %v5399, 2
        %v6248 = vsel %vm1225, %v6245, %v6247
        %v6249 = vrot.slane %v5400, 2
        %v6250 = vrot.slane %v5401, 2
        %v6251 = vsel %vm1225, %v6249, %v6250
        %v6252 = vrot.slane %v5402, 2
        %v6253 = vsel %vm1225, %v6250, %v6252
        %v6254 = vrot.slane %v5403, 2
        %v6255 = vrot.slane %v5404, 2
        %v6256 = vsel %vm1225, %v6254, %v6255
        %v6257 = vrot.slane %v5405, 2
        %v6258 = vsel %vm1225, %v6255, %v6257
        %v6259 = vld [vmem:[%s5406 + $0x10] sm:$0xff]
        %v6260 = vsel %vm4167, %v6181, 0
        %v6262 = vsel %vm4167, %v6183, 0
        %v6264 = vsel %vm4167, %v6186, 0
        %v6266 = vsel %vm4167, %v6188, 0
        %v6268 = vsel %vm4167, %v6191, 0
        %v6270 = vsel %vm4167, %v6193, 0
        %v6272 = vsel %vm4167, %v6196, 0
        %v6274 = vsel %vm4167, %v6198, 0
        %v6276 = vsel %vm4167, %v6201, 0
        %v6278 = vsel %vm4167, %v6203, 0
        %v6280 = vsel %vm4167, %v6206, 0
        %v6282 = vsel %vm4167, %v6208, 0
        %v6284 = vsel %vm4167, %v6211, 0
        %v6286 = vsel %vm4167, %v6213, 0
        %v6288 = vsel %vm4167, %v6216, 0
        %v6290 = vsel %vm4167, %v6218, 0
        %v6292 = vsel %vm4167, %v6221, 0
        %v6294 = vsel %vm4167, %v6223, 0
        %v6296 = vsel %vm4167, %v6226, 0
        %v6298 = vsel %vm4167, %v6228, 0
        %v6300 = vsel %vm4167, %v6231, 0
        %v6302 = vsel %vm4167, %v6233, 0
        %v6304 = vsel %vm4167, %v6236, 0
        %v6306 = vsel %vm4167, %v6238, 0
        %v6308 = vsel %vm4167, %v6241, 0
        %v6310 = vsel %vm4167, %v6243, 0
        %v6312 = vsel %vm4167, %v6246, 0
        %v6314 = vsel %vm4167, %v6248, 0
        %v6316 = vsel %vm4167, %v6251, 0
        %v6318 = vsel %vm4167, %v6253, 0
        %v6320 = vsel %vm4167, %v6256, 0
        %v6322 = vsel %vm4167, %v6258, 0
        %6324 = vmatprep.subr.mxu0 0.0
        %6325 = vmatpush1.msra.mxu0 %v6259
        %6326 = vmatprep.subr.mxu0 0.0
        %6327 = vmatpush1.msra.mxu0 0.0
        %6328 = vmatprep.subr.mxu0 0.0
        %6329 = vmatpush1.msra.mxu0 0.0
        %6330 = vmatprep.subr.mxu0 0.0
        %6331 = vmatpush1.msra.mxu0 0.0
        %6332 = vmatprep.subr.mxu0 0.0
        %6333 = vmatpush1.msra.mxu0 0.0
        %6334 = vmatprep.subr.mxu0 0.0
        %6335 = vmatpush1.msra.mxu0 0.0
        %6336 = vmatprep.subr.mxu0 0.0
        %6337 = vmatpush1.msra.mxu0 0.0
        %6338 = vmatprep.subr.mxu0 0.0
        %6339 = vmatpush1.msra.mxu0 0.0
        %6340 = vmatprep.subr.mxu0 0.0
        %6341 = vmatpush1.msra.mxu0 0.0
        %6342 = vmatprep.subr.mxu0 0.0
        %6343 = vmatpush1.msra.mxu0 0.0
        %6344 = vmatprep.subr.mxu0 0.0
        %6345 = vmatpush1.msra.mxu0 0.0
        %6346 = vmatprep.subr.mxu0 0.0
        %6347 = vmatpush1.msra.mxu0 0.0
        %6348 = vmatprep.subr.mxu0 0.0
        %6349 = vmatpush1.msra.mxu0 0.0
        %6350 = vmatprep.subr.mxu0 0.0
        %6351 = vmatpush1.msra.mxu0 0.0
        %6352 = vmatprep.subr.mxu0 0.0
        %6353 = vmatpush1.msra.mxu0 0.0
        %6354 = vmatprep.subr.mxu0 0.0
        %6355 = vmatpush1.msra.mxu0 0.0
        %6356 = vmatprep.subr.mxu0 0.0
        %6357 = vmatpush1.msra.mxu0 0.0
        %6358 = vmatprep.subr.mxu0 0.0
        %6359 = vmatpush1.msra.mxu0 0.0
        %6360 = vmatprep.subr.mxu0 0.0
        %6361 = vmatpush1.msra.mxu0 0.0
        %6362 = vmatprep.subr.mxu0 0.0
        %6363 = vmatpush1.msra.mxu0 0.0
        %6364 = vmatprep.subr.mxu0 0.0
        %6365 = vmatpush1.msra.mxu0 0.0
        %6366 = vmatprep.subr.mxu0 0.0
        %6367 = vmatpush1.msra.mxu0 0.0
        %6368 = vmatprep.subr.mxu0 0.0
        %6369 = vmatpush1.msra.mxu0 0.0
        %6370 = vmatprep.subr.mxu0 0.0
        %6371 = vmatpush1.msra.mxu0 0.0
        %6372 = vmatprep.subr.mxu0 0.0
        %6373 = vmatpush1.msra.mxu0 0.0
        %6374 = vmatprep.subr.mxu0 0.0
        %6375 = vmatpush1.msra.mxu0 0.0
        %6376 = vmatprep.subr.mxu0 0.0
        %6377 = vmatpush1.msra.mxu0 0.0
        %6378 = vmatprep.subr.mxu0 0.0
        %6379 = vmatpush1.msra.mxu0 0.0
        %6380 = vmatprep.subr.mxu0 0.0
        %6381 = vmatpush1.msra.mxu0 0.0
        %6382 = vmatprep.subr.mxu0 0.0
        %6383 = vmatpush1.msra.mxu0 0.0
        %6384 = vmatprep.subr.mxu0 0.0
        %6385 = vmatpush1.msra.mxu0 0.0
        %6386 = vmatprep.subr.mxu0 0.0
        %6387 = vmatpush1.msra.mxu0 0.0
        %6388 = vmatprep.mubr.f32.mxu0 0.0
        %6389 = vmatmul.mubr.f32.gmra.mrb[0].mxu0 %v6260
        %v6390 = vpop.f32.mrb[0].mxu0
        %v6391 = vadd.f32 0.0, %v6390
        %v6392 = vpop.f32.mrb[0].mxu0
        %6393 = vmatprep.mubr.f32.mxu0 0.0
        %6394 = vmatmul.mubr.f32.gmra.mrb[0].mxu0 %v6262
        %v6395 = vpop.f32.mrb[0].mxu0
        %v6396 = vadd.f32 0.0, %v6395
        %v6397 = vpop.f32.mrb[0].mxu0
        %6398 = vmatprep.mubr.f32.mxu0 0.0
        %6399 = vmatmul.mubr.f32.gmra.mrb[0].mxu0 %v6264
        %v6400 = vpop.f32.mrb[0].mxu0
        %v6401 = vadd.f32 0.0, %v6400
        %v6402 = vpop.f32.mrb[0].mxu0
        %6403 = vmatprep.mubr.f32.mxu0 0.0
        %6404 = vmatmul.mubr.f32.gmra.mrb[0].mxu0 %v6266
        %v6405 = vpop.f32.mrb[0].mxu0
        %v6406 = vadd.f32 0.0, %v6405
        %v6407 = vpop.f32.mrb[0].mxu0
        %6408 = vmatprep.mubr.f32.mxu0 0.0
        %6409 = vmatmul.mubr.f32.gmra.mrb[0].mxu0 %v6268
        %v6410 = vpop.f32.mrb[0].mxu0
        %v6411 = vadd.f32 0.0, %v6410
        %v6412 = vpop.f32.mrb[0].mxu0
        %6413 = vmatprep.mubr.f32.mxu0 0.0
        %6414 = vmatmul.mubr.f32.gmra.mrb[0].mxu0 %v6270
        %v6415 = vpop.f32.mrb[0].mxu0
        %v6416 = vadd.f32 0.0, %v6415
        %v6417 = vpop.f32.mrb[0].mxu0
        %6418 = vmatprep.mubr.f32.mxu0 0.0
        %6419 = vmatmul.mubr.f32.gmra.mrb[0].mxu0 %v6272
        %v6420 = vpop.f32.mrb[0].mxu0
        %v6421 = vadd.f32 0.0, %v6420
        %v6422 = vpop.f32.mrb[0].mxu0
        %6423 = vmatprep.mubr.f32.mxu0 0.0
        %6424 = vmatmul.mubr.f32.gmra.mrb[0].mxu0 %v6274
        %v6425 = vpop.f32.mrb[0].mxu0
        %v6426 = vadd.f32 0.0, %v6425
        %v6427 = vpop.f32.mrb[0].mxu0
        %6428 = vmatprep.mubr.f32.mxu0 0.0
        %6429 = vmatmul.mubr.f32.gmra.mrb[0].mxu0 %v6276
        %v6430 = vpop.f32.mrb[0].mxu0
        %v6431 = vadd.f32 0.0, %v6430
        %v6432 = vpop.f32.mrb[0].mxu0
        %6433 = vmatprep.mubr.f32.mxu0 0.0
        %6434 = vmatmul.mubr.f32.gmra.mrb[0].mxu0 %v6278
        %v6435 = vpop.f32.mrb[0].mxu0
        %v6436 = vadd.f32 0.0, %v6435
        %v6437 = vpop.f32.mrb[0].mxu0
        %6438 = vmatprep.mubr.f32.mxu0 0.0
        %6439 = vmatmul.mubr.f32.gmra.mrb[0].mxu0 %v6280
        %v6440 = vpop.f32.mrb[0].mxu0
        %v6441 = vadd.f32 0.0, %v6440
        %v6442 = vpop.f32.mrb[0].mxu0
        %6443 = vmatprep.mubr.f32.mxu0 0.0
        %6444 = vmatmul.mubr.f32.gmra.mrb[0].mxu0 %v6282
        %v6445 = vpop.f32.mrb[0].mxu0
        %v6446 = vadd.f32 0.0, %v6445
        %v6447 = vpop.f32.mrb[0].mxu0
        %6448 = vmatprep.mubr.f32.mxu0 0.0
        %6449 = vmatmul.mubr.f32.gmra.mrb[0].mxu0 %v6284
        %v6450 = vpop.f32.mrb[0].mxu0
        %v6451 = vadd.f32 0.0, %v6450
        %v6452 = vpop.f32.mrb[0].mxu0
        %6453 = vmatprep.mubr.f32.mxu0 0.0
        %6454 = vmatmul.mubr.f32.gmra.mrb[0].mxu0 %v6286
        %v6455 = vpop.f32.mrb[0].mxu0
        %v6456 = vadd.f32 0.0, %v6455
        %v6457 = vpop.f32.mrb[0].mxu0
        %6458 = vmatprep.mubr.f32.mxu0 0.0
        %6459 = vmatmul.mubr.f32.gmra.mrb[0].mxu0 %v6288
        %v6460 = vpop.f32.mrb[0].mxu0
        %v6461 = vadd.f32 0.0, %v6460
        %v6462 = vpop.f32.mrb[0].mxu0
        %6463 = vmatprep.mubr.f32.mxu0 0.0
        %6464 = vmatmul.mubr.f32.gmra.mrb[0].mxu0 %v6290
        %v6465 = vpop.f32.mrb[0].mxu0
        %v6466 = vadd.f32 0.0, %v6465
        %v6467 = vpop.f32.mrb[0].mxu0
        %6468 = vmatprep.mubr.f32.mxu0 0.0
        %6469 = vmatmul.mubr.f32.gmra.mrb[0].mxu0 %v6292
        %v6470 = vpop.f32.mrb[0].mxu0
        %v6471 = vadd.f32 0.0, %v6470
        %v6472 = vpop.f32.mrb[0].mxu0
        %6473 = vmatprep.mubr.f32.mxu0 0.0
        %6474 = vmatmul.mubr.f32.gmra.mrb[0].mxu0 %v6294
        %v6475 = vpop.f32.mrb[0].mxu0
        %v6476 = vadd.f32 0.0, %v6475
        %v6477 = vpop.f32.mrb[0].mxu0
        %6478 = vmatprep.mubr.f32.mxu0 0.0
        %6479 = vmatmul.mubr.f32.gmra.mrb[0].mxu0 %v6296
        %v6480 = vpop.f32.mrb[0].mxu0
        %v6481 = vadd.f32 0.0, %v6480
        %v6482 = vpop.f32.mrb[0].mxu0
        %6483 = vmatprep.mubr.f32.mxu0 0.0
        %6484 = vmatmul.mubr.f32.gmra.mrb[0].mxu0 %v6298
        %v6485 = vpop.f32.mrb[0].mxu0
        %v6486 = vadd.f32 0.0, %v6485
        %v6487 = vpop.f32.mrb[0].mxu0
        %6488 = vmatprep.mubr.f32.mxu0 0.0
        %6489 = vmatmul.mubr.f32.gmra.mrb[0].mxu0 %v6300
        %v6490 = vpop.f32.mrb[0].mxu0
        %v6491 = vadd.f32 0.0, %v6490
        %v6492 = vpop.f32.mrb[0].mxu0
        %6493 = vmatprep.mubr.f32.mxu0 0.0
        %6494 = vmatmul.mubr.f32.gmra.mrb[0].mxu0 %v6302
        %v6495 = vpop.f32.mrb[0].mxu0
        %v6496 = vadd.f32 0.0, %v6495
        %v6497 = vpop.f32.mrb[0].mxu0
        %6498 = vmatprep.mubr.f32.mxu0 0.0
        %6499 = vmatmul.mubr.f32.gmra.mrb[0].mxu0 %v6304
        %v6500 = vpop.f32.mrb[0].mxu0
        %v6501 = vadd.f32 0.0, %v6500
        %v6502 = vpop.f32.mrb[0].mxu0
        %6503 = vmatprep.mubr.f32.mxu0 0.0
        %6504 = vmatmul.mubr.f32.gmra.mrb[0].mxu0 %v6306
        %v6505 = vpop.f32.mrb[0].mxu0
        %v6506 = vadd.f32 0.0, %v6505
        %v6507 = vpop.f32.mrb[0].mxu0
        %6508 = vmatprep.mubr.f32.mxu0 0.0
        %6509 = vmatmul.mubr.f32.gmra.mrb[0].mxu0 %v6308
        %v6510 = vpop.f32.mrb[0].mxu0
        %v6511 = vadd.f32 0.0, %v6510
        %v6512 = vpop.f32.mrb[0].mxu0
        %6513 = vmatprep.mubr.f32.mxu0 0.0
        %6514 = vmatmul.mubr.f32.gmra.mrb[0].mxu0 %v6310
        %v6515 = vpop.f32.mrb[0].mxu0
        %v6516 = vadd.f32 0.0, %v6515
        %v6517 = vpop.f32.mrb[0].mxu0
        %6518 = vmatprep.mubr.f32.mxu0 0.0
        %6519 = vmatmul.mubr.f32.gmra.mrb[0].mxu0 %v6312
        %v6520 = vpop.f32.mrb[0].mxu0
        %v6521 = vadd.f32 0.0, %v6520
        %v6522 = vpop.f32.mrb[0].mxu0
        %6523 = vmatprep.mubr.f32.mxu0 0.0
        %6524 = vmatmul.mubr.f32.gmra.mrb[0].mxu0 %v6314
        %v6525 = vpop.f32.mrb[0].mxu0
        %v6526 = vadd.f32 0.0, %v6525
        %v6527 = vpop.f32.mrb[0].mxu0
        %6528 = vmatprep.mubr.f32.mxu0 0.0
        %6529 = vmatmul.mubr.f32.gmra.mrb[0].mxu0 %v6316
        %v6530 = vpop.f32.mrb[0].mxu0
        %v6531 = vadd.f32 0.0, %v6530
        %v6532 = vpop.f32.mrb[0].mxu0
        %6533 = vmatprep.mubr.f32.mxu0 0.0
        %6534 = vmatmul.mubr.f32.gmra.mrb[0].mxu0 %v6318
        %v6535 = vpop.f32.mrb[0].mxu0
        %v6536 = vadd.f32 0.0, %v6535
        %v6537 = vpop.f32.mrb[0].mxu0
        %6538 = vmatprep.mubr.f32.mxu0 0.0
        %6539 = vmatmul.mubr.f32.gmra.mrb[0].mxu0 %v6320
        %v6540 = vpop.f32.mrb[0].mxu0
        %v6541 = vadd.f32 0.0, %v6540
        %v6542 = vpop.f32.mrb[0].mxu0
        %6543 = vmatprep.mubr.f32.mxu0 0.0
        %6544 = vmatmul.mubr.f32.gmra.mrb[0].mxu0 %v6322
        %v6545 = vpop.f32.mrb[0].mxu0
        %v6546 = vadd.f32 0.0, %v6545
        %v6547 = vpop.f32.mrb[0].mxu0
        %6548 = vdwg.mxu0
        %v6549 = vadd.f32 %v6147, %v6391
        %v6550 = vadd.f32 %v6148, %v6396
        %v6551 = vadd.f32 %v6149, %v6401
        %v6552 = vadd.f32 %v6150, %v6406
        %v6553 = vadd.f32 %v6151, %v6411
        %v6554 = vadd.f32 %v6152, %v6416
        %v6555 = vadd.f32 %v6153, %v6421
        %v6556 = vadd.f32 %v6154, %v6426
        %v6557 = vadd.f32 %v6155, %v6431
        %v6558 = vadd.f32 %v6156, %v6436
        %v6559 = vadd.f32 %v6157, %v6441
        %v6560 = vadd.f32 %v6158, %v6446
        %v6561 = vadd.f32 %v6159, %v6451
        %v6562 = vadd.f32 %v6160, %v6456
        %v6563 = vadd.f32 %v6161, %v6461
        %v6564 = vadd.f32 %v6162, %v6466
        %v6565 = vadd.f32 %v6163, %v6471
        %v6566 = vadd.f32 %v6164, %v6476
        %v6567 = vadd.f32 %v6165, %v6481
        %v6568 = vadd.f32 %v6166, %v6486
        %v6569 = vadd.f32 %v6167, %v6491
        %v6570 = vadd.f32 %v6168, %v6496
        %v6571 = vadd.f32 %v6169, %v6501
        %v6572 = vadd.f32 %v6170, %v6506
        %v6573 = vadd.f32 %v6171, %v6511
        %v6574 = vadd.f32 %v6172, %v6516
        %v6575 = vadd.f32 %v6173, %v6521
        %v6576 = vadd.f32 %v6174, %v6526
        %v6577 = vadd.f32 %v6175, %v6531
        %v6578 = vadd.f32 %v6176, %v6536
        %v6579 = vadd.f32 %v6177, %v6541
        %v6580 = vadd.f32 %v6178, %v6546
        %s6581 = scalar_lea.vmem [#allocation3], 48
        %v6582 = vld [vmem:[%s6581] sm:$0xff]
        %v6583 = vld [vmem:[%s6581 + $0x8] sm:$0xff]
        %v6584 = vld [vmem:[%s6581 + $0x10] sm:$0x3]
        %v6585 = vld [vmem:[%s6581 + $0x18] sm:$0xff]
        %v6586 = vld [vmem:[%s6581 + $0x20] sm:$0xff]
        %v6587 = vld [vmem:[%s6581 + $0x28] sm:$0x3]
        %v6588 = vld [vmem:[%s6581 + $0x30] sm:$0xff]
        %v6589 = vld [vmem:[%s6581 + $0x38] sm:$0xff]
        %v6590 = vld [vmem:[%s6581 + $0x40] sm:$0x3]
        %v6591 = vld [vmem:[%s6581 + $0x48] sm:$0xff]
        %v6592 = vld [vmem:[%s6581 + $0x50] sm:$0xff]
        %v6593 = vld [vmem:[%s6581 + $0x58] sm:$0x3]
        %v6594 = vld [vmem:[%s6581 + $0x60] sm:$0xff]
        %v6595 = vld [vmem:[%s6581 + $0x68] sm:$0xff]
        %v6596 = vld [vmem:[%s6581 + $0x70] sm:$0x3]
        %v6597 = vld [vmem:[%s6581 + $0x78] sm:$0xff]
        %v6598 = vld [vmem:[%s6581 + $0x80] sm:$0xff]
        %v6599 = vld [vmem:[%s6581 + $0x88] sm:$0x3]
        %v6600 = vld [vmem:[%s6581 + $0x90] sm:$0xff]
        %v6601 = vld [vmem:[%s6581 + $0x98] sm:$0xff]
        %v6602 = vld [vmem:[%s6581 + $0xa0] sm:$0x3]
        %v6603 = vld [vmem:[%s6581 + $0xa8] sm:$0xff]
        %v6604 = vld [vmem:[%s6581 + $0xb0] sm:$0xff]
        %v6605 = vld [vmem:[%s6581 + $0xb8] sm:$0x3]
        %v6606 = vld [vmem:[%s6581 + $0xc0] sm:$0xff]
        %v6607 = vld [vmem:[%s6581 + $0xc8] sm:$0xff]
        %v6608 = vld [vmem:[%s6581 + $0xd0] sm:$0x3]
        %v6609 = vld [vmem:[%s6581 + $0xd8] sm:$0xff]
        %v6610 = vld [vmem:[%s6581 + $0xe0] sm:$0xff]
        %v6611 = vld [vmem:[%s6581 + $0xe8] sm:$0x3]
        %v6612 = vld [vmem:[%s6581 + $0xf0] sm:$0xff]
        %v6613 = vld [vmem:[%s6581 + $0xf8] sm:$0xff]
        %v6614 = vld [vmem:[%s6581 + $0x100] sm:$0x3]
        %v6615 = vld [vmem:[%s6581 + $0x108] sm:$0xff]
        %v6616 = vld [vmem:[%s6581 + $0x110] sm:$0xff]
        %v6617 = vld [vmem:[%s6581 + $0x118] sm:$0x3]
        %v6618 = vld [vmem:[%s6581 + $0x120] sm:$0xff]
        %v6619 = vld [vmem:[%s6581 + $0x128] sm:$0xff]
        %v6620 = vld [vmem:[%s6581 + $0x130] sm:$0x3]
        %v6621 = vld [vmem:[%s6581 + $0x138] sm:$0xff]
        %v6622 = vld [vmem:[%s6581 + $0x140] sm:$0xff]
        %v6623 = vld [vmem:[%s6581 + $0x148] sm:$0x3]
        %v6624 = vld [vmem:[%s6581 + $0x150] sm:$0xff]
        %v6625 = vld [vmem:[%s6581 + $0x158] sm:$0xff]
        %v6626 = vld [vmem:[%s6581 + $0x160] sm:$0x3]
        %v6627 = vld [vmem:[%s6581 + $0x168] sm:$0xff]
        %v6628 = vld [vmem:[%s6581 + $0x170] sm:$0xff]
        %v6629 = vld [vmem:[%s6581 + $0x178] sm:$0x3]
        %s6630 = scalar_lea.vmem %s3, 48
        %v6631 = vld [vmem:[%s6630] sm:$0xff]
        %v6633 = vsel %vm4167, %v6582, 0
        %v6636 = vsel %vm4167, %v6583, 0
        %v6639 = vsel %vm4167, %v6585, 0
        %v6642 = vsel %vm4167, %v6586, 0
        %v6645 = vsel %vm4167, %v6588, 0
        %v6648 = vsel %vm4167, %v6589, 0
        %v6651 = vsel %vm4167, %v6591, 0
        %v6654 = vsel %vm4167, %v6592, 0
        %v6657 = vsel %vm4167, %v6594, 0
        %v6660 = vsel %vm4167, %v6595, 0
        %v6663 = vsel %vm4167, %v6597, 0
        %v6666 = vsel %vm4167, %v6598, 0
        %v6669 = vsel %vm4167, %v6600, 0
        %v6672 = vsel %vm4167, %v6601, 0
        %v6675 = vsel %vm4167, %v6603, 0
        %v6678 = vsel %vm4167, %v6604, 0
        %v6681 = vsel %vm4167, %v6606, 0
        %v6684 = vsel %vm4167, %v6607, 0
        %v6687 = vsel %vm4167, %v6609, 0
        %v6690 = vsel %vm4167, %v6610, 0
        %v6693 = vsel %vm4167, %v6612, 0
        %v6696 = vsel %vm4167, %v6613, 0
        %v6699 = vsel %vm4167, %v6615, 0
        %v6702 = vsel %vm4167, %v6616, 0
        %v6705 = vsel %vm4167, %v6618, 0
        %v6708 = vsel %vm4167, %v6619, 0
        %v6711 = vsel %vm4167, %v6621, 0
        %v6714 = vsel %vm4167, %v6622, 0
        %v6717 = vsel %vm4167, %v6624, 0
        %v6720 = vsel %vm4167, %v6625, 0
        %v6723 = vsel %vm4167, %v6627, 0
        %v6726 = vsel %vm4167, %v6628, 0
        %6728 = vmatprep.subr.mxu0 0.0
        %6729 = vmatpush1.msra.mxu0 %v6631
        %6730 = vmatprep.subr.mxu0 0.0
        %6731 = vmatpush1.msra.mxu0 0.0
        %6732 = vmatprep.subr.mxu0 0.0
        %6733 = vmatpush1.msra.mxu0 0.0
        %6734 = vmatprep.subr.mxu0 0.0
        %6735 = vmatpush1.msra.mxu0 0.0
        %6736 = vmatprep.subr.mxu0 0.0
        %6737 = vmatpush1.msra.mxu0 0.0
        %6738 = vmatprep.subr.mxu0 0.0
        %6739 = vmatpush1.msra.mxu0 0.0
        %6740 = vmatprep.subr.mxu0 0.0
        %6741 = vmatpush1.msra.mxu0 0.0
        %6742 = vmatprep.subr.mxu0 0.0
        %6743 = vmatpush1.msra.mxu0 0.0
        %6744 = vmatprep.subr.mxu0 0.0
        %6745 = vmatpush1.msra.mxu0 0.0
        %6746 = vmatprep.subr.mxu0 0.0
        %6747 = vmatpush1.msra.mxu0 0.0
        %6748 = vmatprep.subr.mxu0 0.0
        %6749 = vmatpush1.msra.mxu0 0.0
        %6750 = vmatprep.subr.mxu0 0.0
        %6751 = vmatpush1.msra.mxu0 0.0
        %6752 = vmatprep.subr.mxu0 0.0
        %6753 = vmatpush1.msra.mxu0 0.0
        %6754 = vmatprep.subr.mxu0 0.0
        %6755 = vmatpush1.msra.mxu0 0.0
        %6756 = vmatprep.subr.mxu0 0.0
        %6757 = vmatpush1.msra.mxu0 0.0
        %6758 = vmatprep.subr.mxu0 0.0
        %6759 = vmatpush1.msra.mxu0 0.0
        %6760 = vmatprep.subr.mxu0 0.0
        %6761 = vmatpush1.msra.mxu0 0.0
        %6762 = vmatprep.subr.mxu0 0.0
        %6763 = vmatpush1.msra.mxu0 0.0
        %6764 = vmatprep.subr.mxu0 0.0
        %6765 = vmatpush1.msra.mxu0 0.0
        %6766 = vmatprep.subr.mxu0 0.0
        %6767 = vmatpush1.msra.mxu0 0.0
        %6768 = vmatprep.subr.mxu0 0.0
        %6769 = vmatpush1.msra.mxu0 0.0
        %6770 = vmatprep.subr.mxu0 0.0
        %6771 = vmatpush1.msra.mxu0 0.0
        %6772 = vmatprep.subr.mxu0 0.0
        %6773 = vmatpush1.msra.mxu0 0.0
        %6774 = vmatprep.subr.mxu0 0.0
        %6775 = vmatpush1.msra.mxu0 0.0
        %6776 = vmatprep.subr.mxu0 0.0
        %6777 = vmatpush1.msra.mxu0 0.0
        %6778 = vmatprep.subr.mxu0 0.0
        %6779 = vmatpush1.msra.mxu0 0.0
        %6780 = vmatprep.subr.mxu0 0.0
        %6781 = vmatpush1.msra.mxu0 0.0
        %6782 = vmatprep.subr.mxu0 0.0
        %6783 = vmatpush1.msra.mxu0 0.0
        %6784 = vmatprep.subr.mxu0 0.0
        %6785 = vmatpush1.msra.mxu0 0.0
        %6786 = vmatprep.subr.mxu0 0.0
        %6787 = vmatpush1.msra.mxu0 0.0
        %6788 = vmatprep.subr.mxu0 0.0
        %6789 = vmatpush1.msra.mxu0 0.0
        %6790 = vmatprep.subr.mxu0 0.0
        %6791 = vmatpush1.msra.mxu0 0.0
        %6792 = vmatprep.mubr.f32.mxu0 0.0
        %6793 = vmatmul.mubr.f32.gmra.mrb[0].mxu0 %v6633
        %v6794 = vpop.f32.mrb[0].mxu0
        %v6795 = vadd.f32 0.0, %v6794
        %v6796 = vpop.f32.mrb[0].mxu0
        %6797 = vmatprep.mubr.f32.mxu0 0.0
        %6798 = vmatmul.mubr.f32.gmra.mrb[0].mxu0 %v6636
        %v6799 = vpop.f32.mrb[0].mxu0
        %v6800 = vadd.f32 0.0, %v6799
        %v6801 = vpop.f32.mrb[0].mxu0
        %6802 = vmatprep.mubr.f32.mxu0 0.0
        %6803 = vmatmul.mubr.f32.gmra.mrb[0].mxu0 %v6639
        %v6804 = vpop.f32.mrb[0].mxu0
        %v6805 = vadd.f32 0.0, %v6804
        %v6806 = vpop.f32.mrb[0].mxu0
        %6807 = vmatprep.mubr.f32.mxu0 0.0
        %6808 = vmatmul.mubr.f32.gmra.mrb[0].mxu0 %v6642
        %v6809 = vpop.f32.mrb[0].mxu0
        %v6810 = vadd.f32 0.0, %v6809
        %v6811 = vpop.f32.mrb[0].mxu0
        %6812 = vmatprep.mubr.f32.mxu0 0.0
        %6813 = vmatmul.mubr.f32.gmra.mrb[0].mxu0 %v6645
        %v6814 = vpop.f32.mrb[0].mxu0
        %v6815 = vadd.f32 0.0, %v6814
        %v6816 = vpop.f32.mrb[0].mxu0
        %6817 = vmatprep.mubr.f32.mxu0 0.0
        %6818 = vmatmul.mubr.f32.gmra.mrb[0].mxu0 %v6648
        %v6819 = vpop.f32.mrb[0].mxu0
        %v6820 = vadd.f32 0.0, %v6819
        %v6821 = vpop.f32.mrb[0].mxu0
        %6822 = vmatprep.mubr.f32.mxu0 0.0
        %6823 = vmatmul.mubr.f32.gmra.mrb[0].mxu0 %v6651
        %v6824 = vpop.f32.mrb[0].mxu0
        %v6825 = vadd.f32 0.0, %v6824
        %v6826 = vpop.f32.mrb[0].mxu0
        %6827 = vmatprep.mubr.f32.mxu0 0.0
        %6828 = vmatmul.mubr.f32.gmra.mrb[0].mxu0 %v6654
        %v6829 = vpop.f32.mrb[0].mxu0
        %v6830 = vadd.f32 0.0, %v6829
        %v6831 = vpop.f32.mrb[0].mxu0
        %6832 = vmatprep.mubr.f32.mxu0 0.0
        %6833 = vmatmul.mubr.f32.gmra.mrb[0].mxu0 %v6657
        %v6834 = vpop.f32.mrb[0].mxu0
        %v6835 = vadd.f32 0.0, %v6834
        %v6836 = vpop.f32.mrb[0].mxu0
        %6837 = vmatprep.mubr.f32.mxu0 0.0
        %6838 = vmatmul.mubr.f32.gmra.mrb[0].mxu0 %v6660
        %v6839 = vpop.f32.mrb[0].mxu0
        %v6840 = vadd.f32 0.0, %v6839
        %v6841 = vpop.f32.mrb[0].mxu0
        %6842 = vmatprep.mubr.f32.mxu0 0.0
        %6843 = vmatmul.mubr.f32.gmra.mrb[0].mxu0 %v6663
        %v6844 = vpop.f32.mrb[0].mxu0
        %v6845 = vadd.f32 0.0, %v6844
        %v6846 = vpop.f32.mrb[0].mxu0
        %6847 = vmatprep.mubr.f32.mxu0 0.0
        %6848 = vmatmul.mubr.f32.gmra.mrb[0].mxu0 %v6666
        %v6849 = vpop.f32.mrb[0].mxu0
        %v6850 = vadd.f32 0.0, %v6849
        %v6851 = vpop.f32.mrb[0].mxu0
        %6852 = vmatprep.mubr.f32.mxu0 0.0
        %6853 = vmatmul.mubr.f32.gmra.mrb[0].mxu0 %v6669
        %v6854 = vpop.f32.mrb[0].mxu0
        %v6855 = vadd.f32 0.0, %v6854
        %v6856 = vpop.f32.mrb[0].mxu0
        %6857 = vmatprep.mubr.f32.mxu0 0.0
        %6858 = vmatmul.mubr.f32.gmra.mrb[0].mxu0 %v6672
        %v6859 = vpop.f32.mrb[0].mxu0
        %v6860 = vadd.f32 0.0, %v6859
        %v6861 = vpop.f32.mrb[0].mxu0
        %6862 = vmatprep.mubr.f32.mxu0 0.0
        %6863 = vmatmul.mubr.f32.gmra.mrb[0].mxu0 %v6675
        %v6864 = vpop.f32.mrb[0].mxu0
        %v6865 = vadd.f32 0.0, %v6864
        %v6866 = vpop.f32.mrb[0].mxu0
        %6867 = vmatprep.mubr.f32.mxu0 0.0
        %6868 = vmatmul.mubr.f32.gmra.mrb[0].mxu0 %v6678
        %v6869 = vpop.f32.mrb[0].mxu0
        %v6870 = vadd.f32 0.0, %v6869
        %v6871 = vpop.f32.mrb[0].mxu0
        %6872 = vmatprep.mubr.f32.mxu0 0.0
        %6873 = vmatmul.mubr.f32.gmra.mrb[0].mxu0 %v6681
        %v6874 = vpop.f32.mrb[0].mxu0
        %v6875 = vadd.f32 0.0, %v6874
        %v6876 = vpop.f32.mrb[0].mxu0
        %6877 = vmatprep.mubr.f32.mxu0 0.0
        %6878 = vmatmul.mubr.f32.gmra.mrb[0].mxu0 %v6684
        %v6879 = vpop.f32.mrb[0].mxu0
        %v6880 = vadd.f32 0.0, %v6879
        %v6881 = vpop.f32.mrb[0].mxu0
        %6882 = vmatprep.mubr.f32.mxu0 0.0
        %6883 = vmatmul.mubr.f32.gmra.mrb[0].mxu0 %v6687
        %v6884 = vpop.f32.mrb[0].mxu0
        %v6885 = vadd.f32 0.0, %v6884
        %v6886 = vpop.f32.mrb[0].mxu0
        %6887 = vmatprep.mubr.f32.mxu0 0.0
        %6888 = vmatmul.mubr.f32.gmra.mrb[0].mxu0 %v6690
        %v6889 = vpop.f32.mrb[0].mxu0
        %v6890 = vadd.f32 0.0, %v6889
        %v6891 = vpop.f32.mrb[0].mxu0
        %6892 = vmatprep.mubr.f32.mxu0 0.0
        %6893 = vmatmul.mubr.f32.gmra.mrb[0].mxu0 %v6693
        %v6894 = vpop.f32.mrb[0].mxu0
        %v6895 = vadd.f32 0.0, %v6894
        %v6896 = vpop.f32.mrb[0].mxu0
        %6897 = vmatprep.mubr.f32.mxu0 0.0
        %6898 = vmatmul.mubr.f32.gmra.mrb[0].mxu0 %v6696
        %v6899 = vpop.f32.mrb[0].mxu0
        %v6900 = vadd.f32 0.0, %v6899
        %v6901 = vpop.f32.mrb[0].mxu0
        %6902 = vmatprep.mubr.f32.mxu0 0.0
        %6903 = vmatmul.mubr.f32.gmra.mrb[0].mxu0 %v6699
        %v6904 = vpop.f32.mrb[0].mxu0
        %v6905 = vadd.f32 0.0, %v6904
        %v6906 = vpop.f32.mrb[0].mxu0
        %6907 = vmatprep.mubr.f32.mxu0 0.0
        %6908 = vmatmul.mubr.f32.gmra.mrb[0].mxu0 %v6702
        %v6909 = vpop.f32.mrb[0].mxu0
        %v6910 = vadd.f32 0.0, %v6909
        %v6911 = vpop.f32.mrb[0].mxu0
        %6912 = vmatprep.mubr.f32.mxu0 0.0
        %6913 = vmatmul.mubr.f32.gmra.mrb[0].mxu0 %v6705
        %v6914 = vpop.f32.mrb[0].mxu0
        %v6915 = vadd.f32 0.0, %v6914
        %v6916 = vpop.f32.mrb[0].mxu0
        %6917 = vmatprep.mubr.f32.mxu0 0.0
        %6918 = vmatmul.mubr.f32.gmra.mrb[0].mxu0 %v6708
        %v6919 = vpop.f32.mrb[0].mxu0
        %v6920 = vadd.f32 0.0, %v6919
        %v6921 = vpop.f32.mrb[0].mxu0
        %6922 = vmatprep.mubr.f32.mxu0 0.0
        %6923 = vmatmul.mubr.f32.gmra.mrb[0].mxu0 %v6711
        %v6924 = vpop.f32.mrb[0].mxu0
        %v6925 = vadd.f32 0.0, %v6924
        %v6926 = vpop.f32.mrb[0].mxu0
        %6927 = vmatprep.mubr.f32.mxu0 0.0
        %6928 = vmatmul.mubr.f32.gmra.mrb[0].mxu0 %v6714
        %v6929 = vpop.f32.mrb[0].mxu0
        %v6930 = vadd.f32 0.0, %v6929
        %v6931 = vpop.f32.mrb[0].mxu0
        %6932 = vmatprep.mubr.f32.mxu0 0.0
        %6933 = vmatmul.mubr.f32.gmra.mrb[0].mxu0 %v6717
        %v6934 = vpop.f32.mrb[0].mxu0
        %v6935 = vadd.f32 0.0, %v6934
        %v6936 = vpop.f32.mrb[0].mxu0
        %6937 = vmatprep.mubr.f32.mxu0 0.0
        %6938 = vmatmul.mubr.f32.gmra.mrb[0].mxu0 %v6720
        %v6939 = vpop.f32.mrb[0].mxu0
        %v6940 = vadd.f32 0.0, %v6939
        %v6941 = vpop.f32.mrb[0].mxu0
        %6942 = vmatprep.mubr.f32.mxu0 0.0
        %6943 = vmatmul.mubr.f32.gmra.mrb[0].mxu0 %v6723
        %v6944 = vpop.f32.mrb[0].mxu0
        %v6945 = vadd.f32 0.0, %v6944
        %v6946 = vpop.f32.mrb[0].mxu0
        %6947 = vmatprep.mubr.f32.mxu0 0.0
        %6948 = vmatmul.mubr.f32.gmra.mrb[0].mxu0 %v6726
        %v6949 = vpop.f32.mrb[0].mxu0
        %v6950 = vadd.f32 0.0, %v6949
        %v6951 = vpop.f32.mrb[0].mxu0
        %6952 = vdwg.mxu0
        %v6953 = vadd.f32 %v6549, %v6795
        %v6954 = vadd.f32 %v6550, %v6800
        %v6955 = vadd.f32 %v6551, %v6805
        %v6956 = vadd.f32 %v6552, %v6810
        %v6957 = vadd.f32 %v6553, %v6815
        %v6958 = vadd.f32 %v6554, %v6820
        %v6959 = vadd.f32 %v6555, %v6825
        %v6960 = vadd.f32 %v6556, %v6830
        %v6961 = vadd.f32 %v6557, %v6835
        %v6962 = vadd.f32 %v6558, %v6840
        %v6963 = vadd.f32 %v6559, %v6845
        %v6964 = vadd.f32 %v6560, %v6850
        %v6965 = vadd.f32 %v6561, %v6855
        %v6966 = vadd.f32 %v6562, %v6860
        %v6967 = vadd.f32 %v6563, %v6865
        %v6968 = vadd.f32 %v6564, %v6870
        %v6969 = vadd.f32 %v6565, %v6875
        %v6970 = vadd.f32 %v6566, %v6880
        %v6971 = vadd.f32 %v6567, %v6885
        %v6972 = vadd.f32 %v6568, %v6890
        %v6973 = vadd.f32 %v6569, %v6895
        %v6974 = vadd.f32 %v6570, %v6900
        %v6975 = vadd.f32 %v6571, %v6905
        %v6976 = vadd.f32 %v6572, %v6910
        %v6977 = vadd.f32 %v6573, %v6915
        %v6978 = vadd.f32 %v6574, %v6920
        %v6979 = vadd.f32 %v6575, %v6925
        %v6980 = vadd.f32 %v6576, %v6930
        %v6981 = vadd.f32 %v6577, %v6935
        %v6982 = vadd.f32 %v6578, %v6940
        %v6983 = vadd.f32 %v6579, %v6945
        %v6984 = vadd.f32 %v6580, %v6950
        %v7001 = vrot.slane %v6582, 1
        %v7002 = vrot.slane %v6583, 1
        %v7003 = vsel %vm558, %v7001, %v7002
        %v7004 = vrot.slane %v6584, 1
        %v7005 = vsel %vm558, %v7002, %v7004
        %v7006 = vrot.slane %v6585, 1
        %v7007 = vrot.slane %v6586, 1
        %v7008 = vsel %vm558, %v7006, %v7007
        %v7009 = vrot.slane %v6587, 1
        %v7010 = vsel %vm558, %v7007, %v7009
        %v7011 = vrot.slane %v6588, 1
        %v7012 = vrot.slane %v6589, 1
        %v7013 = vsel %vm558, %v7011, %v7012
        %v7014 = vrot.slane %v6590, 1
        %v7015 = vsel %vm558, %v7012, %v7014
        %v7016 = vrot.slane %v6591, 1
        %v7017 = vrot.slane %v6592, 1
        %v7018 = vsel %vm558, %v7016, %v7017
        %v7019 = vrot.slane %v6593, 1
        %v7020 = vsel %vm558, %v7017, %v7019
        %v7021 = vrot.slane %v6594, 1
        %v7022 = vrot.slane %v6595, 1
        %v7023 = vsel %vm558, %v7021, %v7022
        %v7024 = vrot.slane %v6596, 1
        %v7025 = vsel %vm558, %v7022, %v7024
        %v7026 = vrot.slane %v6597, 1
        %v7027 = vrot.slane %v6598, 1
        %v7028 = vsel %vm558, %v7026, %v7027
        %v7029 = vrot.slane %v6599, 1
        %v7030 = vsel %vm558, %v7027, %v7029
        %v7031 = vrot.slane %v6600, 1
        %v7032 = vrot.slane %v6601, 1
        %v7033 = vsel %vm558, %v7031, %v7032
        %v7034 = vrot.slane %v6602, 1
        %v7035 = vsel %vm558, %v7032, %v7034
        %v7036 = vrot.slane %v6603, 1
        %v7037 = vrot.slane %v6604, 1
        %v7038 = vsel %vm558, %v7036, %v7037
        %v7039 = vrot.slane %v6605, 1
        %v7040 = vsel %vm558, %v7037, %v7039
        %v7041 = vrot.slane %v6606, 1
        %v7042 = vrot.slane %v6607, 1
        %v7043 = vsel %vm558, %v7041, %v7042
        %v7044 = vrot.slane %v6608, 1
        %v7045 = vsel %vm558, %v7042, %v7044
        %v7046 = vrot.slane %v6609, 1
        %v7047 = vrot.slane %v6610, 1
        %v7048 = vsel %vm558, %v7046, %v7047
        %v7049 = vrot.slane %v6611, 1
        %v7050 = vsel %vm558, %v7047, %v7049
        %v7051 = vrot.slane %v6612, 1
        %v7052 = vrot.slane %v6613, 1
        %v7053 = vsel %vm558, %v7051, %v7052
        %v7054 = vrot.slane %v6614, 1
        %v7055 = vsel %vm558, %v7052, %v7054
        %v7056 = vrot.slane %v6615, 1
        %v7057 = vrot.slane %v6616, 1
        %v7058 = vsel %vm558, %v7056, %v7057
        %v7059 = vrot.slane %v6617, 1
        %v7060 = vsel %vm558, %v7057, %v7059
        %v7061 = vrot.slane %v6618, 1
        %v7062 = vrot.slane %v6619, 1
        %v7063 = vsel %vm558, %v7061, %v7062
        %v7064 = vrot.slane %v6620, 1
        %v7065 = vsel %vm558, %v7062, %v7064
        %v7066 = vrot.slane %v6621, 1
        %v7067 = vrot.slane %v6622, 1
        %v7068 = vsel %vm558, %v7066, %v7067
        %v7069 = vrot.slane %v6623, 1
        %v7070 = vsel %vm558, %v7067, %v7069
        %v7071 = vrot.slane %v6624, 1
        %v7072 = vrot.slane %v6625, 1
        %v7073 = vsel %vm558, %v7071, %v7072
        %v7074 = vrot.slane %v6626, 1
        %v7075 = vsel %vm558, %v7072, %v7074
        %v7076 = vrot.slane %v6627, 1
        %v7077 = vrot.slane %v6628, 1
        %v7078 = vsel %vm558, %v7076, %v7077
        %v7079 = vrot.slane %v6629, 1
        %v7080 = vsel %vm558, %v7077, %v7079
        %v7081 = vld [vmem:[%s6630 + $0x8] sm:$0xff]
        %v7082 = vsel %vm4167, %v7003, 0
        %v7084 = vsel %vm4167, %v7005, 0
        %v7086 = vsel %vm4167, %v7008, 0
        %v7088 = vsel %vm4167, %v7010, 0
        %v7090 = vsel %vm4167, %v7013, 0
        %v7092 = vsel %vm4167, %v7015, 0
        %v7094 = vsel %vm4167, %v7018, 0
        %v7096 = vsel %vm4167, %v7020, 0
        %v7098 = vsel %vm4167, %v7023, 0
        %v7100 = vsel %vm4167, %v7025, 0
        %v7102 = vsel %vm4167, %v7028, 0
        %v7104 = vsel %vm4167, %v7030, 0
        %v7106 = vsel %vm4167, %v7033, 0
        %v7108 = vsel %vm4167, %v7035, 0
        %v7110 = vsel %vm4167, %v7038, 0
        %v7112 = vsel %vm4167, %v7040, 0
        %v7114 = vsel %vm4167, %v7043, 0
        %v7116 = vsel %vm4167, %v7045, 0
        %v7118 = vsel %vm4167, %v7048, 0
        %v7120 = vsel %vm4167, %v7050, 0
        %v7122 = vsel %vm4167, %v7053, 0
        %v7124 = vsel %vm4167, %v7055, 0
        %v7126 = vsel %vm4167, %v7058, 0
        %v7128 = vsel %vm4167, %v7060, 0
        %v7130 = vsel %vm4167, %v7063, 0
        %v7132 = vsel %vm4167, %v7065, 0
        %v7134 = vsel %vm4167, %v7068, 0
        %v7136 = vsel %vm4167, %v7070, 0
        %v7138 = vsel %vm4167, %v7073, 0
        %v7140 = vsel %vm4167, %v7075, 0
        %v7142 = vsel %vm4167, %v7078, 0
        %v7144 = vsel %vm4167, %v7080, 0
        %7146 = vmatprep.subr.mxu0 0.0
        %7147 = vmatpush1.msra.mxu0 %v7081
        %7148 = vmatprep.subr.mxu0 0.0
        %7149 = vmatpush1.msra.mxu0 0.0
        %7150 = vmatprep.subr.mxu0 0.0
        %7151 = vmatpush1.msra.mxu0 0.0
        %7152 = vmatprep.subr.mxu0 0.0
        %7153 = vmatpush1.msra.mxu0 0.0
        %7154 = vmatprep.subr.mxu0 0.0
        %7155 = vmatpush1.msra.mxu0 0.0
        %7156 = vmatprep.subr.mxu0 0.0
        %7157 = vmatpush1.msra.mxu0 0.0
        %7158 = vmatprep.subr.mxu0 0.0
        %7159 = vmatpush1.msra.mxu0 0.0
        %7160 = vmatprep.subr.mxu0 0.0
        %7161 = vmatpush1.msra.mxu0 0.0
        %7162 = vmatprep.subr.mxu0 0.0
        %7163 = vmatpush1.msra.mxu0 0.0
        %7164 = vmatprep.subr.mxu0 0.0
        %7165 = vmatpush1.msra.mxu0 0.0
        %7166 = vmatprep.subr.mxu0 0.0
        %7167 = vmatpush1.msra.mxu0 0.0
        %7168 = vmatprep.subr.mxu0 0.0
        %7169 = vmatpush1.msra.mxu0 0.0
        %7170 = vmatprep.subr.mxu0 0.0
        %7171 = vmatpush1.msra.mxu0 0.0
        %7172 = vmatprep.subr.mxu0 0.0
        %7173 = vmatpush1.msra.mxu0 0.0
        %7174 = vmatprep.subr.mxu0 0.0
        %7175 = vmatpush1.msra.mxu0 0.0
        %7176 = vmatprep.subr.mxu0 0.0
        %7177 = vmatpush1.msra.mxu0 0.0
        %7178 = vmatprep.subr.mxu0 0.0
        %7179 = vmatpush1.msra.mxu0 0.0
        %7180 = vmatprep.subr.mxu0 0.0
        %7181 = vmatpush1.msra.mxu0 0.0
        %7182 = vmatprep.subr.mxu0 0.0
        %7183 = vmatpush1.msra.mxu0 0.0
        %7184 = vmatprep.subr.mxu0 0.0
        %7185 = vmatpush1.msra.mxu0 0.0
        %7186 = vmatprep.subr.mxu0 0.0
        %7187 = vmatpush1.msra.mxu0 0.0
        %7188 = vmatprep.subr.mxu0 0.0
        %7189 = vmatpush1.msra.mxu0 0.0
        %7190 = vmatprep.subr.mxu0 0.0
        %7191 = vmatpush1.msra.mxu0 0.0
        %7192 = vmatprep.subr.mxu0 0.0
        %7193 = vmatpush1.msra.mxu0 0.0
        %7194 = vmatprep.subr.mxu0 0.0
        %7195 = vmatpush1.msra.mxu0 0.0
        %7196 = vmatprep.subr.mxu0 0.0
        %7197 = vmatpush1.msra.mxu0 0.0
        %7198 = vmatprep.subr.mxu0 0.0
        %7199 = vmatpush1.msra.mxu0 0.0
        %7200 = vmatprep.subr.mxu0 0.0
        %7201 = vmatpush1.msra.mxu0 0.0
        %7202 = vmatprep.subr.mxu0 0.0
        %7203 = vmatpush1.msra.mxu0 0.0
        %7204 = vmatprep.subr.mxu0 0.0
        %7205 = vmatpush1.msra.mxu0 0.0
        %7206 = vmatprep.subr.mxu0 0.0
        %7207 = vmatpush1.msra.mxu0 0.0
        %7208 = vmatprep.subr.mxu0 0.0
        %7209 = vmatpush1.msra.mxu0 0.0
        %7210 = vmatprep.mubr.f32.mxu0 0.0
        %7211 = vmatmul.mubr.f32.gmra.mrb[0].mxu0 %v7082
        %v7212 = vpop.f32.mrb[0].mxu0
        %v7213 = vadd.f32 0.0, %v7212
        %v7214 = vpop.f32.mrb[0].mxu0
        %7215 = vmatprep.mubr.f32.mxu0 0.0
        %7216 = vmatmul.mubr.f32.gmra.mrb[0].mxu0 %v7084
        %v7217 = vpop.f32.mrb[0].mxu0
        %v7218 = vadd.f32 0.0, %v7217
        %v7219 = vpop.f32.mrb[0].mxu0
        %7220 = vmatprep.mubr.f32.mxu0 0.0
        %7221 = vmatmul.mubr.f32.gmra.mrb[0].mxu0 %v7086
        %v7222 = vpop.f32.mrb[0].mxu0
        %v7223 = vadd.f32 0.0, %v7222
        %v7224 = vpop.f32.mrb[0].mxu0
        %7225 = vmatprep.mubr.f32.mxu0 0.0
        %7226 = vmatmul.mubr.f32.gmra.mrb[0].mxu0 %v7088
        %v7227 = vpop.f32.mrb[0].mxu0
        %v7228 = vadd.f32 0.0, %v7227
        %v7229 = vpop.f32.mrb[0].mxu0
        %7230 = vmatprep.mubr.f32.mxu0 0.0
        %7231 = vmatmul.mubr.f32.gmra.mrb[0].mxu0 %v7090
        %v7232 = vpop.f32.mrb[0].mxu0
        %v7233 = vadd.f32 0.0, %v7232
        %v7234 = vpop.f32.mrb[0].mxu0
        %7235 = vmatprep.mubr.f32.mxu0 0.0
        %7236 = vmatmul.mubr.f32.gmra.mrb[0].mxu0 %v7092
        %v7237 = vpop.f32.mrb[0].mxu0
        %v7238 = vadd.f32 0.0, %v7237
        %v7239 = vpop.f32.mrb[0].mxu0
        %7240 = vmatprep.mubr.f32.mxu0 0.0
        %7241 = vmatmul.mubr.f32.gmra.mrb[0].mxu0 %v7094
        %v7242 = vpop.f32.mrb[0].mxu0
        %v7243 = vadd.f32 0.0, %v7242
        %v7244 = vpop.f32.mrb[0].mxu0
        %7245 = vmatprep.mubr.f32.mxu0 0.0
        %7246 = vmatmul.mubr.f32.gmra.mrb[0].mxu0 %v7096
        %v7247 = vpop.f32.mrb[0].mxu0
        %v7248 = vadd.f32 0.0, %v7247
        %v7249 = vpop.f32.mrb[0].mxu0
        %7250 = vmatprep.mubr.f32.mxu0 0.0
        %7251 = vmatmul.mubr.f32.gmra.mrb[0].mxu0 %v7098
        %v7252 = vpop.f32.mrb[0].mxu0
        %v7253 = vadd.f32 0.0, %v7252
        %v7254 = vpop.f32.mrb[0].mxu0
        %7255 = vmatprep.mubr.f32.mxu0 0.0
        %7256 = vmatmul.mubr.f32.gmra.mrb[0].mxu0 %v7100
        %v7257 = vpop.f32.mrb[0].mxu0
        %v7258 = vadd.f32 0.0, %v7257
        %v7259 = vpop.f32.mrb[0].mxu0
        %7260 = vmatprep.mubr.f32.mxu0 0.0
        %7261 = vmatmul.mubr.f32.gmra.mrb[0].mxu0 %v7102
        %v7262 = vpop.f32.mrb[0].mxu0
        %v7263 = vadd.f32 0.0, %v7262
        %v7264 = vpop.f32.mrb[0].mxu0
        %7265 = vmatprep.mubr.f32.mxu0 0.0
        %7266 = vmatmul.mubr.f32.gmra.mrb[0].mxu0 %v7104
        %v7267 = vpop.f32.mrb[0].mxu0
        %v7268 = vadd.f32 0.0, %v7267
        %v7269 = vpop.f32.mrb[0].mxu0
        %7270 = vmatprep.mubr.f32.mxu0 0.0
        %7271 = vmatmul.mubr.f32.gmra.mrb[0].mxu0 %v7106
        %v7272 = vpop.f32.mrb[0].mxu0
        %v7273 = vadd.f32 0.0, %v7272
        %v7274 = vpop.f32.mrb[0].mxu0
        %7275 = vmatprep.mubr.f32.mxu0 0.0
        %7276 = vmatmul.mubr.f32.gmra.mrb[0].mxu0 %v7108
        %v7277 = vpop.f32.mrb[0].mxu0
        %v7278 = vadd.f32 0.0, %v7277
        %v7279 = vpop.f32.mrb[0].mxu0
        %7280 = vmatprep.mubr.f32.mxu0 0.0
        %7281 = vmatmul.mubr.f32.gmra.mrb[0].mxu0 %v7110
        %v7282 = vpop.f32.mrb[0].mxu0
        %v7283 = vadd.f32 0.0, %v7282
        %v7284 = vpop.f32.mrb[0].mxu0
        %7285 = vmatprep.mubr.f32.mxu0 0.0
        %7286 = vmatmul.mubr.f32.gmra.mrb[0].mxu0 %v7112
        %v7287 = vpop.f32.mrb[0].mxu0
        %v7288 = vadd.f32 0.0, %v7287
        %v7289 = vpop.f32.mrb[0].mxu0
        %7290 = vmatprep.mubr.f32.mxu0 0.0
        %7291 = vmatmul.mubr.f32.gmra.mrb[0].mxu0 %v7114
        %v7292 = vpop.f32.mrb[0].mxu0
        %v7293 = vadd.f32 0.0, %v7292
        %v7294 = vpop.f32.mrb[0].mxu0
        %7295 = vmatprep.mubr.f32.mxu0 0.0
        %7296 = vmatmul.mubr.f32.gmra.mrb[0].mxu0 %v7116
        %v7297 = vpop.f32.mrb[0].mxu0
        %v7298 = vadd.f32 0.0, %v7297
        %v7299 = vpop.f32.mrb[0].mxu0
        %7300 = vmatprep.mubr.f32.mxu0 0.0
        %7301 = vmatmul.mubr.f32.gmra.mrb[0].mxu0 %v7118
        %v7302 = vpop.f32.mrb[0].mxu0
        %v7303 = vadd.f32 0.0, %v7302
        %v7304 = vpop.f32.mrb[0].mxu0
        %7305 = vmatprep.mubr.f32.mxu0 0.0
        %7306 = vmatmul.mubr.f32.gmra.mrb[0].mxu0 %v7120
        %v7307 = vpop.f32.mrb[0].mxu0
        %v7308 = vadd.f32 0.0, %v7307
        %v7309 = vpop.f32.mrb[0].mxu0
        %7310 = vmatprep.mubr.f32.mxu0 0.0
        %7311 = vmatmul.mubr.f32.gmra.mrb[0].mxu0 %v7122
        %v7312 = vpop.f32.mrb[0].mxu0
        %v7313 = vadd.f32 0.0, %v7312
        %v7314 = vpop.f32.mrb[0].mxu0
        %7315 = vmatprep.mubr.f32.mxu0 0.0
        %7316 = vmatmul.mubr.f32.gmra.mrb[0].mxu0 %v7124
        %v7317 = vpop.f32.mrb[0].mxu0
        %v7318 = vadd.f32 0.0, %v7317
        %v7319 = vpop.f32.mrb[0].mxu0
        %7320 = vmatprep.mubr.f32.mxu0 0.0
        %7321 = vmatmul.mubr.f32.gmra.mrb[0].mxu0 %v7126
        %v7322 = vpop.f32.mrb[0].mxu0
        %v7323 = vadd.f32 0.0, %v7322
        %v7324 = vpop.f32.mrb[0].mxu0
        %7325 = vmatprep.mubr.f32.mxu0 0.0
        %7326 = vmatmul.mubr.f32.gmra.mrb[0].mxu0 %v7128
        %v7327 = vpop.f32.mrb[0].mxu0
        %v7328 = vadd.f32 0.0, %v7327
        %v7329 = vpop.f32.mrb[0].mxu0
        %7330 = vmatprep.mubr.f32.mxu0 0.0
        %7331 = vmatmul.mubr.f32.gmra.mrb[0].mxu0 %v7130
        %v7332 = vpop.f32.mrb[0].mxu0
        %v7333 = vadd.f32 0.0, %v7332
        %v7334 = vpop.f32.mrb[0].mxu0
        %7335 = vmatprep.mubr.f32.mxu0 0.0
        %7336 = vmatmul.mubr.f32.gmra.mrb[0].mxu0 %v7132
        %v7337 = vpop.f32.mrb[0].mxu0
        %v7338 = vadd.f32 0.0, %v7337
        %v7339 = vpop.f32.mrb[0].mxu0
        %7340 = vmatprep.mubr.f32.mxu0 0.0
        %7341 = vmatmul.mubr.f32.gmra.mrb[0].mxu0 %v7134
        %v7342 = vpop.f32.mrb[0].mxu0
        %v7343 = vadd.f32 0.0, %v7342
        %v7344 = vpop.f32.mrb[0].mxu0
        %7345 = vmatprep.mubr.f32.mxu0 0.0
        %7346 = vmatmul.mubr.f32.gmra.mrb[0].mxu0 %v7136
        %v7347 = vpop.f32.mrb[0].mxu0
        %v7348 = vadd.f32 0.0, %v7347
        %v7349 = vpop.f32.mrb[0].mxu0
        %7350 = vmatprep.mubr.f32.mxu0 0.0
        %7351 = vmatmul.mubr.f32.gmra.mrb[0].mxu0 %v7138
        %v7352 = vpop.f32.mrb[0].mxu0
        %v7353 = vadd.f32 0.0, %v7352
        %v7354 = vpop.f32.mrb[0].mxu0
        %7355 = vmatprep.mubr.f32.mxu0 0.0
        %7356 = vmatmul.mubr.f32.gmra.mrb[0].mxu0 %v7140
        %v7357 = vpop.f32.mrb[0].mxu0
        %v7358 = vadd.f32 0.0, %v7357
        %v7359 = vpop.f32.mrb[0].mxu0
        %7360 = vmatprep.mubr.f32.mxu0 0.0
        %7361 = vmatmul.mubr.f32.gmra.mrb[0].mxu0 %v7142
        %v7362 = vpop.f32.mrb[0].mxu0
        %v7363 = vadd.f32 0.0, %v7362
        %v7364 = vpop.f32.mrb[0].mxu0
        %7365 = vmatprep.mubr.f32.mxu0 0.0
        %7366 = vmatmul.mubr.f32.gmra.mrb[0].mxu0 %v7144
        %v7367 = vpop.f32.mrb[0].mxu0
        %v7368 = vadd.f32 0.0, %v7367
        %v7369 = vpop.f32.mrb[0].mxu0
        %7370 = vdwg.mxu0
        %v7371 = vadd.f32 %v6953, %v7213
        %v7372 = vadd.f32 %v6954, %v7218
        %v7373 = vadd.f32 %v6955, %v7223
        %v7374 = vadd.f32 %v6956, %v7228
        %v7375 = vadd.f32 %v6957, %v7233
        %v7376 = vadd.f32 %v6958, %v7238
        %v7377 = vadd.f32 %v6959, %v7243
        %v7378 = vadd.f32 %v6960, %v7248
        %v7379 = vadd.f32 %v6961, %v7253
        %v7380 = vadd.f32 %v6962, %v7258
        %v7381 = vadd.f32 %v6963, %v7263
        %v7382 = vadd.f32 %v6964, %v7268
        %v7383 = vadd.f32 %v6965, %v7273
        %v7384 = vadd.f32 %v6966, %v7278
        %v7385 = vadd.f32 %v6967, %v7283
        %v7386 = vadd.f32 %v6968, %v7288
        %v7387 = vadd.f32 %v6969, %v7293
        %v7388 = vadd.f32 %v6970, %v7298
        %v7389 = vadd.f32 %v6971, %v7303
        %v7390 = vadd.f32 %v6972, %v7308
        %v7391 = vadd.f32 %v6973, %v7313
        %v7392 = vadd.f32 %v6974, %v7318
        %v7393 = vadd.f32 %v6975, %v7323
        %v7394 = vadd.f32 %v6976, %v7328
        %v7395 = vadd.f32 %v6977, %v7333
        %v7396 = vadd.f32 %v6978, %v7338
        %v7397 = vadd.f32 %v6979, %v7343
        %v7398 = vadd.f32 %v6980, %v7348
        %v7399 = vadd.f32 %v6981, %v7353
        %v7400 = vadd.f32 %v6982, %v7358
        %v7401 = vadd.f32 %v6983, %v7363
        %v7402 = vadd.f32 %v6984, %v7368
        %v7403 = vrot.slane %v6582, 2
        %v7404 = vrot.slane %v6583, 2
        %v7405 = vsel %vm1225, %v7403, %v7404
        %v7406 = vrot.slane %v6584, 2
        %v7407 = vsel %vm1225, %v7404, %v7406
        %v7408 = vrot.slane %v6585, 2
        %v7409 = vrot.slane %v6586, 2
        %v7410 = vsel %vm1225, %v7408, %v7409
        %v7411 = vrot.slane %v6587, 2
        %v7412 = vsel %vm1225, %v7409, %v7411
        %v7413 = vrot.slane %v6588, 2
        %v7414 = vrot.slane %v6589, 2
        %v7415 = vsel %vm1225, %v7413, %v7414
        %v7416 = vrot.slane %v6590, 2
        %v7417 = vsel %vm1225, %v7414, %v7416
        %v7418 = vrot.slane %v6591, 2
        %v7419 = vrot.slane %v6592, 2
        %v7420 = vsel %vm1225, %v7418, %v7419
        %v7421 = vrot.slane %v6593, 2
        %v7422 = vsel %vm1225, %v7419, %v7421
        %v7423 = vrot.slane %v6594, 2
        %v7424 = vrot.slane %v6595, 2
        %v7425 = vsel %vm1225, %v7423, %v7424
        %v7426 = vrot.slane %v6596, 2
        %v7427 = vsel %vm1225, %v7424, %v7426
        %v7428 = vrot.slane %v6597, 2
        %v7429 = vrot.slane %v6598, 2
        %v7430 = vsel %vm1225, %v7428, %v7429
        %v7431 = vrot.slane %v6599, 2
        %v7432 = vsel %vm1225, %v7429, %v7431
        %v7433 = vrot.slane %v6600, 2
        %v7434 = vrot.slane %v6601, 2
        %v7435 = vsel %vm1225, %v7433, %v7434
        %v7436 = vrot.slane %v6602, 2
        %v7437 = vsel %vm1225, %v7434, %v7436
        %v7438 = vrot.slane %v6603, 2
        %v7439 = vrot.slane %v6604, 2
        %v7440 = vsel %vm1225, %v7438, %v7439
        %v7441 = vrot.slane %v6605, 2
        %v7442 = vsel %vm1225, %v7439, %v7441
        %v7443 = vrot.slane %v6606, 2
        %v7444 = vrot.slane %v6607, 2
        %v7445 = vsel %vm1225, %v7443, %v7444
        %v7446 = vrot.slane %v6608, 2
        %v7447 = vsel %vm1225, %v7444, %v7446
        %v7448 = vrot.slane %v6609, 2
        %v7449 = vrot.slane %v6610, 2
        %v7450 = vsel %vm1225, %v7448, %v7449
        %v7451 = vrot.slane %v6611, 2
        %v7452 = vsel %vm1225, %v7449, %v7451
        %v7453 = vrot.slane %v6612, 2
        %v7454 = vrot.slane %v6613, 2
        %v7455 = vsel %vm1225, %v7453, %v7454
        %v7456 = vrot.slane %v6614, 2
        %v7457 = vsel %vm1225, %v7454, %v7456
        %v7458 = vrot.slane %v6615, 2
        %v7459 = vrot.slane %v6616, 2
        %v7460 = vsel %vm1225, %v7458, %v7459
        %v7461 = vrot.slane %v6617, 2
        %v7462 = vsel %vm1225, %v7459, %v7461
        %v7463 = vrot.slane %v6618, 2
        %v7464 = vrot.slane %v6619, 2
        %v7465 = vsel %vm1225, %v7463, %v7464
        %v7466 = vrot.slane %v6620, 2
        %v7467 = vsel %vm1225, %v7464, %v7466
        %v7468 = vrot.slane %v6621, 2
        %v7469 = vrot.slane %v6622, 2
        %v7470 = vsel %vm1225, %v7468, %v7469
        %v7471 = vrot.slane %v6623, 2
        %v7472 = vsel %vm1225, %v7469, %v7471
        %v7473 = vrot.slane %v6624, 2
        %v7474 = vrot.slane %v6625, 2
        %v7475 = vsel %vm1225, %v7473, %v7474
        %v7476 = vrot.slane %v6626, 2
        %v7477 = vsel %vm1225, %v7474, %v7476
        %v7478 = vrot.slane %v6627, 2
        %v7479 = vrot.slane %v6628, 2
        %v7480 = vsel %vm1225, %v7478, %v7479
        %v7481 = vrot.slane %v6629, 2
        %v7482 = vsel %vm1225, %v7479, %v7481
        %v7483 = vld [vmem:[%s6630 + $0x10] sm:$0xff]
        %v7484 = vsel %vm4167, %v7405, 0
        %v7486 = vsel %vm4167, %v7407, 0
        %v7488 = vsel %vm4167, %v7410, 0
        %v7490 = vsel %vm4167, %v7412, 0
        %v7492 = vsel %vm4167, %v7415, 0
        %v7494 = vsel %vm4167, %v7417, 0
        %v7496 = vsel %vm4167, %v7420, 0
        %v7498 = vsel %vm4167, %v7422, 0
        %v7500 = vsel %vm4167, %v7425, 0
        %v7502 = vsel %vm4167, %v7427, 0
        %v7504 = vsel %vm4167, %v7430, 0
        %v7506 = vsel %vm4167, %v7432, 0
        %v7508 = vsel %vm4167, %v7435, 0
        %v7510 = vsel %vm4167, %v7437, 0
        %v7512 = vsel %vm4167, %v7440, 0
        %v7514 = vsel %vm4167, %v7442, 0
        %v7516 = vsel %vm4167, %v7445, 0
        %v7518 = vsel %vm4167, %v7447, 0
        %v7520 = vsel %vm4167, %v7450, 0
        %v7522 = vsel %vm4167, %v7452, 0
        %v7524 = vsel %vm4167, %v7455, 0
        %v7526 = vsel %vm4167, %v7457, 0
        %v7528 = vsel %vm4167, %v7460, 0
        %v7530 = vsel %vm4167, %v7462, 0
        %v7532 = vsel %vm4167, %v7465, 0
        %v7534 = vsel %vm4167, %v7467, 0
        %v7536 = vsel %vm4167, %v7470, 0
        %v7538 = vsel %vm4167, %v7472, 0
        %v7540 = vsel %vm4167, %v7475, 0
        %v7542 = vsel %vm4167, %v7477, 0
        %v7544 = vsel %vm4167, %v7480, 0
        %v7546 = vsel %vm4167, %v7482, 0
        %7548 = vmatprep.subr.mxu0 0.0
        %7549 = vmatpush1.msra.mxu0 %v7483
        %7550 = vmatprep.subr.mxu0 0.0
        %7551 = vmatpush1.msra.mxu0 0.0
        %7552 = vmatprep.subr.mxu0 0.0
        %7553 = vmatpush1.msra.mxu0 0.0
        %7554 = vmatprep.subr.mxu0 0.0
        %7555 = vmatpush1.msra.mxu0 0.0
        %7556 = vmatprep.subr.mxu0 0.0
        %7557 = vmatpush1.msra.mxu0 0.0
        %7558 = vmatprep.subr.mxu0 0.0
        %7559 = vmatpush1.msra.mxu0 0.0
        %7560 = vmatprep.subr.mxu0 0.0
        %7561 = vmatpush1.msra.mxu0 0.0
        %7562 = vmatprep.subr.mxu0 0.0
        %7563 = vmatpush1.msra.mxu0 0.0
        %7564 = vmatprep.subr.mxu0 0.0
        %7565 = vmatpush1.msra.mxu0 0.0
        %7566 = vmatprep.subr.mxu0 0.0
        %7567 = vmatpush1.msra.mxu0 0.0
        %7568 = vmatprep.subr.mxu0 0.0
        %7569 = vmatpush1.msra.mxu0 0.0
        %7570 = vmatprep.subr.mxu0 0.0
        %7571 = vmatpush1.msra.mxu0 0.0
        %7572 = vmatprep.subr.mxu0 0.0
        %7573 = vmatpush1.msra.mxu0 0.0
        %7574 = vmatprep.subr.mxu0 0.0
        %7575 = vmatpush1.msra.mxu0 0.0
        %7576 = vmatprep.subr.mxu0 0.0
        %7577 = vmatpush1.msra.mxu0 0.0
        %7578 = vmatprep.subr.mxu0 0.0
        %7579 = vmatpush1.msra.mxu0 0.0
        %7580 = vmatprep.subr.mxu0 0.0
        %7581 = vmatpush1.msra.mxu0 0.0
        %7582 = vmatprep.subr.mxu0 0.0
        %7583 = vmatpush1.msra.mxu0 0.0
        %7584 = vmatprep.subr.mxu0 0.0
        %7585 = vmatpush1.msra.mxu0 0.0
        %7586 = vmatprep.subr.mxu0 0.0
        %7587 = vmatpush1.msra.mxu0 0.0
        %7588 = vmatprep.subr.mxu0 0.0
        %7589 = vmatpush1.msra.mxu0 0.0
        %7590 = vmatprep.subr.mxu0 0.0
        %7591 = vmatpush1.msra.mxu0 0.0
        %7592 = vmatprep.subr.mxu0 0.0
        %7593 = vmatpush1.msra.mxu0 0.0
        %7594 = vmatprep.subr.mxu0 0.0
        %7595 = vmatpush1.msra.mxu0 0.0
        %7596 = vmatprep.subr.mxu0 0.0
        %7597 = vmatpush1.msra.mxu0 0.0
        %7598 = vmatprep.subr.mxu0 0.0
        %7599 = vmatpush1.msra.mxu0 0.0
        %7600 = vmatprep.subr.mxu0 0.0
        %7601 = vmatpush1.msra.mxu0 0.0
        %7602 = vmatprep.subr.mxu0 0.0
        %7603 = vmatpush1.msra.mxu0 0.0
        %7604 = vmatprep.subr.mxu0 0.0
        %7605 = vmatpush1.msra.mxu0 0.0
        %7606 = vmatprep.subr.mxu0 0.0
        %7607 = vmatpush1.msra.mxu0 0.0
        %7608 = vmatprep.subr.mxu0 0.0
        %7609 = vmatpush1.msra.mxu0 0.0
        %7610 = vmatprep.subr.mxu0 0.0
        %7611 = vmatpush1.msra.mxu0 0.0
        %7612 = vmatprep.mubr.f32.mxu0 0.0
        %7613 = vmatmul.mubr.f32.gmra.mrb[0].mxu0 %v7484
        %v7614 = vpop.f32.mrb[0].mxu0
        %v7615 = vadd.f32 0.0, %v7614
        %v7616 = vpop.f32.mrb[0].mxu0
        %7617 = vmatprep.mubr.f32.mxu0 0.0
        %7618 = vmatmul.mubr.f32.gmra.mrb[0].mxu0 %v7486
        %v7619 = vpop.f32.mrb[0].mxu0
        %v7620 = vadd.f32 0.0, %v7619
        %v7621 = vpop.f32.mrb[0].mxu0
        %7622 = vmatprep.mubr.f32.mxu0 0.0
        %7623 = vmatmul.mubr.f32.gmra.mrb[0].mxu0 %v7488
        %v7624 = vpop.f32.mrb[0].mxu0
        %v7625 = vadd.f32 0.0, %v7624
        %v7626 = vpop.f32.mrb[0].mxu0
        %7627 = vmatprep.mubr.f32.mxu0 0.0
        %7628 = vmatmul.mubr.f32.gmra.mrb[0].mxu0 %v7490
        %v7629 = vpop.f32.mrb[0].mxu0
        %v7630 = vadd.f32 0.0, %v7629
        %v7631 = vpop.f32.mrb[0].mxu0
        %7632 = vmatprep.mubr.f32.mxu0 0.0
        %7633 = vmatmul.mubr.f32.gmra.mrb[0].mxu0 %v7492
        %v7634 = vpop.f32.mrb[0].mxu0
        %v7635 = vadd.f32 0.0, %v7634
        %v7636 = vpop.f32.mrb[0].mxu0
        %7637 = vmatprep.mubr.f32.mxu0 0.0
        %7638 = vmatmul.mubr.f32.gmra.mrb[0].mxu0 %v7494
        %v7639 = vpop.f32.mrb[0].mxu0
        %v7640 = vadd.f32 0.0, %v7639
        %v7641 = vpop.f32.mrb[0].mxu0
        %7642 = vmatprep.mubr.f32.mxu0 0.0
        %7643 = vmatmul.mubr.f32.gmra.mrb[0].mxu0 %v7496
        %v7644 = vpop.f32.mrb[0].mxu0
        %v7645 = vadd.f32 0.0, %v7644
        %v7646 = vpop.f32.mrb[0].mxu0
        %7647 = vmatprep.mubr.f32.mxu0 0.0
        %7648 = vmatmul.mubr.f32.gmra.mrb[0].mxu0 %v7498
        %v7649 = vpop.f32.mrb[0].mxu0
        %v7650 = vadd.f32 0.0, %v7649
        %v7651 = vpop.f32.mrb[0].mxu0
        %7652 = vmatprep.mubr.f32.mxu0 0.0
        %7653 = vmatmul.mubr.f32.gmra.mrb[0].mxu0 %v7500
        %v7654 = vpop.f32.mrb[0].mxu0
        %v7655 = vadd.f32 0.0, %v7654
        %v7656 = vpop.f32.mrb[0].mxu0
        %7657 = vmatprep.mubr.f32.mxu0 0.0
        %7658 = vmatmul.mubr.f32.gmra.mrb[0].mxu0 %v7502
        %v7659 = vpop.f32.mrb[0].mxu0
        %v7660 = vadd.f32 0.0, %v7659
        %v7661 = vpop.f32.mrb[0].mxu0
        %7662 = vmatprep.mubr.f32.mxu0 0.0
        %7663 = vmatmul.mubr.f32.gmra.mrb[0].mxu0 %v7504
        %v7664 = vpop.f32.mrb[0].mxu0
        %v7665 = vadd.f32 0.0, %v7664
        %v7666 = vpop.f32.mrb[0].mxu0
        %7667 = vmatprep.mubr.f32.mxu0 0.0
        %7668 = vmatmul.mubr.f32.gmra.mrb[0].mxu0 %v7506
        %v7669 = vpop.f32.mrb[0].mxu0
        %v7670 = vadd.f32 0.0, %v7669
        %v7671 = vpop.f32.mrb[0].mxu0
        %7672 = vmatprep.mubr.f32.mxu0 0.0
        %7673 = vmatmul.mubr.f32.gmra.mrb[0].mxu0 %v7508
        %v7674 = vpop.f32.mrb[0].mxu0
        %v7675 = vadd.f32 0.0, %v7674
        %v7676 = vpop.f32.mrb[0].mxu0
        %7677 = vmatprep.mubr.f32.mxu0 0.0
        %7678 = vmatmul.mubr.f32.gmra.mrb[0].mxu0 %v7510
        %v7679 = vpop.f32.mrb[0].mxu0
        %v7680 = vadd.f32 0.0, %v7679
        %v7681 = vpop.f32.mrb[0].mxu0
        %7682 = vmatprep.mubr.f32.mxu0 0.0
        %7683 = vmatmul.mubr.f32.gmra.mrb[0].mxu0 %v7512
        %v7684 = vpop.f32.mrb[0].mxu0
        %v7685 = vadd.f32 0.0, %v7684
        %v7686 = vpop.f32.mrb[0].mxu0
        %7687 = vmatprep.mubr.f32.mxu0 0.0
        %7688 = vmatmul.mubr.f32.gmra.mrb[0].mxu0 %v7514
        %v7689 = vpop.f32.mrb[0].mxu0
        %v7690 = vadd.f32 0.0, %v7689
        %v7691 = vpop.f32.mrb[0].mxu0
        %7692 = vmatprep.mubr.f32.mxu0 0.0
        %7693 = vmatmul.mubr.f32.gmra.mrb[0].mxu0 %v7516
        %v7694 = vpop.f32.mrb[0].mxu0
        %v7695 = vadd.f32 0.0, %v7694
        %v7696 = vpop.f32.mrb[0].mxu0
        %7697 = vmatprep.mubr.f32.mxu0 0.0
        %7698 = vmatmul.mubr.f32.gmra.mrb[0].mxu0 %v7518
        %v7699 = vpop.f32.mrb[0].mxu0
        %v7700 = vadd.f32 0.0, %v7699
        %v7701 = vpop.f32.mrb[0].mxu0
        %7702 = vmatprep.mubr.f32.mxu0 0.0
        %7703 = vmatmul.mubr.f32.gmra.mrb[0].mxu0 %v7520
        %v7704 = vpop.f32.mrb[0].mxu0
        %v7705 = vadd.f32 0.0, %v7704
        %v7706 = vpop.f32.mrb[0].mxu0
        %7707 = vmatprep.mubr.f32.mxu0 0.0
        %7708 = vmatmul.mubr.f32.gmra.mrb[0].mxu0 %v7522
        %v7709 = vpop.f32.mrb[0].mxu0
        %v7710 = vadd.f32 0.0, %v7709
        %v7711 = vpop.f32.mrb[0].mxu0
        %7712 = vmatprep.mubr.f32.mxu0 0.0
        %7713 = vmatmul.mubr.f32.gmra.mrb[0].mxu0 %v7524
        %v7714 = vpop.f32.mrb[0].mxu0
        %v7715 = vadd.f32 0.0, %v7714
        %v7716 = vpop.f32.mrb[0].mxu0
        %7717 = vmatprep.mubr.f32.mxu0 0.0
        %7718 = vmatmul.mubr.f32.gmra.mrb[0].mxu0 %v7526
        %v7719 = vpop.f32.mrb[0].mxu0
        %v7720 = vadd.f32 0.0, %v7719
        %v7721 = vpop.f32.mrb[0].mxu0
        %7722 = vmatprep.mubr.f32.mxu0 0.0
        %7723 = vmatmul.mubr.f32.gmra.mrb[0].mxu0 %v7528
        %v7724 = vpop.f32.mrb[0].mxu0
        %v7725 = vadd.f32 0.0, %v7724
        %v7726 = vpop.f32.mrb[0].mxu0
        %7727 = vmatprep.mubr.f32.mxu0 0.0
        %7728 = vmatmul.mubr.f32.gmra.mrb[0].mxu0 %v7530
        %v7729 = vpop.f32.mrb[0].mxu0
        %v7730 = vadd.f32 0.0, %v7729
        %v7731 = vpop.f32.mrb[0].mxu0
        %7732 = vmatprep.mubr.f32.mxu0 0.0
        %7733 = vmatmul.mubr.f32.gmra.mrb[0].mxu0 %v7532
        %v7734 = vpop.f32.mrb[0].mxu0
        %v7735 = vadd.f32 0.0, %v7734
        %v7736 = vpop.f32.mrb[0].mxu0
        %7737 = vmatprep.mubr.f32.mxu0 0.0
        %7738 = vmatmul.mubr.f32.gmra.mrb[0].mxu0 %v7534
        %v7739 = vpop.f32.mrb[0].mxu0
        %v7740 = vadd.f32 0.0, %v7739
        %v7741 = vpop.f32.mrb[0].mxu0
        %7742 = vmatprep.mubr.f32.mxu0 0.0
        %7743 = vmatmul.mubr.f32.gmra.mrb[0].mxu0 %v7536
        %v7744 = vpop.f32.mrb[0].mxu0
        %v7745 = vadd.f32 0.0, %v7744
        %v7746 = vpop.f32.mrb[0].mxu0
        %7747 = vmatprep.mubr.f32.mxu0 0.0
        %7748 = vmatmul.mubr.f32.gmra.mrb[0].mxu0 %v7538
        %v7749 = vpop.f32.mrb[0].mxu0
        %v7750 = vadd.f32 0.0, %v7749
        %v7751 = vpop.f32.mrb[0].mxu0
        %7752 = vmatprep.mubr.f32.mxu0 0.0
        %7753 = vmatmul.mubr.f32.gmra.mrb[0].mxu0 %v7540
        %v7754 = vpop.f32.mrb[0].mxu0
        %v7755 = vadd.f32 0.0, %v7754
        %v7756 = vpop.f32.mrb[0].mxu0
        %7757 = vmatprep.mubr.f32.mxu0 0.0
        %7758 = vmatmul.mubr.f32.gmra.mrb[0].mxu0 %v7542
        %v7759 = vpop.f32.mrb[0].mxu0
        %v7760 = vadd.f32 0.0, %v7759
        %v7761 = vpop.f32.mrb[0].mxu0
        %7762 = vmatprep.mubr.f32.mxu0 0.0
        %7763 = vmatmul.mubr.f32.gmra.mrb[0].mxu0 %v7544
        %v7764 = vpop.f32.mrb[0].mxu0
        %v7765 = vadd.f32 0.0, %v7764
        %v7766 = vpop.f32.mrb[0].mxu0
        %7767 = vmatprep.mubr.f32.mxu0 0.0
        %7768 = vmatmul.mubr.f32.gmra.mrb[0].mxu0 %v7546
        %v7769 = vpop.f32.mrb[0].mxu0
        %v7770 = vadd.f32 0.0, %v7769
        %v7771 = vpop.f32.mrb[0].mxu0
        %7772 = vdwg.mxu0
        %v7773 = vadd.f32 %v7371, %v7615
        %v7774 = vadd.f32 %v7372, %v7620
        %v7775 = vadd.f32 %v7373, %v7625
        %v7776 = vadd.f32 %v7374, %v7630
        %v7777 = vadd.f32 %v7375, %v7635
        %v7778 = vadd.f32 %v7376, %v7640
        %v7779 = vadd.f32 %v7377, %v7645
        %v7780 = vadd.f32 %v7378, %v7650
        %v7781 = vadd.f32 %v7379, %v7655
        %v7782 = vadd.f32 %v7380, %v7660
        %v7783 = vadd.f32 %v7381, %v7665
        %v7784 = vadd.f32 %v7382, %v7670
        %v7785 = vadd.f32 %v7383, %v7675
        %v7786 = vadd.f32 %v7384, %v7680
        %v7787 = vadd.f32 %v7385, %v7685
        %v7788 = vadd.f32 %v7386, %v7690
        %v7789 = vadd.f32 %v7387, %v7695
        %v7790 = vadd.f32 %v7388, %v7700
        %v7791 = vadd.f32 %v7389, %v7705
        %v7792 = vadd.f32 %v7390, %v7710
        %v7793 = vadd.f32 %v7391, %v7715
        %v7794 = vadd.f32 %v7392, %v7720
        %v7795 = vadd.f32 %v7393, %v7725
        %v7796 = vadd.f32 %v7394, %v7730
        %v7797 = vadd.f32 %v7395, %v7735
        %v7798 = vadd.f32 %v7396, %v7740
        %v7799 = vadd.f32 %v7397, %v7745
        %v7800 = vadd.f32 %v7398, %v7750
        %v7801 = vadd.f32 %v7399, %v7755
        %v7802 = vadd.f32 %v7400, %v7760
        %v7803 = vadd.f32 %v7401, %v7765
        %v7804 = vadd.f32 %v7402, %v7770
        %v7806 = vlaneseq
        %v7807 = vshrl.u32 %v7806, 7
        %v7808 = vsub.s32 0, %v7807
        %v7809 = vrot.slane %v460, %v7808
        %v7811 = vadd.f32 %v7773, %v7809
        %v7812 = vadd.f32 %v7774, %v7809
        %v7813 = vadd.f32 %v7775, %v7809
        %v7814 = vadd.f32 %v7776, %v7809
        %v7815 = vadd.f32 %v7777, %v7809
        %v7816 = vadd.f32 %v7778, %v7809
        %v7817 = vadd.f32 %v7779, %v7809
        %v7818 = vadd.f32 %v7780, %v7809
        %v7819 = vadd.f32 %v7781, %v7809
        %v7820 = vadd.f32 %v7782, %v7809
        %v7821 = vadd.f32 %v7783, %v7809
        %v7822 = vadd.f32 %v7784, %v7809
        %v7823 = vadd.f32 %v7785, %v7809
        %v7824 = vadd.f32 %v7786, %v7809
        %v7825 = vadd.f32 %v7787, %v7809
        %v7826 = vadd.f32 %v7788, %v7809
        %v7827 = vadd.f32 %v7789, %v7809
        %v7828 = vadd.f32 %v7790, %v7809
        %v7829 = vadd.f32 %v7791, %v7809
        %v7830 = vadd.f32 %v7792, %v7809
        %v7831 = vadd.f32 %v7793, %v7809
        %v7832 = vadd.f32 %v7794, %v7809
        %v7833 = vadd.f32 %v7795, %v7809
        %v7834 = vadd.f32 %v7796, %v7809
        %v7835 = vadd.f32 %v7797, %v7809
        %v7836 = vadd.f32 %v7798, %v7809
        %v7837 = vadd.f32 %v7799, %v7809
        %v7838 = vadd.f32 %v7800, %v7809
        %v7839 = vadd.f32 %v7801, %v7809
        %v7840 = vadd.f32 %v7802, %v7809
        %v7841 = vadd.f32 %v7803, %v7809
        %v7842 = vadd.f32 %v7804, %v7809
        %v7843 = vld [vmem:[%s425 + $0x1] sm:$0xff]
        %v7844 = vld [vmem:[%s425 + $0x9] sm:$0xff]
        %v7845 = vld [vmem:[%s425 + $0x19] sm:$0xff]
        %v7846 = vld [vmem:[%s425 + $0x21] sm:$0xff]
        %v7847 = vld [vmem:[%s425 + $0x31] sm:$0xff]
        %v7848 = vld [vmem:[%s425 + $0x39] sm:$0xff]
        %v7849 = vld [vmem:[%s425 + $0x49] sm:$0xff]
        %v7850 = vld [vmem:[%s425 + $0x51] sm:$0xff]
        %v7851 = vld [vmem:[%s425 + $0x61] sm:$0xff]
        %v7852 = vld [vmem:[%s425 + $0x69] sm:$0xff]
        %v7853 = vld [vmem:[%s425 + $0x79] sm:$0xff]
        %v7854 = vld [vmem:[%s425 + $0x81] sm:$0xff]
        %v7855 = vld [vmem:[%s425 + $0x91] sm:$0xff]
        %v7856 = vld [vmem:[%s425 + $0x99] sm:$0xff]
        %v7857 = vld [vmem:[%s425 + $0xa9] sm:$0xff]
        %v7858 = vld [vmem:[%s425 + $0xb1] sm:$0xff]
        %v7859 = vld [vmem:[%s425 + $0xc1] sm:$0xff]
        %v7860 = vld [vmem:[%s425 + $0xc9] sm:$0xff]
        %v7861 = vld [vmem:[%s425 + $0xd9] sm:$0xff]
        %v7862 = vld [vmem:[%s425 + $0xe1] sm:$0xff]
        %v7863 = vld [vmem:[%s425 + $0xf1] sm:$0xff]
        %v7864 = vld [vmem:[%s425 + $0xf9] sm:$0xff]
        %v7865 = vld [vmem:[%s425 + $0x109] sm:$0xff]
        %v7866 = vld [vmem:[%s425 + $0x111] sm:$0xff]
        %v7867 = vld [vmem:[%s425 + $0x121] sm:$0xff]
        %v7868 = vld [vmem:[%s425 + $0x129] sm:$0xff]
        %v7869 = vld [vmem:[%s425 + $0x139] sm:$0xff]
        %v7870 = vld [vmem:[%s425 + $0x141] sm:$0xff]
        %v7871 = vld [vmem:[%s425 + $0x151] sm:$0xff]
        %v7872 = vld [vmem:[%s425 + $0x159] sm:$0xff]
        %v7873 = vld [vmem:[%s425 + $0x169] sm:$0xff]
        %v7874 = vld [vmem:[%s425 + $0x171] sm:$0xff]
        %v7875 = vld [vmem:[%s5] sm:$0xf]
        %v7876 = vld [vmem:[%s6] sm:$0x1]
        %v7878 = vlaneseq
        %v7879 = vshrl.u32 %v7878, 7
        %v7880 = vsub.s32 0, %v7879
        %v7881 = vrot.slane %v7876, %v7880
        %v7884 = vsel %vm426, %v7843, 0
        %v7887 = vsel %vm426, %v7844, 0
        %v7890 = vsel %vm426, %v7845, 0
        %v7893 = vsel %vm426, %v7846, 0
        %v7896 = vsel %vm426, %v7847, 0
        %v7899 = vsel %vm426, %v7848, 0
        %v7902 = vsel %vm426, %v7849, 0
        %v7905 = vsel %vm426, %v7850, 0
        %v7908 = vsel %vm426, %v7851, 0
        %v7911 = vsel %vm426, %v7852, 0
        %v7914 = vsel %vm426, %v7853, 0
        %v7917 = vsel %vm426, %v7854, 0
        %v7920 = vsel %vm426, %v7855, 0
        %v7923 = vsel %vm426, %v7856, 0
        %v7926 = vsel %vm426, %v7857, 0
        %v7929 = vsel %vm426, %v7858, 0
        %v7932 = vsel %vm426, %v7859, 0
        %v7935 = vsel %vm426, %v7860, 0
        %v7938 = vsel %vm426, %v7861, 0
        %v7941 = vsel %vm426, %v7862, 0
        %v7944 = vsel %vm426, %v7863, 0
        %v7947 = vsel %vm426, %v7864, 0
        %v7950 = vsel %vm426, %v7865, 0
        %v7953 = vsel %vm426, %v7866, 0
        %v7956 = vsel %vm426, %v7867, 0
        %v7959 = vsel %vm426, %v7868, 0
        %v7962 = vsel %vm426, %v7869, 0
        %v7965 = vsel %vm426, %v7870, 0
        %v7968 = vsel %vm426, %v7871, 0
        %v7971 = vsel %vm426, %v7872, 0
        %v7974 = vsel %vm426, %v7873, 0
        %v7977 = vsel %vm426, %v7874, 0
        %v7980 = vsel %vm704, %v7875, 0
        %7982 = vmatprep.subr.mxu0 0.0
        %7983 = vmatpush1.msra.mxu0 %v7980
        %7984 = vmatprep.subr.mxu0 0.0
        %7985 = vmatpush1.msra.mxu0 0.0
        %7986 = vmatprep.subr.mxu0 0.0
        %7987 = vmatpush1.msra.mxu0 0.0
        %7988 = vmatprep.subr.mxu0 0.0
        %7989 = vmatpush1.msra.mxu0 0.0
        %7990 = vmatprep.subr.mxu0 0.0
        %7991 = vmatpush1.msra.mxu0 0.0
        %7992 = vmatprep.subr.mxu0 0.0
        %7993 = vmatpush1.msra.mxu0 0.0
        %7994 = vmatprep.subr.mxu0 0.0
        %7995 = vmatpush1.msra.mxu0 0.0
        %7996 = vmatprep.subr.mxu0 0.0
        %7997 = vmatpush1.msra.mxu0 0.0
        %7998 = vmatprep.subr.mxu0 0.0
        %7999 = vmatpush1.msra.mxu0 0.0
        %8000 = vmatprep.subr.mxu0 0.0
        %8001 = vmatpush1.msra.mxu0 0.0
        %8002 = vmatprep.subr.mxu0 0.0
        %8003 = vmatpush1.msra.mxu0 0.0
        %8004 = vmatprep.subr.mxu0 0.0
        %8005 = vmatpush1.msra.mxu0 0.0
        %8006 = vmatprep.subr.mxu0 0.0
        %8007 = vmatpush1.msra.mxu0 0.0
        %8008 = vmatprep.subr.mxu0 0.0
        %8009 = vmatpush1.msra.mxu0 0.0
        %8010 = vmatprep.subr.mxu0 0.0
        %8011 = vmatpush1.msra.mxu0 0.0
        %8012 = vmatprep.subr.mxu0 0.0
        %8013 = vmatpush1.msra.mxu0 0.0
        %8014 = vmatprep.subr.mxu0 0.0
        %8015 = vmatpush1.msra.mxu0 0.0
        %8016 = vmatprep.subr.mxu0 0.0
        %8017 = vmatpush1.msra.mxu0 0.0
        %8018 = vmatprep.subr.mxu0 0.0
        %8019 = vmatpush1.msra.mxu0 0.0
        %8020 = vmatprep.subr.mxu0 0.0
        %8021 = vmatpush1.msra.mxu0 0.0
        %8022 = vmatprep.subr.mxu0 0.0
        %8023 = vmatpush1.msra.mxu0 0.0
        %8024 = vmatprep.subr.mxu0 0.0
        %8025 = vmatpush1.msra.mxu0 0.0
        %8026 = vmatprep.subr.mxu0 0.0
        %8027 = vmatpush1.msra.mxu0 0.0
        %8028 = vmatprep.subr.mxu0 0.0
        %8029 = vmatpush1.msra.mxu0 0.0
        %8030 = vmatprep.subr.mxu0 0.0
        %8031 = vmatpush1.msra.mxu0 0.0
        %8032 = vmatprep.subr.mxu0 0.0
        %8033 = vmatpush1.msra.mxu0 0.0
        %8034 = vmatprep.subr.mxu0 0.0
        %8035 = vmatpush1.msra.mxu0 0.0
        %8036 = vmatprep.subr.mxu0 0.0
        %8037 = vmatpush1.msra.mxu0 0.0
        %8038 = vmatprep.subr.mxu0 0.0
        %8039 = vmatpush1.msra.mxu0 0.0
        %8040 = vmatprep.subr.mxu0 0.0
        %8041 = vmatpush1.msra.mxu0 0.0
        %8042 = vmatprep.subr.mxu0 0.0
        %8043 = vmatpush1.msra.mxu0 0.0
        %8044 = vmatprep.subr.mxu0 0.0
        %8045 = vmatpush1.msra.mxu0 0.0
        %8046 = vmatprep.mubr.f32.mxu0 0.0
        %8047 = vmatmul.mubr.f32.gmra.mrb[0].mxu0 %v7884
        %v8048 = vpop.f32.mrb[0].mxu0
        %v8049 = vadd.f32 %v7881, %v8048
        %v8050 = vpop.f32.mrb[0].mxu0
        %8051 = vmatprep.mubr.f32.mxu0 0.0
        %8052 = vmatmul.mubr.f32.gmra.mrb[0].mxu0 %v7887
        %v8053 = vpop.f32.mrb[0].mxu0
        %v8054 = vadd.f32 %v7881, %v8053
        %v8055 = vpop.f32.mrb[0].mxu0
        %8056 = vmatprep.mubr.f32.mxu0 0.0
        %8057 = vmatmul.mubr.f32.gmra.mrb[0].mxu0 %v7890
        %v8058 = vpop.f32.mrb[0].mxu0
        %v8059 = vadd.f32 %v7881, %v8058
        %v8060 = vpop.f32.mrb[0].mxu0
        %8061 = vmatprep.mubr.f32.mxu0 0.0
        %8062 = vmatmul.mubr.f32.gmra.mrb[0].mxu0 %v7893
        %v8063 = vpop.f32.mrb[0].mxu0
        %v8064 = vadd.f32 %v7881, %v8063
        %v8065 = vpop.f32.mrb[0].mxu0
        %8066 = vmatprep.mubr.f32.mxu0 0.0
        %8067 = vmatmul.mubr.f32.gmra.mrb[0].mxu0 %v7896
        %v8068 = vpop.f32.mrb[0].mxu0
        %v8069 = vadd.f32 %v7881, %v8068
        %v8070 = vpop.f32.mrb[0].mxu0
        %8071 = vmatprep.mubr.f32.mxu0 0.0
        %8072 = vmatmul.mubr.f32.gmra.mrb[0].mxu0 %v7899
        %v8073 = vpop.f32.mrb[0].mxu0
        %v8074 = vadd.f32 %v7881, %v8073
        %v8075 = vpop.f32.mrb[0].mxu0
        %8076 = vmatprep.mubr.f32.mxu0 0.0
        %8077 = vmatmul.mubr.f32.gmra.mrb[0].mxu0 %v7902
        %v8078 = vpop.f32.mrb[0].mxu0
        %v8079 = vadd.f32 %v7881, %v8078
        %v8080 = vpop.f32.mrb[0].mxu0
        %8081 = vmatprep.mubr.f32.mxu0 0.0
        %8082 = vmatmul.mubr.f32.gmra.mrb[0].mxu0 %v7905
        %v8083 = vpop.f32.mrb[0].mxu0
        %v8084 = vadd.f32 %v7881, %v8083
        %v8085 = vpop.f32.mrb[0].mxu0
        %8086 = vmatprep.mubr.f32.mxu0 0.0
        %8087 = vmatmul.mubr.f32.gmra.mrb[0].mxu0 %v7908
        %v8088 = vpop.f32.mrb[0].mxu0
        %v8089 = vadd.f32 %v7881, %v8088
        %v8090 = vpop.f32.mrb[0].mxu0
        %8091 = vmatprep.mubr.f32.mxu0 0.0
        %8092 = vmatmul.mubr.f32.gmra.mrb[0].mxu0 %v7911
        %v8093 = vpop.f32.mrb[0].mxu0
        %v8094 = vadd.f32 %v7881, %v8093
        %v8095 = vpop.f32.mrb[0].mxu0
        %8096 = vmatprep.mubr.f32.mxu0 0.0
        %8097 = vmatmul.mubr.f32.gmra.mrb[0].mxu0 %v7914
        %v8098 = vpop.f32.mrb[0].mxu0
        %v8099 = vadd.f32 %v7881, %v8098
        %v8100 = vpop.f32.mrb[0].mxu0
        %8101 = vmatprep.mubr.f32.mxu0 0.0
        %8102 = vmatmul.mubr.f32.gmra.mrb[0].mxu0 %v7917
        %v8103 = vpop.f32.mrb[0].mxu0
        %v8104 = vadd.f32 %v7881, %v8103
        %v8105 = vpop.f32.mrb[0].mxu0
        %8106 = vmatprep.mubr.f32.mxu0 0.0
        %8107 = vmatmul.mubr.f32.gmra.mrb[0].mxu0 %v7920
        %v8108 = vpop.f32.mrb[0].mxu0
        %v8109 = vadd.f32 %v7881, %v8108
        %v8110 = vpop.f32.mrb[0].mxu0
        %8111 = vmatprep.mubr.f32.mxu0 0.0
        %8112 = vmatmul.mubr.f32.gmra.mrb[0].mxu0 %v7923
        %v8113 = vpop.f32.mrb[0].mxu0
        %v8114 = vadd.f32 %v7881, %v8113
        %v8115 = vpop.f32.mrb[0].mxu0
        %8116 = vmatprep.mubr.f32.mxu0 0.0
        %8117 = vmatmul.mubr.f32.gmra.mrb[0].mxu0 %v7926
        %v8118 = vpop.f32.mrb[0].mxu0
        %v8119 = vadd.f32 %v7881, %v8118
        %v8120 = vpop.f32.mrb[0].mxu0
        %8121 = vmatprep.mubr.f32.mxu0 0.0
        %8122 = vmatmul.mubr.f32.gmra.mrb[0].mxu0 %v7929
        %v8123 = vpop.f32.mrb[0].mxu0
        %v8124 = vadd.f32 %v7881, %v8123
        %v8125 = vpop.f32.mrb[0].mxu0
        %8126 = vmatprep.mubr.f32.mxu0 0.0
        %8127 = vmatmul.mubr.f32.gmra.mrb[0].mxu0 %v7932
        %v8128 = vpop.f32.mrb[0].mxu0
        %v8129 = vadd.f32 %v7881, %v8128
        %v8130 = vpop.f32.mrb[0].mxu0
        %8131 = vmatprep.mubr.f32.mxu0 0.0
        %8132 = vmatmul.mubr.f32.gmra.mrb[0].mxu0 %v7935
        %v8133 = vpop.f32.mrb[0].mxu0
        %v8134 = vadd.f32 %v7881, %v8133
        %v8135 = vpop.f32.mrb[0].mxu0
        %8136 = vmatprep.mubr.f32.mxu0 0.0
        %8137 = vmatmul.mubr.f32.gmra.mrb[0].mxu0 %v7938
        %v8138 = vpop.f32.mrb[0].mxu0
        %v8139 = vadd.f32 %v7881, %v8138
        %v8140 = vpop.f32.mrb[0].mxu0
        %8141 = vmatprep.mubr.f32.mxu0 0.0
        %8142 = vmatmul.mubr.f32.gmra.mrb[0].mxu0 %v7941
        %v8143 = vpop.f32.mrb[0].mxu0
        %v8144 = vadd.f32 %v7881, %v8143
        %v8145 = vpop.f32.mrb[0].mxu0
        %8146 = vmatprep.mubr.f32.mxu0 0.0
        %8147 = vmatmul.mubr.f32.gmra.mrb[0].mxu0 %v7944
        %v8148 = vpop.f32.mrb[0].mxu0
        %v8149 = vadd.f32 %v7881, %v8148
        %v8150 = vpop.f32.mrb[0].mxu0
        %8151 = vmatprep.mubr.f32.mxu0 0.0
        %8152 = vmatmul.mubr.f32.gmra.mrb[0].mxu0 %v7947
        %v8153 = vpop.f32.mrb[0].mxu0
        %v8154 = vadd.f32 %v7881, %v8153
        %v8155 = vpop.f32.mrb[0].mxu0
        %8156 = vmatprep.mubr.f32.mxu0 0.0
        %8157 = vmatmul.mubr.f32.gmra.mrb[0].mxu0 %v7950
        %v8158 = vpop.f32.mrb[0].mxu0
        %v8159 = vadd.f32 %v7881, %v8158
        %v8160 = vpop.f32.mrb[0].mxu0
        %8161 = vmatprep.mubr.f32.mxu0 0.0
        %8162 = vmatmul.mubr.f32.gmra.mrb[0].mxu0 %v7953
        %v8163 = vpop.f32.mrb[0].mxu0
        %v8164 = vadd.f32 %v7881, %v8163
        %v8165 = vpop.f32.mrb[0].mxu0
        %8166 = vmatprep.mubr.f32.mxu0 0.0
        %8167 = vmatmul.mubr.f32.gmra.mrb[0].mxu0 %v7956
        %v8168 = vpop.f32.mrb[0].mxu0
        %v8169 = vadd.f32 %v7881, %v8168
        %v8170 = vpop.f32.mrb[0].mxu0
        %8171 = vmatprep.mubr.f32.mxu0 0.0
        %8172 = vmatmul.mubr.f32.gmra.mrb[0].mxu0 %v7959
        %v8173 = vpop.f32.mrb[0].mxu0
        %v8174 = vadd.f32 %v7881, %v8173
        %v8175 = vpop.f32.mrb[0].mxu0
        %8176 = vmatprep.mubr.f32.mxu0 0.0
        %8177 = vmatmul.mubr.f32.gmra.mrb[0].mxu0 %v7962
        %v8178 = vpop.f32.mrb[0].mxu0
        %v8179 = vadd.f32 %v7881, %v8178
        %v8180 = vpop.f32.mrb[0].mxu0
        %8181 = vmatprep.mubr.f32.mxu0 0.0
        %8182 = vmatmul.mubr.f32.gmra.mrb[0].mxu0 %v7965
        %v8183 = vpop.f32.mrb[0].mxu0
        %v8184 = vadd.f32 %v7881, %v8183
        %v8185 = vpop.f32.mrb[0].mxu0
        %8186 = vmatprep.mubr.f32.mxu0 0.0
        %8187 = vmatmul.mubr.f32.gmra.mrb[0].mxu0 %v7968
        %v8188 = vpop.f32.mrb[0].mxu0
        %v8189 = vadd.f32 %v7881, %v8188
        %v8190 = vpop.f32.mrb[0].mxu0
        %8191 = vmatprep.mubr.f32.mxu0 0.0
        %8192 = vmatmul.mubr.f32.gmra.mrb[0].mxu0 %v7971
        %v8193 = vpop.f32.mrb[0].mxu0
        %v8194 = vadd.f32 %v7881, %v8193
        %v8195 = vpop.f32.mrb[0].mxu0
        %8196 = vmatprep.mubr.f32.mxu0 0.0
        %8197 = vmatmul.mubr.f32.gmra.mrb[0].mxu0 %v7974
        %v8198 = vpop.f32.mrb[0].mxu0
        %v8199 = vadd.f32 %v7881, %v8198
        %v8200 = vpop.f32.mrb[0].mxu0
        %8201 = vmatprep.mubr.f32.mxu0 0.0
        %8202 = vmatmul.mubr.f32.gmra.mrb[0].mxu0 %v7977
        %v8203 = vpop.f32.mrb[0].mxu0
        %v8204 = vadd.f32 %v7881, %v8203
        %v8205 = vpop.f32.mrb[0].mxu0
        %8206 = vdwg.mxu0
        %v8207 = vadd.f32 %v7811, %v8049
        %v8208 = vadd.f32 %v7812, %v8054
        %v8209 = vadd.f32 %v7813, %v8059
        %v8210 = vadd.f32 %v7814, %v8064
        %v8211 = vadd.f32 %v7815, %v8069
        %v8212 = vadd.f32 %v7816, %v8074
        %v8213 = vadd.f32 %v7817, %v8079
        %v8214 = vadd.f32 %v7818, %v8084
        %v8215 = vadd.f32 %v7819, %v8089
        %v8216 = vadd.f32 %v7820, %v8094
        %v8217 = vadd.f32 %v7821, %v8099
        %v8218 = vadd.f32 %v7822, %v8104
        %v8219 = vadd.f32 %v7823, %v8109
        %v8220 = vadd.f32 %v7824, %v8114
        %v8221 = vadd.f32 %v7825, %v8119
        %v8222 = vadd.f32 %v7826, %v8124
        %v8223 = vadd.f32 %v7827, %v8129
        %v8224 = vadd.f32 %v7828, %v8134
        %v8225 = vadd.f32 %v7829, %v8139
        %v8226 = vadd.f32 %v7830, %v8144
        %v8227 = vadd.f32 %v7831, %v8149
        %v8228 = vadd.f32 %v7832, %v8154
        %v8229 = vadd.f32 %v7833, %v8159
        %v8230 = vadd.f32 %v7834, %v8164
        %v8231 = vadd.f32 %v7835, %v8169
        %v8232 = vadd.f32 %v7836, %v8174
        %v8233 = vadd.f32 %v7837, %v8179
        %v8234 = vadd.f32 %v7838, %v8184
        %v8235 = vadd.f32 %v7839, %v8189
        %v8236 = vadd.f32 %v7840, %v8194
        %v8237 = vadd.f32 %v7841, %v8199
        %v8238 = vadd.f32 %v7842, %v8204
        %v8239 = vmax.f32 %v8207, 0.0
        %v8240 = vmax.f32 %v8208, 0.0
        %v8241 = vmax.f32 %v8209, 0.0
        %v8242 = vmax.f32 %v8210, 0.0
        %v8243 = vmax.f32 %v8211, 0.0
        %v8244 = vmax.f32 %v8212, 0.0
        %v8245 = vmax.f32 %v8213, 0.0
        %v8246 = vmax.f32 %v8214, 0.0
        %v8247 = vmax.f32 %v8215, 0.0
        %v8248 = vmax.f32 %v8216, 0.0
        %v8249 = vmax.f32 %v8217, 0.0
        %v8250 = vmax.f32 %v8218, 0.0
        %v8251 = vmax.f32 %v8219, 0.0
        %v8252 = vmax.f32 %v8220, 0.0
        %v8253 = vmax.f32 %v8221, 0.0
        %v8254 = vmax.f32 %v8222, 0.0
        %v8255 = vmax.f32 %v8223, 0.0
        %v8256 = vmax.f32 %v8224, 0.0
        %v8257 = vmax.f32 %v8225, 0.0
        %v8258 = vmax.f32 %v8226, 0.0
        %v8259 = vmax.f32 %v8227, 0.0
        %v8260 = vmax.f32 %v8228, 0.0
        %v8261 = vmax.f32 %v8229, 0.0
        %v8262 = vmax.f32 %v8230, 0.0
        %v8263 = vmax.f32 %v8231, 0.0
        %v8264 = vmax.f32 %v8232, 0.0
        %v8265 = vmax.f32 %v8233, 0.0
        %v8266 = vmax.f32 %v8234, 0.0
        %v8267 = vmax.f32 %v8235, 0.0
        %v8268 = vmax.f32 %v8236, 0.0
        %v8269 = vmax.f32 %v8237, 0.0
        %v8270 = vmax.f32 %v8238, 0.0
        %8271 = vxpose.xlu0.b32.start [1/16] %v8239, 128
        %8272 = vxpose.xlu0.b32.cont [2/16] %v8240, 128
        %8273 = vxpose.xlu0.b32.cont [3/16] %v8241, 128
        %8274 = vxpose.xlu0.b32.cont [4/16] %v8242, 128
        %8275 = vxpose.xlu0.b32.cont [5/16] %v8243, 128
        %8276 = vxpose.xlu0.b32.cont [6/16] %v8244, 128
        %8277 = vxpose.xlu0.b32.cont [7/16] %v8245, 128
        %8278 = vxpose.xlu0.b32.cont [8/16] %v8246, 128
        %8279 = vxpose.xlu0.b32.cont [9/16] %v8247, 128
        %8280 = vxpose.xlu0.b32.cont [10/16] %v8248, 128
        %8281 = vxpose.xlu0.b32.cont [11/16] %v8249, 128
        %8282 = vxpose.xlu0.b32.cont [12/16] %v8250, 128
        %8283 = vxpose.xlu0.b32.cont [13/16] %v8251, 128
        %8284 = vxpose.xlu0.b32.cont [14/16] %v8252, 128
        %8285 = vxpose.xlu0.b32.cont [15/16] %v8253, 128
        %8286 = vxpose.xlu0.b32.end [16/16] %v8254, 128
        %v8287 = vpop.trf.xlu0
        %v8288 = vpop.trf.xlu0
        %v8289 = vpop.trf.xlu0
        %v8290 = vpop.trf.xlu0
        %v8291 = vpop.trf.xlu0
        %v8292 = vpop.trf.xlu0
        %v8293 = vpop.trf.xlu0
        %v8294 = vpop.trf.xlu0
        %v8295 = vpop.trf.xlu0
        %v8296 = vpop.trf.xlu0
        %v8297 = vpop.trf.xlu0
        %v8298 = vpop.trf.xlu0
        %v8299 = vpop.trf.xlu0
        %v8300 = vpop.trf.xlu0
        %v8301 = vpop.trf.xlu0
        %v8302 = vpop.trf.xlu0
        %8303 = vxpose.xlu0.b32.start [1/16] %v8255, 128
        %8304 = vxpose.xlu0.b32.cont [2/16] %v8256, 128
        %8305 = vxpose.xlu0.b32.cont [3/16] %v8257, 128
        %8306 = vxpose.xlu0.b32.cont [4/16] %v8258, 128
        %8307 = vxpose.xlu0.b32.cont [5/16] %v8259, 128
        %8308 = vxpose.xlu0.b32.cont [6/16] %v8260, 128
        %8309 = vxpose.xlu0.b32.cont [7/16] %v8261, 128
        %8310 = vxpose.xlu0.b32.cont [8/16] %v8262, 128
        %8311 = vxpose.xlu0.b32.cont [9/16] %v8263, 128
        %8312 = vxpose.xlu0.b32.cont [10/16] %v8264, 128
        %8313 = vxpose.xlu0.b32.cont [11/16] %v8265, 128
        %8314 = vxpose.xlu0.b32.cont [12/16] %v8266, 128
        %8315 = vxpose.xlu0.b32.cont [13/16] %v8267, 128
        %8316 = vxpose.xlu0.b32.cont [14/16] %v8268, 128
        %8317 = vxpose.xlu0.b32.cont [15/16] %v8269, 128
        %8318 = vxpose.xlu0.b32.end [16/16] %v8270, 128
        %v8319 = vpop.trf.xlu0
        %v8320 = vpop.trf.xlu0
        %v8321 = vpop.trf.xlu0
        %v8322 = vpop.trf.xlu0
        %v8323 = vpop.trf.xlu0
        %v8324 = vpop.trf.xlu0
        %v8325 = vpop.trf.xlu0
        %v8326 = vpop.trf.xlu0
        %v8327 = vpop.trf.xlu0
        %v8328 = vpop.trf.xlu0
        %v8329 = vpop.trf.xlu0
        %v8330 = vpop.trf.xlu0
        %v8331 = vpop.trf.xlu0
        %v8332 = vpop.trf.xlu0
        %v8333 = vpop.trf.xlu0
        %v8334 = vpop.trf.xlu0
        %8335 = vst [vmem:[%s271] sm:$0xff] %v8287
        %8336 = vst [vmem:[%s271 + $0x8] sm:$0xff] %v8319
        %s8337 = sand.u32 %s181, 1
        %s8338 = scalar_lea.sflag [#allocation5], %s8337
        %s8339 = sand.u32 %s181, 1
        %s8340 = smul.addr %s8339, 16
        %s8341 = scalar_lea.vmem [#allocation4], %s8340
        // Predicated region
        $region53: #{tpu_custom_call.1} parent=47 // pred_check
          %p8342 = pneg %p191
        $region54: #{tpu_custom_call.1} parent=47 // pred_check_branch
          %8344 = sbr.rel (%p8342) target = $region56
        $region55: #{tpu_custom_call.1} parent=47 // pred_region
          %s8346 = ssub.s32 256, 256
          %8347 = vsyncadd %s8338, %s8346
          %s8348 = smul.addr %s21, 2
          %s8349 = smul.addr %s8348, 128
          %s8350 = scalar_lea.hbm %s7, %s8349
          %s8352 = sshll.u32 %s8341, 4
          %s8353 = int_to_ptr.vmem [resolvable:$true] %s8352
          %8355 = dma.vmem_to_hbm [thread:$0]  %s8353, 256, %s8350, %s8338
        $region56: #{tpu_custom_call.1} parent=47 // pred_fallthru
          _
      $region48: #{tpu_custom_call.1} parent=5 // pred_fallthru
        _
      %p8356 = scmp.le.s32.totalorder 2, %s16
      // Predicated region
      $region57: #{tpu_custom_call.1} parent=5 // pred_check
        %p8357 = pneg %p8356
      $region58: #{tpu_custom_call.1} parent=5 // pred_check_branch
        %8359 = sbr.rel (%p8357) target = $region60
      $region59: #{tpu_custom_call.1} parent=5 // pred_region
        %s8360 = ssub.s32 %s16, 2
        // Predicated region
        $region61: #{tpu_custom_call.1} parent=59 // pred_check
          %p8361 = pneg %p197
        $region62: #{tpu_custom_call.1} parent=59 // pred_check_branch
          %8363 = sbr.rel (%p8361) target = $region64
        $region63: #{tpu_custom_call.1} parent=59 // pred_region
          %s8364 = sand.u32 %s182, 1
          %s8365 = scalar_lea.sflag [#allocation5], %s8364
          %s8366 = sand.u32 %s182, 1
          %s8367 = smul.addr %s8366, 16
          %s8368 = scalar_lea.vmem [#allocation4], %s8367
          %8369 = dma.done %s8365, 256
        $region64: #{tpu_custom_call.1} parent=59 // pred_fallthru
          _
      $region60: #{tpu_custom_call.1} parent=5 // pred_fallthru
        _
    $region6: #{tpu_custom_call.1} parent=1 // loop_footer
      %s20 = sadd.s32 1, %s16
    $region7: #{tpu_custom_call.1} parent=1 // loop_footer_branch
      %15 = sbr.rel target = $region3
    $region8: #{tpu_custom_call.1} parent=1 // loop_exit
      _
    %8370 = vsyncpa [#allocation5], 1
    %s8371 = scalar_lea.sflag [#allocation5], 1
    %8372 = vsyncpa %s8371, 1

</llo_original>
